<compile_context>
chip_gen: v5e
topology: v5e:2x2
jax: 0.10.0
libtpu: 0.0.40
codegen_flags: <defaults>
</compile_context>

<pallas_src>
import functools

import jax
import jax.numpy as jnp
from jax.experimental import pallas as pl
from jax.experimental.pallas import tpu as pltpu


# ----------------------------------------------------------------------------
# helpers
# ----------------------------------------------------------------------------

def _cparams(n_axes):
    # All grid axes here are independent -> "parallel" (sharded across TCs on v7x,
    # ignored on v5e/v6e).  Explicit VMEM limit keeps tiling valid on v7x's 64 MiB.
    return pltpu.CompilerParams(
        dimension_semantics=("parallel",) * n_axes,
        vmem_limit_bytes=32 * 1024 * 1024,
    )


def _row_tile(m):
    # Row tile for (M, C) slabs.  Small demo shapes -> capped at 256 rows; for
    # production sizes this would be swept up to 512-2048 within the VMEM budget.
    for t in (256, 128, 64, 32, 16, 8):
        if m % t == 0:
            return t
    return m


# ----------------------------------------------------------------------------
# Pallas kernels
# ----------------------------------------------------------------------------

def _head_proj_kernel(x_ref, s1_ref, b1_ref, w1_ref, s2_ref, b2_ref, w4_ref,
                      act_ref, res_ref):
    # a1 = relu(bn1(x)); act2 = relu(bn2(a1 @ w1)); res = a1 @ w4  (shortcut conv)
    a1 = jnp.maximum(x_ref[...] * s1_ref[...] + b1_ref[...], 0.0)
    y = jnp.dot(a1, w1_ref[...], preferred_element_type=jnp.float32)
    act_ref[...] = jnp.maximum(y * s2_ref[...] + b2_ref[...], 0.0)
    res_ref[...] = jnp.dot(a1, w4_ref[...], preferred_element_type=jnp.float32)


def _head_id_kernel(x_ref, s1_ref, b1_ref, w1_ref, s2_ref, b2_ref, act_ref):
    # Same as above without the shortcut projection (cin == cout -> residual = x).
    a1 = jnp.maximum(x_ref[...] * s1_ref[...] + b1_ref[...], 0.0)
    y = jnp.dot(a1, w1_ref[...], preferred_element_type=jnp.float32)
    act_ref[...] = jnp.maximum(y * s2_ref[...] + b2_ref[...], 0.0)


def _make_conv_tail_kernel(h, w):
    """3x3 conv (as 3 accumulated matmuls over row-shifted slabs of the
    column-shift-concatenated activation) + relu(bn3) + 1x1 conv + residual add."""
    hw = h * w

    def kernel(xc_ref, w2_ref, s3_ref, b3_ref, w3_ref, res_ref, o_ref):
        cmid = w3_ref.shape[0]
        acc = jnp.zeros((hw, cmid), jnp.float32)
        for dh in range(3):
            # xc_ref block is (1, (h+2)*w, 3*cmid); rows [dh*w, dh*w + h*w) are the
            # padded rows dh..dh+h-1 for all w output columns (aligned sublane slice).
            slab = xc_ref[0, pl.ds(dh * w, hw), :]
            acc = acc + jnp.dot(slab, w2_ref[dh], preferred_element_type=jnp.float32)
        a3 = jnp.maximum(acc * s3_ref[...] + b3_ref[...], 0.0)
        o_ref[0] = (jnp.dot(a3, w3_ref[...], preferred_element_type=jnp.float32)
                    + res_ref[0])

    return kernel


def _make_pool_pass_kernel(n_out):
    """One separable max-pool pass: max over 3 taps at stride 2 along the leading
    spatial dim of the block (the other spatial dim was moved off-axis by XLA)."""

    def kernel(x_ref, o_ref):
        x = x_ref[0]                                   # (pad_len, K, C)
        k, c = x.shape[1], x.shape[2]

        def tap(dh):
            s = x[dh:dh + 2 * n_out]                   # leading-dim slice (safe)
            return s.reshape(n_out, 2, k, c)[:, 0]     # stride-2 subsample via split

        o_ref[0] = jnp.maximum(jnp.maximum(tap(0), tap(1)), tap(2))

    return kernel


def _upsample_add_kernel(w_ref, x_ref, skip_ref, o_ref):
    # out = Wbilinear @ x_small_flat + skip   (align_corners=True bilinear as a matmul)
    o_ref[0] = (jnp.dot(w_ref[...], x_ref[0], preferred_element_type=jnp.float32)
                + skip_ref[0])


def _mask_apply_kernel(x_ref, t_ref, s1_ref, b1_ref, w1_ref, s2_ref, b2_ref, w2_ref,
                       o_ref):
    # softmax_block2 fused:  (1 + sigmoid(conv1x1(relu(bn(conv1x1(relu(bn(x)))))))) * trunk
    h = jnp.maximum(x_ref[...] * s1_ref[...] + b1_ref[...], 0.0)
    h = jnp.dot(h, w1_ref[...], preferred_element_type=jnp.float32)
    h = jnp.maximum(h * s2_ref[...] + b2_ref[...], 0.0)
    h = jnp.dot(h, w2_ref[...], preferred_element_type=jnp.float32)
    o_ref[...] = (1.0 + jax.nn.sigmoid(h)) * t_ref[...]


# ----------------------------------------------------------------------------
# ResidualBlock
# ----------------------------------------------------------------------------

def _residual_block(x_nhwc, p):
    n, h, w, cin = x_nhwc.shape
    cout = p["cout"]
    cmid = cout // 4
    m = n * h * w
    xf = x_nhwc.reshape(m, cin)

    tm = _row_tile(m)
    grid = (m // tm,)
    cp = _cparams(1)
    s1, b1 = p["bn1"]
    s2, b2 = p["bn2"]
    s3, b3 = p["bn3"]

    row = lambda bs: pl.BlockSpec(bs, lambda i: (i, 0))
    cst = lambda bs: pl.BlockSpec(bs, lambda i: (0, 0))

    # ---- head: relu(bn1) -> 1x1 conv -> relu(bn2)  (+ shortcut conv) --------------
    if "w4" in p:
        act2, res = pl.pallas_call(
            _head_proj_kernel,
            out_shape=(jax.ShapeDtypeStruct((m, cmid), jnp.float32),
                       jax.ShapeDtypeStruct((m, cout), jnp.float32)),
            grid=grid,
            in_specs=[row((tm, cin)), cst((1, cin)), cst((1, cin)),
                      cst((cin, cmid)), cst((1, cmid)), cst((1, cmid)),
                      cst((cin, cout))],
            out_specs=(row((tm, cmid)), row((tm, cout))),
            compiler_params=cp,
        )(xf, s1, b1, p["w1"], s2, b2, p["w4"])
    else:
        act2 = pl.pallas_call(
            _head_id_kernel,
            out_shape=jax.ShapeDtypeStruct((m, cmid), jnp.float32),
            grid=grid,
            in_specs=[row((tm, cin)), cst((1, cin)), cst((1, cin)),
                      cst((cin, cmid)), cst((1, cmid)), cst((1, cmid))],
            out_specs=row((tm, cmid)),
            compiler_params=cp,
        )(xf, s1, b1, p["w1"], s2, b2)
        res = xf                                       # identity shortcut

    # ---- 3x3 conv + relu(bn3) + 1x1 conv + residual add ---------------------------
    # Layout glue (XLA): zero-pad the post-relu activation and build the 3-way
    # column-shifted concat (3x the small mid-channel tensor, instead of 9x im2col).
    a2 = act2.reshape(n, h, w, cmid)
    a2p = jnp.pad(a2, ((0, 0), (1, 1), (1, 1), (0, 0)))
    xcat = jnp.concatenate(
        [a2p[:, :, 0:w, :], a2p[:, :, 1:w + 1, :], a2p[:, :, 2:w + 2, :]], axis=-1)
    xcat = xcat.reshape(n, (h + 2) * w, 3 * cmid)
    res3 = res.reshape(n, h * w, cout)

    out = pl.pallas_call(
        _make_conv_tail_kernel(h, w),
        out_shape=jax.ShapeDtypeStruct((n, h * w, cout), jnp.float32),
        grid=(n,),
        in_specs=[
            pl.BlockSpec((1, (h + 2) * w, 3 * cmid), lambda i: (i, 0, 0)),
            pl.BlockSpec((3, 3 * cmid, cmid), lambda i: (0, 0, 0)),
            pl.BlockSpec((1, cmid), lambda i: (0, 0)),
            pl.BlockSpec((1, cmid), lambda i: (0, 0)),
            pl.BlockSpec((cmid, cout), lambda i: (0, 0)),
            pl.BlockSpec((1, h * w, cout), lambda i: (i, 0, 0)),
        ],
        out_specs=pl.BlockSpec((1, h * w, cout), lambda i: (i, 0, 0)),
        compiler_params=cp,
    )(xcat, p["w2"], s3, b3, p["w3"], res3)
    return out.reshape(n, h, w, cout)


# ----------------------------------------------------------------------------
# MaxPool2d(kernel=3, stride=2, padding=1) — separable, two in-kernel passes
# ----------------------------------------------------------------------------

def _maxpool_3x3_s2_p1(x_nhwc):
    n, h, w, c = x_nhwc.shape
    ho = (h - 1) // 2 + 1
    wo = (w - 1) // 2 + 1
    cp = _cparams(1)

    # pass 1: reduce rows (pad rows with -inf; extra alloc row only eases slicing)
    hp = 2 * ho + 2
    xp = jnp.pad(x_nhwc, ((0, 0), (1, hp - h - 1), (0, 0), (0, 0)),
                 constant_values=-jnp.inf)
    y = pl.pallas_call(
        _make_pool_pass_kernel(ho),
        out_shape=jax.ShapeDtypeStruct((n, ho, w, c), jnp.float32),
        grid=(n,),
        in_specs=[pl.BlockSpec((1, hp, w, c), lambda i: (i, 0, 0, 0))],
        out_specs=pl.BlockSpec((1, ho, w, c), lambda i: (i, 0, 0, 0)),
        compiler_params=cp,
    )(xp)

    # pass 2: reduce cols (transpose is XLA layout plumbing)
    yt = jnp.transpose(y, (0, 2, 1, 3))                # (n, w, ho, c)
    wp = 2 * wo + 2
    ytp = jnp.pad(yt, ((0, 0), (1, wp - w - 1), (0, 0), (0, 0)),
                  constant_values=-jnp.inf)
    z = pl.pallas_call(
        _make_pool_pass_kernel(wo),
        out_shape=jax.ShapeDtypeStruct((n, wo, ho, c), jnp.float32),
        grid=(n,),
        in_specs=[pl.BlockSpec((1, wp, ho, c), lambda i: (i, 0, 0, 0))],
        out_specs=pl.BlockSpec((1, wo, ho, c), lambda i: (i, 0, 0, 0)),
        compiler_params=cp,
    )(ytp)
    return jnp.transpose(z, (0, 2, 1, 3))              # (n, ho, wo, c)


# ----------------------------------------------------------------------------
# UpsamplingBilinear2d(size=skip spatial, align_corners=True) + skip add
# ----------------------------------------------------------------------------

def _bilinear_matrix(src, dst):
    if dst == 1:
        t = jnp.zeros((1,), jnp.float32)
    else:
        t = jnp.arange(dst, dtype=jnp.float32) * ((src - 1) / (dst - 1))
    i0 = jnp.clip(jnp.floor(t).astype(jnp.int32), 0, src - 1)
    i1 = jnp.minimum(i0 + 1, src - 1)
    f = t - i0.astype(jnp.float32)
    m0 = jax.nn.one_hot(i0, src, dtype=jnp.float32) * (1.0 - f)[:, None]
    m1 = jax.nn.one_hot(i1, src, dtype=jnp.float32) * f[:, None]
    return m0 + m1                                     # (dst, src)


def _upsample_bilinear_add(x_small, x_skip):
    n, hs, ws, c = x_small.shape
    _, ht, wt, _ = x_skip.shape
    # Interpolation as a small resident matrix (ht*wt, hs*ws); no per-pixel weight maps.
    wb = jnp.kron(_bilinear_matrix(hs, ht), _bilinear_matrix(ws, wt))
    xs = x_small.reshape(n, hs * ws, c)
    sk = x_skip.reshape(n, ht * wt, c)
    out = pl.pallas_call(
        _upsample_add_kernel,
        out_shape=jax.ShapeDtypeStruct((n, ht * wt, c), jnp.float32),
        grid=(n,),
        in_specs=[pl.BlockSpec((ht * wt, hs * ws), lambda i: (0, 0)),
                  pl.BlockSpec((1, hs * ws, c), lambda i: (i, 0, 0)),
                  pl.BlockSpec((1, ht * wt, c), lambda i: (i, 0, 0))],
        out_specs=pl.BlockSpec((1, ht * wt, c), lambda i: (i, 0, 0)),
        compiler_params=_cparams(1),
    )(wb, xs, sk)
    return out.reshape(n, ht, wt, c)


# ----------------------------------------------------------------------------
# softmax_block2 + (1 + mask) * trunk  (fused, row-tiled)
# ----------------------------------------------------------------------------

def _mask_apply(x_interp, trunk, params):
    n, h, w, c = x_interp.shape
    m = n * h * w
    tm = _row_tile(m)
    s1, b1 = params["sm2_bn1"]
    s2, b2 = params["sm2_bn2"]
    out = pl.pallas_call(
        _mask_apply_kernel,
        out_shape=jax.ShapeDtypeStruct((m, c), jnp.float32),
        grid=(m // tm,),
        in_specs=[pl.BlockSpec((tm, c), lambda i: (i, 0)),
                  pl.BlockSpec((tm, c), lambda i: (i, 0)),
                  pl.BlockSpec((1, c), lambda i: (0, 0)),
                  pl.BlockSpec((1, c), lambda i: (0, 0)),
                  pl.BlockSpec((c, c), lambda i: (0, 0)),
                  pl.BlockSpec((1, c), lambda i: (0, 0)),
                  pl.BlockSpec((1, c), lambda i: (0, 0)),
                  pl.BlockSpec((c, c), lambda i: (0, 0))],
        out_specs=pl.BlockSpec((tm, c), lambda i: (i, 0)),
        compiler_params=_cparams(1),
    )(x_interp.reshape(m, c), trunk.reshape(m, c),
      s1, b1, params["sm2_w1"], s2, b2, params["sm2_w2"])
    return out.reshape(n, h, w, c)


# ----------------------------------------------------------------------------
# Module forward
# ----------------------------------------------------------------------------

def attention_module_0(x_nchw, params):
    x = jnp.transpose(x_nchw, (0, 2, 3, 1)).astype(jnp.float32)   # NCHW -> NHWC

    x = _residual_block(x, params["first"])                       # first_block
    out_trunk = _residual_block(_residual_block(x, params["trunk1"]), params["trunk2"])

    out_mpool1 = _maxpool_3x3_s2_p1(x)                            # mpool1
    out_softmax1 = _residual_block(
        _residual_block(out_mpool1, params["sm1a"]), params["sm1b"])

    out_interp1 = _upsample_bilinear_add(out_softmax1, x)         # interpolation1 + x
    out = _mask_apply(out_interp1, out_trunk, params)             # (1 + softmax2) * trunk
    out_last = _residual_block(out, params["last"])               # last_block
    return jnp.transpose(out_last, (0, 3, 1, 2))                  # back to NCHW


# ----------------------------------------------------------------------------
# Deterministic parameter initialization
# ----------------------------------------------------------------------------

def _init_bn(key, c):
    k1, k2, k3, k4 = jax.random.split(key, 4)
    gamma = jax.random.uniform(k1, (c,), jnp.float32, 0.5, 1.5)
    beta = 0.1 * jax.random.normal(k2, (c,), jnp.float32)
    mean = 0.1 * jax.random.normal(k3, (c,), jnp.float32)
    var = jax.random.uniform(k4, (c,), jnp.float32, 0.5, 1.5)
    scale = gamma / jnp.sqrt(var + 1e-5)
    shift = beta - mean * scale
    return scale.reshape(1, c), shift.reshape(1, c)


def _init_w(key, shape):
    return 0.1 * jax.random.normal(key, shape, jnp.float32)


def _init_residual_block(key, cin, cout):
    cmid = cout // 4
    ks = jax.random.split(key, 7)
    p = {
        "cout": cout,
        "bn1": _init_bn(ks[0], cin),
        "w1": _init_w(ks[1], (cin, cmid)),              # 1x1 conv  (Cin -> Cmid)
        "bn2": _init_bn(ks[2], cmid),
        "w2": _init_w(ks[3], (3, 3 * cmid, cmid)),      # 3x3 conv: per-dh (3*Cmid, Cmid)
        "bn3": _init_bn(ks[4], cmid),
        "w3": _init_w(ks[5], (cmid, cout)),             # 1x1 conv  (Cmid -> Cout)
    }
    if cin != cout:
        p["w4"] = _init_w(ks[6], (cin, cout))           # shortcut 1x1 conv
    return p


def init_attention_module(key, cin, cout):
    ks = jax.random.split(key, 10)
    return {
        "first": _init_residual_block(ks[0], cin, cout),
        "trunk1": _init_residual_block(ks[1], cout, cout),
        "trunk2": _init_residual_block(ks[2], cout, cout),
        "sm1a": _init_residual_block(ks[3], cout, cout),
        "sm1b": _init_residual_block(ks[4], cout, cout),
        "sm2_bn1": _init_bn(ks[5], cout),
        "sm2_w1": _init_w(ks[6], (cout, cout)),
        "sm2_bn2": _init_bn(ks[7], cout),
        "sm2_w2": _init_w(ks[8], (cout, cout)),
        "last": _init_residual_block(ks[9], cout, cout),
    }


# ----------------------------------------------------------------------------
# Demo
# ----------------------------------------------------------------------------

if __name__ == "__main__":
    key = jax.random.PRNGKey(0)
    kx, kp = jax.random.split(key)

    # size1 equals the input spatial size (required for the `out_interp1 + x` add);
    # 16x16 here instead of the default 13x13.
    N, C_IN, C_OUT, H, W = 2, 4, 8, 16, 16

    x = jax.random.normal(kx, (N, C_IN, H, W), jnp.float32)
    params = init_attention_module(kp, C_IN, C_OUT)

    fwd = jax.jit(functools.partial(attention_module_0, params=params))
    out = fwd(x)
    jax.block_until_ready(out)

    assert out.shape == (N, C_OUT, H, W), out.shape
    assert out.dtype == jnp.float32
    assert bool(jnp.all(jnp.isfinite(out)))
    print("KERNEL_OK")
</pallas_src>

<mosaic_0001>
module attributes {stable_mosaic.version = 11 : i64} {
  func.func @_head_proj_kernel(%arg0: i32, %arg1: memref<256x4xf32, #tpu.memory_space<vmem>>, %arg2: memref<1x4xf32, #tpu.memory_space<vmem>>, %arg3: memref<1x4xf32, #tpu.memory_space<vmem>>, %arg4: memref<4x2xf32, #tpu.memory_space<vmem>>, %arg5: memref<1x2xf32, #tpu.memory_space<vmem>>, %arg6: memref<1x2xf32, #tpu.memory_space<vmem>>, %arg7: memref<4x8xf32, #tpu.memory_space<vmem>>, %arg8: memref<256x2xf32, #tpu.memory_space<vmem>>, %arg9: memref<256x8xf32, #tpu.memory_space<vmem>>) attributes {dimension_semantics = [#tpu.dimension_semantics<parallel>], iteration_bounds = array<i64: 2>, scalar_prefetch = 0 : i64, scratch_operands = 0 : i64, tpu.core_type = #tpu.core_type<tc>, window_params = [{transform_indices = @transform_0, window_bounds = array<i64: 256, 4>}, {pipeline_mode = #tpu.pipeline_mode<synchronous>, transform_indices = @transform_1, window_bounds = array<i64: 1, 4>}, {pipeline_mode = #tpu.pipeline_mode<synchronous>, transform_indices = @transform_2, window_bounds = array<i64: 1, 4>}, {pipeline_mode = #tpu.pipeline_mode<synchronous>, transform_indices = @transform_3, window_bounds = array<i64: 4, 2>}, {pipeline_mode = #tpu.pipeline_mode<synchronous>, transform_indices = @transform_4, window_bounds = array<i64: 1, 2>}, {pipeline_mode = #tpu.pipeline_mode<synchronous>, transform_indices = @transform_5, window_bounds = array<i64: 1, 2>}, {pipeline_mode = #tpu.pipeline_mode<synchronous>, transform_indices = @transform_6, window_bounds = array<i64: 4, 8>}, {transform_indices = @transform_7, window_bounds = array<i64: 256, 2>}, {transform_indices = @transform_8, window_bounds = array<i64: 256, 8>}]} {
    %c0 = arith.constant 0 : index
    %c0_0 = arith.constant 0 : index
    %0 = vector.load %arg1[%c0, %c0_0] : memref<256x4xf32, #tpu.memory_space<vmem>>, vector<256x4xf32>
    %c0_1 = arith.constant 0 : index
    %c0_2 = arith.constant 0 : index
    %1 = vector.load %arg2[%c0_1, %c0_2] : memref<1x4xf32, #tpu.memory_space<vmem>>, vector<1x4xf32>
    %2 = vector.broadcast %1 : vector<1x4xf32> to vector<256x4xf32>
    %3 = arith.mulf %0, %2 : vector<256x4xf32>
    %c0_3 = arith.constant 0 : index
    %c0_4 = arith.constant 0 : index
    %4 = vector.load %arg3[%c0_3, %c0_4] : memref<1x4xf32, #tpu.memory_space<vmem>>, vector<1x4xf32>
    %5 = vector.broadcast %4 : vector<1x4xf32> to vector<256x4xf32>
    %6 = arith.addf %3, %5 : vector<256x4xf32>
    %cst = arith.constant 0.000000e+00 : f32
    %7 = vector.broadcast %cst : f32 to vector<256x4xf32>
    %8 = arith.maximumf %6, %7 : vector<256x4xf32>
    %c0_5 = arith.constant 0 : index
    %c0_6 = arith.constant 0 : index
    %9 = vector.load %arg4[%c0_5, %c0_6] : memref<4x2xf32, #tpu.memory_space<vmem>>, vector<4x2xf32>
    %cst_7 = arith.constant dense<0.000000e+00> : vector<256x2xf32>
    %10 = tpu.matmul %8, %9, %cst_7 {dimension_numbers = #tpu.dot_dimension_numbers<[1], [0], [0], [1], [0, 0, 1, 1], [], []>} : vector<256x4xf32>, vector<4x2xf32>, vector<256x2xf32> -> vector<256x2xf32>
    %c0_8 = arith.constant 0 : index
    %c0_9 = arith.constant 0 : index
    %11 = vector.load %arg5[%c0_8, %c0_9] : memref<1x2xf32, #tpu.memory_space<vmem>>, vector<1x2xf32>
    %12 = vector.broadcast %11 : vector<1x2xf32> to vector<256x2xf32>
    %13 = arith.mulf %10, %12 : vector<256x2xf32>
    %c0_10 = arith.constant 0 : index
    %c0_11 = arith.constant 0 : index
    %14 = vector.load %arg6[%c0_10, %c0_11] : memref<1x2xf32, #tpu.memory_space<vmem>>, vector<1x2xf32>
    %15 = vector.broadcast %14 : vector<1x2xf32> to vector<256x2xf32>
    %16 = arith.addf %13, %15 : vector<256x2xf32>
    %cst_12 = arith.constant 0.000000e+00 : f32
    %17 = vector.broadcast %cst_12 : f32 to vector<256x2xf32>
    %18 = arith.maximumf %16, %17 : vector<256x2xf32>
    %c0_13 = arith.constant 0 : index
    %c0_14 = arith.constant 0 : index
    %19 = vector.load %arg8[%c0_13, %c0_14] : memref<256x2xf32, #tpu.memory_space<vmem>>, vector<256x2xf32>
    tpu.vector_store %arg8[%c0_13, %c0_14], %18 {strides = array<i32>} : memref<256x2xf32, #tpu.memory_space<vmem>>, vector<256x2xf32>,
    %c0_15 = arith.constant 0 : index
    %c0_16 = arith.constant 0 : index
    %20 = vector.load %arg7[%c0_15, %c0_16] : memref<4x8xf32, #tpu.memory_space<vmem>>, vector<4x8xf32>
    %cst_17 = arith.constant dense<0.000000e+00> : vector<256x8xf32>
    %21 = tpu.matmul %8, %20, %cst_17 {dimension_numbers = #tpu.dot_dimension_numbers<[1], [0], [0], [1], [0, 0, 1, 1], [], []>} : vector<256x4xf32>, vector<4x8xf32>, vector<256x8xf32> -> vector<256x8xf32>
    %c0_18 = arith.constant 0 : index
    %c0_19 = arith.constant 0 : index
    %22 = vector.load %arg9[%c0_18, %c0_19] : memref<256x8xf32, #tpu.memory_space<vmem>>, vector<256x8xf32>
    tpu.vector_store %arg9[%c0_18, %c0_19], %21 {strides = array<i32>} : memref<256x8xf32, #tpu.memory_space<vmem>>, vector<256x8xf32>,
    return
  }
  func.func @transform_0(%arg0: i32) -> (i32, i32) {
    %c0_i32 = arith.constant 0 : i32
    %c0_i32_0 = arith.constant 0 : i32
    return %arg0, %c0_i32 : i32, i32
  }
  func.func @transform_1(%arg0: i32) -> (i32, i32) {
    %c0_i32 = arith.constant 0 : i32
    %c0_i32_0 = arith.constant 0 : i32
    %c0_i32_1 = arith.constant 0 : i32
    return %c0_i32, %c0_i32_0 : i32, i32
  }
  func.func @transform_2(%arg0: i32) -> (i32, i32) {
    %c0_i32 = arith.constant 0 : i32
    %c0_i32_0 = arith.constant 0 : i32
    %c0_i32_1 = arith.constant 0 : i32
    return %c0_i32, %c0_i32_0 : i32, i32
  }
  func.func @transform_3(%arg0: i32) -> (i32, i32) {
    %c0_i32 = arith.constant 0 : i32
    %c0_i32_0 = arith.constant 0 : i32
    %c0_i32_1 = arith.constant 0 : i32
    return %c0_i32, %c0_i32_0 : i32, i32
  }
  func.func @transform_4(%arg0: i32) -> (i32, i32) {
    %c0_i32 = arith.constant 0 : i32
    %c0_i32_0 = arith.constant 0 : i32
    %c0_i32_1 = arith.constant 0 : i32
    return %c0_i32, %c0_i32_0 : i32, i32
  }
  func.func @transform_5(%arg0: i32) -> (i32, i32) {
    %c0_i32 = arith.constant 0 : i32
    %c0_i32_0 = arith.constant 0 : i32
    %c0_i32_1 = arith.constant 0 : i32
    return %c0_i32, %c0_i32_0 : i32, i32
  }
  func.func @transform_6(%arg0: i32) -> (i32, i32) {
    %c0_i32 = arith.constant 0 : i32
    %c0_i32_0 = arith.constant 0 : i32
    %c0_i32_1 = arith.constant 0 : i32
    return %c0_i32, %c0_i32_0 : i32, i32
  }
  func.func @transform_7(%arg0: i32) -> (i32, i32) {
    %c0_i32 = arith.constant 0 : i32
    %c0_i32_0 = arith.constant 0 : i32
    return %arg0, %c0_i32 : i32, i32
  }
  func.func @transform_8(%arg0: i32) -> (i32, i32) {
    %c0_i32 = arith.constant 0 : i32
    %c0_i32_0 = arith.constant 0 : i32
    return %arg0, %c0_i32 : i32, i32
  }
}

module attributes {stable_mosaic.version = 11 : i64} {
  func.func @kernel(%arg0: i32, %arg1: memref<1x288x6xf32, #tpu.memory_space<vmem>>, %arg2: memref<3x6x2xf32, #tpu.memory_space<vmem>>, %arg3: memref<1x2xf32, #tpu.memory_space<vmem>>, %arg4: memref<1x2xf32, #tpu.memory_space<vmem>>, %arg5: memref<2x8xf32, #tpu.memory_space<vmem>>, %arg6: memref<1x256x8xf32, #tpu.memory_space<vmem>>, %arg7: memref<1x256x8xf32, #tpu.memory_space<vmem>>) attributes {dimension_semantics = [#tpu.dimension_semantics<parallel>], iteration_bounds = array<i64: 2>, scalar_prefetch = 0 : i64, scratch_operands = 0 : i64, tpu.core_type = #tpu.core_type<tc>, window_params = [{transform_indices = @transform_0, window_bounds = array<i64: 1, 288, 6>}, {pipeline_mode = #tpu.pipeline_mode<synchronous>, transform_indices = @transform_1, window_bounds = array<i64: 3, 6, 2>}, {pipeline_mode = #tpu.pipeline_mode<synchronous>, transform_indices = @transform_2, window_bounds = array<i64: 1, 2>}, {pipeline_mode = #tpu.pipeline_mode<synchronous>, transform_indices = @transform_3, window_bounds = array<i64: 1, 2>}, {pipeline_mode = #tpu.pipeline_mode<synchronous>, transform_indices = @transform_4, window_bounds = array<i64: 2, 8>}, {transform_indices = @transform_5, window_bounds = array<i64: 1, 256, 8>}, {transform_indices = @transform_6, window_bounds = array<i64: 1, 256, 8>}]} {
    %cst = arith.constant 0.000000e+00 : f32
    %0 = vector.broadcast %cst : f32 to vector<256x2xf32>
    %c0 = arith.constant 0 : index
    %c0_0 = arith.constant 0 : index
    %c0_1 = arith.constant 0 : index
    %1 = vector.load %arg1[%c0, %c0_0, %c0_1] : memref<1x288x6xf32, #tpu.memory_space<vmem>>, vector<1x256x6xf32>
    %2 = vector.shape_cast %1 : vector<1x256x6xf32> to vector<256x6xf32>
    %c0_2 = arith.constant 0 : index
    %c0_3 = arith.constant 0 : index
    %c0_4 = arith.constant 0 : index
    %3 = vector.load %arg2[%c0_2, %c0_3, %c0_4] : memref<3x6x2xf32, #tpu.memory_space<vmem>>, vector<1x6x2xf32>
    %4 = vector.shape_cast %3 : vector<1x6x2xf32> to vector<6x2xf32>
    %cst_5 = arith.constant dense<0.000000e+00> : vector<256x2xf32>
    %5 = tpu.matmul %2, %4, %cst_5 {dimension_numbers = #tpu.dot_dimension_numbers<[1], [0], [0], [1], [0, 0, 1, 1], [], []>} : vector<256x6xf32>, vector<6x2xf32>, vector<256x2xf32> -> vector<256x2xf32>
    %6 = arith.addf %0, %5 : vector<256x2xf32>
    %c0_6 = arith.constant 0 : index
    %c16 = arith.constant 16 : index
    %c0_7 = arith.constant 0 : index
    %7 = vector.load %arg1[%c0_6, %c16, %c0_7] : memref<1x288x6xf32, #tpu.memory_space<vmem>>, vector<1x256x6xf32>
    %8 = vector.shape_cast %7 : vector<1x256x6xf32> to vector<256x6xf32>
    %c1 = arith.constant 1 : index
    %c0_8 = arith.constant 0 : index
    %c0_9 = arith.constant 0 : index
    %9 = vector.load %arg2[%c1, %c0_8, %c0_9] : memref<3x6x2xf32, #tpu.memory_space<vmem>>, vector<1x6x2xf32>
    %10 = vector.shape_cast %9 : vector<1x6x2xf32> to vector<6x2xf32>
    %cst_10 = arith.constant dense<0.000000e+00> : vector<256x2xf32>
    %11 = tpu.matmul %8, %10, %cst_10 {dimension_numbers = #tpu.dot_dimension_numbers<[1], [0], [0], [1], [0, 0, 1, 1], [], []>} : vector<256x6xf32>, vector<6x2xf32>, vector<256x2xf32> -> vector<256x2xf32>
    %12 = arith.addf %6, %11 : vector<256x2xf32>
    %c0_11 = arith.constant 0 : index
    %c32 = arith.constant 32 : index
    %c0_12 = arith.constant 0 : index
    %13 = vector.load %arg1[%c0_11, %c32, %c0_12] : memref<1x288x6xf32, #tpu.memory_space<vmem>>, vector<1x256x6xf32>
    %14 = vector.shape_cast %13 : vector<1x256x6xf32> to vector<256x6xf32>
    %c2 = arith.constant 2 : index
    %c0_13 = arith.constant 0 : index
    %c0_14 = arith.constant 0 : index
    %15 = vector.load %arg2[%c2, %c0_13, %c0_14] : memref<3x6x2xf32, #tpu.memory_space<vmem>>, vector<1x6x2xf32>
    %16 = vector.shape_cast %15 : vector<1x6x2xf32> to vector<6x2xf32>
    %cst_15 = arith.constant dense<0.000000e+00> : vector<256x2xf32>
    %17 = tpu.matmul %14, %16, %cst_15 {dimension_numbers = #tpu.dot_dimension_numbers<[1], [0], [0], [1], [0, 0, 1, 1], [], []>} : vector<256x6xf32>, vector<6x2xf32>, vector<256x2xf32> -> vector<256x2xf32>
    %18 = arith.addf %12, %17 : vector<256x2xf32>
    %c0_16 = arith.constant 0 : index
    %c0_17 = arith.constant 0 : index
    %19 = vector.load %arg3[%c0_16, %c0_17] : memref<1x2xf32, #tpu.memory_space<vmem>>, vector<1x2xf32>
    %20 = vector.broadcast %19 : vector<1x2xf32> to vector<256x2xf32>
    %21 = arith.mulf %18, %20 : vector<256x2xf32>
    %c0_18 = arith.constant 0 : index
    %c0_19 = arith.constant 0 : index
    %22 = vector.load %arg4[%c0_18, %c0_19] : memref<1x2xf32, #tpu.memory_space<vmem>>, vector<1x2xf32>
    %23 = vector.broadcast %22 : vector<1x2xf32> to vector<256x2xf32>
    %24 = arith.addf %21, %23 : vector<256x2xf32>
    %cst_20 = arith.constant 0.000000e+00 : f32
    %25 = vector.broadcast %cst_20 : f32 to vector<256x2xf32>
    %26 = arith.maximumf %24, %25 : vector<256x2xf32>
    %c0_21 = arith.constant 0 : index
    %c0_22 = arith.constant 0 : index
    %27 = vector.load %arg5[%c0_21, %c0_22] : memref<2x8xf32, #tpu.memory_space<vmem>>, vector<2x8xf32>
    %cst_23 = arith.constant dense<0.000000e+00> : vector<256x8xf32>
    %28 = tpu.matmul %26, %27, %cst_23 {dimension_numbers = #tpu.dot_dimension_numbers<[1], [0], [0], [1], [0, 0, 1, 1], [], []>} : vector<256x2xf32>, vector<2x8xf32>, vector<256x8xf32> -> vector<256x8xf32>
    %c0_24 = arith.constant 0 : index
    %c0_25 = arith.constant 0 : index
    %c0_26 = arith.constant 0 : index
    %29 = vector.load %arg6[%c0_24, %c0_25, %c0_26] : memref<1x256x8xf32, #tpu.memory_space<vmem>>, vector<1x256x8xf32>
    %30 = vector.shape_cast %29 : vector<1x256x8xf32> to vector<256x8xf32>
    %31 = arith.addf %28, %30 : vector<256x8xf32>
    %c0_27 = arith.constant 0 : index
    %c0_28 = arith.constant 0 : index
    %c0_29 = arith.constant 0 : index
    %32 = vector.load %arg7[%c0_27, %c0_28, %c0_29] : memref<1x256x8xf32, #tpu.memory_space<vmem>>, vector<1x256x8xf32>
    %33 = vector.shape_cast %32 : vector<1x256x8xf32> to vector<256x8xf32>
    %34 = vector.shape_cast %31 : vector<256x8xf32> to vector<1x256x8xf32>
    tpu.vector_store %arg7[%c0_27, %c0_28, %c0_29], %34 {strides = array<i32>} : memref<1x256x8xf32, #tpu.memory_space<vmem>>, vector<1x256x8xf32>,
    return
  }
  func.func @transform_0(%arg0: i32) -> (i32, i32, i32) {
    %c0_i32 = arith.constant 0 : i32
    %c0_i32_0 = arith.constant 0 : i32
    %c0_i32_1 = arith.constant 0 : i32
    return %arg0, %c0_i32, %c0_i32_0 : i32, i32, i32
  }
  func.func @transform_1(%arg0: i32) -> (i32, i32, i32) {
    %c0_i32 = arith.constant 0 : i32
    %c0_i32_0 = arith.constant 0 : i32
    %c0_i32_1 = arith.constant 0 : i32
    %c0_i32_2 = arith.constant 0 : i32
    return %c0_i32, %c0_i32_0, %c0_i32_1 : i32, i32, i32
  }
  func.func @transform_2(%arg0: i32) -> (i32, i32) {
    %c0_i32 = arith.constant 0 : i32
    %c0_i32_0 = arith.constant 0 : i32
    %c0_i32_1 = arith.constant 0 : i32
    return %c0_i32, %c0_i32_0 : i32, i32
  }
  func.func @transform_3(%arg0: i32) -> (i32, i32) {
    %c0_i32 = arith.constant 0 : i32
    %c0_i32_0 = arith.constant 0 : i32
    %c0_i32_1 = arith.constant 0 : i32
    return %c0_i32, %c0_i32_0 : i32, i32
  }
  func.func @transform_4(%arg0: i32) -> (i32, i32) {
    %c0_i32 = arith.constant 0 : i32
    %c0_i32_0 = arith.constant 0 : i32
    %c0_i32_1 = arith.constant 0 : i32
    return %c0_i32, %c0_i32_0 : i32, i32
  }
  func.func @transform_5(%arg0: i32) -> (i32, i32, i32) {
    %c0_i32 = arith.constant 0 : i32
    %c0_i32_0 = arith.constant 0 : i32
    %c0_i32_1 = arith.constant 0 : i32
    return %arg0, %c0_i32, %c0_i32_0 : i32, i32, i32
  }
  func.func @transform_6(%arg0: i32) -> (i32, i32, i32) {
    %c0_i32 = arith.constant 0 : i32
    %c0_i32_0 = arith.constant 0 : i32
    %c0_i32_1 = arith.constant 0 : i32
    return %arg0, %c0_i32, %c0_i32_0 : i32, i32, i32
  }
}

module attributes {stable_mosaic.version = 11 : i64} {
  func.func @kernel(%arg0: i32, %arg1: memref<1x18x16x8xf32, #tpu.memory_space<vmem>>, %arg2: memref<1x8x16x8xf32, #tpu.memory_space<vmem>>) attributes {dimension_semantics = [#tpu.dimension_semantics<parallel>], iteration_bounds = array<i64: 2>, scalar_prefetch = 0 : i64, scratch_operands = 0 : i64, tpu.core_type = #tpu.core_type<tc>, window_params = [{transform_indices = @transform_0, window_bounds = array<i64: 1, 18, 16, 8>}, {transform_indices = @transform_1, window_bounds = array<i64: 1, 8, 16, 8>}]} {
    %c0 = arith.constant 0 : index
    %c0_0 = arith.constant 0 : index
    %c0_1 = arith.constant 0 : index
    %c0_2 = arith.constant 0 : index
    %0 = vector.load %arg1[%c0, %c0_0, %c0_1, %c0_2] : memref<1x18x16x8xf32, #tpu.memory_space<vmem>>, vector<1x18x16x8xf32>
    %1 = vector.shape_cast %0 : vector<1x18x16x8xf32> to vector<18x16x8xf32>
    %2 = vector.extract_strided_slice %1 {offsets = [0, 0, 0], sizes = [16, 16, 8], strides = [1, 1, 1]} : vector<18x16x8xf32> to vector<16x16x8xf32>
    %3 = vector.shape_cast %2 : vector<16x16x8xf32> to vector<8x2x16x8xf32>
    %4 = vector.extract_strided_slice %3 {offsets = [0, 0, 0, 0], sizes = [8, 1, 16, 8], strides = [1, 1, 1, 1]} : vector<8x2x16x8xf32> to vector<8x1x16x8xf32>
    %5 = vector.shape_cast %4 : vector<8x1x16x8xf32> to vector<8x16x8xf32>
    %6 = vector.extract_strided_slice %1 {offsets = [1, 0, 0], sizes = [16, 16, 8], strides = [1, 1, 1]} : vector<18x16x8xf32> to vector<16x16x8xf32>
    %7 = vector.shape_cast %6 : vector<16x16x8xf32> to vector<8x2x16x8xf32>
    %8 = vector.extract_strided_slice %7 {offsets = [0, 0, 0, 0], sizes = [8, 1, 16, 8], strides = [1, 1, 1, 1]} : vector<8x2x16x8xf32> to vector<8x1x16x8xf32>
    %9 = vector.shape_cast %8 : vector<8x1x16x8xf32> to vector<8x16x8xf32>
    %10 = arith.maximumf %5, %9 : vector<8x16x8xf32>
    %11 = vector.extract_strided_slice %1 {offsets = [2, 0, 0], sizes = [16, 16, 8], strides = [1, 1, 1]} : vector<18x16x8xf32> to vector<16x16x8xf32>
    %12 = vector.shape_cast %11 : vector<16x16x8xf32> to vector<8x2x16x8xf32>
    %13 = vector.extract_strided_slice %12 {offsets = [0, 0, 0, 0], sizes = [8, 1, 16, 8], strides = [1, 1, 1, 1]} : vector<8x2x16x8xf32> to vector<8x1x16x8xf32>
    %14 = vector.shape_cast %13 : vector<8x1x16x8xf32> to vector<8x16x8xf32>
    %15 = arith.maximumf %10, %14 : vector<8x16x8xf32>
    %c0_3 = arith.constant 0 : index
    %c0_4 = arith.constant 0 : index
    %c0_5 = arith.constant 0 : index
    %c0_6 = arith.constant 0 : index
    %16 = vector.load %arg2[%c0_3, %c0_4, %c0_5, %c0_6] : memref<1x8x16x8xf32, #tpu.memory_space<vmem>>, vector<1x8x16x8xf32>
    %17 = vector.shape_cast %16 : vector<1x8x16x8xf32> to vector<8x16x8xf32>
    %18 = vector.shape_cast %15 : vector<8x16x8xf32> to vector<1x8x16x8xf32>
    tpu.vector_store %arg2[%c0_3, %c0_4, %c0_5, %c0_6], %18 {strides = array<i32>} : memref<1x8x16x8xf32, #tpu.memory_space<vmem>>, vector<1x8x16x8xf32>,
    return
  }
  func.func @transform_0(%arg0: i32) -> (i32, i32, i32, i32) {
    %c0_i32 = arith.constant 0 : i32
    %c0_i32_0 = arith.constant 0 : i32
    %c0_i32_1 = arith.constant 0 : i32
    %c0_i32_2 = arith.constant 0 : i32
    return %arg0, %c0_i32, %c0_i32_0, %c0_i32_1 : i32, i32, i32, i32
  }
  func.func @transform_1(%arg0: i32) -> (i32, i32, i32, i32) {
    %c0_i32 = arith.constant 0 : i32
    %c0_i32_0 = arith.constant 0 : i32
    %c0_i32_1 = arith.constant 0 : i32
    %c0_i32_2 = arith.constant 0 : i32
    return %arg0, %c0_i32, %c0_i32_0, %c0_i32_1 : i32, i32, i32, i32
  }
}

module attributes {stable_mosaic.version = 11 : i64} {
  func.func @kernel(%arg0: i32, %arg1: memref<1x18x8x8xf32, #tpu.memory_space<vmem>>, %arg2: memref<1x8x8x8xf32, #tpu.memory_space<vmem>>) attributes {dimension_semantics = [#tpu.dimension_semantics<parallel>], iteration_bounds = array<i64: 2>, scalar_prefetch = 0 : i64, scratch_operands = 0 : i64, tpu.core_type = #tpu.core_type<tc>, window_params = [{transform_indices = @transform_0, window_bounds = array<i64: 1, 18, 8, 8>}, {transform_indices = @transform_1, window_bounds = array<i64: 1, 8, 8, 8>}]} {
    %c0 = arith.constant 0 : index
    %c0_0 = arith.constant 0 : index
    %c0_1 = arith.constant 0 : index
    %c0_2 = arith.constant 0 : index
    %0 = vector.load %arg1[%c0, %c0_0, %c0_1, %c0_2] : memref<1x18x8x8xf32, #tpu.memory_space<vmem>>, vector<1x18x8x8xf32>
    %1 = vector.shape_cast %0 : vector<1x18x8x8xf32> to vector<18x8x8xf32>
    %2 = vector.extract_strided_slice %1 {offsets = [0, 0, 0], sizes = [16, 8, 8], strides = [1, 1, 1]} : vector<18x8x8xf32> to vector<16x8x8xf32>
    %3 = vector.shape_cast %2 : vector<16x8x8xf32> to vector<8x2x8x8xf32>
    %4 = vector.extract_strided_slice %3 {offsets = [0, 0, 0, 0], sizes = [8, 1, 8, 8], strides = [1, 1, 1, 1]} : vector<8x2x8x8xf32> to vector<8x1x8x8xf32>
    %5 = vector.shape_cast %4 : vector<8x1x8x8xf32> to vector<8x8x8xf32>
    %6 = vector.extract_strided_slice %1 {offsets = [1, 0, 0], sizes = [16, 8, 8], strides = [1, 1, 1]} : vector<18x8x8xf32> to vector<16x8x8xf32>
    %7 = vector.shape_cast %6 : vector<16x8x8xf32> to vector<8x2x8x8xf32>
    %8 = vector.extract_strided_slice %7 {offsets = [0, 0, 0, 0], sizes = [8, 1, 8, 8], strides = [1, 1, 1, 1]} : vector<8x2x8x8xf32> to vector<8x1x8x8xf32>
    %9 = vector.shape_cast %8 : vector<8x1x8x8xf32> to vector<8x8x8xf32>
    %10 = arith.maximumf %5, %9 : vector<8x8x8xf32>
    %11 = vector.extract_strided_slice %1 {offsets = [2, 0, 0], sizes = [16, 8, 8], strides = [1, 1, 1]} : vector<18x8x8xf32> to vector<16x8x8xf32>
    %12 = vector.shape_cast %11 : vector<16x8x8xf32> to vector<8x2x8x8xf32>
    %13 = vector.extract_strided_slice %12 {offsets = [0, 0, 0, 0], sizes = [8, 1, 8, 8], strides = [1, 1, 1, 1]} : vector<8x2x8x8xf32> to vector<8x1x8x8xf32>
    %14 = vector.shape_cast %13 : vector<8x1x8x8xf32> to vector<8x8x8xf32>
    %15 = arith.maximumf %10, %14 : vector<8x8x8xf32>
    %c0_3 = arith.constant 0 : index
    %c0_4 = arith.constant 0 : index
    %c0_5 = arith.constant 0 : index
    %c0_6 = arith.constant 0 : index
    %16 = vector.load %arg2[%c0_3, %c0_4, %c0_5, %c0_6] : memref<1x8x8x8xf32, #tpu.memory_space<vmem>>, vector<1x8x8x8xf32>
    %17 = vector.shape_cast %16 : vector<1x8x8x8xf32> to vector<8x8x8xf32>
    %18 = vector.shape_cast %15 : vector<8x8x8xf32> to vector<1x8x8x8xf32>
    tpu.vector_store %arg2[%c0_3, %c0_4, %c0_5, %c0_6], %18 {strides = array<i32>} : memref<1x8x8x8xf32, #tpu.memory_space<vmem>>, vector<1x8x8x8xf32>,
    return
  }
  func.func @transform_0(%arg0: i32) -> (i32, i32, i32, i32) {
    %c0_i32 = arith.constant 0 : i32
    %c0_i32_0 = arith.constant 0 : i32
    %c0_i32_1 = arith.constant 0 : i32
    %c0_i32_2 = arith.constant 0 : i32
    return %arg0, %c0_i32, %c0_i32_0, %c0_i32_1 : i32, i32, i32, i32
  }
  func.func @transform_1(%arg0: i32) -> (i32, i32, i32, i32) {
    %c0_i32 = arith.constant 0 : i32
    %c0_i32_0 = arith.constant 0 : i32
    %c0_i32_1 = arith.constant 0 : i32
    %c0_i32_2 = arith.constant 0 : i32
    return %arg0, %c0_i32, %c0_i32_0, %c0_i32_1 : i32, i32, i32, i32
  }
}

module attributes {stable_mosaic.version = 11 : i64} {
  func.func @_head_id_kernel(%arg0: i32, %arg1: memref<128x8xf32, #tpu.memory_space<vmem>>, %arg2: memref<1x8xf32, #tpu.memory_space<vmem>>, %arg3: memref<1x8xf32, #tpu.memory_space<vmem>>, %arg4: memref<8x2xf32, #tpu.memory_space<vmem>>, %arg5: memref<1x2xf32, #tpu.memory_space<vmem>>, %arg6: memref<1x2xf32, #tpu.memory_space<vmem>>, %arg7: memref<128x2xf32, #tpu.memory_space<vmem>>) attributes {dimension_semantics = [#tpu.dimension_semantics<parallel>], iteration_bounds = array<i64: 1>, scalar_prefetch = 0 : i64, scratch_operands = 0 : i64, tpu.core_type = #tpu.core_type<tc>, window_params = [{transform_indices = @transform_0, window_bounds = array<i64: 128, 8>}, {pipeline_mode = #tpu.pipeline_mode<synchronous>, transform_indices = @transform_1, window_bounds = array<i64: 1, 8>}, {pipeline_mode = #tpu.pipeline_mode<synchronous>, transform_indices = @transform_2, window_bounds = array<i64: 1, 8>}, {pipeline_mode = #tpu.pipeline_mode<synchronous>, transform_indices = @transform_3, window_bounds = array<i64: 8, 2>}, {pipeline_mode = #tpu.pipeline_mode<synchronous>, transform_indices = @transform_4, window_bounds = array<i64: 1, 2>}, {pipeline_mode = #tpu.pipeline_mode<synchronous>, transform_indices = @transform_5, window_bounds = array<i64: 1, 2>}, {transform_indices = @transform_6, window_bounds = array<i64: 128, 2>}]} {
    %c0 = arith.constant 0 : index
    %c0_0 = arith.constant 0 : index
    %0 = vector.load %arg1[%c0, %c0_0] : memref<128x8xf32, #tpu.memory_space<vmem>>, vector<128x8xf32>
    %c0_1 = arith.constant 0 : index
    %c0_2 = arith.constant 0 : index
    %1 = vector.load %arg2[%c0_1, %c0_2] : memref<1x8xf32, #tpu.memory_space<vmem>>, vector<1x8xf32>
    %2 = vector.broadcast %1 : vector<1x8xf32> to vector<128x8xf32>
    %3 = arith.mulf %0, %2 : vector<128x8xf32>
    %c0_3 = arith.constant 0 : index
    %c0_4 = arith.constant 0 : index
    %4 = vector.load %arg3[%c0_3, %c0_4] : memref<1x8xf32, #tpu.memory_space<vmem>>, vector<1x8xf32>
    %5 = vector.broadcast %4 : vector<1x8xf32> to vector<128x8xf32>
    %6 = arith.addf %3, %5 : vector<128x8xf32>
    %cst = arith.constant 0.000000e+00 : f32
    %7 = vector.broadcast %cst : f32 to vector<128x8xf32>
    %8 = arith.maximumf %6, %7 : vector<128x8xf32>
    %c0_5 = arith.constant 0 : index
    %c0_6 = arith.constant 0 : index
    %9 = vector.load %arg4[%c0_5, %c0_6] : memref<8x2xf32, #tpu.memory_space<vmem>>, vector<8x2xf32>
    %cst_7 = arith.constant dense<0.000000e+00> : vector<128x2xf32>
    %10 = tpu.matmul %8, %9, %cst_7 {dimension_numbers = #tpu.dot_dimension_numbers<[1], [0], [0], [1], [0, 0, 1, 1], [], []>} : vector<128x8xf32>, vector<8x2xf32>, vector<128x2xf32> -> vector<128x2xf32>
    %c0_8 = arith.constant 0 : index
    %c0_9 = arith.constant 0 : index
    %11 = vector.load %arg5[%c0_8, %c0_9] : memref<1x2xf32, #tpu.memory_space<vmem>>, vector<1x2xf32>
    %12 = vector.broadcast %11 : vector<1x2xf32> to vector<128x2xf32>
    %13 = arith.mulf %10, %12 : vector<128x2xf32>
    %c0_10 = arith.constant 0 : index
    %c0_11 = arith.constant 0 : index
    %14 = vector.load %arg6[%c0_10, %c0_11] : memref<1x2xf32, #tpu.memory_space<vmem>>, vector<1x2xf32>
    %15 = vector.broadcast %14 : vector<1x2xf32> to vector<128x2xf32>
    %16 = arith.addf %13, %15 : vector<128x2xf32>
    %cst_12 = arith.constant 0.000000e+00 : f32
    %17 = vector.broadcast %cst_12 : f32 to vector<128x2xf32>
    %18 = arith.maximumf %16, %17 : vector<128x2xf32>
    %c0_13 = arith.constant 0 : index
    %c0_14 = arith.constant 0 : index
    %19 = vector.load %arg7[%c0_13, %c0_14] : memref<128x2xf32, #tpu.memory_space<vmem>>, vector<128x2xf32>
    tpu.vector_store %arg7[%c0_13, %c0_14], %18 {strides = array<i32>} : memref<128x2xf32, #tpu.memory_space<vmem>>, vector<128x2xf32>,
    return
  }
  func.func @transform_0(%arg0: i32) -> (i32, i32) {
    %c0_i32 = arith.constant 0 : i32
    %c0_i32_0 = arith.constant 0 : i32
    return %arg0, %c0_i32 : i32, i32
  }
  func.func @transform_1(%arg0: i32) -> (i32, i32) {
    %c0_i32 = arith.constant 0 : i32
    %c0_i32_0 = arith.constant 0 : i32
    %c0_i32_1 = arith.constant 0 : i32
    return %c0_i32, %c0_i32_0 : i32, i32
  }
  func.func @transform_2(%arg0: i32) -> (i32, i32) {
    %c0_i32 = arith.constant 0 : i32
    %c0_i32_0 = arith.constant 0 : i32
    %c0_i32_1 = arith.constant 0 : i32
    return %c0_i32, %c0_i32_0 : i32, i32
  }
  func.func @transform_3(%arg0: i32) -> (i32, i32) {
    %c0_i32 = arith.constant 0 : i32
    %c0_i32_0 = arith.constant 0 : i32
    %c0_i32_1 = arith.constant 0 : i32
    return %c0_i32, %c0_i32_0 : i32, i32
  }
  func.func @transform_4(%arg0: i32) -> (i32, i32) {
    %c0_i32 = arith.constant 0 : i32
    %c0_i32_0 = arith.constant 0 : i32
    %c0_i32_1 = arith.constant 0 : i32
    return %c0_i32, %c0_i32_0 : i32, i32
  }
  func.func @transform_5(%arg0: i32) -> (i32, i32) {
    %c0_i32 = arith.constant 0 : i32
    %c0_i32_0 = arith.constant 0 : i32
    %c0_i32_1 = arith.constant 0 : i32
    return %c0_i32, %c0_i32_0 : i32, i32
  }
  func.func @transform_6(%arg0: i32) -> (i32, i32) {
    %c0_i32 = arith.constant 0 : i32
    %c0_i32_0 = arith.constant 0 : i32
    return %arg0, %c0_i32 : i32, i32
  }
}

module attributes {stable_mosaic.version = 11 : i64} {
  func.func @kernel(%arg0: i32, %arg1: memref<1x80x6xf32, #tpu.memory_space<vmem>>, %arg2: memref<3x6x2xf32, #tpu.memory_space<vmem>>, %arg3: memref<1x2xf32, #tpu.memory_space<vmem>>, %arg4: memref<1x2xf32, #tpu.memory_space<vmem>>, %arg5: memref<2x8xf32, #tpu.memory_space<vmem>>, %arg6: memref<1x64x8xf32, #tpu.memory_space<vmem>>, %arg7: memref<1x64x8xf32, #tpu.memory_space<vmem>>) attributes {dimension_semantics = [#tpu.dimension_semantics<parallel>], iteration_bounds = array<i64: 2>, scalar_prefetch = 0 : i64, scratch_operands = 0 : i64, tpu.core_type = #tpu.core_type<tc>, window_params = [{transform_indices = @transform_0, window_bounds = array<i64: 1, 80, 6>}, {pipeline_mode = #tpu.pipeline_mode<synchronous>, transform_indices = @transform_1, window_bounds = array<i64: 3, 6, 2>}, {pipeline_mode = #tpu.pipeline_mode<synchronous>, transform_indices = @transform_2, window_bounds = array<i64: 1, 2>}, {pipeline_mode = #tpu.pipeline_mode<synchronous>, transform_indices = @transform_3, window_bounds = array<i64: 1, 2>}, {pipeline_mode = #tpu.pipeline_mode<synchronous>, transform_indices = @transform_4, window_bounds = array<i64: 2, 8>}, {transform_indices = @transform_5, window_bounds = array<i64: 1, 64, 8>}, {transform_indices = @transform_6, window_bounds = array<i64: 1, 64, 8>}]} {
    %cst = arith.constant 0.000000e+00 : f32
    %0 = vector.broadcast %cst : f32 to vector<64x2xf32>
    %c0 = arith.constant 0 : index
    %c0_0 = arith.constant 0 : index
    %c0_1 = arith.constant 0 : index
    %1 = vector.load %arg1[%c0, %c0_0, %c0_1] : memref<1x80x6xf32, #tpu.memory_space<vmem>>, vector<1x64x6xf32>
    %2 = vector.shape_cast %1 : vector<1x64x6xf32> to vector<64x6xf32>
    %c0_2 = arith.constant 0 : index
    %c0_3 = arith.constant 0 : index
    %c0_4 = arith.constant 0 : index
    %3 = vector.load %arg2[%c0_2, %c0_3, %c0_4] : memref<3x6x2xf32, #tpu.memory_space<vmem>>, vector<1x6x2xf32>
    %4 = vector.shape_cast %3 : vector<1x6x2xf32> to vector<6x2xf32>
    %cst_5 = arith.constant dense<0.000000e+00> : vector<64x2xf32>
    %5 = tpu.matmul %2, %4, %cst_5 {dimension_numbers = #tpu.dot_dimension_numbers<[1], [0], [0], [1], [0, 0, 1, 1], [], []>} : vector<64x6xf32>, vector<6x2xf32>, vector<64x2xf32> -> vector<64x2xf32>
    %6 = arith.addf %0, %5 : vector<64x2xf32>
    %c0_6 = arith.constant 0 : index
    %c8 = arith.constant 8 : index
    %c0_7 = arith.constant 0 : index
    %7 = vector.load %arg1[%c0_6, %c8, %c0_7] : memref<1x80x6xf32, #tpu.memory_space<vmem>>, vector<1x64x6xf32>
    %8 = vector.shape_cast %7 : vector<1x64x6xf32> to vector<64x6xf32>
    %c1 = arith.constant 1 : index
    %c0_8 = arith.constant 0 : index
    %c0_9 = arith.constant 0 : index
    %9 = vector.load %arg2[%c1, %c0_8, %c0_9] : memref<3x6x2xf32, #tpu.memory_space<vmem>>, vector<1x6x2xf32>
    %10 = vector.shape_cast %9 : vector<1x6x2xf32> to vector<6x2xf32>
    %cst_10 = arith.constant dense<0.000000e+00> : vector<64x2xf32>
    %11 = tpu.matmul %8, %10, %cst_10 {dimension_numbers = #tpu.dot_dimension_numbers<[1], [0], [0], [1], [0, 0, 1, 1], [], []>} : vector<64x6xf32>, vector<6x2xf32>, vector<64x2xf32> -> vector<64x2xf32>
    %12 = arith.addf %6, %11 : vector<64x2xf32>
    %c0_11 = arith.constant 0 : index
    %c16 = arith.constant 16 : index
    %c0_12 = arith.constant 0 : index
    %13 = vector.load %arg1[%c0_11, %c16, %c0_12] : memref<1x80x6xf32, #tpu.memory_space<vmem>>, vector<1x64x6xf32>
    %14 = vector.shape_cast %13 : vector<1x64x6xf32> to vector<64x6xf32>
    %c2 = arith.constant 2 : index
    %c0_13 = arith.constant 0 : index
    %c0_14 = arith.constant 0 : index
    %15 = vector.load %arg2[%c2, %c0_13, %c0_14] : memref<3x6x2xf32, #tpu.memory_space<vmem>>, vector<1x6x2xf32>
    %16 = vector.shape_cast %15 : vector<1x6x2xf32> to vector<6x2xf32>
    %cst_15 = arith.constant dense<0.000000e+00> : vector<64x2xf32>
    %17 = tpu.matmul %14, %16, %cst_15 {dimension_numbers = #tpu.dot_dimension_numbers<[1], [0], [0], [1], [0, 0, 1, 1], [], []>} : vector<64x6xf32>, vector<6x2xf32>, vector<64x2xf32> -> vector<64x2xf32>
    %18 = arith.addf %12, %17 : vector<64x2xf32>
    %c0_16 = arith.constant 0 : index
    %c0_17 = arith.constant 0 : index
    %19 = vector.load %arg3[%c0_16, %c0_17] : memref<1x2xf32, #tpu.memory_space<vmem>>, vector<1x2xf32>
    %20 = vector.broadcast %19 : vector<1x2xf32> to vector<64x2xf32>
    %21 = arith.mulf %18, %20 : vector<64x2xf32>
    %c0_18 = arith.constant 0 : index
    %c0_19 = arith.constant 0 : index
    %22 = vector.load %arg4[%c0_18, %c0_19] : memref<1x2xf32, #tpu.memory_space<vmem>>, vector<1x2xf32>
    %23 = vector.broadcast %22 : vector<1x2xf32> to vector<64x2xf32>
    %24 = arith.addf %21, %23 : vector<64x2xf32>
    %cst_20 = arith.constant 0.000000e+00 : f32
    %25 = vector.broadcast %cst_20 : f32 to vector<64x2xf32>
    %26 = arith.maximumf %24, %25 : vector<64x2xf32>
    %c0_21 = arith.constant 0 : index
    %c0_22 = arith.constant 0 : index
    %27 = vector.load %arg5[%c0_21, %c0_22] : memref<2x8xf32, #tpu.memory_space<vmem>>, vector<2x8xf32>
    %cst_23 = arith.constant dense<0.000000e+00> : vector<64x8xf32>
    %28 = tpu.matmul %26, %27, %cst_23 {dimension_numbers = #tpu.dot_dimension_numbers<[1], [0], [0], [1], [0, 0, 1, 1], [], []>} : vector<64x2xf32>, vector<2x8xf32>, vector<64x8xf32> -> vector<64x8xf32>
    %c0_24 = arith.constant 0 : index
    %c0_25 = arith.constant 0 : index
    %c0_26 = arith.constant 0 : index
    %29 = vector.load %arg6[%c0_24, %c0_25, %c0_26] : memref<1x64x8xf32, #tpu.memory_space<vmem>>, vector<1x64x8xf32>
    %30 = vector.shape_cast %29 : vector<1x64x8xf32> to vector<64x8xf32>
    %31 = arith.addf %28, %30 : vector<64x8xf32>
    %c0_27 = arith.constant 0 : index
    %c0_28 = arith.constant 0 : index
    %c0_29 = arith.constant 0 : index
    %32 = vector.load %arg7[%c0_27, %c0_28, %c0_29] : memref<1x64x8xf32, #tpu.memory_space<vmem>>, vector<1x64x8xf32>
    %33 = vector.shape_cast %32 : vector<1x64x8xf32> to vector<64x8xf32>
    %34 = vector.shape_cast %31 : vector<64x8xf32> to vector<1x64x8xf32>
    tpu.vector_store %arg7[%c0_27, %c0_28, %c0_29], %34 {strides = array<i32>} : memref<1x64x8xf32, #tpu.memory_space<vmem>>, vector<1x64x8xf32>,
    return
  }
  func.func @transform_0(%arg0: i32) -> (i32, i32, i32) {
    %c0_i32 = arith.constant 0 : i32
    %c0_i32_0 = arith.constant 0 : i32
    %c0_i32_1 = arith.constant 0 : i32
    return %arg0, %c0_i32, %c0_i32_0 : i32, i32, i32
  }
  func.func @transform_1(%arg0: i32) -> (i32, i32, i32) {
    %c0_i32 = arith.constant 0 : i32
    %c0_i32_0 = arith.constant 0 : i32
    %c0_i32_1 = arith.constant 0 : i32
    %c0_i32_2 = arith.constant 0 : i32
    return %c0_i32, %c0_i32_0, %c0_i32_1 : i32, i32, i32
  }
  func.func @transform_2(%arg0: i32) -> (i32, i32) {
    %c0_i32 = arith.constant 0 : i32
    %c0_i32_0 = arith.constant 0 : i32
    %c0_i32_1 = arith.constant 0 : i32
    return %c0_i32, %c0_i32_0 : i32, i32
  }
  func.func @transform_3(%arg0: i32) -> (i32, i32) {
    %c0_i32 = arith.constant 0 : i32
    %c0_i32_0 = arith.constant 0 : i32
    %c0_i32_1 = arith.constant 0 : i32
    return %c0_i32, %c0_i32_0 : i32, i32
  }
  func.func @transform_4(%arg0: i32) -> (i32, i32) {
    %c0_i32 = arith.constant 0 : i32
    %c0_i32_0 = arith.constant 0 : i32
    %c0_i32_1 = arith.constant 0 : i32
    return %c0_i32, %c0_i32_0 : i32, i32
  }
  func.func @transform_5(%arg0: i32) -> (i32, i32, i32) {
    %c0_i32 = arith.constant 0 : i32
    %c0_i32_0 = arith.constant 0 : i32
    %c0_i32_1 = arith.constant 0 : i32
    return %arg0, %c0_i32, %c0_i32_0 : i32, i32, i32
  }
  func.func @transform_6(%arg0: i32) -> (i32, i32, i32) {
    %c0_i32 = arith.constant 0 : i32
    %c0_i32_0 = arith.constant 0 : i32
    %c0_i32_1 = arith.constant 0 : i32
    return %arg0, %c0_i32, %c0_i32_0 : i32, i32, i32
  }
}

module attributes {stable_mosaic.version = 11 : i64} {
  func.func @_upsample_add_kernel(%arg0: i32, %arg1: memref<256x64xf32, #tpu.memory_space<vmem>>, %arg2: memref<1x64x8xf32, #tpu.memory_space<vmem>>, %arg3: memref<1x256x8xf32, #tpu.memory_space<vmem>>, %arg4: memref<1x256x8xf32, #tpu.memory_space<vmem>>) attributes {dimension_semantics = [#tpu.dimension_semantics<parallel>], iteration_bounds = array<i64: 2>, scalar_prefetch = 0 : i64, scratch_operands = 0 : i64, tpu.core_type = #tpu.core_type<tc>, window_params = [{pipeline_mode = #tpu.pipeline_mode<synchronous>, transform_indices = @transform_0, window_bounds = array<i64: 256, 64>}, {transform_indices = @transform_1, window_bounds = array<i64: 1, 64, 8>}, {transform_indices = @transform_2, window_bounds = array<i64: 1, 256, 8>}, {transform_indices = @transform_3, window_bounds = array<i64: 1, 256, 8>}]} {
    %c0 = arith.constant 0 : index
    %c0_0 = arith.constant 0 : index
    %0 = vector.load %arg1[%c0, %c0_0] : memref<256x64xf32, #tpu.memory_space<vmem>>, vector<256x64xf32>
    %c0_1 = arith.constant 0 : index
    %c0_2 = arith.constant 0 : index
    %c0_3 = arith.constant 0 : index
    %1 = vector.load %arg2[%c0_1, %c0_2, %c0_3] : memref<1x64x8xf32, #tpu.memory_space<vmem>>, vector<1x64x8xf32>
    %2 = vector.shape_cast %1 : vector<1x64x8xf32> to vector<64x8xf32>
    %cst = arith.constant dense<0.000000e+00> : vector<256x8xf32>
    %3 = tpu.matmul %0, %2, %cst {dimension_numbers = #tpu.dot_dimension_numbers<[1], [0], [0], [1], [0, 0, 1, 1], [], []>} : vector<256x64xf32>, vector<64x8xf32>, vector<256x8xf32> -> vector<256x8xf32>
    %c0_4 = arith.constant 0 : index
    %c0_5 = arith.constant 0 : index
    %c0_6 = arith.constant 0 : index
    %4 = vector.load %arg3[%c0_4, %c0_5, %c0_6] : memref<1x256x8xf32, #tpu.memory_space<vmem>>, vector<1x256x8xf32>
    %5 = vector.shape_cast %4 : vector<1x256x8xf32> to vector<256x8xf32>
    %6 = arith.addf %3, %5 : vector<256x8xf32>
    %c0_7 = arith.constant 0 : index
    %c0_8 = arith.constant 0 : index
    %c0_9 = arith.constant 0 : index
    %7 = vector.load %arg4[%c0_7, %c0_8, %c0_9] : memref<1x256x8xf32, #tpu.memory_space<vmem>>, vector<1x256x8xf32>
    %8 = vector.shape_cast %7 : vector<1x256x8xf32> to vector<256x8xf32>
    %9 = vector.shape_cast %6 : vector<256x8xf32> to vector<1x256x8xf32>
    tpu.vector_store %arg4[%c0_7, %c0_8, %c0_9], %9 {strides = array<i32>} : memref<1x256x8xf32, #tpu.memory_space<vmem>>, vector<1x256x8xf32>,
    return
  }
  func.func @transform_0(%arg0: i32) -> (i32, i32) {
    %c0_i32 = arith.constant 0 : i32
    %c0_i32_0 = arith.constant 0 : i32
    %c0_i32_1 = arith.constant 0 : i32
    return %c0_i32, %c0_i32_0 : i32, i32
  }
  func.func @transform_1(%arg0: i32) -> (i32, i32, i32) {
    %c0_i32 = arith.constant 0 : i32
    %c0_i32_0 = arith.constant 0 : i32
    %c0_i32_1 = arith.constant 0 : i32
    return %arg0, %c0_i32, %c0_i32_0 : i32, i32, i32
  }
  func.func @transform_2(%arg0: i32) -> (i32, i32, i32) {
    %c0_i32 = arith.constant 0 : i32
    %c0_i32_0 = arith.constant 0 : i32
    %c0_i32_1 = arith.constant 0 : i32
    return %arg0, %c0_i32, %c0_i32_0 : i32, i32, i32
  }
  func.func @transform_3(%arg0: i32) -> (i32, i32, i32) {
    %c0_i32 = arith.constant 0 : i32
    %c0_i32_0 = arith.constant 0 : i32
    %c0_i32_1 = arith.constant 0 : i32
    return %arg0, %c0_i32, %c0_i32_0 : i32, i32, i32
  }
}

module attributes {stable_mosaic.version = 11 : i64} {
  func.func @_head_id_kernel(%arg0: i32, %arg1: memref<256x8xf32, #tpu.memory_space<vmem>>, %arg2: memref<1x8xf32, #tpu.memory_space<vmem>>, %arg3: memref<1x8xf32, #tpu.memory_space<vmem>>, %arg4: memref<8x2xf32, #tpu.memory_space<vmem>>, %arg5: memref<1x2xf32, #tpu.memory_space<vmem>>, %arg6: memref<1x2xf32, #tpu.memory_space<vmem>>, %arg7: memref<256x2xf32, #tpu.memory_space<vmem>>) attributes {dimension_semantics = [#tpu.dimension_semantics<parallel>], iteration_bounds = array<i64: 2>, scalar_prefetch = 0 : i64, scratch_operands = 0 : i64, tpu.core_type = #tpu.core_type<tc>, window_params = [{transform_indices = @transform_0, window_bounds = array<i64: 256, 8>}, {pipeline_mode = #tpu.pipeline_mode<synchronous>, transform_indices = @transform_1, window_bounds = array<i64: 1, 8>}, {pipeline_mode = #tpu.pipeline_mode<synchronous>, transform_indices = @transform_2, window_bounds = array<i64: 1, 8>}, {pipeline_mode = #tpu.pipeline_mode<synchronous>, transform_indices = @transform_3, window_bounds = array<i64: 8, 2>}, {pipeline_mode = #tpu.pipeline_mode<synchronous>, transform_indices = @transform_4, window_bounds = array<i64: 1, 2>}, {pipeline_mode = #tpu.pipeline_mode<synchronous>, transform_indices = @transform_5, window_bounds = array<i64: 1, 2>}, {transform_indices = @transform_6, window_bounds = array<i64: 256, 2>}]} {
    %c0 = arith.constant 0 : index
    %c0_0 = arith.constant 0 : index
    %0 = vector.load %arg1[%c0, %c0_0] : memref<256x8xf32, #tpu.memory_space<vmem>>, vector<256x8xf32>
    %c0_1 = arith.constant 0 : index
    %c0_2 = arith.constant 0 : index
    %1 = vector.load %arg2[%c0_1, %c0_2] : memref<1x8xf32, #tpu.memory_space<vmem>>, vector<1x8xf32>
    %2 = vector.broadcast %1 : vector<1x8xf32> to vector<256x8xf32>
    %3 = arith.mulf %0, %2 : vector<256x8xf32>
    %c0_3 = arith.constant 0 : index
    %c0_4 = arith.constant 0 : index
    %4 = vector.load %arg3[%c0_3, %c0_4] : memref<1x8xf32, #tpu.memory_space<vmem>>, vector<1x8xf32>
    %5 = vector.broadcast %4 : vector<1x8xf32> to vector<256x8xf32>
    %6 = arith.addf %3, %5 : vector<256x8xf32>
    %cst = arith.constant 0.000000e+00 : f32
    %7 = vector.broadcast %cst : f32 to vector<256x8xf32>
    %8 = arith.maximumf %6, %7 : vector<256x8xf32>
    %c0_5 = arith.constant 0 : index
    %c0_6 = arith.constant 0 : index
    %9 = vector.load %arg4[%c0_5, %c0_6] : memref<8x2xf32, #tpu.memory_space<vmem>>, vector<8x2xf32>
    %cst_7 = arith.constant dense<0.000000e+00> : vector<256x2xf32>
    %10 = tpu.matmul %8, %9, %cst_7 {dimension_numbers = #tpu.dot_dimension_numbers<[1], [0], [0], [1], [0, 0, 1, 1], [], []>} : vector<256x8xf32>, vector<8x2xf32>, vector<256x2xf32> -> vector<256x2xf32>
    %c0_8 = arith.constant 0 : index
    %c0_9 = arith.constant 0 : index
    %11 = vector.load %arg5[%c0_8, %c0_9] : memref<1x2xf32, #tpu.memory_space<vmem>>, vector<1x2xf32>
    %12 = vector.broadcast %11 : vector<1x2xf32> to vector<256x2xf32>
    %13 = arith.mulf %10, %12 : vector<256x2xf32>
    %c0_10 = arith.constant 0 : index
    %c0_11 = arith.constant 0 : index
    %14 = vector.load %arg6[%c0_10, %c0_11] : memref<1x2xf32, #tpu.memory_space<vmem>>, vector<1x2xf32>
    %15 = vector.broadcast %14 : vector<1x2xf32> to vector<256x2xf32>
    %16 = arith.addf %13, %15 : vector<256x2xf32>
    %cst_12 = arith.constant 0.000000e+00 : f32
    %17 = vector.broadcast %cst_12 : f32 to vector<256x2xf32>
    %18 = arith.maximumf %16, %17 : vector<256x2xf32>
    %c0_13 = arith.constant 0 : index
    %c0_14 = arith.constant 0 : index
    %19 = vector.load %arg7[%c0_13, %c0_14] : memref<256x2xf32, #tpu.memory_space<vmem>>, vector<256x2xf32>
    tpu.vector_store %arg7[%c0_13, %c0_14], %18 {strides = array<i32>} : memref<256x2xf32, #tpu.memory_space<vmem>>, vector<256x2xf32>,
    return
  }
  func.func @transform_0(%arg0: i32) -> (i32, i32) {
    %c0_i32 = arith.constant 0 : i32
    %c0_i32_0 = arith.constant 0 : i32
    return %arg0, %c0_i32 : i32, i32
  }
  func.func @transform_1(%arg0: i32) -> (i32, i32) {
    %c0_i32 = arith.constant 0 : i32
    %c0_i32_0 = arith.constant 0 : i32
    %c0_i32_1 = arith.constant 0 : i32
    return %c0_i32, %c0_i32_0 : i32, i32
  }
  func.func @transform_2(%arg0: i32) -> (i32, i32) {
    %c0_i32 = arith.constant 0 : i32
    %c0_i32_0 = arith.constant 0 : i32
    %c0_i32_1 = arith.constant 0 : i32
    return %c0_i32, %c0_i32_0 : i32, i32
  }
  func.func @transform_3(%arg0: i32) -> (i32, i32) {
    %c0_i32 = arith.constant 0 : i32
    %c0_i32_0 = arith.constant 0 : i32
    %c0_i32_1 = arith.constant 0 : i32
    return %c0_i32, %c0_i32_0 : i32, i32
  }
  func.func @transform_4(%arg0: i32) -> (i32, i32) {
    %c0_i32 = arith.constant 0 : i32
    %c0_i32_0 = arith.constant 0 : i32
    %c0_i32_1 = arith.constant 0 : i32
    return %c0_i32, %c0_i32_0 : i32, i32
  }
  func.func @transform_5(%arg0: i32) -> (i32, i32) {
    %c0_i32 = arith.constant 0 : i32
    %c0_i32_0 = arith.constant 0 : i32
    %c0_i32_1 = arith.constant 0 : i32
    return %c0_i32, %c0_i32_0 : i32, i32
  }
  func.func @transform_6(%arg0: i32) -> (i32, i32) {
    %c0_i32 = arith.constant 0 : i32
    %c0_i32_0 = arith.constant 0 : i32
    return %arg0, %c0_i32 : i32, i32
  }
}

module attributes {stable_mosaic.version = 11 : i64} {
  func.func @_mask_apply_kernel(%arg0: i32, %arg1: memref<256x8xf32, #tpu.memory_space<vmem>>, %arg2: memref<256x8xf32, #tpu.memory_space<vmem>>, %arg3: memref<1x8xf32, #tpu.memory_space<vmem>>, %arg4: memref<1x8xf32, #tpu.memory_space<vmem>>, %arg5: memref<8x8xf32, #tpu.memory_space<vmem>>, %arg6: memref<1x8xf32, #tpu.memory_space<vmem>>, %arg7: memref<1x8xf32, #tpu.memory_space<vmem>>, %arg8: memref<8x8xf32, #tpu.memory_space<vmem>>, %arg9: memref<256x8xf32, #tpu.memory_space<vmem>>) attributes {dimension_semantics = [#tpu.dimension_semantics<parallel>], iteration_bounds = array<i64: 2>, scalar_prefetch = 0 : i64, scratch_operands = 0 : i64, tpu.core_type = #tpu.core_type<tc>, window_params = [{transform_indices = @transform_0, window_bounds = array<i64: 256, 8>}, {transform_indices = @transform_1, window_bounds = array<i64: 256, 8>}, {pipeline_mode = #tpu.pipeline_mode<synchronous>, transform_indices = @transform_2, window_bounds = array<i64: 1, 8>}, {pipeline_mode = #tpu.pipeline_mode<synchronous>, transform_indices = @transform_3, window_bounds = array<i64: 1, 8>}, {pipeline_mode = #tpu.pipeline_mode<synchronous>, transform_indices = @transform_4, window_bounds = array<i64: 8, 8>}, {pipeline_mode = #tpu.pipeline_mode<synchronous>, transform_indices = @transform_5, window_bounds = array<i64: 1, 8>}, {pipeline_mode = #tpu.pipeline_mode<synchronous>, transform_indices = @transform_6, window_bounds = array<i64: 1, 8>}, {pipeline_mode = #tpu.pipeline_mode<synchronous>, transform_indices = @transform_7, window_bounds = array<i64: 8, 8>}, {transform_indices = @transform_8, window_bounds = array<i64: 256, 8>}]} {
    %c0 = arith.constant 0 : index
    %c0_0 = arith.constant 0 : index
    %0 = vector.load %arg1[%c0, %c0_0] : memref<256x8xf32, #tpu.memory_space<vmem>>, vector<256x8xf32>
    %c0_1 = arith.constant 0 : index
    %c0_2 = arith.constant 0 : index
    %1 = vector.load %arg3[%c0_1, %c0_2] : memref<1x8xf32, #tpu.memory_space<vmem>>, vector<1x8xf32>
    %2 = vector.broadcast %1 : vector<1x8xf32> to vector<256x8xf32>
    %3 = arith.mulf %0, %2 : vector<256x8xf32>
    %c0_3 = arith.constant 0 : index
    %c0_4 = arith.constant 0 : index
    %4 = vector.load %arg4[%c0_3, %c0_4] : memref<1x8xf32, #tpu.memory_space<vmem>>, vector<1x8xf32>
    %5 = vector.broadcast %4 : vector<1x8xf32> to vector<256x8xf32>
    %6 = arith.addf %3, %5 : vector<256x8xf32>
    %cst = arith.constant 0.000000e+00 : f32
    %7 = vector.broadcast %cst : f32 to vector<256x8xf32>
    %8 = arith.maximumf %6, %7 : vector<256x8xf32>
    %c0_5 = arith.constant 0 : index
    %c0_6 = arith.constant 0 : index
    %9 = vector.load %arg5[%c0_5, %c0_6] : memref<8x8xf32, #tpu.memory_space<vmem>>, vector<8x8xf32>
    %cst_7 = arith.constant dense<0.000000e+00> : vector<256x8xf32>
    %10 = tpu.matmul %8, %9, %cst_7 {dimension_numbers = #tpu.dot_dimension_numbers<[1], [0], [0], [1], [0, 0, 1, 1], [], []>} : vector<256x8xf32>, vector<8x8xf32>, vector<256x8xf32> -> vector<256x8xf32>
    %c0_8 = arith.constant 0 : index
    %c0_9 = arith.constant 0 : index
    %11 = vector.load %arg6[%c0_8, %c0_9] : memref<1x8xf32, #tpu.memory_space<vmem>>, vector<1x8xf32>
    %12 = vector.broadcast %11 : vector<1x8xf32> to vector<256x8xf32>
    %13 = arith.mulf %10, %12 : vector<256x8xf32>
    %c0_10 = arith.constant 0 : index
    %c0_11 = arith.constant 0 : index
    %14 = vector.load %arg7[%c0_10, %c0_11] : memref<1x8xf32, #tpu.memory_space<vmem>>, vector<1x8xf32>
    %15 = vector.broadcast %14 : vector<1x8xf32> to vector<256x8xf32>
    %16 = arith.addf %13, %15 : vector<256x8xf32>
    %cst_12 = arith.constant 0.000000e+00 : f32
    %17 = vector.broadcast %cst_12 : f32 to vector<256x8xf32>
    %18 = arith.maximumf %16, %17 : vector<256x8xf32>
    %c0_13 = arith.constant 0 : index
    %c0_14 = arith.constant 0 : index
    %19 = vector.load %arg8[%c0_13, %c0_14] : memref<8x8xf32, #tpu.memory_space<vmem>>, vector<8x8xf32>
    %cst_15 = arith.constant dense<0.000000e+00> : vector<256x8xf32>
    %20 = tpu.matmul %18, %19, %cst_15 {dimension_numbers = #tpu.dot_dimension_numbers<[1], [0], [0], [1], [0, 0, 1, 1], [], []>} : vector<256x8xf32>, vector<8x8xf32>, vector<256x8xf32> -> vector<256x8xf32>
    %21 = arith.negf %20 : vector<256x8xf32>
    %22 = math.exp %21 : vector<256x8xf32>
    %cst_16 = arith.constant 1.000000e+00 : f32
    %23 = vector.broadcast %cst_16 : f32 to vector<256x8xf32>
    %24 = arith.addf %23, %22 : vector<256x8xf32>
    %25 = arith.divf %23, %24 : vector<256x8xf32>
    %cst_17 = arith.constant 1.000000e+00 : f32
    %26 = vector.broadcast %cst_17 : f32 to vector<256x8xf32>
    %27 = arith.addf %26, %25 : vector<256x8xf32>
    %c0_18 = arith.constant 0 : index
    %c0_19 = arith.constant 0 : index
    %28 = vector.load %arg2[%c0_18, %c0_19] : memref<256x8xf32, #tpu.memory_space<vmem>>, vector<256x8xf32>
    %29 = arith.mulf %27, %28 : vector<256x8xf32>
    %c0_20 = arith.constant 0 : index
    %c0_21 = arith.constant 0 : index
    %30 = vector.load %arg9[%c0_20, %c0_21] : memref<256x8xf32, #tpu.memory_space<vmem>>, vector<256x8xf32>
    tpu.vector_store %arg9[%c0_20, %c0_21], %29 {strides = array<i32>} : memref<256x8xf32, #tpu.memory_space<vmem>>, vector<256x8xf32>,
    return
  }
  func.func @transform_0(%arg0: i32) -> (i32, i32) {
    %c0_i32 = arith.constant 0 : i32
    %c0_i32_0 = arith.constant 0 : i32
    return %arg0, %c0_i32 : i32, i32
  }
  func.func @transform_1(%arg0: i32) -> (i32, i32) {
    %c0_i32 = arith.constant 0 : i32
    %c0_i32_0 = arith.constant 0 : i32
    return %arg0, %c0_i32 : i32, i32
  }
  func.func @transform_2(%arg0: i32) -> (i32, i32) {
    %c0_i32 = arith.constant 0 : i32
    %c0_i32_0 = arith.constant 0 : i32
    %c0_i32_1 = arith.constant 0 : i32
    return %c0_i32, %c0_i32_0 : i32, i32
  }
  func.func @transform_3(%arg0: i32) -> (i32, i32) {
    %c0_i32 = arith.constant 0 : i32
    %c0_i32_0 = arith.constant 0 : i32
    %c0_i32_1 = arith.constant 0 : i32
    return %c0_i32, %c0_i32_0 : i32, i32
  }
  func.func @transform_4(%arg0: i32) -> (i32, i32) {
    %c0_i32 = arith.constant 0 : i32
    %c0_i32_0 = arith.constant 0 : i32
    %c0_i32_1 = arith.constant 0 : i32
    return %c0_i32, %c0_i32_0 : i32, i32
  }
  func.func @transform_5(%arg0: i32) -> (i32, i32) {
    %c0_i32 = arith.constant 0 : i32
    %c0_i32_0 = arith.constant 0 : i32
    %c0_i32_1 = arith.constant 0 : i32
    return %c0_i32, %c0_i32_0 : i32, i32
  }
  func.func @transform_6(%arg0: i32) -> (i32, i32) {
    %c0_i32 = arith.constant 0 : i32
    %c0_i32_0 = arith.constant 0 : i32
    %c0_i32_1 = arith.constant 0 : i32
    return %c0_i32, %c0_i32_0 : i32, i32
  }
  func.func @transform_7(%arg0: i32) -> (i32, i32) {
    %c0_i32 = arith.constant 0 : i32
    %c0_i32_0 = arith.constant 0 : i32
    %c0_i32_1 = arith.constant 0 : i32
    return %c0_i32, %c0_i32_0 : i32, i32
  }
  func.func @transform_8(%arg0: i32) -> (i32, i32) {
    %c0_i32 = arith.constant 0 : i32
    %c0_i32_0 = arith.constant 0 : i32
    return %arg0, %c0_i32 : i32, i32
  }
}

</mosaic_0001>

<llo_original>
// kernel: attention_module_0.16
$region0: #{attention_module_0.16}
  #allocation0 [shape = 'u32[]', space=smem, size = 0x4, offset = 0x4, fixed_abs, tag = 'smem constant byte address 0x4 - core index']
  #allocation1 [shape = 'u32[72,128]{1,0:T(1,128)}', space=vmem, size = 0x9000, scoped, tag = 'internal scratch']
  %s0 = inlined_call_operand.vmem [shape: f32[512,4], index: 0, kind: input, shape index: {}]
  %s1 = inlined_call_operand.vmem [shape: f32[1,4], index: 1, kind: input, shape index: {}]
  %s2 = inlined_call_operand.vmem [shape: f32[1,4], index: 2, kind: input, shape index: {}]
  %s3 = inlined_call_operand.vmem [shape: f32[4,2], index: 3, kind: input, shape index: {}]
  %s4 = inlined_call_operand.vmem [shape: f32[1,2], index: 4, kind: input, shape index: {}]
  %s5 = inlined_call_operand.vmem [shape: f32[1,2], index: 5, kind: input, shape index: {}]
  %s6 = inlined_call_operand.vmem [shape: f32[4,8], index: 6, kind: input, shape index: {}]
  %s7 = inlined_call_operand.vmem [shape: f32[512,2], index: 7, kind: output, shape index: {0}]
  %s8 = inlined_call_operand.vmem [shape: f32[512,8], index: 8, kind: output, shape index: {1}]
  %9 = xla_tuple %s7, %s8
  %s10 = sld [smem:[#allocation0]]
  $region69: #{attention_module_0.16} parent=0
    _
  %s12 = ssub.s32 1, %s10
  %s13 = scalar_select 0, %s12, %s10
  loop: start=0, step=1, limit=4
  $region2: #{attention_module_0.16} parent=0 // loop_pre_header
    _
  $region3: #{attention_module_0.16} parent=0 // loop_header
    %s15 = sphi 0, %s19
    %p16 = scmp.ge.s32.totalorder %s15, 4
    %s25 = sphi 0, %s27
    %s28 = sphi 0, %s25
    %s29 = sphi 0, %s28
    %s45 = sphi 0, %s29
    %s49 = sphi 0, %s49
    %s51 = sphi 0, %s49
    %s52 = sphi 0, %s51
    %s66 = sphi 0, %s52
    %s70 = sphi 0, %s70
    %s72 = sphi 0, %s70
    %s73 = sphi 0, %s72
    %s87 = sphi 0, %s73
    %s91 = sphi 0, %s91
    %s93 = sphi 0, %s91
    %s94 = sphi 0, %s93
    %s108 = sphi 0, %s94
    %s112 = sphi 0, %s112
    %s114 = sphi 0, %s112
    %s115 = sphi 0, %s114
    %s129 = sphi 0, %s115
    %s133 = sphi 0, %s133
    %s135 = sphi 0, %s133
    %s136 = sphi 0, %s135
    %s150 = sphi 0, %s136
    %s154 = sphi 0, %s154
    %s156 = sphi 0, %s154
    %s157 = sphi 0, %s156
    %s171 = sphi 0, %s157
    %s177 = sphi 0, %s179
    %s180 = sphi 0, %s177
    %s181 = sphi 0, %s180
    %s197 = sphi 0, %s181
    %s203 = sphi 0, %s205
    %s206 = sphi 0, %s203
    %s207 = sphi 0, %s206
    %s223 = sphi 0, %s207
  $region4: #{attention_module_0.16} parent=0 // loop_header_branch
    %18 = sbr.rel (%p16) target = $region8
  $region5: #{attention_module_0.16} parent=0 // loop_body
    %s20 = ssub.s32 %s15, 1
    %s21 = ssub.s32 %s15, 2
    %s22 = sadd.s32 %s15, 1
    %s23 = ssub.s32 %s15, %s22
    %p24 = scmp.eq.s32.totalorder %s23, 0
    %s26 = sadd.s32 %s25, 1
    %s27 = scalar_select %p24, %s25, %s26
    %p30 = pneg %p24
    %p31 = scmp.eq.s32.totalorder %s15, 1
    %p32 = por %p30, %p31
    %p33 = scmp.ne.s32.totalorder %s25, %s28
    %p34 = scmp.eq.s32.totalorder %s15, 0
    %p35 = por %p33, %p34
    %p36 = scmp.ne.s32.totalorder %s25, %s28
    %p37 = scmp.eq.s32.totalorder %s20, 1
    %p38 = por %p36, %p37
    %p39 = scmp.ne.s32.totalorder %s28, %s29
    %p40 = scmp.eq.s32.totalorder %s20, 0
    %p41 = por %p39, %p40
    %p42 = scmp.ne.s32.totalorder %s28, %s29
    %p43 = scmp.eq.s32.totalorder %s21, 1
    %p44 = por %p42, %p43
    %p46 = scmp.ne.s32.totalorder %s29, %s45
    %p47 = scmp.eq.s32.totalorder %s21, 0
    %p48 = por %p46, %p47
    %s50 = sadd.s32 %s49, 1
    %p53 = scmp.eq.s32.totalorder %s15, 1
    %p54 = scmp.ne.s32.totalorder %s49, %s51
    %p55 = scmp.eq.s32.totalorder %s15, 0
    %p56 = por %p54, %p55
    %p57 = scmp.ne.s32.totalorder %s49, %s51
    %p58 = scmp.eq.s32.totalorder %s20, 1
    %p59 = por %p57, %p58
    %p60 = scmp.ne.s32.totalorder %s51, %s52
    %p61 = scmp.eq.s32.totalorder %s20, 0
    %p62 = por %p60, %p61
    %p63 = scmp.ne.s32.totalorder %s51, %s52
    %p64 = scmp.eq.s32.totalorder %s21, 1
    %p65 = por %p63, %p64
    %p67 = scmp.ne.s32.totalorder %s52, %s66
    %p68 = scmp.eq.s32.totalorder %s21, 0
    %p69 = por %p67, %p68
    %s71 = sadd.s32 %s70, 1
    %p74 = scmp.eq.s32.totalorder %s15, 1
    %p75 = scmp.ne.s32.totalorder %s70, %s72
    %p76 = scmp.eq.s32.totalorder %s15, 0
    %p77 = por %p75, %p76
    %p78 = scmp.ne.s32.totalorder %s70, %s72
    %p79 = scmp.eq.s32.totalorder %s20, 1
    %p80 = por %p78, %p79
    %p81 = scmp.ne.s32.totalorder %s72, %s73
    %p82 = scmp.eq.s32.totalorder %s20, 0
    %p83 = por %p81, %p82
    %p84 = scmp.ne.s32.totalorder %s72, %s73
    %p85 = scmp.eq.s32.totalorder %s21, 1
    %p86 = por %p84, %p85
    %p88 = scmp.ne.s32.totalorder %s73, %s87
    %p89 = scmp.eq.s32.totalorder %s21, 0
    %p90 = por %p88, %p89
    %s92 = sadd.s32 %s91, 1
    %p95 = scmp.eq.s32.totalorder %s15, 1
    %p96 = scmp.ne.s32.totalorder %s91, %s93
    %p97 = scmp.eq.s32.totalorder %s15, 0
    %p98 = por %p96, %p97
    %p99 = scmp.ne.s32.totalorder %s91, %s93
    %p100 = scmp.eq.s32.totalorder %s20, 1
    %p101 = por %p99, %p100
    %p102 = scmp.ne.s32.totalorder %s93, %s94
    %p103 = scmp.eq.s32.totalorder %s20, 0
    %p104 = por %p102, %p103
    %p105 = scmp.ne.s32.totalorder %s93, %s94
    %p106 = scmp.eq.s32.totalorder %s21, 1
    %p107 = por %p105, %p106
    %p109 = scmp.ne.s32.totalorder %s94, %s108
    %p110 = scmp.eq.s32.totalorder %s21, 0
    %p111 = por %p109, %p110
    %s113 = sadd.s32 %s112, 1
    %p116 = scmp.eq.s32.totalorder %s15, 1
    %p117 = scmp.ne.s32.totalorder %s112, %s114
    %p118 = scmp.eq.s32.totalorder %s15, 0
    %p119 = por %p117, %p118
    %p120 = scmp.ne.s32.totalorder %s112, %s114
    %p121 = scmp.eq.s32.totalorder %s20, 1
    %p122 = por %p120, %p121
    %p123 = scmp.ne.s32.totalorder %s114, %s115
    %p124 = scmp.eq.s32.totalorder %s20, 0
    %p125 = por %p123, %p124
    %p126 = scmp.ne.s32.totalorder %s114, %s115
    %p127 = scmp.eq.s32.totalorder %s21, 1
    %p128 = por %p126, %p127
    %p130 = scmp.ne.s32.totalorder %s115, %s129
    %p131 = scmp.eq.s32.totalorder %s21, 0
    %p132 = por %p130, %p131
    %s134 = sadd.s32 %s133, 1
    %p137 = scmp.eq.s32.totalorder %s15, 1
    %p138 = scmp.ne.s32.totalorder %s133, %s135
    %p139 = scmp.eq.s32.totalorder %s15, 0
    %p140 = por %p138, %p139
    %p141 = scmp.ne.s32.totalorder %s133, %s135
    %p142 = scmp.eq.s32.totalorder %s20, 1
    %p143 = por %p141, %p142
    %p144 = scmp.ne.s32.totalorder %s135, %s136
    %p145 = scmp.eq.s32.totalorder %s20, 0
    %p146 = por %p144, %p145
    %p147 = scmp.ne.s32.totalorder %s135, %s136
    %p148 = scmp.eq.s32.totalorder %s21, 1
    %p149 = por %p147, %p148
    %p151 = scmp.ne.s32.totalorder %s136, %s150
    %p152 = scmp.eq.s32.totalorder %s21, 0
    %p153 = por %p151, %p152
    %s155 = sadd.s32 %s154, 1
    %p158 = scmp.eq.s32.totalorder %s15, 1
    %p159 = scmp.ne.s32.totalorder %s154, %s156
    %p160 = scmp.eq.s32.totalorder %s15, 0
    %p161 = por %p159, %p160
    %p162 = scmp.ne.s32.totalorder %s154, %s156
    %p163 = scmp.eq.s32.totalorder %s20, 1
    %p164 = por %p162, %p163
    %p165 = scmp.ne.s32.totalorder %s156, %s157
    %p166 = scmp.eq.s32.totalorder %s20, 0
    %p167 = por %p165, %p166
    %p168 = scmp.ne.s32.totalorder %s156, %s157
    %p169 = scmp.eq.s32.totalorder %s21, 1
    %p170 = por %p168, %p169
    %p172 = scmp.ne.s32.totalorder %s157, %s171
    %p173 = scmp.eq.s32.totalorder %s21, 0
    %p174 = por %p172, %p173
    %s175 = ssub.s32 %s15, %s22
    %p176 = scmp.eq.s32.totalorder %s175, 0
    %s178 = sadd.s32 %s177, 1
    %s179 = scalar_select %p176, %s177, %s178
    %p182 = pneg %p176
    %p183 = scmp.eq.s32.totalorder %s15, 1
    %p184 = por %p182, %p183
    %p185 = scmp.ne.s32.totalorder %s177, %s180
    %p186 = scmp.eq.s32.totalorder %s15, 0
    %p187 = por %p185, %p186
    %p188 = scmp.ne.s32.totalorder %s177, %s180
    %p189 = scmp.eq.s32.totalorder %s20, 1
    %p190 = por %p188, %p189
    %p191 = scmp.ne.s32.totalorder %s180, %s181
    %p192 = scmp.eq.s32.totalorder %s20, 0
    %p193 = por %p191, %p192
    %p194 = scmp.ne.s32.totalorder %s180, %s181
    %p195 = scmp.eq.s32.totalorder %s21, 1
    %p196 = por %p194, %p195
    %p198 = scmp.ne.s32.totalorder %s181, %s197
    %p199 = scmp.eq.s32.totalorder %s21, 0
    %p200 = por %p198, %p199
    %s201 = ssub.s32 %s15, %s22
    %p202 = scmp.eq.s32.totalorder %s201, 0
    %s204 = sadd.s32 %s203, 1
    %s205 = scalar_select %p202, %s203, %s204
    %p208 = pneg %p202
    %p209 = scmp.eq.s32.totalorder %s15, 1
    %p210 = por %p208, %p209
    %p211 = scmp.ne.s32.totalorder %s203, %s206
    %p212 = scmp.eq.s32.totalorder %s15, 0
    %p213 = por %p211, %p212
    %p214 = scmp.ne.s32.totalorder %s203, %s206
    %p215 = scmp.eq.s32.totalorder %s20, 1
    %p216 = por %p214, %p215
    %p217 = scmp.ne.s32.totalorder %s206, %s207
    %p218 = scmp.eq.s32.totalorder %s20, 0
    %p219 = por %p217, %p218
    %p220 = scmp.ne.s32.totalorder %s206, %s207
    %p221 = scmp.eq.s32.totalorder %s21, 1
    %p222 = por %p220, %p221
    %p224 = scmp.ne.s32.totalorder %s207, %s223
    %p225 = scmp.eq.s32.totalorder %s21, 0
    %p226 = por %p224, %p225
    %p227 = scmp.le.s32.totalorder 1, %s15
    %p228 = scmp.lt.s32.totalorder %s15, 3
    %p229 = pnand %p227, %p228
    %p230 = pneg %p229
    // Predicated region
    $region9: #{attention_module_0.16} parent=5 // pred_check
      _
    $region10: #{attention_module_0.16} parent=5 // pred_check_branch
      %232 = sbr.rel (%p229) target = $region12
    $region11: #{attention_module_0.16} parent=5 // pred_region
      %s233 = ssub.s32 %s15, 1
      // Predicated region
      $region13: #{attention_module_0.16} parent=11 // pred_check
        %p234 = pneg %p62
      $region14: #{attention_module_0.16} parent=11 // pred_check_branch
        %236 = sbr.rel (%p234) target = $region16
      $region15: #{attention_module_0.16} parent=11 // pred_region
        _
      $region16: #{attention_module_0.16} parent=11 // pred_fallthru
        _
      // Predicated region
      $region17: #{attention_module_0.16} parent=11 // pred_check
        %p237 = pneg %p83
      $region18: #{attention_module_0.16} parent=11 // pred_check_branch
        %239 = sbr.rel (%p237) target = $region20
      $region19: #{attention_module_0.16} parent=11 // pred_region
        _
      $region20: #{attention_module_0.16} parent=11 // pred_fallthru
        _
      // Predicated region
      $region21: #{attention_module_0.16} parent=11 // pred_check
        %p240 = pneg %p104
      $region22: #{attention_module_0.16} parent=11 // pred_check_branch
        %242 = sbr.rel (%p240) target = $region24
      $region23: #{attention_module_0.16} parent=11 // pred_region
        _
      $region24: #{attention_module_0.16} parent=11 // pred_fallthru
        _
      // Predicated region
      $region25: #{attention_module_0.16} parent=11 // pred_check
        %p243 = pneg %p125
      $region26: #{attention_module_0.16} parent=11 // pred_check_branch
        %245 = sbr.rel (%p243) target = $region28
      $region27: #{attention_module_0.16} parent=11 // pred_region
        _
      $region28: #{attention_module_0.16} parent=11 // pred_fallthru
        _
      // Predicated region
      $region29: #{attention_module_0.16} parent=11 // pred_check
        %p246 = pneg %p146
      $region30: #{attention_module_0.16} parent=11 // pred_check_branch
        %248 = sbr.rel (%p246) target = $region32
      $region31: #{attention_module_0.16} parent=11 // pred_region
        _
      $region32: #{attention_module_0.16} parent=11 // pred_fallthru
        _
      // Predicated region
      $region33: #{attention_module_0.16} parent=11 // pred_check
        %p249 = pneg %p167
      $region34: #{attention_module_0.16} parent=11 // pred_check_branch
        %251 = sbr.rel (%p249) target = $region36
      $region35: #{attention_module_0.16} parent=11 // pred_region
        _
      $region36: #{attention_module_0.16} parent=11 // pred_fallthru
        _
    $region12: #{attention_module_0.16} parent=5 // pred_fallthru
      _
    %p252 = scmp.lt.s32.totalorder %s15, 2
    // Predicated region
    $region37: #{attention_module_0.16} parent=5 // pred_check
      %p253 = pneg %p252
    $region38: #{attention_module_0.16} parent=5 // pred_check_branch
      %255 = sbr.rel (%p253) target = $region40
    $region39: #{attention_module_0.16} parent=5 // pred_region
      // Predicated region
      $region41: #{attention_module_0.16} parent=39 // pred_check
        %p256 = pneg %p35
      $region42: #{attention_module_0.16} parent=39 // pred_check_branch
        %258 = sbr.rel (%p256) target = $region44
      $region43: #{attention_module_0.16} parent=39 // pred_region
        %s259 = smul.u32 32, %s15
        %p260 = scmp.lt.s32.totalorder %s259, 63
        %s261 = scalar_select %p260, %s259, 63
        %s262 = smul.addr %s261, 8
        %s263 = scalar_lea.vmem %s0, %s262
        %s264 = smul.u32 32, %s15
      $region44: #{attention_module_0.16} parent=39 // pred_fallthru
        _
    $region40: #{attention_module_0.16} parent=5 // pred_fallthru
      _
    %p265 = scmp.le.s32.totalorder 1, %s15
    %p266 = scmp.lt.s32.totalorder %s15, 3
    %p267 = pnand %p265, %p266
    %p268 = pneg %p267
    // Predicated region
    $region45: #{attention_module_0.16} parent=5 // pred_check
      _
    $region46: #{attention_module_0.16} parent=5 // pred_check_branch
      %270 = sbr.rel (%p267) target = $region48
    $region47: #{attention_module_0.16} parent=5 // pred_region
      %s271 = ssub.s32 %s15, 1
      %s272 = smul.u32 32, %s20
      %p273 = scmp.lt.s32.totalorder %s272, 63
      %s274 = scalar_select %p273, %s272, 63
      %s275 = smul.addr %s274, 8
      %s276 = scalar_lea.vmem %s0, %s275
      %p277 = pneg %p41
      %p278 = pneg %p38
      %p279 = pneg %p62
      %p280 = pneg %p59
      %p281 = pneg %p83
      %p282 = pneg %p80
      %p283 = pneg %p104
      %p284 = pneg %p101
      %p285 = pneg %p125
      %p286 = pneg %p122
      %p287 = pneg %p146
      %p288 = pneg %p143
      %p289 = pneg %p167
      %p290 = pneg %p164
      %p291 = pneg %p193
      %p292 = pneg %p190
      %s293 = smul.u32 32, %s20
      %p294 = scmp.lt.s32.totalorder %s293, 63
      %s295 = scalar_select %p294, %s293, 63
      %s296 = smul.addr %s295, 8
      %s297 = scalar_lea.vmem %s7, %s296
      %p298 = pneg %p219
      %p299 = pneg %p216
      %s300 = smul.u32 32, %s20
      %p301 = scmp.lt.s32.totalorder %s300, 63
      %s302 = scalar_select %p301, %s300, 63
      %s303 = smul.addr %s302, 8
      %s304 = scalar_lea.vmem %s8, %s303
      %s305 = smul.u32 32, %s20
      %p306 = scmp.lt.s32.totalorder %s305, 63
      %s307 = scalar_select %p306, %s305, 63
      %s308 = smul.addr %s307, 8
      %s309 = scalar_lea.vmem %s0, %s308
      %s310 = smul.u32 32, %s20
      %s311 = smul.u32 32, %s20
      %p312 = scmp.lt.s32.totalorder %s311, 63
      %s313 = scalar_select %p312, %s311, 63
      %s314 = smul.addr %s313, 8
      %s315 = scalar_lea.vmem %s7, %s314
      %s316 = smul.u32 32, %s20
      %s317 = smul.u32 32, %s20
      %p318 = scmp.lt.s32.totalorder %s317, 63
      %s319 = scalar_select %p318, %s317, 63
      %s320 = smul.addr %s319, 8
      %s321 = scalar_lea.vmem %s8, %s320
      %s322 = smul.u32 32, %s20
      %v323 = vld [vmem:[%s309] sm:$0xff]
      %v324 = vld [vmem:[%s309 + $0x8] sm:$0xff]
      %v325 = vld [vmem:[%s309 + $0x10] sm:$0xff]
      %v326 = vld [vmem:[%s309 + $0x18] sm:$0xff]
      %v327 = vld [vmem:[%s309 + $0x20] sm:$0xff]
      %v328 = vld [vmem:[%s309 + $0x28] sm:$0xff]
      %v329 = vld [vmem:[%s309 + $0x30] sm:$0xff]
      %v330 = vld [vmem:[%s309 + $0x38] sm:$0xff]
      %v331 = vld [vmem:[%s309 + $0x40] sm:$0xff]
      %v332 = vld [vmem:[%s309 + $0x48] sm:$0xff]
      %v333 = vld [vmem:[%s309 + $0x50] sm:$0xff]
      %v334 = vld [vmem:[%s309 + $0x58] sm:$0xff]
      %v335 = vld [vmem:[%s309 + $0x60] sm:$0xff]
      %v336 = vld [vmem:[%s309 + $0x68] sm:$0xff]
      %v337 = vld [vmem:[%s309 + $0x70] sm:$0xff]
      %v338 = vld [vmem:[%s309 + $0x78] sm:$0xff]
      %v339 = vld [vmem:[%s309 + $0x80] sm:$0xff]
      %v340 = vld [vmem:[%s309 + $0x88] sm:$0xff]
      %v341 = vld [vmem:[%s309 + $0x90] sm:$0xff]
      %v342 = vld [vmem:[%s309 + $0x98] sm:$0xff]
      %v343 = vld [vmem:[%s309 + $0xa0] sm:$0xff]
      %v344 = vld [vmem:[%s309 + $0xa8] sm:$0xff]
      %v345 = vld [vmem:[%s309 + $0xb0] sm:$0xff]
      %v346 = vld [vmem:[%s309 + $0xb8] sm:$0xff]
      %v347 = vld [vmem:[%s309 + $0xc0] sm:$0xff]
      %v348 = vld [vmem:[%s309 + $0xc8] sm:$0xff]
      %v349 = vld [vmem:[%s309 + $0xd0] sm:$0xff]
      %v350 = vld [vmem:[%s309 + $0xd8] sm:$0xff]
      %v351 = vld [vmem:[%s309 + $0xe0] sm:$0xff]
      %v352 = vld [vmem:[%s309 + $0xe8] sm:$0xff]
      %v353 = vld [vmem:[%s309 + $0xf0] sm:$0xff]
      %v354 = vld [vmem:[%s309 + $0xf8] sm:$0xff]
      %v355 = vld [vmem:[%s1] sm:$0x1]
      %v357 = vperm.slane %v355, 0
      %v359 = vmul.f32 %v323, %v357
      %v360 = vmul.f32 %v324, %v357
      %v361 = vmul.f32 %v325, %v357
      %v362 = vmul.f32 %v326, %v357
      %v363 = vmul.f32 %v327, %v357
      %v364 = vmul.f32 %v328, %v357
      %v365 = vmul.f32 %v329, %v357
      %v366 = vmul.f32 %v330, %v357
      %v367 = vmul.f32 %v331, %v357
      %v368 = vmul.f32 %v332, %v357
      %v369 = vmul.f32 %v333, %v357
      %v370 = vmul.f32 %v334, %v357
      %v371 = vmul.f32 %v335, %v357
      %v372 = vmul.f32 %v336, %v357
      %v373 = vmul.f32 %v337, %v357
      %v374 = vmul.f32 %v338, %v357
      %v375 = vmul.f32 %v339, %v357
      %v376 = vmul.f32 %v340, %v357
      %v377 = vmul.f32 %v341, %v357
      %v378 = vmul.f32 %v342, %v357
      %v379 = vmul.f32 %v343, %v357
      %v380 = vmul.f32 %v344, %v357
      %v381 = vmul.f32 %v345, %v357
      %v382 = vmul.f32 %v346, %v357
      %v383 = vmul.f32 %v347, %v357
      %v384 = vmul.f32 %v348, %v357
      %v385 = vmul.f32 %v349, %v357
      %v386 = vmul.f32 %v350, %v357
      %v387 = vmul.f32 %v351, %v357
      %v388 = vmul.f32 %v352, %v357
      %v389 = vmul.f32 %v353, %v357
      %v390 = vmul.f32 %v354, %v357
      %v391 = vld [vmem:[%s2] sm:$0x1]
      %v393 = vperm.slane %v391, 0
      %v395 = vadd.f32 %v359, %v393
      %v396 = vadd.f32 %v360, %v393
      %v397 = vadd.f32 %v361, %v393
      %v398 = vadd.f32 %v362, %v393
      %v399 = vadd.f32 %v363, %v393
      %v400 = vadd.f32 %v364, %v393
      %v401 = vadd.f32 %v365, %v393
      %v402 = vadd.f32 %v366, %v393
      %v403 = vadd.f32 %v367, %v393
      %v404 = vadd.f32 %v368, %v393
      %v405 = vadd.f32 %v369, %v393
      %v406 = vadd.f32 %v370, %v393
      %v407 = vadd.f32 %v371, %v393
      %v408 = vadd.f32 %v372, %v393
      %v409 = vadd.f32 %v373, %v393
      %v410 = vadd.f32 %v374, %v393
      %v411 = vadd.f32 %v375, %v393
      %v412 = vadd.f32 %v376, %v393
      %v413 = vadd.f32 %v377, %v393
      %v414 = vadd.f32 %v378, %v393
      %v415 = vadd.f32 %v379, %v393
      %v416 = vadd.f32 %v380, %v393
      %v417 = vadd.f32 %v381, %v393
      %v418 = vadd.f32 %v382, %v393
      %v419 = vadd.f32 %v383, %v393
      %v420 = vadd.f32 %v384, %v393
      %v421 = vadd.f32 %v385, %v393
      %v422 = vadd.f32 %v386, %v393
      %v423 = vadd.f32 %v387, %v393
      %v424 = vadd.f32 %v388, %v393
      %v425 = vadd.f32 %v389, %v393
      %v426 = vadd.f32 %v390, %v393
      %v427 = vmax.f32 %v395, 0.0
      %v428 = vmax.f32 %v396, 0.0
      %v429 = vmax.f32 %v397, 0.0
      %v430 = vmax.f32 %v398, 0.0
      %v431 = vmax.f32 %v399, 0.0
      %v432 = vmax.f32 %v400, 0.0
      %v433 = vmax.f32 %v401, 0.0
      %v434 = vmax.f32 %v402, 0.0
      %v435 = vmax.f32 %v403, 0.0
      %v436 = vmax.f32 %v404, 0.0
      %v437 = vmax.f32 %v405, 0.0
      %v438 = vmax.f32 %v406, 0.0
      %v439 = vmax.f32 %v407, 0.0
      %v440 = vmax.f32 %v408, 0.0
      %v441 = vmax.f32 %v409, 0.0
      %v442 = vmax.f32 %v410, 0.0
      %v443 = vmax.f32 %v411, 0.0
      %v444 = vmax.f32 %v412, 0.0
      %v445 = vmax.f32 %v413, 0.0
      %v446 = vmax.f32 %v414, 0.0
      %v447 = vmax.f32 %v415, 0.0
      %v448 = vmax.f32 %v416, 0.0
      %v449 = vmax.f32 %v417, 0.0
      %v450 = vmax.f32 %v418, 0.0
      %v451 = vmax.f32 %v419, 0.0
      %v452 = vmax.f32 %v420, 0.0
      %v453 = vmax.f32 %v421, 0.0
      %v454 = vmax.f32 %v422, 0.0
      %v455 = vmax.f32 %v423, 0.0
      %v456 = vmax.f32 %v424, 0.0
      %v457 = vmax.f32 %v425, 0.0
      %v458 = vmax.f32 %v426, 0.0
      %v459 = vld [vmem:[%s3] sm:$0xf]
      %vm460 = vcmask 31744
      %v462 = vsel %vm460, %v427, 0
      %v465 = vsel %vm460, %v428, 0
      %v468 = vsel %vm460, %v429, 0
      %v471 = vsel %vm460, %v430, 0
      %v474 = vsel %vm460, %v431, 0
      %v477 = vsel %vm460, %v432, 0
      %v480 = vsel %vm460, %v433, 0
      %v483 = vsel %vm460, %v434, 0
      %v486 = vsel %vm460, %v435, 0
      %v489 = vsel %vm460, %v436, 0
      %v492 = vsel %vm460, %v437, 0
      %v495 = vsel %vm460, %v438, 0
      %v498 = vsel %vm460, %v439, 0
      %v501 = vsel %vm460, %v440, 0
      %v504 = vsel %vm460, %v441, 0
      %v507 = vsel %vm460, %v442, 0
      %v510 = vsel %vm460, %v443, 0
      %v513 = vsel %vm460, %v444, 0
      %v516 = vsel %vm460, %v445, 0
      %v519 = vsel %vm460, %v446, 0
      %v522 = vsel %vm460, %v447, 0
      %v525 = vsel %vm460, %v448, 0
      %v528 = vsel %vm460, %v449, 0
      %v531 = vsel %vm460, %v450, 0
      %v534 = vsel %vm460, %v451, 0
      %v537 = vsel %vm460, %v452, 0
      %v540 = vsel %vm460, %v453, 0
      %v543 = vsel %vm460, %v454, 0
      %v546 = vsel %vm460, %v455, 0
      %v549 = vsel %vm460, %v456, 0
      %v552 = vsel %vm460, %v457, 0
      %v555 = vsel %vm460, %v458, 0
      %vm557 = vcmask 1043456
      %v559 = vsel %vm557, %v459, 0
      %561 = vmatpush.msra.mxu0 0.0
      %562 = vmatpush.msra.mxu0 0.0
      %563 = vmatpush.msra.mxu0 0.0
      %564 = vmatpush.msra.mxu0 0.0
      %565 = vmatpush.msra.mxu0 0.0
      %566 = vmatpush.msra.mxu0 0.0
      %567 = vmatpush.msra.mxu0 0.0
      %568 = vmatpush.msra.mxu0 0.0
      %569 = vmatpush.msra.mxu0 0.0
      %570 = vmatpush.msra.mxu0 0.0
      %571 = vmatpush.msra.mxu0 0.0
      %572 = vmatpush.msra.mxu0 0.0
      %573 = vmatpush.msra.mxu0 0.0
      %574 = vmatpush.msra.mxu0 0.0
      %575 = vmatpush.msra.mxu0 0.0
      %576 = vmatpush.msra.mxu0 %v559
      %577 = vmatmul.f32.gmra.mxu0 %v462
      %v578 = vpop.f32.mrf.mxu0
      %v579 = vadd.f32 0.0, %v578
      %580 = vmatmul.f32.gmra.mxu0 %v465
      %v581 = vpop.f32.mrf.mxu0
      %v582 = vadd.f32 0.0, %v581
      %583 = vmatmul.f32.gmra.mxu0 %v468
      %v584 = vpop.f32.mrf.mxu0
      %v585 = vadd.f32 0.0, %v584
      %586 = vmatmul.f32.gmra.mxu0 %v471
      %v587 = vpop.f32.mrf.mxu0
      %v588 = vadd.f32 0.0, %v587
      %589 = vmatmul.f32.gmra.mxu0 %v474
      %v590 = vpop.f32.mrf.mxu0
      %v591 = vadd.f32 0.0, %v590
      %592 = vmatmul.f32.gmra.mxu0 %v477
      %v593 = vpop.f32.mrf.mxu0
      %v594 = vadd.f32 0.0, %v593
      %595 = vmatmul.f32.gmra.mxu0 %v480
      %v596 = vpop.f32.mrf.mxu0
      %v597 = vadd.f32 0.0, %v596
      %598 = vmatmul.f32.gmra.mxu0 %v483
      %v599 = vpop.f32.mrf.mxu0
      %v600 = vadd.f32 0.0, %v599
      %601 = vmatmul.f32.gmra.mxu0 %v486
      %v602 = vpop.f32.mrf.mxu0
      %v603 = vadd.f32 0.0, %v602
      %604 = vmatmul.f32.gmra.mxu0 %v489
      %v605 = vpop.f32.mrf.mxu0
      %v606 = vadd.f32 0.0, %v605
      %607 = vmatmul.f32.gmra.mxu0 %v492
      %v608 = vpop.f32.mrf.mxu0
      %v609 = vadd.f32 0.0, %v608
      %610 = vmatmul.f32.gmra.mxu0 %v495
      %v611 = vpop.f32.mrf.mxu0
      %v612 = vadd.f32 0.0, %v611
      %613 = vmatmul.f32.gmra.mxu0 %v498
      %v614 = vpop.f32.mrf.mxu0
      %v615 = vadd.f32 0.0, %v614
      %616 = vmatmul.f32.gmra.mxu0 %v501
      %v617 = vpop.f32.mrf.mxu0
      %v618 = vadd.f32 0.0, %v617
      %619 = vmatmul.f32.gmra.mxu0 %v504
      %v620 = vpop.f32.mrf.mxu0
      %v621 = vadd.f32 0.0, %v620
      %622 = vmatmul.f32.gmra.mxu0 %v507
      %v623 = vpop.f32.mrf.mxu0
      %v624 = vadd.f32 0.0, %v623
      %625 = vmatmul.f32.gmra.mxu0 %v510
      %v626 = vpop.f32.mrf.mxu0
      %v627 = vadd.f32 0.0, %v626
      %628 = vmatmul.f32.gmra.mxu0 %v513
      %v629 = vpop.f32.mrf.mxu0
      %v630 = vadd.f32 0.0, %v629
      %631 = vmatmul.f32.gmra.mxu0 %v516
      %v632 = vpop.f32.mrf.mxu0
      %v633 = vadd.f32 0.0, %v632
      %634 = vmatmul.f32.gmra.mxu0 %v519
      %v635 = vpop.f32.mrf.mxu0
      %v636 = vadd.f32 0.0, %v635
      %637 = vmatmul.f32.gmra.mxu0 %v522
      %v638 = vpop.f32.mrf.mxu0
      %v639 = vadd.f32 0.0, %v638
      %640 = vmatmul.f32.gmra.mxu0 %v525
      %v641 = vpop.f32.mrf.mxu0
      %v642 = vadd.f32 0.0, %v641
      %643 = vmatmul.f32.gmra.mxu0 %v528
      %v644 = vpop.f32.mrf.mxu0
      %v645 = vadd.f32 0.0, %v644
      %646 = vmatmul.f32.gmra.mxu0 %v531
      %v647 = vpop.f32.mrf.mxu0
      %v648 = vadd.f32 0.0, %v647
      %649 = vmatmul.f32.gmra.mxu0 %v534
      %v650 = vpop.f32.mrf.mxu0
      %v651 = vadd.f32 0.0, %v650
      %652 = vmatmul.f32.gmra.mxu0 %v537
      %v653 = vpop.f32.mrf.mxu0
      %v654 = vadd.f32 0.0, %v653
      %655 = vmatmul.f32.gmra.mxu0 %v540
      %v656 = vpop.f32.mrf.mxu0
      %v657 = vadd.f32 0.0, %v656
      %658 = vmatmul.f32.gmra.mxu0 %v543
      %v659 = vpop.f32.mrf.mxu0
      %v660 = vadd.f32 0.0, %v659
      %661 = vmatmul.f32.gmra.mxu0 %v546
      %v662 = vpop.f32.mrf.mxu0
      %v663 = vadd.f32 0.0, %v662
      %664 = vmatmul.f32.gmra.mxu0 %v549
      %v665 = vpop.f32.mrf.mxu0
      %v666 = vadd.f32 0.0, %v665
      %667 = vmatmul.f32.gmra.mxu0 %v552
      %v668 = vpop.f32.mrf.mxu0
      %v669 = vadd.f32 0.0, %v668
      %670 = vmatmul.f32.gmra.mxu0 %v555
      %v671 = vpop.f32.mrf.mxu0
      %v672 = vadd.f32 0.0, %v671
      %673 = vdwg.mxu0
      %v674 = vld [vmem:[%s4] sm:$0x1]
      %v676 = vperm.slane %v674, 0
      %v678 = vmul.f32 %v579, %v676
      %v679 = vmul.f32 %v582, %v676
      %v680 = vmul.f32 %v585, %v676
      %v681 = vmul.f32 %v588, %v676
      %v682 = vmul.f32 %v591, %v676
      %v683 = vmul.f32 %v594, %v676
      %v684 = vmul.f32 %v597, %v676
      %v685 = vmul.f32 %v600, %v676
      %v686 = vmul.f32 %v603, %v676
      %v687 = vmul.f32 %v606, %v676
      %v688 = vmul.f32 %v609, %v676
      %v689 = vmul.f32 %v612, %v676
      %v690 = vmul.f32 %v615, %v676
      %v691 = vmul.f32 %v618, %v676
      %v692 = vmul.f32 %v621, %v676
      %v693 = vmul.f32 %v624, %v676
      %v694 = vmul.f32 %v627, %v676
      %v695 = vmul.f32 %v630, %v676
      %v696 = vmul.f32 %v633, %v676
      %v697 = vmul.f32 %v636, %v676
      %v698 = vmul.f32 %v639, %v676
      %v699 = vmul.f32 %v642, %v676
      %v700 = vmul.f32 %v645, %v676
      %v701 = vmul.f32 %v648, %v676
      %v702 = vmul.f32 %v651, %v676
      %v703 = vmul.f32 %v654, %v676
      %v704 = vmul.f32 %v657, %v676
      %v705 = vmul.f32 %v660, %v676
      %v706 = vmul.f32 %v663, %v676
      %v707 = vmul.f32 %v666, %v676
      %v708 = vmul.f32 %v669, %v676
      %v709 = vmul.f32 %v672, %v676
      %v710 = vld [vmem:[%s5] sm:$0x1]
      %v712 = vperm.slane %v710, 0
      %v714 = vadd.f32 %v678, %v712
      %v715 = vadd.f32 %v679, %v712
      %v716 = vadd.f32 %v680, %v712
      %v717 = vadd.f32 %v681, %v712
      %v718 = vadd.f32 %v682, %v712
      %v719 = vadd.f32 %v683, %v712
      %v720 = vadd.f32 %v684, %v712
      %v721 = vadd.f32 %v685, %v712
      %v722 = vadd.f32 %v686, %v712
      %v723 = vadd.f32 %v687, %v712
      %v724 = vadd.f32 %v688, %v712
      %v725 = vadd.f32 %v689, %v712
      %v726 = vadd.f32 %v690, %v712
      %v727 = vadd.f32 %v691, %v712
      %v728 = vadd.f32 %v692, %v712
      %v729 = vadd.f32 %v693, %v712
      %v730 = vadd.f32 %v694, %v712
      %v731 = vadd.f32 %v695, %v712
      %v732 = vadd.f32 %v696, %v712
      %v733 = vadd.f32 %v697, %v712
      %v734 = vadd.f32 %v698, %v712
      %v735 = vadd.f32 %v699, %v712
      %v736 = vadd.f32 %v700, %v712
      %v737 = vadd.f32 %v701, %v712
      %v738 = vadd.f32 %v702, %v712
      %v739 = vadd.f32 %v703, %v712
      %v740 = vadd.f32 %v704, %v712
      %v741 = vadd.f32 %v705, %v712
      %v742 = vadd.f32 %v706, %v712
      %v743 = vadd.f32 %v707, %v712
      %v744 = vadd.f32 %v708, %v712
      %v745 = vadd.f32 %v709, %v712
      %v746 = vmax.f32 %v714, 0.0
      %v747 = vmax.f32 %v715, 0.0
      %v748 = vmax.f32 %v716, 0.0
      %v749 = vmax.f32 %v717, 0.0
      %v750 = vmax.f32 %v718, 0.0
      %v751 = vmax.f32 %v719, 0.0
      %v752 = vmax.f32 %v720, 0.0
      %v753 = vmax.f32 %v721, 0.0
      %v754 = vmax.f32 %v722, 0.0
      %v755 = vmax.f32 %v723, 0.0
      %v756 = vmax.f32 %v724, 0.0
      %v757 = vmax.f32 %v725, 0.0
      %v758 = vmax.f32 %v726, 0.0
      %v759 = vmax.f32 %v727, 0.0
      %v760 = vmax.f32 %v728, 0.0
      %v761 = vmax.f32 %v729, 0.0
      %v762 = vmax.f32 %v730, 0.0
      %v763 = vmax.f32 %v731, 0.0
      %v764 = vmax.f32 %v732, 0.0
      %v765 = vmax.f32 %v733, 0.0
      %v766 = vmax.f32 %v734, 0.0
      %v767 = vmax.f32 %v735, 0.0
      %v768 = vmax.f32 %v736, 0.0
      %v769 = vmax.f32 %v737, 0.0
      %v770 = vmax.f32 %v738, 0.0
      %v771 = vmax.f32 %v739, 0.0
      %v772 = vmax.f32 %v740, 0.0
      %v773 = vmax.f32 %v741, 0.0
      %v774 = vmax.f32 %v742, 0.0
      %v775 = vmax.f32 %v743, 0.0
      %v776 = vmax.f32 %v744, 0.0
      %v777 = vmax.f32 %v745, 0.0
      %vm778 = vcmask 15360
      %779 = vst.msk [vmem:[%s315] sm:$0xff] %vm778, %v746
      %780 = vst.msk [vmem:[%s315 + $0x8] sm:$0xff] %vm778, %v747
      %781 = vst.msk [vmem:[%s315 + $0x10] sm:$0xff] %vm778, %v748
      %782 = vst.msk [vmem:[%s315 + $0x18] sm:$0xff] %vm778, %v749
      %783 = vst.msk [vmem:[%s315 + $0x20] sm:$0xff] %vm778, %v750
      %784 = vst.msk [vmem:[%s315 + $0x28] sm:$0xff] %vm778, %v751
      %785 = vst.msk [vmem:[%s315 + $0x30] sm:$0xff] %vm778, %v752
      %786 = vst.msk [vmem:[%s315 + $0x38] sm:$0xff] %vm778, %v753
      %787 = vst.msk [vmem:[%s315 + $0x40] sm:$0xff] %vm778, %v754
      %788 = vst.msk [vmem:[%s315 + $0x48] sm:$0xff] %vm778, %v755
      %789 = vst.msk [vmem:[%s315 + $0x50] sm:$0xff] %vm778, %v756
      %790 = vst.msk [vmem:[%s315 + $0x58] sm:$0xff] %vm778, %v757
      %791 = vst.msk [vmem:[%s315 + $0x60] sm:$0xff] %vm778, %v758
      %792 = vst.msk [vmem:[%s315 + $0x68] sm:$0xff] %vm778, %v759
      %793 = vst.msk [vmem:[%s315 + $0x70] sm:$0xff] %vm778, %v760
      %794 = vst.msk [vmem:[%s315 + $0x78] sm:$0xff] %vm778, %v761
      %795 = vst.msk [vmem:[%s315 + $0x80] sm:$0xff] %vm778, %v762
      %796 = vst.msk [vmem:[%s315 + $0x88] sm:$0xff] %vm778, %v763
      %797 = vst.msk [vmem:[%s315 + $0x90] sm:$0xff] %vm778, %v764
      %798 = vst.msk [vmem:[%s315 + $0x98] sm:$0xff] %vm778, %v765
      %799 = vst.msk [vmem:[%s315 + $0xa0] sm:$0xff] %vm778, %v766
      %800 = vst.msk [vmem:[%s315 + $0xa8] sm:$0xff] %vm778, %v767
      %801 = vst.msk [vmem:[%s315 + $0xb0] sm:$0xff] %vm778, %v768
      %802 = vst.msk [vmem:[%s315 + $0xb8] sm:$0xff] %vm778, %v769
      %803 = vst.msk [vmem:[%s315 + $0xc0] sm:$0xff] %vm778, %v770
      %804 = vst.msk [vmem:[%s315 + $0xc8] sm:$0xff] %vm778, %v771
      %805 = vst.msk [vmem:[%s315 + $0xd0] sm:$0xff] %vm778, %v772
      %806 = vst.msk [vmem:[%s315 + $0xd8] sm:$0xff] %vm778, %v773
      %807 = vst.msk [vmem:[%s315 + $0xe0] sm:$0xff] %vm778, %v774
      %808 = vst.msk [vmem:[%s315 + $0xe8] sm:$0xff] %vm778, %v775
      %809 = vst.msk [vmem:[%s315 + $0xf0] sm:$0xff] %vm778, %v776
      %810 = vst.msk [vmem:[%s315 + $0xf8] sm:$0xff] %vm778, %v777
      %v811 = vld [vmem:[%s6] sm:$0xf]
      %v813 = vsel %vm557, %v811, 0
      %815 = vmatpush.msra.mxu0 0.0
      %816 = vmatpush.msra.mxu0 0.0
      %817 = vmatpush.msra.mxu0 0.0
      %818 = vmatpush.msra.mxu0 0.0
      %819 = vmatpush.msra.mxu0 0.0
      %820 = vmatpush.msra.mxu0 0.0
      %821 = vmatpush.msra.mxu0 0.0
      %822 = vmatpush.msra.mxu0 0.0
      %823 = vmatpush.msra.mxu0 0.0
      %824 = vmatpush.msra.mxu0 0.0
      %825 = vmatpush.msra.mxu0 0.0
      %826 = vmatpush.msra.mxu0 0.0
      %827 = vmatpush.msra.mxu0 0.0
      %828 = vmatpush.msra.mxu0 0.0
      %829 = vmatpush.msra.mxu0 0.0
      %830 = vmatpush.msra.mxu0 %v813
      %831 = vmatmul.f32.gmra.mxu0 %v462
      %v832 = vpop.f32.mrf.mxu0
      %v833 = vadd.f32 0.0, %v832
      %834 = vmatmul.f32.gmra.mxu0 %v465
      %v835 = vpop.f32.mrf.mxu0
      %v836 = vadd.f32 0.0, %v835
      %837 = vmatmul.f32.gmra.mxu0 %v468
      %v838 = vpop.f32.mrf.mxu0
      %v839 = vadd.f32 0.0, %v838
      %840 = vmatmul.f32.gmra.mxu0 %v471
      %v841 = vpop.f32.mrf.mxu0
      %v842 = vadd.f32 0.0, %v841
      %843 = vmatmul.f32.gmra.mxu0 %v474
      %v844 = vpop.f32.mrf.mxu0
      %v845 = vadd.f32 0.0, %v844
      %846 = vmatmul.f32.gmra.mxu0 %v477
      %v847 = vpop.f32.mrf.mxu0
      %v848 = vadd.f32 0.0, %v847
      %849 = vmatmul.f32.gmra.mxu0 %v480
      %v850 = vpop.f32.mrf.mxu0
      %v851 = vadd.f32 0.0, %v850
      %852 = vmatmul.f32.gmra.mxu0 %v483
      %v853 = vpop.f32.mrf.mxu0
      %v854 = vadd.f32 0.0, %v853
      %855 = vmatmul.f32.gmra.mxu0 %v486
      %v856 = vpop.f32.mrf.mxu0
      %v857 = vadd.f32 0.0, %v856
      %858 = vmatmul.f32.gmra.mxu0 %v489
      %v859 = vpop.f32.mrf.mxu0
      %v860 = vadd.f32 0.0, %v859
      %861 = vmatmul.f32.gmra.mxu0 %v492
      %v862 = vpop.f32.mrf.mxu0
      %v863 = vadd.f32 0.0, %v862
      %864 = vmatmul.f32.gmra.mxu0 %v495
      %v865 = vpop.f32.mrf.mxu0
      %v866 = vadd.f32 0.0, %v865
      %867 = vmatmul.f32.gmra.mxu0 %v498
      %v868 = vpop.f32.mrf.mxu0
      %v869 = vadd.f32 0.0, %v868
      %870 = vmatmul.f32.gmra.mxu0 %v501
      %v871 = vpop.f32.mrf.mxu0
      %v872 = vadd.f32 0.0, %v871
      %873 = vmatmul.f32.gmra.mxu0 %v504
      %v874 = vpop.f32.mrf.mxu0
      %v875 = vadd.f32 0.0, %v874
      %876 = vmatmul.f32.gmra.mxu0 %v507
      %v877 = vpop.f32.mrf.mxu0
      %v878 = vadd.f32 0.0, %v877
      %879 = vmatmul.f32.gmra.mxu0 %v510
      %v880 = vpop.f32.mrf.mxu0
      %v881 = vadd.f32 0.0, %v880
      %882 = vmatmul.f32.gmra.mxu0 %v513
      %v883 = vpop.f32.mrf.mxu0
      %v884 = vadd.f32 0.0, %v883
      %885 = vmatmul.f32.gmra.mxu0 %v516
      %v886 = vpop.f32.mrf.mxu0
      %v887 = vadd.f32 0.0, %v886
      %888 = vmatmul.f32.gmra.mxu0 %v519
      %v889 = vpop.f32.mrf.mxu0
      %v890 = vadd.f32 0.0, %v889
      %891 = vmatmul.f32.gmra.mxu0 %v522
      %v892 = vpop.f32.mrf.mxu0
      %v893 = vadd.f32 0.0, %v892
      %894 = vmatmul.f32.gmra.mxu0 %v525
      %v895 = vpop.f32.mrf.mxu0
      %v896 = vadd.f32 0.0, %v895
      %897 = vmatmul.f32.gmra.mxu0 %v528
      %v898 = vpop.f32.mrf.mxu0
      %v899 = vadd.f32 0.0, %v898
      %900 = vmatmul.f32.gmra.mxu0 %v531
      %v901 = vpop.f32.mrf.mxu0
      %v902 = vadd.f32 0.0, %v901
      %903 = vmatmul.f32.gmra.mxu0 %v534
      %v904 = vpop.f32.mrf.mxu0
      %v905 = vadd.f32 0.0, %v904
      %906 = vmatmul.f32.gmra.mxu0 %v537
      %v907 = vpop.f32.mrf.mxu0
      %v908 = vadd.f32 0.0, %v907
      %909 = vmatmul.f32.gmra.mxu0 %v540
      %v910 = vpop.f32.mrf.mxu0
      %v911 = vadd.f32 0.0, %v910
      %912 = vmatmul.f32.gmra.mxu0 %v543
      %v913 = vpop.f32.mrf.mxu0
      %v914 = vadd.f32 0.0, %v913
      %915 = vmatmul.f32.gmra.mxu0 %v546
      %v916 = vpop.f32.mrf.mxu0
      %v917 = vadd.f32 0.0, %v916
      %918 = vmatmul.f32.gmra.mxu0 %v549
      %v919 = vpop.f32.mrf.mxu0
      %v920 = vadd.f32 0.0, %v919
      %921 = vmatmul.f32.gmra.mxu0 %v552
      %v922 = vpop.f32.mrf.mxu0
      %v923 = vadd.f32 0.0, %v922
      %924 = vmatmul.f32.gmra.mxu0 %v555
      %v925 = vpop.f32.mrf.mxu0
      %v926 = vadd.f32 0.0, %v925
      %927 = vdwg.mxu0
      %vm928 = vcmask 64512
      %929 = vst.msk [vmem:[%s321] sm:$0xff] %vm928, %v833
      %930 = vst.msk [vmem:[%s321 + $0x8] sm:$0xff] %vm928, %v836
      %931 = vst.msk [vmem:[%s321 + $0x10] sm:$0xff] %vm928, %v839
      %932 = vst.msk [vmem:[%s321 + $0x18] sm:$0xff] %vm928, %v842
      %933 = vst.msk [vmem:[%s321 + $0x20] sm:$0xff] %vm928, %v845
      %934 = vst.msk [vmem:[%s321 + $0x28] sm:$0xff] %vm928, %v848
      %935 = vst.msk [vmem:[%s321 + $0x30] sm:$0xff] %vm928, %v851
      %936 = vst.msk [vmem:[%s321 + $0x38] sm:$0xff] %vm928, %v854
      %937 = vst.msk [vmem:[%s321 + $0x40] sm:$0xff] %vm928, %v857
      %938 = vst.msk [vmem:[%s321 + $0x48] sm:$0xff] %vm928, %v860
      %939 = vst.msk [vmem:[%s321 + $0x50] sm:$0xff] %vm928, %v863
      %940 = vst.msk [vmem:[%s321 + $0x58] sm:$0xff] %vm928, %v866
      %941 = vst.msk [vmem:[%s321 + $0x60] sm:$0xff] %vm928, %v869
      %942 = vst.msk [vmem:[%s321 + $0x68] sm:$0xff] %vm928, %v872
      %943 = vst.msk [vmem:[%s321 + $0x70] sm:$0xff] %vm928, %v875
      %944 = vst.msk [vmem:[%s321 + $0x78] sm:$0xff] %vm928, %v878
      %945 = vst.msk [vmem:[%s321 + $0x80] sm:$0xff] %vm928, %v881
      %946 = vst.msk [vmem:[%s321 + $0x88] sm:$0xff] %vm928, %v884
      %947 = vst.msk [vmem:[%s321 + $0x90] sm:$0xff] %vm928, %v887
      %948 = vst.msk [vmem:[%s321 + $0x98] sm:$0xff] %vm928, %v890
      %949 = vst.msk [vmem:[%s321 + $0xa0] sm:$0xff] %vm928, %v893
      %950 = vst.msk [vmem:[%s321 + $0xa8] sm:$0xff] %vm928, %v896
      %951 = vst.msk [vmem:[%s321 + $0xb0] sm:$0xff] %vm928, %v899
      %952 = vst.msk [vmem:[%s321 + $0xb8] sm:$0xff] %vm928, %v902
      %953 = vst.msk [vmem:[%s321 + $0xc0] sm:$0xff] %vm928, %v905
      %954 = vst.msk [vmem:[%s321 + $0xc8] sm:$0xff] %vm928, %v908
      %955 = vst.msk [vmem:[%s321 + $0xd0] sm:$0xff] %vm928, %v911
      %956 = vst.msk [vmem:[%s321 + $0xd8] sm:$0xff] %vm928, %v914
      %957 = vst.msk [vmem:[%s321 + $0xe0] sm:$0xff] %vm928, %v917
      %958 = vst.msk [vmem:[%s321 + $0xe8] sm:$0xff] %vm928, %v920
      %959 = vst.msk [vmem:[%s321 + $0xf0] sm:$0xff] %vm928, %v923
      %960 = vst.msk [vmem:[%s321 + $0xf8] sm:$0xff] %vm928, %v926
      %s961 = smul.u32 32, %s20
      %p962 = scmp.lt.s32.totalorder %s961, 63
      %s963 = scalar_select %p962, %s961, 63
      %s964 = smul.addr %s963, 8
      %s965 = scalar_lea.vmem %s7, %s964
      %s966 = smul.u32 32, %s20
      %p967 = scmp.lt.s32.totalorder %s966, 63
      %s968 = scalar_select %p967, %s966, 63
      %s969 = smul.addr %s968, 8
      %s970 = scalar_lea.vmem %s8, %s969
      // Predicated region
      $region49: #{attention_module_0.16} parent=47 // pred_check
        %p971 = pneg %p190
      $region50: #{attention_module_0.16} parent=47 // pred_check_branch
        %973 = sbr.rel (%p971) target = $region52
      $region51: #{attention_module_0.16} parent=47 // pred_region
        %s974 = smul.u32 32, %s20
      $region52: #{attention_module_0.16} parent=47 // pred_fallthru
        _
      // Predicated region
      $region53: #{attention_module_0.16} parent=47 // pred_check
        %p975 = pneg %p216
      $region54: #{attention_module_0.16} parent=47 // pred_check_branch
        %977 = sbr.rel (%p975) target = $region56
      $region55: #{attention_module_0.16} parent=47 // pred_region
        %s978 = smul.u32 32, %s20
      $region56: #{attention_module_0.16} parent=47 // pred_fallthru
        _
    $region48: #{attention_module_0.16} parent=5 // pred_fallthru
      _
    %p979 = scmp.le.s32.totalorder 2, %s15
    // Predicated region
    $region57: #{attention_module_0.16} parent=5 // pred_check
      %p980 = pneg %p979
    $region58: #{attention_module_0.16} parent=5 // pred_check_branch
      %982 = sbr.rel (%p980) target = $region60
    $region59: #{attention_module_0.16} parent=5 // pred_region
      %s983 = ssub.s32 %s15, 2
      // Predicated region
      $region61: #{attention_module_0.16} parent=59 // pred_check
        %p984 = pneg %p196
      $region62: #{attention_module_0.16} parent=59 // pred_check_branch
        %986 = sbr.rel (%p984) target = $region64
      $region63: #{attention_module_0.16} parent=59 // pred_region
        %s987 = smul.u32 32, %s21
        %p988 = scmp.lt.s32.totalorder %s987, 63
        %s989 = scalar_select %p988, %s987, 63
        %s990 = smul.addr %s989, 8
        %s991 = scalar_lea.vmem %s7, %s990
      $region64: #{attention_module_0.16} parent=59 // pred_fallthru
        _
      // Predicated region
      $region65: #{attention_module_0.16} parent=59 // pred_check
        %p992 = pneg %p222
      $region66: #{attention_module_0.16} parent=59 // pred_check_branch
        %994 = sbr.rel (%p992) target = $region68
      $region67: #{attention_module_0.16} parent=59 // pred_region
        %s995 = smul.u32 32, %s21
        %p996 = scmp.lt.s32.totalorder %s995, 63
        %s997 = scalar_select %p996, %s995, 63
        %s998 = smul.addr %s997, 8
        %s999 = scalar_lea.vmem %s8, %s998
      $region68: #{attention_module_0.16} parent=59 // pred_fallthru
        _
    $region60: #{attention_module_0.16} parent=5 // pred_fallthru
      _
  $region6: #{attention_module_0.16} parent=0 // loop_footer
    %s19 = sadd.s32 1, %s15
  $region7: #{attention_module_0.16} parent=0 // loop_footer_branch
    %14 = sbr.rel target = $region3
  $region8: #{attention_module_0.16} parent=0 // loop_exit
    _

// kernel: attention_module_0.22
$region0: #{attention_module_0.22}
  #allocation0 [shape = 'u32[]', space=smem, size = 0x4, offset = 0x4, fixed_abs, tag = 'smem constant byte address 0x4 - core index']
  #allocation1 [shape = 'u32[72,128]{1,0:T(1,128)}', space=vmem, size = 0x9000, scoped, tag = 'internal scratch']
  %s0 = inlined_call_operand.vmem [shape: f32[2,18,16,8], index: 0, kind: input, shape index: {}]
  %s1 = inlined_call_operand.vmem [shape: f32[2,8,16,8], index: 1, kind: output, shape index: {}]
  %s2 = sld [smem:[#allocation0]]
  $region37: #{attention_module_0.22} parent=0
    _
  %s4 = ssub.s32 1, %s2
  %s5 = scalar_select 0, %s4, %s2
  loop: start=0, step=1, limit=4
  $region2: #{attention_module_0.22} parent=0 // loop_pre_header
    _
  $region3: #{attention_module_0.22} parent=0 // loop_header
    %s7 = sphi 0, %s11
    %p8 = scmp.ge.s32.totalorder %s7, 4
    %s17 = sphi 0, %s19
    %s20 = sphi 0, %s17
    %s21 = sphi 0, %s20
    %s37 = sphi 0, %s21
    %s43 = sphi 0, %s45
    %s46 = sphi 0, %s43
    %s47 = sphi 0, %s46
    %s63 = sphi 0, %s47
  $region4: #{attention_module_0.22} parent=0 // loop_header_branch
    %10 = sbr.rel (%p8) target = $region8
  $region5: #{attention_module_0.22} parent=0 // loop_body
    %s12 = ssub.s32 %s7, 1
    %s13 = ssub.s32 %s7, 2
    %s14 = sadd.s32 %s7, 1
    %s15 = ssub.s32 %s7, %s14
    %p16 = scmp.eq.s32.totalorder %s15, 0
    %s18 = sadd.s32 %s17, 1
    %s19 = scalar_select %p16, %s17, %s18
    %p22 = pneg %p16
    %p23 = scmp.eq.s32.totalorder %s7, 1
    %p24 = por %p22, %p23
    %p25 = scmp.ne.s32.totalorder %s17, %s20
    %p26 = scmp.eq.s32.totalorder %s7, 0
    %p27 = por %p25, %p26
    %p28 = scmp.ne.s32.totalorder %s17, %s20
    %p29 = scmp.eq.s32.totalorder %s12, 1
    %p30 = por %p28, %p29
    %p31 = scmp.ne.s32.totalorder %s20, %s21
    %p32 = scmp.eq.s32.totalorder %s12, 0
    %p33 = por %p31, %p32
    %p34 = scmp.ne.s32.totalorder %s20, %s21
    %p35 = scmp.eq.s32.totalorder %s13, 1
    %p36 = por %p34, %p35
    %p38 = scmp.ne.s32.totalorder %s21, %s37
    %p39 = scmp.eq.s32.totalorder %s13, 0
    %p40 = por %p38, %p39
    %s41 = ssub.s32 %s7, %s14
    %p42 = scmp.eq.s32.totalorder %s41, 0
    %s44 = sadd.s32 %s43, 1
    %s45 = scalar_select %p42, %s43, %s44
    %p48 = pneg %p42
    %p49 = scmp.eq.s32.totalorder %s7, 1
    %p50 = por %p48, %p49
    %p51 = scmp.ne.s32.totalorder %s43, %s46
    %p52 = scmp.eq.s32.totalorder %s7, 0
    %p53 = por %p51, %p52
    %p54 = scmp.ne.s32.totalorder %s43, %s46
    %p55 = scmp.eq.s32.totalorder %s12, 1
    %p56 = por %p54, %p55
    %p57 = scmp.ne.s32.totalorder %s46, %s47
    %p58 = scmp.eq.s32.totalorder %s12, 0
    %p59 = por %p57, %p58
    %p60 = scmp.ne.s32.totalorder %s46, %s47
    %p61 = scmp.eq.s32.totalorder %s13, 1
    %p62 = por %p60, %p61
    %p64 = scmp.ne.s32.totalorder %s47, %s63
    %p65 = scmp.eq.s32.totalorder %s13, 0
    %p66 = por %p64, %p65
    %p67 = scmp.le.s32.totalorder 1, %s7
    %p68 = scmp.lt.s32.totalorder %s7, 3
    %p69 = pnand %p67, %p68
    %p70 = pneg %p69
    // Predicated region
    $region9: #{attention_module_0.22} parent=5 // pred_check
      _
    $region10: #{attention_module_0.22} parent=5 // pred_check_branch
      %72 = sbr.rel (%p69) target = $region12
    $region11: #{attention_module_0.22} parent=5 // pred_region
      %s73 = ssub.s32 %s7, 1
    $region12: #{attention_module_0.22} parent=5 // pred_fallthru
      _
    %p74 = scmp.lt.s32.totalorder %s7, 2
    // Predicated region
    $region13: #{attention_module_0.22} parent=5 // pred_check
      %p75 = pneg %p74
    $region14: #{attention_module_0.22} parent=5 // pred_check_branch
      %77 = sbr.rel (%p75) target = $region16
    $region15: #{attention_module_0.22} parent=5 // pred_region
      // Predicated region
      $region17: #{attention_module_0.22} parent=15 // pred_check
        %p78 = pneg %p27
      $region18: #{attention_module_0.22} parent=15 // pred_check_branch
        %80 = sbr.rel (%p78) target = $region20
      $region19: #{attention_module_0.22} parent=15 // pred_region
        %p81 = scmp.lt.s32.totalorder %s7, 1
        %s82 = scalar_select %p81, %s7, 1
        %s83 = smul.addr %s82, 36
        %s84 = smul.addr %s83, 8
        %s85 = scalar_lea.vmem %s0, %s84
      $region20: #{attention_module_0.22} parent=15 // pred_fallthru
        _
    $region16: #{attention_module_0.22} parent=5 // pred_fallthru
      _
    %p86 = scmp.le.s32.totalorder 1, %s7
    %p87 = scmp.lt.s32.totalorder %s7, 3
    %p88 = pnand %p86, %p87
    %p89 = pneg %p88
    // Predicated region
    $region21: #{attention_module_0.22} parent=5 // pred_check
      _
    $region22: #{attention_module_0.22} parent=5 // pred_check_branch
      %91 = sbr.rel (%p88) target = $region24
    $region23: #{attention_module_0.22} parent=5 // pred_region
      %s92 = ssub.s32 %s7, 1
      %p93 = scmp.lt.s32.totalorder %s12, 1
      %s94 = scalar_select %p93, %s12, 1
      %s95 = smul.addr %s94, 36
      %s96 = smul.addr %s95, 8
      %s97 = scalar_lea.vmem %s0, %s96
      %p98 = pneg %p33
      %p99 = pneg %p30
      %p100 = pneg %p59
      %p101 = pneg %p56
      %p102 = scmp.lt.s32.totalorder %s12, 1
      %s103 = scalar_select %p102, %s12, 1
      %s104 = smul.addr %s103, 16
      %s105 = smul.addr %s104, 8
      %s106 = scalar_lea.vmem %s1, %s105
      %p107 = scmp.lt.s32.totalorder %s12, 1
      %s108 = scalar_select %p107, %s12, 1
      %s109 = smul.addr %s108, 36
      %s110 = smul.addr %s109, 8
      %s111 = scalar_lea.vmem %s0, %s110
      %p112 = scmp.lt.s32.totalorder %s12, 1
      %s113 = scalar_select %p112, %s12, 1
      %s114 = smul.addr %s113, 16
      %s115 = smul.addr %s114, 8
      %s116 = scalar_lea.vmem %s1, %s115
      %v117 = vld [vmem:[%s111] sm:$0xff]
      %v118 = vld [vmem:[%s111 + $0x8] sm:$0xff]
      %v119 = vld [vmem:[%s111 + $0x10] sm:$0xff]
      %v120 = vld [vmem:[%s111 + $0x18] sm:$0xff]
      %v121 = vld [vmem:[%s111 + $0x20] sm:$0xff]
      %v122 = vld [vmem:[%s111 + $0x28] sm:$0xff]
      %v123 = vld [vmem:[%s111 + $0x30] sm:$0xff]
      %v124 = vld [vmem:[%s111 + $0x38] sm:$0xff]
      %v125 = vld [vmem:[%s111 + $0x40] sm:$0xff]
      %v126 = vld [vmem:[%s111 + $0x48] sm:$0xff]
      %v127 = vld [vmem:[%s111 + $0x50] sm:$0xff]
      %v128 = vld [vmem:[%s111 + $0x58] sm:$0xff]
      %v129 = vld [vmem:[%s111 + $0x60] sm:$0xff]
      %v130 = vld [vmem:[%s111 + $0x68] sm:$0xff]
      %v131 = vld [vmem:[%s111 + $0x70] sm:$0xff]
      %v132 = vld [vmem:[%s111 + $0x78] sm:$0xff]
      %v133 = vld [vmem:[%s111 + $0x80] sm:$0xff]
      %v134 = vld [vmem:[%s111 + $0x88] sm:$0xff]
      %v135 = vld [vmem:[%s111 + $0x90] sm:$0xff]
      %v136 = vld [vmem:[%s111 + $0x98] sm:$0xff]
      %v137 = vld [vmem:[%s111 + $0xa0] sm:$0xff]
      %v138 = vld [vmem:[%s111 + $0xa8] sm:$0xff]
      %v139 = vld [vmem:[%s111 + $0xb0] sm:$0xff]
      %v140 = vld [vmem:[%s111 + $0xb8] sm:$0xff]
      %v141 = vld [vmem:[%s111 + $0xc0] sm:$0xff]
      %v142 = vld [vmem:[%s111 + $0xc8] sm:$0xff]
      %v143 = vld [vmem:[%s111 + $0xd0] sm:$0xff]
      %v144 = vld [vmem:[%s111 + $0xd8] sm:$0xff]
      %v145 = vld [vmem:[%s111 + $0xe0] sm:$0xff]
      %v146 = vld [vmem:[%s111 + $0xe8] sm:$0xff]
      %v147 = vld [vmem:[%s111 + $0xf0] sm:$0xff]
      %v148 = vld [vmem:[%s111 + $0xf8] sm:$0xff]
      %v149 = vld [vmem:[%s111 + $0x100] sm:$0xff]
      %v150 = vld [vmem:[%s111 + $0x108] sm:$0xff]
      %v151 = vmax.f32 %v117, %v119
      %v152 = vmax.f32 %v118, %v120
      %v153 = vmax.f32 %v121, %v123
      %v154 = vmax.f32 %v122, %v124
      %v155 = vmax.f32 %v125, %v127
      %v156 = vmax.f32 %v126, %v128
      %v157 = vmax.f32 %v129, %v131
      %v158 = vmax.f32 %v130, %v132
      %v159 = vmax.f32 %v133, %v135
      %v160 = vmax.f32 %v134, %v136
      %v161 = vmax.f32 %v137, %v139
      %v162 = vmax.f32 %v138, %v140
      %v163 = vmax.f32 %v141, %v143
      %v164 = vmax.f32 %v142, %v144
      %v165 = vmax.f32 %v145, %v147
      %v166 = vmax.f32 %v146, %v148
      %v167 = vmax.f32 %v151, %v121
      %v168 = vmax.f32 %v152, %v122
      %v169 = vmax.f32 %v153, %v125
      %v170 = vmax.f32 %v154, %v126
      %v171 = vmax.f32 %v155, %v129
      %v172 = vmax.f32 %v156, %v130
      %v173 = vmax.f32 %v157, %v133
      %v174 = vmax.f32 %v158, %v134
      %v175 = vmax.f32 %v159, %v137
      %v176 = vmax.f32 %v160, %v138
      %v177 = vmax.f32 %v161, %v141
      %v178 = vmax.f32 %v162, %v142
      %v179 = vmax.f32 %v163, %v145
      %v180 = vmax.f32 %v164, %v146
      %v181 = vmax.f32 %v165, %v149
      %v182 = vmax.f32 %v166, %v150
      %vm183 = vcmask 64512
      %184 = vst.msk [vmem:[%s116] sm:$0xff] %vm183, %v167
      %185 = vst.msk [vmem:[%s116 + $0x8] sm:$0xff] %vm183, %v168
      %186 = vst.msk [vmem:[%s116 + $0x10] sm:$0xff] %vm183, %v169
      %187 = vst.msk [vmem:[%s116 + $0x18] sm:$0xff] %vm183, %v170
      %188 = vst.msk [vmem:[%s116 + $0x20] sm:$0xff] %vm183, %v171
      %189 = vst.msk [vmem:[%s116 + $0x28] sm:$0xff] %vm183, %v172
      %190 = vst.msk [vmem:[%s116 + $0x30] sm:$0xff] %vm183, %v173
      %191 = vst.msk [vmem:[%s116 + $0x38] sm:$0xff] %vm183, %v174
      %192 = vst.msk [vmem:[%s116 + $0x40] sm:$0xff] %vm183, %v175
      %193 = vst.msk [vmem:[%s116 + $0x48] sm:$0xff] %vm183, %v176
      %194 = vst.msk [vmem:[%s116 + $0x50] sm:$0xff] %vm183, %v177
      %195 = vst.msk [vmem:[%s116 + $0x58] sm:$0xff] %vm183, %v178
      %196 = vst.msk [vmem:[%s116 + $0x60] sm:$0xff] %vm183, %v179
      %197 = vst.msk [vmem:[%s116 + $0x68] sm:$0xff] %vm183, %v180
      %198 = vst.msk [vmem:[%s116 + $0x70] sm:$0xff] %vm183, %v181
      %199 = vst.msk [vmem:[%s116 + $0x78] sm:$0xff] %vm183, %v182
      %p200 = scmp.lt.s32.totalorder %s12, 1
      %s201 = scalar_select %p200, %s12, 1
      %s202 = smul.addr %s201, 16
      %s203 = smul.addr %s202, 8
      %s204 = scalar_lea.vmem %s1, %s203
      // Predicated region
      $region25: #{attention_module_0.22} parent=23 // pred_check
        %p205 = pneg %p56
      $region26: #{attention_module_0.22} parent=23 // pred_check_branch
        %207 = sbr.rel (%p205) target = $region28
      $region27: #{attention_module_0.22} parent=23 // pred_region
        _
      $region28: #{attention_module_0.22} parent=23 // pred_fallthru
        _
    $region24: #{attention_module_0.22} parent=5 // pred_fallthru
      _
    %p208 = scmp.le.s32.totalorder 2, %s7
    // Predicated region
    $region29: #{attention_module_0.22} parent=5 // pred_check
      %p209 = pneg %p208
    $region30: #{attention_module_0.22} parent=5 // pred_check_branch
      %211 = sbr.rel (%p209) target = $region32
    $region31: #{attention_module_0.22} parent=5 // pred_region
      %s212 = ssub.s32 %s7, 2
      // Predicated region
      $region33: #{attention_module_0.22} parent=31 // pred_check
        %p213 = pneg %p62
      $region34: #{attention_module_0.22} parent=31 // pred_check_branch
        %215 = sbr.rel (%p213) target = $region36
      $region35: #{attention_module_0.22} parent=31 // pred_region
        %p216 = scmp.lt.s32.totalorder %s13, 1
        %s217 = scalar_select %p216, %s13, 1
        %s218 = smul.addr %s217, 16
        %s219 = smul.addr %s218, 8
        %s220 = scalar_lea.vmem %s1, %s219
      $region36: #{attention_module_0.22} parent=31 // pred_fallthru
        _
    $region32: #{attention_module_0.22} parent=5 // pred_fallthru
      _
  $region6: #{attention_module_0.22} parent=0 // loop_footer
    %s11 = sadd.s32 1, %s7
  $region7: #{attention_module_0.22} parent=0 // loop_footer_branch
    %6 = sbr.rel target = $region3
  $region8: #{attention_module_0.22} parent=0 // loop_exit
    _

// kernel: attention_module_0.17
$region0: #{attention_module_0.17}
  #allocation0 [shape = 'u32[]', space=smem, size = 0x4, offset = 0x4, fixed_abs, tag = 'smem constant byte address 0x4 - core index']
  #allocation1 [shape = 'u32[72,128]{1,0:T(1,128)}', space=vmem, size = 0x9000, scoped, tag = 'internal scratch']
  %s0 = inlined_call_operand.vmem [shape: f32[2,288,6], index: 0, kind: input, shape index: {}]
  %s1 = inlined_call_operand.vmem [shape: f32[3,6,2], index: 1, kind: input, shape index: {}]
  %s2 = inlined_call_operand.vmem [shape: f32[1,2], index: 2, kind: input, shape index: {}]
  %s3 = inlined_call_operand.vmem [shape: f32[1,2], index: 3, kind: input, shape index: {}]
  %s4 = inlined_call_operand.vmem [shape: f32[2,8], index: 4, kind: input, shape index: {}]
  %s5 = inlined_call_operand.vmem [shape: f32[2,256,8], index: 5, kind: input, shape index: {}]
  %s6 = inlined_call_operand.vmem [shape: f32[2,256,8], index: 6, kind: output, shape index: {}]
  %s7 = sld [smem:[#allocation0]]
  $region57: #{attention_module_0.17} parent=0
    _
  %s9 = ssub.s32 1, %s7
  %s10 = scalar_select 0, %s9, %s7
  loop: start=0, step=1, limit=4
  $region2: #{attention_module_0.17} parent=0 // loop_pre_header
    _
  $region3: #{attention_module_0.17} parent=0 // loop_header
    %s12 = sphi 0, %s16
    %p13 = scmp.ge.s32.totalorder %s12, 4
    %s22 = sphi 0, %s24
    %s25 = sphi 0, %s22
    %s26 = sphi 0, %s25
    %s42 = sphi 0, %s26
    %s46 = sphi 0, %s46
    %s48 = sphi 0, %s46
    %s49 = sphi 0, %s48
    %s63 = sphi 0, %s49
    %s67 = sphi 0, %s67
    %s69 = sphi 0, %s67
    %s70 = sphi 0, %s69
    %s84 = sphi 0, %s70
    %s88 = sphi 0, %s88
    %s90 = sphi 0, %s88
    %s91 = sphi 0, %s90
    %s105 = sphi 0, %s91
    %s109 = sphi 0, %s109
    %s111 = sphi 0, %s109
    %s112 = sphi 0, %s111
    %s126 = sphi 0, %s112
    %s132 = sphi 0, %s134
    %s135 = sphi 0, %s132
    %s136 = sphi 0, %s135
    %s152 = sphi 0, %s136
    %s158 = sphi 0, %s160
    %s161 = sphi 0, %s158
    %s162 = sphi 0, %s161
    %s178 = sphi 0, %s162
  $region4: #{attention_module_0.17} parent=0 // loop_header_branch
    %15 = sbr.rel (%p13) target = $region8
  $region5: #{attention_module_0.17} parent=0 // loop_body
    %s17 = ssub.s32 %s12, 1
    %s18 = ssub.s32 %s12, 2
    %s19 = sadd.s32 %s12, 1
    %s20 = ssub.s32 %s12, %s19
    %p21 = scmp.eq.s32.totalorder %s20, 0
    %s23 = sadd.s32 %s22, 1
    %s24 = scalar_select %p21, %s22, %s23
    %p27 = pneg %p21
    %p28 = scmp.eq.s32.totalorder %s12, 1
    %p29 = por %p27, %p28
    %p30 = scmp.ne.s32.totalorder %s22, %s25
    %p31 = scmp.eq.s32.totalorder %s12, 0
    %p32 = por %p30, %p31
    %p33 = scmp.ne.s32.totalorder %s22, %s25
    %p34 = scmp.eq.s32.totalorder %s17, 1
    %p35 = por %p33, %p34
    %p36 = scmp.ne.s32.totalorder %s25, %s26
    %p37 = scmp.eq.s32.totalorder %s17, 0
    %p38 = por %p36, %p37
    %p39 = scmp.ne.s32.totalorder %s25, %s26
    %p40 = scmp.eq.s32.totalorder %s18, 1
    %p41 = por %p39, %p40
    %p43 = scmp.ne.s32.totalorder %s26, %s42
    %p44 = scmp.eq.s32.totalorder %s18, 0
    %p45 = por %p43, %p44
    %s47 = sadd.s32 %s46, 1
    %p50 = scmp.eq.s32.totalorder %s12, 1
    %p51 = scmp.ne.s32.totalorder %s46, %s48
    %p52 = scmp.eq.s32.totalorder %s12, 0
    %p53 = por %p51, %p52
    %p54 = scmp.ne.s32.totalorder %s46, %s48
    %p55 = scmp.eq.s32.totalorder %s17, 1
    %p56 = por %p54, %p55
    %p57 = scmp.ne.s32.totalorder %s48, %s49
    %p58 = scmp.eq.s32.totalorder %s17, 0
    %p59 = por %p57, %p58
    %p60 = scmp.ne.s32.totalorder %s48, %s49
    %p61 = scmp.eq.s32.totalorder %s18, 1
    %p62 = por %p60, %p61
    %p64 = scmp.ne.s32.totalorder %s49, %s63
    %p65 = scmp.eq.s32.totalorder %s18, 0
    %p66 = por %p64, %p65
    %s68 = sadd.s32 %s67, 1
    %p71 = scmp.eq.s32.totalorder %s12, 1
    %p72 = scmp.ne.s32.totalorder %s67, %s69
    %p73 = scmp.eq.s32.totalorder %s12, 0
    %p74 = por %p72, %p73
    %p75 = scmp.ne.s32.totalorder %s67, %s69
    %p76 = scmp.eq.s32.totalorder %s17, 1
    %p77 = por %p75, %p76
    %p78 = scmp.ne.s32.totalorder %s69, %s70
    %p79 = scmp.eq.s32.totalorder %s17, 0
    %p80 = por %p78, %p79
    %p81 = scmp.ne.s32.totalorder %s69, %s70
    %p82 = scmp.eq.s32.totalorder %s18, 1
    %p83 = por %p81, %p82
    %p85 = scmp.ne.s32.totalorder %s70, %s84
    %p86 = scmp.eq.s32.totalorder %s18, 0
    %p87 = por %p85, %p86
    %s89 = sadd.s32 %s88, 1
    %p92 = scmp.eq.s32.totalorder %s12, 1
    %p93 = scmp.ne.s32.totalorder %s88, %s90
    %p94 = scmp.eq.s32.totalorder %s12, 0
    %p95 = por %p93, %p94
    %p96 = scmp.ne.s32.totalorder %s88, %s90
    %p97 = scmp.eq.s32.totalorder %s17, 1
    %p98 = por %p96, %p97
    %p99 = scmp.ne.s32.totalorder %s90, %s91
    %p100 = scmp.eq.s32.totalorder %s17, 0
    %p101 = por %p99, %p100
    %p102 = scmp.ne.s32.totalorder %s90, %s91
    %p103 = scmp.eq.s32.totalorder %s18, 1
    %p104 = por %p102, %p103
    %p106 = scmp.ne.s32.totalorder %s91, %s105
    %p107 = scmp.eq.s32.totalorder %s18, 0
    %p108 = por %p106, %p107
    %s110 = sadd.s32 %s109, 1
    %p113 = scmp.eq.s32.totalorder %s12, 1
    %p114 = scmp.ne.s32.totalorder %s109, %s111
    %p115 = scmp.eq.s32.totalorder %s12, 0
    %p116 = por %p114, %p115
    %p117 = scmp.ne.s32.totalorder %s109, %s111
    %p118 = scmp.eq.s32.totalorder %s17, 1
    %p119 = por %p117, %p118
    %p120 = scmp.ne.s32.totalorder %s111, %s112
    %p121 = scmp.eq.s32.totalorder %s17, 0
    %p122 = por %p120, %p121
    %p123 = scmp.ne.s32.totalorder %s111, %s112
    %p124 = scmp.eq.s32.totalorder %s18, 1
    %p125 = por %p123, %p124
    %p127 = scmp.ne.s32.totalorder %s112, %s126
    %p128 = scmp.eq.s32.totalorder %s18, 0
    %p129 = por %p127, %p128
    %s130 = ssub.s32 %s12, %s19
    %p131 = scmp.eq.s32.totalorder %s130, 0
    %s133 = sadd.s32 %s132, 1
    %s134 = scalar_select %p131, %s132, %s133
    %p137 = pneg %p131
    %p138 = scmp.eq.s32.totalorder %s12, 1
    %p139 = por %p137, %p138
    %p140 = scmp.ne.s32.totalorder %s132, %s135
    %p141 = scmp.eq.s32.totalorder %s12, 0
    %p142 = por %p140, %p141
    %p143 = scmp.ne.s32.totalorder %s132, %s135
    %p144 = scmp.eq.s32.totalorder %s17, 1
    %p145 = por %p143, %p144
    %p146 = scmp.ne.s32.totalorder %s135, %s136
    %p147 = scmp.eq.s32.totalorder %s17, 0
    %p148 = por %p146, %p147
    %p149 = scmp.ne.s32.totalorder %s135, %s136
    %p150 = scmp.eq.s32.totalorder %s18, 1
    %p151 = por %p149, %p150
    %p153 = scmp.ne.s32.totalorder %s136, %s152
    %p154 = scmp.eq.s32.totalorder %s18, 0
    %p155 = por %p153, %p154
    %s156 = ssub.s32 %s12, %s19
    %p157 = scmp.eq.s32.totalorder %s156, 0
    %s159 = sadd.s32 %s158, 1
    %s160 = scalar_select %p157, %s158, %s159
    %p163 = pneg %p157
    %p164 = scmp.eq.s32.totalorder %s12, 1
    %p165 = por %p163, %p164
    %p166 = scmp.ne.s32.totalorder %s158, %s161
    %p167 = scmp.eq.s32.totalorder %s12, 0
    %p168 = por %p166, %p167
    %p169 = scmp.ne.s32.totalorder %s158, %s161
    %p170 = scmp.eq.s32.totalorder %s17, 1
    %p171 = por %p169, %p170
    %p172 = scmp.ne.s32.totalorder %s161, %s162
    %p173 = scmp.eq.s32.totalorder %s17, 0
    %p174 = por %p172, %p173
    %p175 = scmp.ne.s32.totalorder %s161, %s162
    %p176 = scmp.eq.s32.totalorder %s18, 1
    %p177 = por %p175, %p176
    %p179 = scmp.ne.s32.totalorder %s162, %s178
    %p180 = scmp.eq.s32.totalorder %s18, 0
    %p181 = por %p179, %p180
    %p182 = scmp.le.s32.totalorder 1, %s12
    %p183 = scmp.lt.s32.totalorder %s12, 3
    %p184 = pnand %p182, %p183
    %p185 = pneg %p184
    // Predicated region
    $region9: #{attention_module_0.17} parent=5 // pred_check
      _
    $region10: #{attention_module_0.17} parent=5 // pred_check_branch
      %187 = sbr.rel (%p184) target = $region12
    $region11: #{attention_module_0.17} parent=5 // pred_region
      %s188 = ssub.s32 %s12, 1
      // Predicated region
      $region13: #{attention_module_0.17} parent=11 // pred_check
        %p189 = pneg %p59
      $region14: #{attention_module_0.17} parent=11 // pred_check_branch
        %191 = sbr.rel (%p189) target = $region16
      $region15: #{attention_module_0.17} parent=11 // pred_region
        _
      $region16: #{attention_module_0.17} parent=11 // pred_fallthru
        _
      // Predicated region
      $region17: #{attention_module_0.17} parent=11 // pred_check
        %p192 = pneg %p80
      $region18: #{attention_module_0.17} parent=11 // pred_check_branch
        %194 = sbr.rel (%p192) target = $region20
      $region19: #{attention_module_0.17} parent=11 // pred_region
        _
      $region20: #{attention_module_0.17} parent=11 // pred_fallthru
        _
      // Predicated region
      $region21: #{attention_module_0.17} parent=11 // pred_check
        %p195 = pneg %p101
      $region22: #{attention_module_0.17} parent=11 // pred_check_branch
        %197 = sbr.rel (%p195) target = $region24
      $region23: #{attention_module_0.17} parent=11 // pred_region
        _
      $region24: #{attention_module_0.17} parent=11 // pred_fallthru
        _
      // Predicated region
      $region25: #{attention_module_0.17} parent=11 // pred_check
        %p198 = pneg %p122
      $region26: #{attention_module_0.17} parent=11 // pred_check_branch
        %200 = sbr.rel (%p198) target = $region28
      $region27: #{attention_module_0.17} parent=11 // pred_region
        _
      $region28: #{attention_module_0.17} parent=11 // pred_fallthru
        _
    $region12: #{attention_module_0.17} parent=5 // pred_fallthru
      _
    %p201 = scmp.lt.s32.totalorder %s12, 2
    // Predicated region
    $region29: #{attention_module_0.17} parent=5 // pred_check
      %p202 = pneg %p201
    $region30: #{attention_module_0.17} parent=5 // pred_check_branch
      %204 = sbr.rel (%p202) target = $region32
    $region31: #{attention_module_0.17} parent=5 // pred_region
      // Predicated region
      $region33: #{attention_module_0.17} parent=31 // pred_check
        %p205 = pneg %p32
      $region34: #{attention_module_0.17} parent=31 // pred_check_branch
        %207 = sbr.rel (%p205) target = $region36
      $region35: #{attention_module_0.17} parent=31 // pred_region
        %p208 = scmp.lt.s32.totalorder %s12, 1
        %s209 = scalar_select %p208, %s12, 1
        %s210 = smul.addr %s209, 36
        %s211 = smul.addr %s210, 8
        %s212 = scalar_lea.vmem %s0, %s211
      $region36: #{attention_module_0.17} parent=31 // pred_fallthru
        _
      // Predicated region
      $region37: #{attention_module_0.17} parent=31 // pred_check
        %p213 = pneg %p142
      $region38: #{attention_module_0.17} parent=31 // pred_check_branch
        %215 = sbr.rel (%p213) target = $region40
      $region39: #{attention_module_0.17} parent=31 // pred_region
        %p216 = scmp.lt.s32.totalorder %s12, 1
        %s217 = scalar_select %p216, %s12, 1
        %s218 = smul.addr %s217, 32
        %s219 = smul.addr %s218, 8
        %s220 = scalar_lea.vmem %s5, %s219
      $region40: #{attention_module_0.17} parent=31 // pred_fallthru
        _
    $region32: #{attention_module_0.17} parent=5 // pred_fallthru
      _
    %p221 = scmp.le.s32.totalorder 1, %s12
    %p222 = scmp.lt.s32.totalorder %s12, 3
    %p223 = pnand %p221, %p222
    %p224 = pneg %p223
    // Predicated region
    $region41: #{attention_module_0.17} parent=5 // pred_check
      _
    $region42: #{attention_module_0.17} parent=5 // pred_check_branch
      %226 = sbr.rel (%p223) target = $region44
    $region43: #{attention_module_0.17} parent=5 // pred_region
      %s227 = ssub.s32 %s12, 1
      %p228 = scmp.lt.s32.totalorder %s17, 1
      %s229 = scalar_select %p228, %s17, 1
      %s230 = smul.addr %s229, 36
      %s231 = smul.addr %s230, 8
      %s232 = scalar_lea.vmem %s0, %s231
      %p233 = pneg %p38
      %p234 = pneg %p35
      %p235 = pneg %p59
      %p236 = pneg %p56
      %p237 = pneg %p80
      %p238 = pneg %p77
      %p239 = pneg %p101
      %p240 = pneg %p98
      %p241 = pneg %p122
      %p242 = pneg %p119
      %p243 = scmp.lt.s32.totalorder %s17, 1
      %s244 = scalar_select %p243, %s17, 1
      %s245 = smul.addr %s244, 32
      %s246 = smul.addr %s245, 8
      %s247 = scalar_lea.vmem %s5, %s246
      %p248 = pneg %p148
      %p249 = pneg %p145
      %p250 = pneg %p174
      %p251 = pneg %p171
      %p252 = scmp.lt.s32.totalorder %s17, 1
      %s253 = scalar_select %p252, %s17, 1
      %s254 = smul.addr %s253, 32
      %s255 = smul.addr %s254, 8
      %s256 = scalar_lea.vmem %s6, %s255
      %p257 = scmp.lt.s32.totalorder %s17, 1
      %s258 = scalar_select %p257, %s17, 1
      %s259 = smul.addr %s258, 36
      %s260 = smul.addr %s259, 8
      %s261 = scalar_lea.vmem %s0, %s260
      %p262 = scmp.lt.s32.totalorder %s17, 1
      %s263 = scalar_select %p262, %s17, 1
      %s264 = smul.addr %s263, 32
      %s265 = smul.addr %s264, 8
      %s266 = scalar_lea.vmem %s5, %s265
      %p267 = scmp.lt.s32.totalorder %s17, 1
      %s268 = scalar_select %p267, %s17, 1
      %s269 = smul.addr %s268, 32
      %s270 = smul.addr %s269, 8
      %s271 = scalar_lea.vmem %s6, %s270
      %v272 = vld [vmem:[%s261] sm:$0xff]
      %v273 = vld [vmem:[%s261 + $0x8] sm:$0xff]
      %v274 = vld [vmem:[%s261 + $0x10] sm:$0xff]
      %v275 = vld [vmem:[%s261 + $0x18] sm:$0xff]
      %v276 = vld [vmem:[%s261 + $0x20] sm:$0xff]
      %v277 = vld [vmem:[%s261 + $0x28] sm:$0xff]
      %v278 = vld [vmem:[%s261 + $0x30] sm:$0xff]
      %v279 = vld [vmem:[%s261 + $0x38] sm:$0xff]
      %v280 = vld [vmem:[%s261 + $0x40] sm:$0xff]
      %v281 = vld [vmem:[%s261 + $0x48] sm:$0xff]
      %v282 = vld [vmem:[%s261 + $0x50] sm:$0xff]
      %v283 = vld [vmem:[%s261 + $0x58] sm:$0xff]
      %v284 = vld [vmem:[%s261 + $0x60] sm:$0xff]
      %v285 = vld [vmem:[%s261 + $0x68] sm:$0xff]
      %v286 = vld [vmem:[%s261 + $0x70] sm:$0xff]
      %v287 = vld [vmem:[%s261 + $0x78] sm:$0xff]
      %v288 = vld [vmem:[%s261 + $0x80] sm:$0xff]
      %v289 = vld [vmem:[%s261 + $0x88] sm:$0xff]
      %v290 = vld [vmem:[%s261 + $0x90] sm:$0xff]
      %v291 = vld [vmem:[%s261 + $0x98] sm:$0xff]
      %v292 = vld [vmem:[%s261 + $0xa0] sm:$0xff]
      %v293 = vld [vmem:[%s261 + $0xa8] sm:$0xff]
      %v294 = vld [vmem:[%s261 + $0xb0] sm:$0xff]
      %v295 = vld [vmem:[%s261 + $0xb8] sm:$0xff]
      %v296 = vld [vmem:[%s261 + $0xc0] sm:$0xff]
      %v297 = vld [vmem:[%s261 + $0xc8] sm:$0xff]
      %v298 = vld [vmem:[%s261 + $0xd0] sm:$0xff]
      %v299 = vld [vmem:[%s261 + $0xd8] sm:$0xff]
      %v300 = vld [vmem:[%s261 + $0xe0] sm:$0xff]
      %v301 = vld [vmem:[%s261 + $0xe8] sm:$0xff]
      %v302 = vld [vmem:[%s261 + $0xf0] sm:$0xff]
      %v303 = vld [vmem:[%s261 + $0xf8] sm:$0xff]
      %v304 = vld [vmem:[%s1] sm:$0x3f]
      %v305 = vld [vmem:[%s261 + $0x100] sm:$0xff]
      %v306 = vld [vmem:[%s261 + $0x108] sm:$0xff]
      %s307 = scalar_lea.vmem %s1, 8
      %v308 = vld [vmem:[%s307] sm:$0x3f]
      %vm309 = vcmask 48128
      %v311 = vsel %vm309, %v274, 0
      %v314 = vsel %vm309, %v275, 0
      %v317 = vsel %vm309, %v276, 0
      %v320 = vsel %vm309, %v277, 0
      %v323 = vsel %vm309, %v278, 0
      %v326 = vsel %vm309, %v279, 0
      %v329 = vsel %vm309, %v280, 0
      %v332 = vsel %vm309, %v281, 0
      %v335 = vsel %vm309, %v282, 0
      %v338 = vsel %vm309, %v283, 0
      %v341 = vsel %vm309, %v284, 0
      %v344 = vsel %vm309, %v285, 0
      %v347 = vsel %vm309, %v286, 0
      %v350 = vsel %vm309, %v287, 0
      %v353 = vsel %vm309, %v288, 0
      %v356 = vsel %vm309, %v289, 0
      %v359 = vsel %vm309, %v290, 0
      %v362 = vsel %vm309, %v291, 0
      %v365 = vsel %vm309, %v292, 0
      %v368 = vsel %vm309, %v293, 0
      %v371 = vsel %vm309, %v294, 0
      %v374 = vsel %vm309, %v295, 0
      %v377 = vsel %vm309, %v296, 0
      %v380 = vsel %vm309, %v297, 0
      %v383 = vsel %vm309, %v298, 0
      %v386 = vsel %vm309, %v299, 0
      %v389 = vsel %vm309, %v300, 0
      %v392 = vsel %vm309, %v301, 0
      %v395 = vsel %vm309, %v302, 0
      %v398 = vsel %vm309, %v303, 0
      %v401 = vsel %vm309, %v305, 0
      %v404 = vsel %vm309, %v306, 0
      %vm406 = vcmask 1045504
      %v408 = vsel %vm406, %v308, 0
      %410 = vmatpush.msra.mxu0 0.0
      %411 = vmatpush.msra.mxu0 0.0
      %412 = vmatpush.msra.mxu0 0.0
      %413 = vmatpush.msra.mxu0 0.0
      %414 = vmatpush.msra.mxu0 0.0
      %415 = vmatpush.msra.mxu0 0.0
      %416 = vmatpush.msra.mxu0 0.0
      %417 = vmatpush.msra.mxu0 0.0
      %418 = vmatpush.msra.mxu0 0.0
      %419 = vmatpush.msra.mxu0 0.0
      %420 = vmatpush.msra.mxu0 0.0
      %421 = vmatpush.msra.mxu0 0.0
      %422 = vmatpush.msra.mxu0 0.0
      %423 = vmatpush.msra.mxu0 0.0
      %424 = vmatpush.msra.mxu0 0.0
      %425 = vmatpush.msra.mxu0 %v408
      %426 = vmatmul.f32.gmra.mxu0 %v311
      %v427 = vpop.f32.mrf.mxu0
      %v428 = vadd.f32 0.0, %v427
      %429 = vmatmul.f32.gmra.mxu0 %v314
      %v430 = vpop.f32.mrf.mxu0
      %v431 = vadd.f32 0.0, %v430
      %432 = vmatmul.f32.gmra.mxu0 %v317
      %v433 = vpop.f32.mrf.mxu0
      %v434 = vadd.f32 0.0, %v433
      %435 = vmatmul.f32.gmra.mxu0 %v320
      %v436 = vpop.f32.mrf.mxu0
      %v437 = vadd.f32 0.0, %v436
      %438 = vmatmul.f32.gmra.mxu0 %v323
      %v439 = vpop.f32.mrf.mxu0
      %v440 = vadd.f32 0.0, %v439
      %441 = vmatmul.f32.gmra.mxu0 %v326
      %v442 = vpop.f32.mrf.mxu0
      %v443 = vadd.f32 0.0, %v442
      %444 = vmatmul.f32.gmra.mxu0 %v329
      %v445 = vpop.f32.mrf.mxu0
      %v446 = vadd.f32 0.0, %v445
      %447 = vmatmul.f32.gmra.mxu0 %v332
      %v448 = vpop.f32.mrf.mxu0
      %v449 = vadd.f32 0.0, %v448
      %450 = vmatmul.f32.gmra.mxu0 %v335
      %v451 = vpop.f32.mrf.mxu0
      %v452 = vadd.f32 0.0, %v451
      %453 = vmatmul.f32.gmra.mxu0 %v338
      %v454 = vpop.f32.mrf.mxu0
      %v455 = vadd.f32 0.0, %v454
      %456 = vmatmul.f32.gmra.mxu0 %v341
      %v457 = vpop.f32.mrf.mxu0
      %v458 = vadd.f32 0.0, %v457
      %459 = vmatmul.f32.gmra.mxu0 %v344
      %v460 = vpop.f32.mrf.mxu0
      %v461 = vadd.f32 0.0, %v460
      %462 = vmatmul.f32.gmra.mxu0 %v347
      %v463 = vpop.f32.mrf.mxu0
      %v464 = vadd.f32 0.0, %v463
      %465 = vmatmul.f32.gmra.mxu0 %v350
      %v466 = vpop.f32.mrf.mxu0
      %v467 = vadd.f32 0.0, %v466
      %468 = vmatmul.f32.gmra.mxu0 %v353
      %v469 = vpop.f32.mrf.mxu0
      %v470 = vadd.f32 0.0, %v469
      %471 = vmatmul.f32.gmra.mxu0 %v356
      %v472 = vpop.f32.mrf.mxu0
      %v473 = vadd.f32 0.0, %v472
      %474 = vmatmul.f32.gmra.mxu0 %v359
      %v475 = vpop.f32.mrf.mxu0
      %v476 = vadd.f32 0.0, %v475
      %477 = vmatmul.f32.gmra.mxu0 %v362
      %v478 = vpop.f32.mrf.mxu0
      %v479 = vadd.f32 0.0, %v478
      %480 = vmatmul.f32.gmra.mxu0 %v365
      %v481 = vpop.f32.mrf.mxu0
      %v482 = vadd.f32 0.0, %v481
      %483 = vmatmul.f32.gmra.mxu0 %v368
      %v484 = vpop.f32.mrf.mxu0
      %v485 = vadd.f32 0.0, %v484
      %486 = vmatmul.f32.gmra.mxu0 %v371
      %v487 = vpop.f32.mrf.mxu0
      %v488 = vadd.f32 0.0, %v487
      %489 = vmatmul.f32.gmra.mxu0 %v374
      %v490 = vpop.f32.mrf.mxu0
      %v491 = vadd.f32 0.0, %v490
      %492 = vmatmul.f32.gmra.mxu0 %v377
      %v493 = vpop.f32.mrf.mxu0
      %v494 = vadd.f32 0.0, %v493
      %495 = vmatmul.f32.gmra.mxu0 %v380
      %v496 = vpop.f32.mrf.mxu0
      %v497 = vadd.f32 0.0, %v496
      %498 = vmatmul.f32.gmra.mxu0 %v383
      %v499 = vpop.f32.mrf.mxu0
      %v500 = vadd.f32 0.0, %v499
      %501 = vmatmul.f32.gmra.mxu0 %v386
      %v502 = vpop.f32.mrf.mxu0
      %v503 = vadd.f32 0.0, %v502
      %504 = vmatmul.f32.gmra.mxu0 %v389
      %v505 = vpop.f32.mrf.mxu0
      %v506 = vadd.f32 0.0, %v505
      %507 = vmatmul.f32.gmra.mxu0 %v392
      %v508 = vpop.f32.mrf.mxu0
      %v509 = vadd.f32 0.0, %v508
      %510 = vmatmul.f32.gmra.mxu0 %v395
      %v511 = vpop.f32.mrf.mxu0
      %v512 = vadd.f32 0.0, %v511
      %513 = vmatmul.f32.gmra.mxu0 %v398
      %v514 = vpop.f32.mrf.mxu0
      %v515 = vadd.f32 0.0, %v514
      %516 = vmatmul.f32.gmra.mxu0 %v401
      %v517 = vpop.f32.mrf.mxu0
      %v518 = vadd.f32 0.0, %v517
      %519 = vmatmul.f32.gmra.mxu0 %v404
      %v520 = vpop.f32.mrf.mxu0
      %v521 = vadd.f32 0.0, %v520
      %522 = vdwg.mxu0
      %v524 = vsel %vm309, %v272, 0
      %v527 = vsel %vm309, %v273, 0
      %v530 = vsel %vm406, %v304, 0
      %532 = vmatpush.msra.mxu0 0.0
      %533 = vmatpush.msra.mxu0 0.0
      %534 = vmatpush.msra.mxu0 0.0
      %535 = vmatpush.msra.mxu0 0.0
      %536 = vmatpush.msra.mxu0 0.0
      %537 = vmatpush.msra.mxu0 0.0
      %538 = vmatpush.msra.mxu0 0.0
      %539 = vmatpush.msra.mxu0 0.0
      %540 = vmatpush.msra.mxu0 0.0
      %541 = vmatpush.msra.mxu0 0.0
      %542 = vmatpush.msra.mxu0 0.0
      %543 = vmatpush.msra.mxu0 0.0
      %544 = vmatpush.msra.mxu0 0.0
      %545 = vmatpush.msra.mxu0 0.0
      %546 = vmatpush.msra.mxu0 0.0
      %547 = vmatpush.msra.mxu0 %v530
      %548 = vmatmul.f32.gmra.mxu0 %v524
      %v549 = vpop.f32.mrf.mxu0
      %v550 = vadd.f32 %v428, %v549
      %551 = vmatmul.f32.gmra.mxu0 %v527
      %v552 = vpop.f32.mrf.mxu0
      %v553 = vadd.f32 %v431, %v552
      %554 = vmatmul.f32.gmra.mxu0 %v311
      %v555 = vpop.f32.mrf.mxu0
      %v556 = vadd.f32 %v434, %v555
      %557 = vmatmul.f32.gmra.mxu0 %v314
      %v558 = vpop.f32.mrf.mxu0
      %v559 = vadd.f32 %v437, %v558
      %560 = vmatmul.f32.gmra.mxu0 %v317
      %v561 = vpop.f32.mrf.mxu0
      %v562 = vadd.f32 %v440, %v561
      %563 = vmatmul.f32.gmra.mxu0 %v320
      %v564 = vpop.f32.mrf.mxu0
      %v565 = vadd.f32 %v443, %v564
      %566 = vmatmul.f32.gmra.mxu0 %v323
      %v567 = vpop.f32.mrf.mxu0
      %v568 = vadd.f32 %v446, %v567
      %569 = vmatmul.f32.gmra.mxu0 %v326
      %v570 = vpop.f32.mrf.mxu0
      %v571 = vadd.f32 %v449, %v570
      %572 = vmatmul.f32.gmra.mxu0 %v329
      %v573 = vpop.f32.mrf.mxu0
      %v574 = vadd.f32 %v452, %v573
      %575 = vmatmul.f32.gmra.mxu0 %v332
      %v576 = vpop.f32.mrf.mxu0
      %v577 = vadd.f32 %v455, %v576
      %578 = vmatmul.f32.gmra.mxu0 %v335
      %v579 = vpop.f32.mrf.mxu0
      %v580 = vadd.f32 %v458, %v579
      %581 = vmatmul.f32.gmra.mxu0 %v338
      %v582 = vpop.f32.mrf.mxu0
      %v583 = vadd.f32 %v461, %v582
      %584 = vmatmul.f32.gmra.mxu0 %v341
      %v585 = vpop.f32.mrf.mxu0
      %v586 = vadd.f32 %v464, %v585
      %587 = vmatmul.f32.gmra.mxu0 %v344
      %v588 = vpop.f32.mrf.mxu0
      %v589 = vadd.f32 %v467, %v588
      %590 = vmatmul.f32.gmra.mxu0 %v347
      %v591 = vpop.f32.mrf.mxu0
      %v592 = vadd.f32 %v470, %v591
      %593 = vmatmul.f32.gmra.mxu0 %v350
      %v594 = vpop.f32.mrf.mxu0
      %v595 = vadd.f32 %v473, %v594
      %596 = vmatmul.f32.gmra.mxu0 %v353
      %v597 = vpop.f32.mrf.mxu0
      %v598 = vadd.f32 %v476, %v597
      %599 = vmatmul.f32.gmra.mxu0 %v356
      %v600 = vpop.f32.mrf.mxu0
      %v601 = vadd.f32 %v479, %v600
      %602 = vmatmul.f32.gmra.mxu0 %v359
      %v603 = vpop.f32.mrf.mxu0
      %v604 = vadd.f32 %v482, %v603
      %605 = vmatmul.f32.gmra.mxu0 %v362
      %v606 = vpop.f32.mrf.mxu0
      %v607 = vadd.f32 %v485, %v606
      %608 = vmatmul.f32.gmra.mxu0 %v365
      %v609 = vpop.f32.mrf.mxu0
      %v610 = vadd.f32 %v488, %v609
      %611 = vmatmul.f32.gmra.mxu0 %v368
      %v612 = vpop.f32.mrf.mxu0
      %v613 = vadd.f32 %v491, %v612
      %614 = vmatmul.f32.gmra.mxu0 %v371
      %v615 = vpop.f32.mrf.mxu0
      %v616 = vadd.f32 %v494, %v615
      %617 = vmatmul.f32.gmra.mxu0 %v374
      %v618 = vpop.f32.mrf.mxu0
      %v619 = vadd.f32 %v497, %v618
      %620 = vmatmul.f32.gmra.mxu0 %v377
      %v621 = vpop.f32.mrf.mxu0
      %v622 = vadd.f32 %v500, %v621
      %623 = vmatmul.f32.gmra.mxu0 %v380
      %v624 = vpop.f32.mrf.mxu0
      %v625 = vadd.f32 %v503, %v624
      %626 = vmatmul.f32.gmra.mxu0 %v383
      %v627 = vpop.f32.mrf.mxu0
      %v628 = vadd.f32 %v506, %v627
      %629 = vmatmul.f32.gmra.mxu0 %v386
      %v630 = vpop.f32.mrf.mxu0
      %v631 = vadd.f32 %v509, %v630
      %632 = vmatmul.f32.gmra.mxu0 %v389
      %v633 = vpop.f32.mrf.mxu0
      %v634 = vadd.f32 %v512, %v633
      %635 = vmatmul.f32.gmra.mxu0 %v392
      %v636 = vpop.f32.mrf.mxu0
      %v637 = vadd.f32 %v515, %v636
      %638 = vmatmul.f32.gmra.mxu0 %v395
      %v639 = vpop.f32.mrf.mxu0
      %v640 = vadd.f32 %v518, %v639
      %641 = vmatmul.f32.gmra.mxu0 %v398
      %v642 = vpop.f32.mrf.mxu0
      %v643 = vadd.f32 %v521, %v642
      %644 = vdwg.mxu0
      %v645 = vld [vmem:[%s261 + $0x20] sm:$0xff]
      %v646 = vld [vmem:[%s261 + $0x28] sm:$0xff]
      %v647 = vld [vmem:[%s261 + $0x30] sm:$0xff]
      %v648 = vld [vmem:[%s261 + $0x38] sm:$0xff]
      %v649 = vld [vmem:[%s261 + $0x40] sm:$0xff]
      %v650 = vld [vmem:[%s261 + $0x48] sm:$0xff]
      %v651 = vld [vmem:[%s261 + $0x50] sm:$0xff]
      %v652 = vld [vmem:[%s261 + $0x58] sm:$0xff]
      %v653 = vld [vmem:[%s261 + $0x60] sm:$0xff]
      %v654 = vld [vmem:[%s261 + $0x68] sm:$0xff]
      %v655 = vld [vmem:[%s261 + $0x70] sm:$0xff]
      %v656 = vld [vmem:[%s261 + $0x78] sm:$0xff]
      %v657 = vld [vmem:[%s261 + $0x80] sm:$0xff]
      %v658 = vld [vmem:[%s261 + $0x88] sm:$0xff]
      %v659 = vld [vmem:[%s261 + $0x90] sm:$0xff]
      %v660 = vld [vmem:[%s261 + $0x98] sm:$0xff]
      %v661 = vld [vmem:[%s261 + $0xa0] sm:$0xff]
      %v662 = vld [vmem:[%s261 + $0xa8] sm:$0xff]
      %v663 = vld [vmem:[%s261 + $0xb0] sm:$0xff]
      %v664 = vld [vmem:[%s261 + $0xb8] sm:$0xff]
      %v665 = vld [vmem:[%s261 + $0xc0] sm:$0xff]
      %v666 = vld [vmem:[%s261 + $0xc8] sm:$0xff]
      %v667 = vld [vmem:[%s261 + $0xd0] sm:$0xff]
      %v668 = vld [vmem:[%s261 + $0xd8] sm:$0xff]
      %v669 = vld [vmem:[%s261 + $0xe0] sm:$0xff]
      %v670 = vld [vmem:[%s261 + $0xe8] sm:$0xff]
      %v671 = vld [vmem:[%s261 + $0xf0] sm:$0xff]
      %v672 = vld [vmem:[%s261 + $0xf8] sm:$0xff]
      %v673 = vld [vmem:[%s261 + $0x100] sm:$0xff]
      %v674 = vld [vmem:[%s261 + $0x108] sm:$0xff]
      %v675 = vld [vmem:[%s261 + $0x110] sm:$0xff]
      %v676 = vld [vmem:[%s261 + $0x118] sm:$0xff]
      %s677 = scalar_lea.vmem %s1, 16
      %v678 = vld [vmem:[%s677] sm:$0x3f]
      %v680 = vsel %vm309, %v645, 0
      %v683 = vsel %vm309, %v646, 0
      %v686 = vsel %vm309, %v647, 0
      %v689 = vsel %vm309, %v648, 0
      %v692 = vsel %vm309, %v649, 0
      %v695 = vsel %vm309, %v650, 0
      %v698 = vsel %vm309, %v651, 0
      %v701 = vsel %vm309, %v652, 0
      %v704 = vsel %vm309, %v653, 0
      %v707 = vsel %vm309, %v654, 0
      %v710 = vsel %vm309, %v655, 0
      %v713 = vsel %vm309, %v656, 0
      %v716 = vsel %vm309, %v657, 0
      %v719 = vsel %vm309, %v658, 0
      %v722 = vsel %vm309, %v659, 0
      %v725 = vsel %vm309, %v660, 0
      %v728 = vsel %vm309, %v661, 0
      %v731 = vsel %vm309, %v662, 0
      %v734 = vsel %vm309, %v663, 0
      %v737 = vsel %vm309, %v664, 0
      %v740 = vsel %vm309, %v665, 0
      %v743 = vsel %vm309, %v666, 0
      %v746 = vsel %vm309, %v667, 0
      %v749 = vsel %vm309, %v668, 0
      %v752 = vsel %vm309, %v669, 0
      %v755 = vsel %vm309, %v670, 0
      %v758 = vsel %vm309, %v671, 0
      %v761 = vsel %vm309, %v672, 0
      %v764 = vsel %vm309, %v673, 0
      %v767 = vsel %vm309, %v674, 0
      %v770 = vsel %vm309, %v675, 0
      %v773 = vsel %vm309, %v676, 0
      %v776 = vsel %vm406, %v678, 0
      %778 = vmatpush.msra.mxu0 0.0
      %779 = vmatpush.msra.mxu0 0.0
      %780 = vmatpush.msra.mxu0 0.0
      %781 = vmatpush.msra.mxu0 0.0
      %782 = vmatpush.msra.mxu0 0.0
      %783 = vmatpush.msra.mxu0 0.0
      %784 = vmatpush.msra.mxu0 0.0
      %785 = vmatpush.msra.mxu0 0.0
      %786 = vmatpush.msra.mxu0 0.0
      %787 = vmatpush.msra.mxu0 0.0
      %788 = vmatpush.msra.mxu0 0.0
      %789 = vmatpush.msra.mxu0 0.0
      %790 = vmatpush.msra.mxu0 0.0
      %791 = vmatpush.msra.mxu0 0.0
      %792 = vmatpush.msra.mxu0 0.0
      %793 = vmatpush.msra.mxu0 %v776
      %794 = vmatmul.f32.gmra.mxu0 %v680
      %v795 = vpop.f32.mrf.mxu0
      %v796 = vadd.f32 0.0, %v795
      %797 = vmatmul.f32.gmra.mxu0 %v683
      %v798 = vpop.f32.mrf.mxu0
      %v799 = vadd.f32 0.0, %v798
      %800 = vmatmul.f32.gmra.mxu0 %v686
      %v801 = vpop.f32.mrf.mxu0
      %v802 = vadd.f32 0.0, %v801
      %803 = vmatmul.f32.gmra.mxu0 %v689
      %v804 = vpop.f32.mrf.mxu0
      %v805 = vadd.f32 0.0, %v804
      %806 = vmatmul.f32.gmra.mxu0 %v692
      %v807 = vpop.f32.mrf.mxu0
      %v808 = vadd.f32 0.0, %v807
      %809 = vmatmul.f32.gmra.mxu0 %v695
      %v810 = vpop.f32.mrf.mxu0
      %v811 = vadd.f32 0.0, %v810
      %812 = vmatmul.f32.gmra.mxu0 %v698
      %v813 = vpop.f32.mrf.mxu0
      %v814 = vadd.f32 0.0, %v813
      %815 = vmatmul.f32.gmra.mxu0 %v701
      %v816 = vpop.f32.mrf.mxu0
      %v817 = vadd.f32 0.0, %v816
      %818 = vmatmul.f32.gmra.mxu0 %v704
      %v819 = vpop.f32.mrf.mxu0
      %v820 = vadd.f32 0.0, %v819
      %821 = vmatmul.f32.gmra.mxu0 %v707
      %v822 = vpop.f32.mrf.mxu0
      %v823 = vadd.f32 0.0, %v822
      %824 = vmatmul.f32.gmra.mxu0 %v710
      %v825 = vpop.f32.mrf.mxu0
      %v826 = vadd.f32 0.0, %v825
      %827 = vmatmul.f32.gmra.mxu0 %v713
      %v828 = vpop.f32.mrf.mxu0
      %v829 = vadd.f32 0.0, %v828
      %830 = vmatmul.f32.gmra.mxu0 %v716
      %v831 = vpop.f32.mrf.mxu0
      %v832 = vadd.f32 0.0, %v831
      %833 = vmatmul.f32.gmra.mxu0 %v719
      %v834 = vpop.f32.mrf.mxu0
      %v835 = vadd.f32 0.0, %v834
      %836 = vmatmul.f32.gmra.mxu0 %v722
      %v837 = vpop.f32.mrf.mxu0
      %v838 = vadd.f32 0.0, %v837
      %839 = vmatmul.f32.gmra.mxu0 %v725
      %v840 = vpop.f32.mrf.mxu0
      %v841 = vadd.f32 0.0, %v840
      %842 = vmatmul.f32.gmra.mxu0 %v728
      %v843 = vpop.f32.mrf.mxu0
      %v844 = vadd.f32 0.0, %v843
      %845 = vmatmul.f32.gmra.mxu0 %v731
      %v846 = vpop.f32.mrf.mxu0
      %v847 = vadd.f32 0.0, %v846
      %848 = vmatmul.f32.gmra.mxu0 %v734
      %v849 = vpop.f32.mrf.mxu0
      %v850 = vadd.f32 0.0, %v849
      %851 = vmatmul.f32.gmra.mxu0 %v737
      %v852 = vpop.f32.mrf.mxu0
      %v853 = vadd.f32 0.0, %v852
      %854 = vmatmul.f32.gmra.mxu0 %v740
      %v855 = vpop.f32.mrf.mxu0
      %v856 = vadd.f32 0.0, %v855
      %857 = vmatmul.f32.gmra.mxu0 %v743
      %v858 = vpop.f32.mrf.mxu0
      %v859 = vadd.f32 0.0, %v858
      %860 = vmatmul.f32.gmra.mxu0 %v746
      %v861 = vpop.f32.mrf.mxu0
      %v862 = vadd.f32 0.0, %v861
      %863 = vmatmul.f32.gmra.mxu0 %v749
      %v864 = vpop.f32.mrf.mxu0
      %v865 = vadd.f32 0.0, %v864
      %866 = vmatmul.f32.gmra.mxu0 %v752
      %v867 = vpop.f32.mrf.mxu0
      %v868 = vadd.f32 0.0, %v867
      %869 = vmatmul.f32.gmra.mxu0 %v755
      %v870 = vpop.f32.mrf.mxu0
      %v871 = vadd.f32 0.0, %v870
      %872 = vmatmul.f32.gmra.mxu0 %v758
      %v873 = vpop.f32.mrf.mxu0
      %v874 = vadd.f32 0.0, %v873
      %875 = vmatmul.f32.gmra.mxu0 %v761
      %v876 = vpop.f32.mrf.mxu0
      %v877 = vadd.f32 0.0, %v876
      %878 = vmatmul.f32.gmra.mxu0 %v764
      %v879 = vpop.f32.mrf.mxu0
      %v880 = vadd.f32 0.0, %v879
      %881 = vmatmul.f32.gmra.mxu0 %v767
      %v882 = vpop.f32.mrf.mxu0
      %v883 = vadd.f32 0.0, %v882
      %884 = vmatmul.f32.gmra.mxu0 %v770
      %v885 = vpop.f32.mrf.mxu0
      %v886 = vadd.f32 0.0, %v885
      %887 = vmatmul.f32.gmra.mxu0 %v773
      %v888 = vpop.f32.mrf.mxu0
      %v889 = vadd.f32 0.0, %v888
      %890 = vdwg.mxu0
      %v891 = vadd.f32 %v550, %v796
      %v892 = vadd.f32 %v553, %v799
      %v893 = vadd.f32 %v556, %v802
      %v894 = vadd.f32 %v559, %v805
      %v895 = vadd.f32 %v562, %v808
      %v896 = vadd.f32 %v565, %v811
      %v897 = vadd.f32 %v568, %v814
      %v898 = vadd.f32 %v571, %v817
      %v899 = vadd.f32 %v574, %v820
      %v900 = vadd.f32 %v577, %v823
      %v901 = vadd.f32 %v580, %v826
      %v902 = vadd.f32 %v583, %v829
      %v903 = vadd.f32 %v586, %v832
      %v904 = vadd.f32 %v589, %v835
      %v905 = vadd.f32 %v592, %v838
      %v906 = vadd.f32 %v595, %v841
      %v907 = vadd.f32 %v598, %v844
      %v908 = vadd.f32 %v601, %v847
      %v909 = vadd.f32 %v604, %v850
      %v910 = vadd.f32 %v607, %v853
      %v911 = vadd.f32 %v610, %v856
      %v912 = vadd.f32 %v613, %v859
      %v913 = vadd.f32 %v616, %v862
      %v914 = vadd.f32 %v619, %v865
      %v915 = vadd.f32 %v622, %v868
      %v916 = vadd.f32 %v625, %v871
      %v917 = vadd.f32 %v628, %v874
      %v918 = vadd.f32 %v631, %v877
      %v919 = vadd.f32 %v634, %v880
      %v920 = vadd.f32 %v637, %v883
      %v921 = vadd.f32 %v640, %v886
      %v922 = vadd.f32 %v643, %v889
      %v923 = vld [vmem:[%s2] sm:$0x1]
      %v925 = vperm.slane %v923, 0
      %v927 = vmul.f32 %v891, %v925
      %v928 = vmul.f32 %v892, %v925
      %v929 = vmul.f32 %v893, %v925
      %v930 = vmul.f32 %v894, %v925
      %v931 = vmul.f32 %v895, %v925
      %v932 = vmul.f32 %v896, %v925
      %v933 = vmul.f32 %v897, %v925
      %v934 = vmul.f32 %v898, %v925
      %v935 = vmul.f32 %v899, %v925
      %v936 = vmul.f32 %v900, %v925
      %v937 = vmul.f32 %v901, %v925
      %v938 = vmul.f32 %v902, %v925
      %v939 = vmul.f32 %v903, %v925
      %v940 = vmul.f32 %v904, %v925
      %v941 = vmul.f32 %v905, %v925
      %v942 = vmul.f32 %v906, %v925
      %v943 = vmul.f32 %v907, %v925
      %v944 = vmul.f32 %v908, %v925
      %v945 = vmul.f32 %v909, %v925
      %v946 = vmul.f32 %v910, %v925
      %v947 = vmul.f32 %v911, %v925
      %v948 = vmul.f32 %v912, %v925
      %v949 = vmul.f32 %v913, %v925
      %v950 = vmul.f32 %v914, %v925
      %v951 = vmul.f32 %v915, %v925
      %v952 = vmul.f32 %v916, %v925
      %v953 = vmul.f32 %v917, %v925
      %v954 = vmul.f32 %v918, %v925
      %v955 = vmul.f32 %v919, %v925
      %v956 = vmul.f32 %v920, %v925
      %v957 = vmul.f32 %v921, %v925
      %v958 = vmul.f32 %v922, %v925
      %v959 = vld [vmem:[%s3] sm:$0x1]
      %v961 = vperm.slane %v959, 0
      %v963 = vadd.f32 %v927, %v961
      %v964 = vadd.f32 %v928, %v961
      %v965 = vadd.f32 %v929, %v961
      %v966 = vadd.f32 %v930, %v961
      %v967 = vadd.f32 %v931, %v961
      %v968 = vadd.f32 %v932, %v961
      %v969 = vadd.f32 %v933, %v961
      %v970 = vadd.f32 %v934, %v961
      %v971 = vadd.f32 %v935, %v961
      %v972 = vadd.f32 %v936, %v961
      %v973 = vadd.f32 %v937, %v961
      %v974 = vadd.f32 %v938, %v961
      %v975 = vadd.f32 %v939, %v961
      %v976 = vadd.f32 %v940, %v961
      %v977 = vadd.f32 %v941, %v961
      %v978 = vadd.f32 %v942, %v961
      %v979 = vadd.f32 %v943, %v961
      %v980 = vadd.f32 %v944, %v961
      %v981 = vadd.f32 %v945, %v961
      %v982 = vadd.f32 %v946, %v961
      %v983 = vadd.f32 %v947, %v961
      %v984 = vadd.f32 %v948, %v961
      %v985 = vadd.f32 %v949, %v961
      %v986 = vadd.f32 %v950, %v961
      %v987 = vadd.f32 %v951, %v961
      %v988 = vadd.f32 %v952, %v961
      %v989 = vadd.f32 %v953, %v961
      %v990 = vadd.f32 %v954, %v961
      %v991 = vadd.f32 %v955, %v961
      %v992 = vadd.f32 %v956, %v961
      %v993 = vadd.f32 %v957, %v961
      %v994 = vadd.f32 %v958, %v961
      %v995 = vmax.f32 %v963, 0.0
      %v996 = vmax.f32 %v964, 0.0
      %v997 = vmax.f32 %v965, 0.0
      %v998 = vmax.f32 %v966, 0.0
      %v999 = vmax.f32 %v967, 0.0
      %v1000 = vmax.f32 %v968, 0.0
      %v1001 = vmax.f32 %v969, 0.0
      %v1002 = vmax.f32 %v970, 0.0
      %v1003 = vmax.f32 %v971, 0.0
      %v1004 = vmax.f32 %v972, 0.0
      %v1005 = vmax.f32 %v973, 0.0
      %v1006 = vmax.f32 %v974, 0.0
      %v1007 = vmax.f32 %v975, 0.0
      %v1008 = vmax.f32 %v976, 0.0
      %v1009 = vmax.f32 %v977, 0.0
      %v1010 = vmax.f32 %v978, 0.0
      %v1011 = vmax.f32 %v979, 0.0
      %v1012 = vmax.f32 %v980, 0.0
      %v1013 = vmax.f32 %v981, 0.0
      %v1014 = vmax.f32 %v982, 0.0
      %v1015 = vmax.f32 %v983, 0.0
      %v1016 = vmax.f32 %v984, 0.0
      %v1017 = vmax.f32 %v985, 0.0
      %v1018 = vmax.f32 %v986, 0.0
      %v1019 = vmax.f32 %v987, 0.0
      %v1020 = vmax.f32 %v988, 0.0
      %v1021 = vmax.f32 %v989, 0.0
      %v1022 = vmax.f32 %v990, 0.0
      %v1023 = vmax.f32 %v991, 0.0
      %v1024 = vmax.f32 %v992, 0.0
      %v1025 = vmax.f32 %v993, 0.0
      %v1026 = vmax.f32 %v994, 0.0
      %v1027 = vld [vmem:[%s4] sm:$0x3]
      %v1028 = vld [vmem:[%s266] sm:$0xff]
      %v1029 = vld [vmem:[%s266 + $0x8] sm:$0xff]
      %v1030 = vld [vmem:[%s266 + $0x10] sm:$0xff]
      %v1031 = vld [vmem:[%s266 + $0x18] sm:$0xff]
      %v1032 = vld [vmem:[%s266 + $0x20] sm:$0xff]
      %v1033 = vld [vmem:[%s266 + $0x28] sm:$0xff]
      %v1034 = vld [vmem:[%s266 + $0x30] sm:$0xff]
      %v1035 = vld [vmem:[%s266 + $0x38] sm:$0xff]
      %v1036 = vld [vmem:[%s266 + $0x40] sm:$0xff]
      %v1037 = vld [vmem:[%s266 + $0x48] sm:$0xff]
      %v1038 = vld [vmem:[%s266 + $0x50] sm:$0xff]
      %v1039 = vld [vmem:[%s266 + $0x58] sm:$0xff]
      %v1040 = vld [vmem:[%s266 + $0x60] sm:$0xff]
      %v1041 = vld [vmem:[%s266 + $0x68] sm:$0xff]
      %v1042 = vld [vmem:[%s266 + $0x70] sm:$0xff]
      %v1043 = vld [vmem:[%s266 + $0x78] sm:$0xff]
      %v1044 = vld [vmem:[%s266 + $0x80] sm:$0xff]
      %v1045 = vld [vmem:[%s266 + $0x88] sm:$0xff]
      %v1046 = vld [vmem:[%s266 + $0x90] sm:$0xff]
      %v1047 = vld [vmem:[%s266 + $0x98] sm:$0xff]
      %v1048 = vld [vmem:[%s266 + $0xa0] sm:$0xff]
      %v1049 = vld [vmem:[%s266 + $0xa8] sm:$0xff]
      %v1050 = vld [vmem:[%s266 + $0xb0] sm:$0xff]
      %v1051 = vld [vmem:[%s266 + $0xb8] sm:$0xff]
      %v1052 = vld [vmem:[%s266 + $0xc0] sm:$0xff]
      %v1053 = vld [vmem:[%s266 + $0xc8] sm:$0xff]
      %v1054 = vld [vmem:[%s266 + $0xd0] sm:$0xff]
      %v1055 = vld [vmem:[%s266 + $0xd8] sm:$0xff]
      %v1056 = vld [vmem:[%s266 + $0xe0] sm:$0xff]
      %v1057 = vld [vmem:[%s266 + $0xe8] sm:$0xff]
      %v1058 = vld [vmem:[%s266 + $0xf0] sm:$0xff]
      %v1059 = vld [vmem:[%s266 + $0xf8] sm:$0xff]
      %vm1060 = vcmask 15360
      %v1062 = vsel %vm1060, %v995, 0
      %v1065 = vsel %vm1060, %v996, 0
      %v1068 = vsel %vm1060, %v997, 0
      %v1071 = vsel %vm1060, %v998, 0
      %v1074 = vsel %vm1060, %v999, 0
      %v1077 = vsel %vm1060, %v1000, 0
      %v1080 = vsel %vm1060, %v1001, 0
      %v1083 = vsel %vm1060, %v1002, 0
      %v1086 = vsel %vm1060, %v1003, 0
      %v1089 = vsel %vm1060, %v1004, 0
      %v1092 = vsel %vm1060, %v1005, 0
      %v1095 = vsel %vm1060, %v1006, 0
      %v1098 = vsel %vm1060, %v1007, 0
      %v1101 = vsel %vm1060, %v1008, 0
      %v1104 = vsel %vm1060, %v1009, 0
      %v1107 = vsel %vm1060, %v1010, 0
      %v1110 = vsel %vm1060, %v1011, 0
      %v1113 = vsel %vm1060, %v1012, 0
      %v1116 = vsel %vm1060, %v1013, 0
      %v1119 = vsel %vm1060, %v1014, 0
      %v1122 = vsel %vm1060, %v1015, 0
      %v1125 = vsel %vm1060, %v1016, 0
      %v1128 = vsel %vm1060, %v1017, 0
      %v1131 = vsel %vm1060, %v1018, 0
      %v1134 = vsel %vm1060, %v1019, 0
      %v1137 = vsel %vm1060, %v1020, 0
      %v1140 = vsel %vm1060, %v1021, 0
      %v1143 = vsel %vm1060, %v1022, 0
      %v1146 = vsel %vm1060, %v1023, 0
      %v1149 = vsel %vm1060, %v1024, 0
      %v1152 = vsel %vm1060, %v1025, 0
      %v1155 = vsel %vm1060, %v1026, 0
      %vm1157 = vcmask 1041408
      %v1159 = vsel %vm1157, %v1027, 0
      %1161 = vmatpush.msra.mxu0 0.0
      %1162 = vmatpush.msra.mxu0 0.0
      %1163 = vmatpush.msra.mxu0 0.0
      %1164 = vmatpush.msra.mxu0 0.0
      %1165 = vmatpush.msra.mxu0 0.0
      %1166 = vmatpush.msra.mxu0 0.0
      %1167 = vmatpush.msra.mxu0 0.0
      %1168 = vmatpush.msra.mxu0 0.0
      %1169 = vmatpush.msra.mxu0 0.0
      %1170 = vmatpush.msra.mxu0 0.0
      %1171 = vmatpush.msra.mxu0 0.0
      %1172 = vmatpush.msra.mxu0 0.0
      %1173 = vmatpush.msra.mxu0 0.0
      %1174 = vmatpush.msra.mxu0 0.0
      %1175 = vmatpush.msra.mxu0 0.0
      %1176 = vmatpush.msra.mxu0 %v1159
      %1177 = vmatmul.f32.gmra.mxu0 %v1062
      %v1178 = vpop.f32.mrf.mxu0
      %v1179 = vadd.f32 %v1028, %v1178
      %1180 = vmatmul.f32.gmra.mxu0 %v1065
      %v1181 = vpop.f32.mrf.mxu0
      %v1182 = vadd.f32 %v1029, %v1181
      %1183 = vmatmul.f32.gmra.mxu0 %v1068
      %v1184 = vpop.f32.mrf.mxu0
      %v1185 = vadd.f32 %v1030, %v1184
      %1186 = vmatmul.f32.gmra.mxu0 %v1071
      %v1187 = vpop.f32.mrf.mxu0
      %v1188 = vadd.f32 %v1031, %v1187
      %1189 = vmatmul.f32.gmra.mxu0 %v1074
      %v1190 = vpop.f32.mrf.mxu0
      %v1191 = vadd.f32 %v1032, %v1190
      %1192 = vmatmul.f32.gmra.mxu0 %v1077
      %v1193 = vpop.f32.mrf.mxu0
      %v1194 = vadd.f32 %v1033, %v1193
      %1195 = vmatmul.f32.gmra.mxu0 %v1080
      %v1196 = vpop.f32.mrf.mxu0
      %v1197 = vadd.f32 %v1034, %v1196
      %1198 = vmatmul.f32.gmra.mxu0 %v1083
      %v1199 = vpop.f32.mrf.mxu0
      %v1200 = vadd.f32 %v1035, %v1199
      %1201 = vmatmul.f32.gmra.mxu0 %v1086
      %v1202 = vpop.f32.mrf.mxu0
      %v1203 = vadd.f32 %v1036, %v1202
      %1204 = vmatmul.f32.gmra.mxu0 %v1089
      %v1205 = vpop.f32.mrf.mxu0
      %v1206 = vadd.f32 %v1037, %v1205
      %1207 = vmatmul.f32.gmra.mxu0 %v1092
      %v1208 = vpop.f32.mrf.mxu0
      %v1209 = vadd.f32 %v1038, %v1208
      %1210 = vmatmul.f32.gmra.mxu0 %v1095
      %v1211 = vpop.f32.mrf.mxu0
      %v1212 = vadd.f32 %v1039, %v1211
      %1213 = vmatmul.f32.gmra.mxu0 %v1098
      %v1214 = vpop.f32.mrf.mxu0
      %v1215 = vadd.f32 %v1040, %v1214
      %1216 = vmatmul.f32.gmra.mxu0 %v1101
      %v1217 = vpop.f32.mrf.mxu0
      %v1218 = vadd.f32 %v1041, %v1217
      %1219 = vmatmul.f32.gmra.mxu0 %v1104
      %v1220 = vpop.f32.mrf.mxu0
      %v1221 = vadd.f32 %v1042, %v1220
      %1222 = vmatmul.f32.gmra.mxu0 %v1107
      %v1223 = vpop.f32.mrf.mxu0
      %v1224 = vadd.f32 %v1043, %v1223
      %1225 = vmatmul.f32.gmra.mxu0 %v1110
      %v1226 = vpop.f32.mrf.mxu0
      %v1227 = vadd.f32 %v1044, %v1226
      %1228 = vmatmul.f32.gmra.mxu0 %v1113
      %v1229 = vpop.f32.mrf.mxu0
      %v1230 = vadd.f32 %v1045, %v1229
      %1231 = vmatmul.f32.gmra.mxu0 %v1116
      %v1232 = vpop.f32.mrf.mxu0
      %v1233 = vadd.f32 %v1046, %v1232
      %1234 = vmatmul.f32.gmra.mxu0 %v1119
      %v1235 = vpop.f32.mrf.mxu0
      %v1236 = vadd.f32 %v1047, %v1235
      %1237 = vmatmul.f32.gmra.mxu0 %v1122
      %v1238 = vpop.f32.mrf.mxu0
      %v1239 = vadd.f32 %v1048, %v1238
      %1240 = vmatmul.f32.gmra.mxu0 %v1125
      %v1241 = vpop.f32.mrf.mxu0
      %v1242 = vadd.f32 %v1049, %v1241
      %1243 = vmatmul.f32.gmra.mxu0 %v1128
      %v1244 = vpop.f32.mrf.mxu0
      %v1245 = vadd.f32 %v1050, %v1244
      %1246 = vmatmul.f32.gmra.mxu0 %v1131
      %v1247 = vpop.f32.mrf.mxu0
      %v1248 = vadd.f32 %v1051, %v1247
      %1249 = vmatmul.f32.gmra.mxu0 %v1134
      %v1250 = vpop.f32.mrf.mxu0
      %v1251 = vadd.f32 %v1052, %v1250
      %1252 = vmatmul.f32.gmra.mxu0 %v1137
      %v1253 = vpop.f32.mrf.mxu0
      %v1254 = vadd.f32 %v1053, %v1253
      %1255 = vmatmul.f32.gmra.mxu0 %v1140
      %v1256 = vpop.f32.mrf.mxu0
      %v1257 = vadd.f32 %v1054, %v1256
      %1258 = vmatmul.f32.gmra.mxu0 %v1143
      %v1259 = vpop.f32.mrf.mxu0
      %v1260 = vadd.f32 %v1055, %v1259
      %1261 = vmatmul.f32.gmra.mxu0 %v1146
      %v1262 = vpop.f32.mrf.mxu0
      %v1263 = vadd.f32 %v1056, %v1262
      %1264 = vmatmul.f32.gmra.mxu0 %v1149
      %v1265 = vpop.f32.mrf.mxu0
      %v1266 = vadd.f32 %v1057, %v1265
      %1267 = vmatmul.f32.gmra.mxu0 %v1152
      %v1268 = vpop.f32.mrf.mxu0
      %v1269 = vadd.f32 %v1058, %v1268
      %1270 = vmatmul.f32.gmra.mxu0 %v1155
      %v1271 = vpop.f32.mrf.mxu0
      %v1272 = vadd.f32 %v1059, %v1271
      %1273 = vdwg.mxu0
      %vm1274 = vcmask 64512
      %1275 = vst.msk [vmem:[%s271] sm:$0xff] %vm1274, %v1179
      %1276 = vst.msk [vmem:[%s271 + $0x8] sm:$0xff] %vm1274, %v1182
      %1277 = vst.msk [vmem:[%s271 + $0x10] sm:$0xff] %vm1274, %v1185
      %1278 = vst.msk [vmem:[%s271 + $0x18] sm:$0xff] %vm1274, %v1188
      %1279 = vst.msk [vmem:[%s271 + $0x20] sm:$0xff] %vm1274, %v1191
      %1280 = vst.msk [vmem:[%s271 + $0x28] sm:$0xff] %vm1274, %v1194
      %1281 = vst.msk [vmem:[%s271 + $0x30] sm:$0xff] %vm1274, %v1197
      %1282 = vst.msk [vmem:[%s271 + $0x38] sm:$0xff] %vm1274, %v1200
      %1283 = vst.msk [vmem:[%s271 + $0x40] sm:$0xff] %vm1274, %v1203
      %1284 = vst.msk [vmem:[%s271 + $0x48] sm:$0xff] %vm1274, %v1206
      %1285 = vst.msk [vmem:[%s271 + $0x50] sm:$0xff] %vm1274, %v1209
      %1286 = vst.msk [vmem:[%s271 + $0x58] sm:$0xff] %vm1274, %v1212
      %1287 = vst.msk [vmem:[%s271 + $0x60] sm:$0xff] %vm1274, %v1215
      %1288 = vst.msk [vmem:[%s271 + $0x68] sm:$0xff] %vm1274, %v1218
      %1289 = vst.msk [vmem:[%s271 + $0x70] sm:$0xff] %vm1274, %v1221
      %1290 = vst.msk [vmem:[%s271 + $0x78] sm:$0xff] %vm1274, %v1224
      %1291 = vst.msk [vmem:[%s271 + $0x80] sm:$0xff] %vm1274, %v1227
      %1292 = vst.msk [vmem:[%s271 + $0x88] sm:$0xff] %vm1274, %v1230
      %1293 = vst.msk [vmem:[%s271 + $0x90] sm:$0xff] %vm1274, %v1233
      %1294 = vst.msk [vmem:[%s271 + $0x98] sm:$0xff] %vm1274, %v1236
      %1295 = vst.msk [vmem:[%s271 + $0xa0] sm:$0xff] %vm1274, %v1239
      %1296 = vst.msk [vmem:[%s271 + $0xa8] sm:$0xff] %vm1274, %v1242
      %1297 = vst.msk [vmem:[%s271 + $0xb0] sm:$0xff] %vm1274, %v1245
      %1298 = vst.msk [vmem:[%s271 + $0xb8] sm:$0xff] %vm1274, %v1248
      %1299 = vst.msk [vmem:[%s271 + $0xc0] sm:$0xff] %vm1274, %v1251
      %1300 = vst.msk [vmem:[%s271 + $0xc8] sm:$0xff] %vm1274, %v1254
      %1301 = vst.msk [vmem:[%s271 + $0xd0] sm:$0xff] %vm1274, %v1257
      %1302 = vst.msk [vmem:[%s271 + $0xd8] sm:$0xff] %vm1274, %v1260
      %1303 = vst.msk [vmem:[%s271 + $0xe0] sm:$0xff] %vm1274, %v1263
      %1304 = vst.msk [vmem:[%s271 + $0xe8] sm:$0xff] %vm1274, %v1266
      %1305 = vst.msk [vmem:[%s271 + $0xf0] sm:$0xff] %vm1274, %v1269
      %1306 = vst.msk [vmem:[%s271 + $0xf8] sm:$0xff] %vm1274, %v1272
      %p1307 = scmp.lt.s32.totalorder %s17, 1
      %s1308 = scalar_select %p1307, %s17, 1
      %s1309 = smul.addr %s1308, 32
      %s1310 = smul.addr %s1309, 8
      %s1311 = scalar_lea.vmem %s6, %s1310
      // Predicated region
      $region45: #{attention_module_0.17} parent=43 // pred_check
        %p1312 = pneg %p171
      $region46: #{attention_module_0.17} parent=43 // pred_check_branch
        %1314 = sbr.rel (%p1312) target = $region48
      $region47: #{attention_module_0.17} parent=43 // pred_region
        _
      $region48: #{attention_module_0.17} parent=43 // pred_fallthru
        _
    $region44: #{attention_module_0.17} parent=5 // pred_fallthru
      _
    %p1315 = scmp.le.s32.totalorder 2, %s12
    // Predicated region
    $region49: #{attention_module_0.17} parent=5 // pred_check
      %p1316 = pneg %p1315
    $region50: #{attention_module_0.17} parent=5 // pred_check_branch
      %1318 = sbr.rel (%p1316) target = $region52
    $region51: #{attention_module_0.17} parent=5 // pred_region
      %s1319 = ssub.s32 %s12, 2
      // Predicated region
      $region53: #{attention_module_0.17} parent=51 // pred_check
        %p1320 = pneg %p177
      $region54: #{attention_module_0.17} parent=51 // pred_check_branch
        %1322 = sbr.rel (%p1320) target = $region56
      $region55: #{attention_module_0.17} parent=51 // pred_region
        %p1323 = scmp.lt.s32.totalorder %s18, 1
        %s1324 = scalar_select %p1323, %s18, 1
        %s1325 = smul.addr %s1324, 32
        %s1326 = smul.addr %s1325, 8
        %s1327 = scalar_lea.vmem %s6, %s1326
      $region56: #{attention_module_0.17} parent=51 // pred_fallthru
        _
    $region52: #{attention_module_0.17} parent=5 // pred_fallthru
      _
  $region6: #{attention_module_0.17} parent=0 // loop_footer
    %s16 = sadd.s32 1, %s12
  $region7: #{attention_module_0.17} parent=0 // loop_footer_branch
    %11 = sbr.rel target = $region3
  $region8: #{attention_module_0.17} parent=0 // loop_exit
    _

// kernel: attention_module_0.23
$region0: #{attention_module_0.23}
  #allocation0 [shape = 'u32[]', space=smem, size = 0x4, offset = 0x4, fixed_abs, tag = 'smem constant byte address 0x4 - core index']
  #allocation1 [shape = 'u32[72,128]{1,0:T(1,128)}', space=vmem, size = 0x9000, scoped, tag = 'internal scratch']
  %s0 = inlined_call_operand.vmem [shape: f32[2,18,8,8], index: 0, kind: input, shape index: {}]
  %s1 = inlined_call_operand.vmem [shape: f32[2,8,8,8], index: 1, kind: output, shape index: {}]
  %s2 = sld [smem:[#allocation0]]
  $region37: #{attention_module_0.23} parent=0
    _
  %s4 = ssub.s32 1, %s2
  %s5 = scalar_select 0, %s4, %s2
  loop: start=0, step=1, limit=4
  $region2: #{attention_module_0.23} parent=0 // loop_pre_header
    _
  $region3: #{attention_module_0.23} parent=0 // loop_header
    %s7 = sphi 0, %s11
    %p8 = scmp.ge.s32.totalorder %s7, 4
    %s17 = sphi 0, %s19
    %s20 = sphi 0, %s17
    %s21 = sphi 0, %s20
    %s37 = sphi 0, %s21
    %s43 = sphi 0, %s45
    %s46 = sphi 0, %s43
    %s47 = sphi 0, %s46
    %s63 = sphi 0, %s47
  $region4: #{attention_module_0.23} parent=0 // loop_header_branch
    %10 = sbr.rel (%p8) target = $region8
  $region5: #{attention_module_0.23} parent=0 // loop_body
    %s12 = ssub.s32 %s7, 1
    %s13 = ssub.s32 %s7, 2
    %s14 = sadd.s32 %s7, 1
    %s15 = ssub.s32 %s7, %s14
    %p16 = scmp.eq.s32.totalorder %s15, 0
    %s18 = sadd.s32 %s17, 1
    %s19 = scalar_select %p16, %s17, %s18
    %p22 = pneg %p16
    %p23 = scmp.eq.s32.totalorder %s7, 1
    %p24 = por %p22, %p23
    %p25 = scmp.ne.s32.totalorder %s17, %s20
    %p26 = scmp.eq.s32.totalorder %s7, 0
    %p27 = por %p25, %p26
    %p28 = scmp.ne.s32.totalorder %s17, %s20
    %p29 = scmp.eq.s32.totalorder %s12, 1
    %p30 = por %p28, %p29
    %p31 = scmp.ne.s32.totalorder %s20, %s21
    %p32 = scmp.eq.s32.totalorder %s12, 0
    %p33 = por %p31, %p32
    %p34 = scmp.ne.s32.totalorder %s20, %s21
    %p35 = scmp.eq.s32.totalorder %s13, 1
    %p36 = por %p34, %p35
    %p38 = scmp.ne.s32.totalorder %s21, %s37
    %p39 = scmp.eq.s32.totalorder %s13, 0
    %p40 = por %p38, %p39
    %s41 = ssub.s32 %s7, %s14
    %p42 = scmp.eq.s32.totalorder %s41, 0
    %s44 = sadd.s32 %s43, 1
    %s45 = scalar_select %p42, %s43, %s44
    %p48 = pneg %p42
    %p49 = scmp.eq.s32.totalorder %s7, 1
    %p50 = por %p48, %p49
    %p51 = scmp.ne.s32.totalorder %s43, %s46
    %p52 = scmp.eq.s32.totalorder %s7, 0
    %p53 = por %p51, %p52
    %p54 = scmp.ne.s32.totalorder %s43, %s46
    %p55 = scmp.eq.s32.totalorder %s12, 1
    %p56 = por %p54, %p55
    %p57 = scmp.ne.s32.totalorder %s46, %s47
    %p58 = scmp.eq.s32.totalorder %s12, 0
    %p59 = por %p57, %p58
    %p60 = scmp.ne.s32.totalorder %s46, %s47
    %p61 = scmp.eq.s32.totalorder %s13, 1
    %p62 = por %p60, %p61
    %p64 = scmp.ne.s32.totalorder %s47, %s63
    %p65 = scmp.eq.s32.totalorder %s13, 0
    %p66 = por %p64, %p65
    %p67 = scmp.le.s32.totalorder 1, %s7
    %p68 = scmp.lt.s32.totalorder %s7, 3
    %p69 = pnand %p67, %p68
    %p70 = pneg %p69
    // Predicated region
    $region9: #{attention_module_0.23} parent=5 // pred_check
      _
    $region10: #{attention_module_0.23} parent=5 // pred_check_branch
      %72 = sbr.rel (%p69) target = $region12
    $region11: #{attention_module_0.23} parent=5 // pred_region
      %s73 = ssub.s32 %s7, 1
    $region12: #{attention_module_0.23} parent=5 // pred_fallthru
      _
    %p74 = scmp.lt.s32.totalorder %s7, 2
    // Predicated region
    $region13: #{attention_module_0.23} parent=5 // pred_check
      %p75 = pneg %p74
    $region14: #{attention_module_0.23} parent=5 // pred_check_branch
      %77 = sbr.rel (%p75) target = $region16
    $region15: #{attention_module_0.23} parent=5 // pred_region
      // Predicated region
      $region17: #{attention_module_0.23} parent=15 // pred_check
        %p78 = pneg %p27
      $region18: #{attention_module_0.23} parent=15 // pred_check_branch
        %80 = sbr.rel (%p78) target = $region20
      $region19: #{attention_module_0.23} parent=15 // pred_region
        %p81 = scmp.lt.s32.totalorder %s7, 1
        %s82 = scalar_select %p81, %s7, 1
        %s83 = smul.addr %s82, 18
        %s84 = smul.addr %s83, 8
        %s85 = scalar_lea.vmem %s0, %s84
      $region20: #{attention_module_0.23} parent=15 // pred_fallthru
        _
    $region16: #{attention_module_0.23} parent=5 // pred_fallthru
      _
    %p86 = scmp.le.s32.totalorder 1, %s7
    %p87 = scmp.lt.s32.totalorder %s7, 3
    %p88 = pnand %p86, %p87
    %p89 = pneg %p88
    // Predicated region
    $region21: #{attention_module_0.23} parent=5 // pred_check
      _
    $region22: #{attention_module_0.23} parent=5 // pred_check_branch
      %91 = sbr.rel (%p88) target = $region24
    $region23: #{attention_module_0.23} parent=5 // pred_region
      %s92 = ssub.s32 %s7, 1
      %p93 = scmp.lt.s32.totalorder %s12, 1
      %s94 = scalar_select %p93, %s12, 1
      %s95 = smul.addr %s94, 18
      %s96 = smul.addr %s95, 8
      %s97 = scalar_lea.vmem %s0, %s96
      %p98 = pneg %p33
      %p99 = pneg %p30
      %p100 = pneg %p59
      %p101 = pneg %p56
      %p102 = scmp.lt.s32.totalorder %s12, 1
      %s103 = scalar_select %p102, %s12, 1
      %s104 = smul.addr %s103, 8
      %s105 = smul.addr %s104, 8
      %s106 = scalar_lea.vmem %s1, %s105
      %p107 = scmp.lt.s32.totalorder %s12, 1
      %s108 = scalar_select %p107, %s12, 1
      %s109 = smul.addr %s108, 18
      %s110 = smul.addr %s109, 8
      %s111 = scalar_lea.vmem %s0, %s110
      %p112 = scmp.lt.s32.totalorder %s12, 1
      %s113 = scalar_select %p112, %s12, 1
      %s114 = smul.addr %s113, 8
      %s115 = smul.addr %s114, 8
      %s116 = scalar_lea.vmem %s1, %s115
      %v117 = vld [vmem:[%s111] sm:$0xff]
      %v118 = vld [vmem:[%s111 + $0x8] sm:$0xff]
      %v119 = vld [vmem:[%s111 + $0x10] sm:$0xff]
      %v120 = vld [vmem:[%s111 + $0x18] sm:$0xff]
      %v121 = vld [vmem:[%s111 + $0x20] sm:$0xff]
      %v122 = vld [vmem:[%s111 + $0x28] sm:$0xff]
      %v123 = vld [vmem:[%s111 + $0x30] sm:$0xff]
      %v124 = vld [vmem:[%s111 + $0x38] sm:$0xff]
      %v125 = vld [vmem:[%s111 + $0x40] sm:$0xff]
      %v126 = vld [vmem:[%s111 + $0x48] sm:$0xff]
      %v127 = vld [vmem:[%s111 + $0x50] sm:$0xff]
      %v128 = vld [vmem:[%s111 + $0x58] sm:$0xff]
      %v129 = vld [vmem:[%s111 + $0x60] sm:$0xff]
      %v130 = vld [vmem:[%s111 + $0x68] sm:$0xff]
      %v131 = vld [vmem:[%s111 + $0x70] sm:$0xff]
      %v132 = vld [vmem:[%s111 + $0x78] sm:$0xff]
      %v133 = vld [vmem:[%s111 + $0x80] sm:$0xff]
      %v134 = vmax.f32 %v117, %v118
      %v135 = vmax.f32 %v119, %v120
      %v136 = vmax.f32 %v121, %v122
      %v137 = vmax.f32 %v123, %v124
      %v138 = vmax.f32 %v125, %v126
      %v139 = vmax.f32 %v127, %v128
      %v140 = vmax.f32 %v129, %v130
      %v141 = vmax.f32 %v131, %v132
      %v142 = vmax.f32 %v134, %v119
      %v143 = vmax.f32 %v135, %v121
      %v144 = vmax.f32 %v136, %v123
      %v145 = vmax.f32 %v137, %v125
      %v146 = vmax.f32 %v138, %v127
      %v147 = vmax.f32 %v139, %v129
      %v148 = vmax.f32 %v140, %v131
      %v149 = vmax.f32 %v141, %v133
      %vm150 = vcmask 64512
      %151 = vst.msk [vmem:[%s116] sm:$0xff] %vm150, %v142
      %152 = vst.msk [vmem:[%s116 + $0x8] sm:$0xff] %vm150, %v143
      %153 = vst.msk [vmem:[%s116 + $0x10] sm:$0xff] %vm150, %v144
      %154 = vst.msk [vmem:[%s116 + $0x18] sm:$0xff] %vm150, %v145
      %155 = vst.msk [vmem:[%s116 + $0x20] sm:$0xff] %vm150, %v146
      %156 = vst.msk [vmem:[%s116 + $0x28] sm:$0xff] %vm150, %v147
      %157 = vst.msk [vmem:[%s116 + $0x30] sm:$0xff] %vm150, %v148
      %158 = vst.msk [vmem:[%s116 + $0x38] sm:$0xff] %vm150, %v149
      %p159 = scmp.lt.s32.totalorder %s12, 1
      %s160 = scalar_select %p159, %s12, 1
      %s161 = smul.addr %s160, 8
      %s162 = smul.addr %s161, 8
      %s163 = scalar_lea.vmem %s1, %s162
      // Predicated region
      $region25: #{attention_module_0.23} parent=23 // pred_check
        %p164 = pneg %p56
      $region26: #{attention_module_0.23} parent=23 // pred_check_branch
        %166 = sbr.rel (%p164) target = $region28
      $region27: #{attention_module_0.23} parent=23 // pred_region
        _
      $region28: #{attention_module_0.23} parent=23 // pred_fallthru
        _
    $region24: #{attention_module_0.23} parent=5 // pred_fallthru
      _
    %p167 = scmp.le.s32.totalorder 2, %s7
    // Predicated region
    $region29: #{attention_module_0.23} parent=5 // pred_check
      %p168 = pneg %p167
    $region30: #{attention_module_0.23} parent=5 // pred_check_branch
      %170 = sbr.rel (%p168) target = $region32
    $region31: #{attention_module_0.23} parent=5 // pred_region
      %s171 = ssub.s32 %s7, 2
      // Predicated region
      $region33: #{attention_module_0.23} parent=31 // pred_check
        %p172 = pneg %p62
      $region34: #{attention_module_0.23} parent=31 // pred_check_branch
        %174 = sbr.rel (%p172) target = $region36
      $region35: #{attention_module_0.23} parent=31 // pred_region
        %p175 = scmp.lt.s32.totalorder %s13, 1
        %s176 = scalar_select %p175, %s13, 1
        %s177 = smul.addr %s176, 8
        %s178 = smul.addr %s177, 8
        %s179 = scalar_lea.vmem %s1, %s178
      $region36: #{attention_module_0.23} parent=31 // pred_fallthru
        _
    $region32: #{attention_module_0.23} parent=5 // pred_fallthru
      _
  $region6: #{attention_module_0.23} parent=0 // loop_footer
    %s11 = sadd.s32 1, %s7
  $region7: #{attention_module_0.23} parent=0 // loop_footer_branch
    %6 = sbr.rel target = $region3
  $region8: #{attention_module_0.23} parent=0 // loop_exit
    _

// kernel: attention_module_0.24
$region0: #{attention_module_0.24}
  #allocation0 [shape = 'u32[]', space=smem, size = 0x4, offset = 0x4, fixed_abs, tag = 'smem constant byte address 0x4 - core index']
  #allocation1 [shape = 'u32[72,128]{1,0:T(1,128)}', space=vmem, size = 0x9000, scoped, tag = 'internal scratch']
  %s0 = inlined_call_operand.vmem [shape: f32[128,8], index: 0, kind: input, shape index: {}]
  %s1 = inlined_call_operand.vmem [shape: f32[1,8], index: 1, kind: input, shape index: {}]
  %s2 = inlined_call_operand.vmem [shape: f32[1,8], index: 2, kind: input, shape index: {}]
  %s3 = inlined_call_operand.vmem [shape: f32[8,2], index: 3, kind: input, shape index: {}]
  %s4 = inlined_call_operand.vmem [shape: f32[1,2], index: 4, kind: input, shape index: {}]
  %s5 = inlined_call_operand.vmem [shape: f32[1,2], index: 5, kind: input, shape index: {}]
  %s6 = inlined_call_operand.vmem [shape: f32[128,2], index: 6, kind: output, shape index: {}]
  %s7 = sld [smem:[#allocation0]]
  $region34: #{attention_module_0.24} parent=0
    _
  %s9 = ssub.s32 1, %s7
  %s10 = scalar_select 0, %s9, %s7
  // Predicated region
  $region2: #{attention_module_0.24} parent=0 // pred_check
    _
  $region3: #{attention_module_0.24} parent=0 // pred_check_branch
    %12 = sbr.rel (0) target = $region5
  $region4: #{attention_module_0.24} parent=0 // pred_region
    _
  $region5: #{attention_module_0.24} parent=0 // pred_fallthru
    _
  // Predicated region
  $region6: #{attention_module_0.24} parent=0 // pred_check
    _
  $region7: #{attention_module_0.24} parent=0 // pred_check_branch
    %14 = sbr.rel (0) target = $region9
  $region8: #{attention_module_0.24} parent=0 // pred_region
    _
  $region9: #{attention_module_0.24} parent=0 // pred_fallthru
    _
  // Predicated region
  $region10: #{attention_module_0.24} parent=0 // pred_check
    _
  $region11: #{attention_module_0.24} parent=0 // pred_check_branch
    %16 = sbr.rel (0) target = $region13
  $region12: #{attention_module_0.24} parent=0 // pred_region
    _
  $region13: #{attention_module_0.24} parent=0 // pred_fallthru
    _
  // Predicated region
  $region14: #{attention_module_0.24} parent=0 // pred_check
    _
  $region15: #{attention_module_0.24} parent=0 // pred_check_branch
    %18 = sbr.rel (0) target = $region17
  $region16: #{attention_module_0.24} parent=0 // pred_region
    _
  $region17: #{attention_module_0.24} parent=0 // pred_fallthru
    _
  // Predicated region
  $region18: #{attention_module_0.24} parent=0 // pred_check
    _
  $region19: #{attention_module_0.24} parent=0 // pred_check_branch
    %20 = sbr.rel (0) target = $region21
  $region20: #{attention_module_0.24} parent=0 // pred_region
    _
  $region21: #{attention_module_0.24} parent=0 // pred_fallthru
    _
  // Predicated region
  $region22: #{attention_module_0.24} parent=0 // pred_check
    _
  $region23: #{attention_module_0.24} parent=0 // pred_check_branch
    %22 = sbr.rel (0) target = $region25
  $region24: #{attention_module_0.24} parent=0 // pred_region
    _
  $region25: #{attention_module_0.24} parent=0 // pred_fallthru
    _
  %v23 = vld [vmem:[%s0] sm:$0xff]
  %v24 = vld [vmem:[%s0 + $0x8] sm:$0xff]
  %v25 = vld [vmem:[%s0 + $0x10] sm:$0xff]
  %v26 = vld [vmem:[%s0 + $0x18] sm:$0xff]
  %v27 = vld [vmem:[%s0 + $0x20] sm:$0xff]
  %v28 = vld [vmem:[%s0 + $0x28] sm:$0xff]
  %v29 = vld [vmem:[%s0 + $0x30] sm:$0xff]
  %v30 = vld [vmem:[%s0 + $0x38] sm:$0xff]
  %v31 = vld [vmem:[%s0 + $0x40] sm:$0xff]
  %v32 = vld [vmem:[%s0 + $0x48] sm:$0xff]
  %v33 = vld [vmem:[%s0 + $0x50] sm:$0xff]
  %v34 = vld [vmem:[%s0 + $0x58] sm:$0xff]
  %v35 = vld [vmem:[%s0 + $0x60] sm:$0xff]
  %v36 = vld [vmem:[%s0 + $0x68] sm:$0xff]
  %v37 = vld [vmem:[%s0 + $0x70] sm:$0xff]
  %v38 = vld [vmem:[%s0 + $0x78] sm:$0xff]
  %v39 = vld [vmem:[%s1] sm:$0x1]
  %v41 = vperm.slane %v39, 0
  %v43 = vmul.f32 %v23, %v41
  %v44 = vmul.f32 %v24, %v41
  %v45 = vmul.f32 %v25, %v41
  %v46 = vmul.f32 %v26, %v41
  %v47 = vmul.f32 %v27, %v41
  %v48 = vmul.f32 %v28, %v41
  %v49 = vmul.f32 %v29, %v41
  %v50 = vmul.f32 %v30, %v41
  %v51 = vmul.f32 %v31, %v41
  %v52 = vmul.f32 %v32, %v41
  %v53 = vmul.f32 %v33, %v41
  %v54 = vmul.f32 %v34, %v41
  %v55 = vmul.f32 %v35, %v41
  %v56 = vmul.f32 %v36, %v41
  %v57 = vmul.f32 %v37, %v41
  %v58 = vmul.f32 %v38, %v41
  %v59 = vld [vmem:[%s2] sm:$0x1]
  %v61 = vperm.slane %v59, 0
  %v63 = vadd.f32 %v43, %v61
  %v64 = vadd.f32 %v44, %v61
  %v65 = vadd.f32 %v45, %v61
  %v66 = vadd.f32 %v46, %v61
  %v67 = vadd.f32 %v47, %v61
  %v68 = vadd.f32 %v48, %v61
  %v69 = vadd.f32 %v49, %v61
  %v70 = vadd.f32 %v50, %v61
  %v71 = vadd.f32 %v51, %v61
  %v72 = vadd.f32 %v52, %v61
  %v73 = vadd.f32 %v53, %v61
  %v74 = vadd.f32 %v54, %v61
  %v75 = vadd.f32 %v55, %v61
  %v76 = vadd.f32 %v56, %v61
  %v77 = vadd.f32 %v57, %v61
  %v78 = vadd.f32 %v58, %v61
  %v79 = vmax.f32 %v63, 0.0
  %v80 = vmax.f32 %v64, 0.0
  %v81 = vmax.f32 %v65, 0.0
  %v82 = vmax.f32 %v66, 0.0
  %v83 = vmax.f32 %v67, 0.0
  %v84 = vmax.f32 %v68, 0.0
  %v85 = vmax.f32 %v69, 0.0
  %v86 = vmax.f32 %v70, 0.0
  %v87 = vmax.f32 %v71, 0.0
  %v88 = vmax.f32 %v72, 0.0
  %v89 = vmax.f32 %v73, 0.0
  %v90 = vmax.f32 %v74, 0.0
  %v91 = vmax.f32 %v75, 0.0
  %v92 = vmax.f32 %v76, 0.0
  %v93 = vmax.f32 %v77, 0.0
  %v94 = vmax.f32 %v78, 0.0
  %v95 = vld [vmem:[%s3] sm:$0xff]
  %vm96 = vcmask 64512
  %v98 = vsel %vm96, %v79, 0
  %v101 = vsel %vm96, %v80, 0
  %v104 = vsel %vm96, %v81, 0
  %v107 = vsel %vm96, %v82, 0
  %v110 = vsel %vm96, %v83, 0
  %v113 = vsel %vm96, %v84, 0
  %v116 = vsel %vm96, %v85, 0
  %v119 = vsel %vm96, %v86, 0
  %v122 = vsel %vm96, %v87, 0
  %v125 = vsel %vm96, %v88, 0
  %v128 = vsel %vm96, %v89, 0
  %v131 = vsel %vm96, %v90, 0
  %v134 = vsel %vm96, %v91, 0
  %v137 = vsel %vm96, %v92, 0
  %v140 = vsel %vm96, %v93, 0
  %v143 = vsel %vm96, %v94, 0
  %145 = vmatpush.msra.mxu0 0.0
  %146 = vmatpush.msra.mxu0 0.0
  %147 = vmatpush.msra.mxu0 0.0
  %148 = vmatpush.msra.mxu0 0.0
  %149 = vmatpush.msra.mxu0 0.0
  %150 = vmatpush.msra.mxu0 0.0
  %151 = vmatpush.msra.mxu0 0.0
  %152 = vmatpush.msra.mxu0 0.0
  %153 = vmatpush.msra.mxu0 0.0
  %154 = vmatpush.msra.mxu0 0.0
  %155 = vmatpush.msra.mxu0 0.0
  %156 = vmatpush.msra.mxu0 0.0
  %157 = vmatpush.msra.mxu0 0.0
  %158 = vmatpush.msra.mxu0 0.0
  %159 = vmatpush.msra.mxu0 0.0
  %160 = vmatpush.msra.mxu0 %v95
  %161 = vmatmul.f32.gmra.mxu0 %v98
  %v162 = vpop.f32.mrf.mxu0
  %v163 = vadd.f32 0.0, %v162
  %164 = vmatmul.f32.gmra.mxu0 %v101
  %v165 = vpop.f32.mrf.mxu0
  %v166 = vadd.f32 0.0, %v165
  %167 = vmatmul.f32.gmra.mxu0 %v104
  %v168 = vpop.f32.mrf.mxu0
  %v169 = vadd.f32 0.0, %v168
  %170 = vmatmul.f32.gmra.mxu0 %v107
  %v171 = vpop.f32.mrf.mxu0
  %v172 = vadd.f32 0.0, %v171
  %173 = vmatmul.f32.gmra.mxu0 %v110
  %v174 = vpop.f32.mrf.mxu0
  %v175 = vadd.f32 0.0, %v174
  %176 = vmatmul.f32.gmra.mxu0 %v113
  %v177 = vpop.f32.mrf.mxu0
  %v178 = vadd.f32 0.0, %v177
  %179 = vmatmul.f32.gmra.mxu0 %v116
  %v180 = vpop.f32.mrf.mxu0
  %v181 = vadd.f32 0.0, %v180
  %182 = vmatmul.f32.gmra.mxu0 %v119
  %v183 = vpop.f32.mrf.mxu0
  %v184 = vadd.f32 0.0, %v183
  %185 = vmatmul.f32.gmra.mxu0 %v122
  %v186 = vpop.f32.mrf.mxu0
  %v187 = vadd.f32 0.0, %v186
  %188 = vmatmul.f32.gmra.mxu0 %v125
  %v189 = vpop.f32.mrf.mxu0
  %v190 = vadd.f32 0.0, %v189
  %191 = vmatmul.f32.gmra.mxu0 %v128
  %v192 = vpop.f32.mrf.mxu0
  %v193 = vadd.f32 0.0, %v192
  %194 = vmatmul.f32.gmra.mxu0 %v131
  %v195 = vpop.f32.mrf.mxu0
  %v196 = vadd.f32 0.0, %v195
  %197 = vmatmul.f32.gmra.mxu0 %v134
  %v198 = vpop.f32.mrf.mxu0
  %v199 = vadd.f32 0.0, %v198
  %200 = vmatmul.f32.gmra.mxu0 %v137
  %v201 = vpop.f32.mrf.mxu0
  %v202 = vadd.f32 0.0, %v201
  %203 = vmatmul.f32.gmra.mxu0 %v140
  %v204 = vpop.f32.mrf.mxu0
  %v205 = vadd.f32 0.0, %v204
  %206 = vmatmul.f32.gmra.mxu0 %v143
  %v207 = vpop.f32.mrf.mxu0
  %v208 = vadd.f32 0.0, %v207
  %209 = vdwg.mxu0
  %v210 = vld [vmem:[%s4] sm:$0x1]
  %v212 = vperm.slane %v210, 0
  %v214 = vmul.f32 %v163, %v212
  %v215 = vmul.f32 %v166, %v212
  %v216 = vmul.f32 %v169, %v212
  %v217 = vmul.f32 %v172, %v212
  %v218 = vmul.f32 %v175, %v212
  %v219 = vmul.f32 %v178, %v212
  %v220 = vmul.f32 %v181, %v212
  %v221 = vmul.f32 %v184, %v212
  %v222 = vmul.f32 %v187, %v212
  %v223 = vmul.f32 %v190, %v212
  %v224 = vmul.f32 %v193, %v212
  %v225 = vmul.f32 %v196, %v212
  %v226 = vmul.f32 %v199, %v212
  %v227 = vmul.f32 %v202, %v212
  %v228 = vmul.f32 %v205, %v212
  %v229 = vmul.f32 %v208, %v212
  %v230 = vld [vmem:[%s5] sm:$0x1]
  %v232 = vperm.slane %v230, 0
  %v234 = vadd.f32 %v214, %v232
  %v235 = vadd.f32 %v215, %v232
  %v236 = vadd.f32 %v216, %v232
  %v237 = vadd.f32 %v217, %v232
  %v238 = vadd.f32 %v218, %v232
  %v239 = vadd.f32 %v219, %v232
  %v240 = vadd.f32 %v220, %v232
  %v241 = vadd.f32 %v221, %v232
  %v242 = vadd.f32 %v222, %v232
  %v243 = vadd.f32 %v223, %v232
  %v244 = vadd.f32 %v224, %v232
  %v245 = vadd.f32 %v225, %v232
  %v246 = vadd.f32 %v226, %v232
  %v247 = vadd.f32 %v227, %v232
  %v248 = vadd.f32 %v228, %v232
  %v249 = vadd.f32 %v229, %v232
  %v250 = vmax.f32 %v234, 0.0
  %v251 = vmax.f32 %v235, 0.0
  %v252 = vmax.f32 %v236, 0.0
  %v253 = vmax.f32 %v237, 0.0
  %v254 = vmax.f32 %v238, 0.0
  %v255 = vmax.f32 %v239, 0.0
  %v256 = vmax.f32 %v240, 0.0
  %v257 = vmax.f32 %v241, 0.0
  %v258 = vmax.f32 %v242, 0.0
  %v259 = vmax.f32 %v243, 0.0
  %v260 = vmax.f32 %v244, 0.0
  %v261 = vmax.f32 %v245, 0.0
  %v262 = vmax.f32 %v246, 0.0
  %v263 = vmax.f32 %v247, 0.0
  %v264 = vmax.f32 %v248, 0.0
  %v265 = vmax.f32 %v249, 0.0
  %vm266 = vcmask 15360
  %267 = vst.msk [vmem:[%s6] sm:$0xff] %vm266, %v250
  %268 = vst.msk [vmem:[%s6 + $0x8] sm:$0xff] %vm266, %v251
  %269 = vst.msk [vmem:[%s6 + $0x10] sm:$0xff] %vm266, %v252
  %270 = vst.msk [vmem:[%s6 + $0x18] sm:$0xff] %vm266, %v253
  %271 = vst.msk [vmem:[%s6 + $0x20] sm:$0xff] %vm266, %v254
  %272 = vst.msk [vmem:[%s6 + $0x28] sm:$0xff] %vm266, %v255
  %273 = vst.msk [vmem:[%s6 + $0x30] sm:$0xff] %vm266, %v256
  %274 = vst.msk [vmem:[%s6 + $0x38] sm:$0xff] %vm266, %v257
  %275 = vst.msk [vmem:[%s6 + $0x40] sm:$0xff] %vm266, %v258
  %276 = vst.msk [vmem:[%s6 + $0x48] sm:$0xff] %vm266, %v259
  %277 = vst.msk [vmem:[%s6 + $0x50] sm:$0xff] %vm266, %v260
  %278 = vst.msk [vmem:[%s6 + $0x58] sm:$0xff] %vm266, %v261
  %279 = vst.msk [vmem:[%s6 + $0x60] sm:$0xff] %vm266, %v262
  %280 = vst.msk [vmem:[%s6 + $0x68] sm:$0xff] %vm266, %v263
  %281 = vst.msk [vmem:[%s6 + $0x70] sm:$0xff] %vm266, %v264
  %282 = vst.msk [vmem:[%s6 + $0x78] sm:$0xff] %vm266, %v265
  // Predicated region
  $region26: #{attention_module_0.24} parent=0 // pred_check
    _
  $region27: #{attention_module_0.24} parent=0 // pred_check_branch
    %284 = sbr.rel (0) target = $region29
  $region28: #{attention_module_0.24} parent=0 // pred_region
    _
  $region29: #{attention_module_0.24} parent=0 // pred_fallthru
    _
  // Predicated region
  $region30: #{attention_module_0.24} parent=0 // pred_check
    _
  $region31: #{attention_module_0.24} parent=0 // pred_check_branch
    %286 = sbr.rel (0) target = $region33
  $region32: #{attention_module_0.24} parent=0 // pred_region
    _
  $region33: #{attention_module_0.24} parent=0 // pred_fallthru
    _

// kernel: attention_module_0.25
$region0: #{attention_module_0.25}
  #allocation0 [shape = 'u32[]', space=smem, size = 0x4, offset = 0x4, fixed_abs, tag = 'smem constant byte address 0x4 - core index']
  #allocation1 [shape = 'u32[72,128]{1,0:T(1,128)}', space=vmem, size = 0x9000, scoped, tag = 'internal scratch']
  %s0 = inlined_call_operand.vmem [shape: f32[2,80,6], index: 0, kind: input, shape index: {}]
  %s1 = inlined_call_operand.vmem [shape: f32[3,6,2], index: 1, kind: input, shape index: {}]
  %s2 = inlined_call_operand.vmem [shape: f32[1,2], index: 2, kind: input, shape index: {}]
  %s3 = inlined_call_operand.vmem [shape: f32[1,2], index: 3, kind: input, shape index: {}]
  %s4 = inlined_call_operand.vmem [shape: f32[2,8], index: 4, kind: input, shape index: {}]
  %s5 = inlined_call_operand.vmem [shape: f32[2,64,8], index: 5, kind: input, shape index: {}]
  %s6 = inlined_call_operand.vmem [shape: f32[2,64,8], index: 6, kind: output, shape index: {}]
  %s7 = sld [smem:[#allocation0]]
  $region57: #{attention_module_0.25} parent=0
    _
  %s9 = ssub.s32 1, %s7
  %s10 = scalar_select 0, %s9, %s7
  loop: start=0, step=1, limit=4
  $region2: #{attention_module_0.25} parent=0 // loop_pre_header
    _
  $region3: #{attention_module_0.25} parent=0 // loop_header
    %s12 = sphi 0, %s16
    %p13 = scmp.ge.s32.totalorder %s12, 4
    %s22 = sphi 0, %s24
    %s25 = sphi 0, %s22
    %s26 = sphi 0, %s25
    %s42 = sphi 0, %s26
    %s46 = sphi 0, %s46
    %s48 = sphi 0, %s46
    %s49 = sphi 0, %s48
    %s63 = sphi 0, %s49
    %s67 = sphi 0, %s67
    %s69 = sphi 0, %s67
    %s70 = sphi 0, %s69
    %s84 = sphi 0, %s70
    %s88 = sphi 0, %s88
    %s90 = sphi 0, %s88
    %s91 = sphi 0, %s90
    %s105 = sphi 0, %s91
    %s109 = sphi 0, %s109
    %s111 = sphi 0, %s109
    %s112 = sphi 0, %s111
    %s126 = sphi 0, %s112
    %s132 = sphi 0, %s134
    %s135 = sphi 0, %s132
    %s136 = sphi 0, %s135
    %s152 = sphi 0, %s136
    %s158 = sphi 0, %s160
    %s161 = sphi 0, %s158
    %s162 = sphi 0, %s161
    %s178 = sphi 0, %s162
  $region4: #{attention_module_0.25} parent=0 // loop_header_branch
    %15 = sbr.rel (%p13) target = $region8
  $region5: #{attention_module_0.25} parent=0 // loop_body
    %s17 = ssub.s32 %s12, 1
    %s18 = ssub.s32 %s12, 2
    %s19 = sadd.s32 %s12, 1
    %s20 = ssub.s32 %s12, %s19
    %p21 = scmp.eq.s32.totalorder %s20, 0
    %s23 = sadd.s32 %s22, 1
    %s24 = scalar_select %p21, %s22, %s23
    %p27 = pneg %p21
    %p28 = scmp.eq.s32.totalorder %s12, 1
    %p29 = por %p27, %p28
    %p30 = scmp.ne.s32.totalorder %s22, %s25
    %p31 = scmp.eq.s32.totalorder %s12, 0
    %p32 = por %p30, %p31
    %p33 = scmp.ne.s32.totalorder %s22, %s25
    %p34 = scmp.eq.s32.totalorder %s17, 1
    %p35 = por %p33, %p34
    %p36 = scmp.ne.s32.totalorder %s25, %s26
    %p37 = scmp.eq.s32.totalorder %s17, 0
    %p38 = por %p36, %p37
    %p39 = scmp.ne.s32.totalorder %s25, %s26
    %p40 = scmp.eq.s32.totalorder %s18, 1
    %p41 = por %p39, %p40
    %p43 = scmp.ne.s32.totalorder %s26, %s42
    %p44 = scmp.eq.s32.totalorder %s18, 0
    %p45 = por %p43, %p44
    %s47 = sadd.s32 %s46, 1
    %p50 = scmp.eq.s32.totalorder %s12, 1
    %p51 = scmp.ne.s32.totalorder %s46, %s48
    %p52 = scmp.eq.s32.totalorder %s12, 0
    %p53 = por %p51, %p52
    %p54 = scmp.ne.s32.totalorder %s46, %s48
    %p55 = scmp.eq.s32.totalorder %s17, 1
    %p56 = por %p54, %p55
    %p57 = scmp.ne.s32.totalorder %s48, %s49
    %p58 = scmp.eq.s32.totalorder %s17, 0
    %p59 = por %p57, %p58
    %p60 = scmp.ne.s32.totalorder %s48, %s49
    %p61 = scmp.eq.s32.totalorder %s18, 1
    %p62 = por %p60, %p61
    %p64 = scmp.ne.s32.totalorder %s49, %s63
    %p65 = scmp.eq.s32.totalorder %s18, 0
    %p66 = por %p64, %p65
    %s68 = sadd.s32 %s67, 1
    %p71 = scmp.eq.s32.totalorder %s12, 1
    %p72 = scmp.ne.s32.totalorder %s67, %s69
    %p73 = scmp.eq.s32.totalorder %s12, 0
    %p74 = por %p72, %p73
    %p75 = scmp.ne.s32.totalorder %s67, %s69
    %p76 = scmp.eq.s32.totalorder %s17, 1
    %p77 = por %p75, %p76
    %p78 = scmp.ne.s32.totalorder %s69, %s70
    %p79 = scmp.eq.s32.totalorder %s17, 0
    %p80 = por %p78, %p79
    %p81 = scmp.ne.s32.totalorder %s69, %s70
    %p82 = scmp.eq.s32.totalorder %s18, 1
    %p83 = por %p81, %p82
    %p85 = scmp.ne.s32.totalorder %s70, %s84
    %p86 = scmp.eq.s32.totalorder %s18, 0
    %p87 = por %p85, %p86
    %s89 = sadd.s32 %s88, 1
    %p92 = scmp.eq.s32.totalorder %s12, 1
    %p93 = scmp.ne.s32.totalorder %s88, %s90
    %p94 = scmp.eq.s32.totalorder %s12, 0
    %p95 = por %p93, %p94
    %p96 = scmp.ne.s32.totalorder %s88, %s90
    %p97 = scmp.eq.s32.totalorder %s17, 1
    %p98 = por %p96, %p97
    %p99 = scmp.ne.s32.totalorder %s90, %s91
    %p100 = scmp.eq.s32.totalorder %s17, 0
    %p101 = por %p99, %p100
    %p102 = scmp.ne.s32.totalorder %s90, %s91
    %p103 = scmp.eq.s32.totalorder %s18, 1
    %p104 = por %p102, %p103
    %p106 = scmp.ne.s32.totalorder %s91, %s105
    %p107 = scmp.eq.s32.totalorder %s18, 0
    %p108 = por %p106, %p107
    %s110 = sadd.s32 %s109, 1
    %p113 = scmp.eq.s32.totalorder %s12, 1
    %p114 = scmp.ne.s32.totalorder %s109, %s111
    %p115 = scmp.eq.s32.totalorder %s12, 0
    %p116 = por %p114, %p115
    %p117 = scmp.ne.s32.totalorder %s109, %s111
    %p118 = scmp.eq.s32.totalorder %s17, 1
    %p119 = por %p117, %p118
    %p120 = scmp.ne.s32.totalorder %s111, %s112
    %p121 = scmp.eq.s32.totalorder %s17, 0
    %p122 = por %p120, %p121
    %p123 = scmp.ne.s32.totalorder %s111, %s112
    %p124 = scmp.eq.s32.totalorder %s18, 1
    %p125 = por %p123, %p124
    %p127 = scmp.ne.s32.totalorder %s112, %s126
    %p128 = scmp.eq.s32.totalorder %s18, 0
    %p129 = por %p127, %p128
    %s130 = ssub.s32 %s12, %s19
    %p131 = scmp.eq.s32.totalorder %s130, 0
    %s133 = sadd.s32 %s132, 1
    %s134 = scalar_select %p131, %s132, %s133
    %p137 = pneg %p131
    %p138 = scmp.eq.s32.totalorder %s12, 1
    %p139 = por %p137, %p138
    %p140 = scmp.ne.s32.totalorder %s132, %s135
    %p141 = scmp.eq.s32.totalorder %s12, 0
    %p142 = por %p140, %p141
    %p143 = scmp.ne.s32.totalorder %s132, %s135
    %p144 = scmp.eq.s32.totalorder %s17, 1
    %p145 = por %p143, %p144
    %p146 = scmp.ne.s32.totalorder %s135, %s136
    %p147 = scmp.eq.s32.totalorder %s17, 0
    %p148 = por %p146, %p147
    %p149 = scmp.ne.s32.totalorder %s135, %s136
    %p150 = scmp.eq.s32.totalorder %s18, 1
    %p151 = por %p149, %p150
    %p153 = scmp.ne.s32.totalorder %s136, %s152
    %p154 = scmp.eq.s32.totalorder %s18, 0
    %p155 = por %p153, %p154
    %s156 = ssub.s32 %s12, %s19
    %p157 = scmp.eq.s32.totalorder %s156, 0
    %s159 = sadd.s32 %s158, 1
    %s160 = scalar_select %p157, %s158, %s159
    %p163 = pneg %p157
    %p164 = scmp.eq.s32.totalorder %s12, 1
    %p165 = por %p163, %p164
    %p166 = scmp.ne.s32.totalorder %s158, %s161
    %p167 = scmp.eq.s32.totalorder %s12, 0
    %p168 = por %p166, %p167
    %p169 = scmp.ne.s32.totalorder %s158, %s161
    %p170 = scmp.eq.s32.totalorder %s17, 1
    %p171 = por %p169, %p170
    %p172 = scmp.ne.s32.totalorder %s161, %s162
    %p173 = scmp.eq.s32.totalorder %s17, 0
    %p174 = por %p172, %p173
    %p175 = scmp.ne.s32.totalorder %s161, %s162
    %p176 = scmp.eq.s32.totalorder %s18, 1
    %p177 = por %p175, %p176
    %p179 = scmp.ne.s32.totalorder %s162, %s178
    %p180 = scmp.eq.s32.totalorder %s18, 0
    %p181 = por %p179, %p180
    %p182 = scmp.le.s32.totalorder 1, %s12
    %p183 = scmp.lt.s32.totalorder %s12, 3
    %p184 = pnand %p182, %p183
    %p185 = pneg %p184
    // Predicated region
    $region9: #{attention_module_0.25} parent=5 // pred_check
      _
    $region10: #{attention_module_0.25} parent=5 // pred_check_branch
      %187 = sbr.rel (%p184) target = $region12
    $region11: #{attention_module_0.25} parent=5 // pred_region
      %s188 = ssub.s32 %s12, 1
      // Predicated region
      $region13: #{attention_module_0.25} parent=11 // pred_check
        %p189 = pneg %p59
      $region14: #{attention_module_0.25} parent=11 // pred_check_branch
        %191 = sbr.rel (%p189) target = $region16
      $region15: #{attention_module_0.25} parent=11 // pred_region
        _
      $region16: #{attention_module_0.25} parent=11 // pred_fallthru
        _
      // Predicated region
      $region17: #{attention_module_0.25} parent=11 // pred_check
        %p192 = pneg %p80
      $region18: #{attention_module_0.25} parent=11 // pred_check_branch
        %194 = sbr.rel (%p192) target = $region20
      $region19: #{attention_module_0.25} parent=11 // pred_region
        _
      $region20: #{attention_module_0.25} parent=11 // pred_fallthru
        _
      // Predicated region
      $region21: #{attention_module_0.25} parent=11 // pred_check
        %p195 = pneg %p101
      $region22: #{attention_module_0.25} parent=11 // pred_check_branch
        %197 = sbr.rel (%p195) target = $region24
      $region23: #{attention_module_0.25} parent=11 // pred_region
        _
      $region24: #{attention_module_0.25} parent=11 // pred_fallthru
        _
      // Predicated region
      $region25: #{attention_module_0.25} parent=11 // pred_check
        %p198 = pneg %p122
      $region26: #{attention_module_0.25} parent=11 // pred_check_branch
        %200 = sbr.rel (%p198) target = $region28
      $region27: #{attention_module_0.25} parent=11 // pred_region
        _
      $region28: #{attention_module_0.25} parent=11 // pred_fallthru
        _
    $region12: #{attention_module_0.25} parent=5 // pred_fallthru
      _
    %p201 = scmp.lt.s32.totalorder %s12, 2
    // Predicated region
    $region29: #{attention_module_0.25} parent=5 // pred_check
      %p202 = pneg %p201
    $region30: #{attention_module_0.25} parent=5 // pred_check_branch
      %204 = sbr.rel (%p202) target = $region32
    $region31: #{attention_module_0.25} parent=5 // pred_region
      // Predicated region
      $region33: #{attention_module_0.25} parent=31 // pred_check
        %p205 = pneg %p32
      $region34: #{attention_module_0.25} parent=31 // pred_check_branch
        %207 = sbr.rel (%p205) target = $region36
      $region35: #{attention_module_0.25} parent=31 // pred_region
        %p208 = scmp.lt.s32.totalorder %s12, 1
        %s209 = scalar_select %p208, %s12, 1
        %s210 = smul.addr %s209, 10
        %s211 = smul.addr %s210, 8
        %s212 = scalar_lea.vmem %s0, %s211
      $region36: #{attention_module_0.25} parent=31 // pred_fallthru
        _
      // Predicated region
      $region37: #{attention_module_0.25} parent=31 // pred_check
        %p213 = pneg %p142
      $region38: #{attention_module_0.25} parent=31 // pred_check_branch
        %215 = sbr.rel (%p213) target = $region40
      $region39: #{attention_module_0.25} parent=31 // pred_region
        %p216 = scmp.lt.s32.totalorder %s12, 1
        %s217 = scalar_select %p216, %s12, 1
        %s218 = smul.addr %s217, 8
        %s219 = smul.addr %s218, 8
        %s220 = scalar_lea.vmem %s5, %s219
      $region40: #{attention_module_0.25} parent=31 // pred_fallthru
        _
    $region32: #{attention_module_0.25} parent=5 // pred_fallthru
      _
    %p221 = scmp.le.s32.totalorder 1, %s12
    %p222 = scmp.lt.s32.totalorder %s12, 3
    %p223 = pnand %p221, %p222
    %p224 = pneg %p223
    // Predicated region
    $region41: #{attention_module_0.25} parent=5 // pred_check
      _
    $region42: #{attention_module_0.25} parent=5 // pred_check_branch
      %226 = sbr.rel (%p223) target = $region44
    $region43: #{attention_module_0.25} parent=5 // pred_region
      %s227 = ssub.s32 %s12, 1
      %p228 = scmp.lt.s32.totalorder %s17, 1
      %s229 = scalar_select %p228, %s17, 1
      %s230 = smul.addr %s229, 10
      %s231 = smul.addr %s230, 8
      %s232 = scalar_lea.vmem %s0, %s231
      %p233 = pneg %p38
      %p234 = pneg %p35
      %p235 = pneg %p59
      %p236 = pneg %p56
      %p237 = pneg %p80
      %p238 = pneg %p77
      %p239 = pneg %p101
      %p240 = pneg %p98
      %p241 = pneg %p122
      %p242 = pneg %p119
      %p243 = scmp.lt.s32.totalorder %s17, 1
      %s244 = scalar_select %p243, %s17, 1
      %s245 = smul.addr %s244, 8
      %s246 = smul.addr %s245, 8
      %s247 = scalar_lea.vmem %s5, %s246
      %p248 = pneg %p148
      %p249 = pneg %p145
      %p250 = pneg %p174
      %p251 = pneg %p171
      %p252 = scmp.lt.s32.totalorder %s17, 1
      %s253 = scalar_select %p252, %s17, 1
      %s254 = smul.addr %s253, 8
      %s255 = smul.addr %s254, 8
      %s256 = scalar_lea.vmem %s6, %s255
      %p257 = scmp.lt.s32.totalorder %s17, 1
      %s258 = scalar_select %p257, %s17, 1
      %s259 = smul.addr %s258, 10
      %s260 = smul.addr %s259, 8
      %s261 = scalar_lea.vmem %s0, %s260
      %p262 = scmp.lt.s32.totalorder %s17, 1
      %s263 = scalar_select %p262, %s17, 1
      %s264 = smul.addr %s263, 8
      %s265 = smul.addr %s264, 8
      %s266 = scalar_lea.vmem %s5, %s265
      %p267 = scmp.lt.s32.totalorder %s17, 1
      %s268 = scalar_select %p267, %s17, 1
      %s269 = smul.addr %s268, 8
      %s270 = smul.addr %s269, 8
      %s271 = scalar_lea.vmem %s6, %s270
      %v272 = vld [vmem:[%s261] sm:$0xff]
      %v273 = vld [vmem:[%s261 + $0x8] sm:$0xff]
      %v274 = vld [vmem:[%s261 + $0x10] sm:$0xff]
      %v275 = vld [vmem:[%s261 + $0x18] sm:$0xff]
      %v276 = vld [vmem:[%s261 + $0x20] sm:$0xff]
      %v277 = vld [vmem:[%s261 + $0x28] sm:$0xff]
      %v278 = vld [vmem:[%s261 + $0x30] sm:$0xff]
      %v279 = vld [vmem:[%s261 + $0x38] sm:$0xff]
      %v280 = vld [vmem:[%s1] sm:$0x3f]
      %v281 = vld [vmem:[%s261 + $0x40] sm:$0xff]
      %s282 = scalar_lea.vmem %s1, 8
      %v283 = vld [vmem:[%s282] sm:$0x3f]
      %vm284 = vcmask 48128
      %v286 = vsel %vm284, %v273, 0
      %v289 = vsel %vm284, %v274, 0
      %v292 = vsel %vm284, %v275, 0
      %v295 = vsel %vm284, %v276, 0
      %v298 = vsel %vm284, %v277, 0
      %v301 = vsel %vm284, %v278, 0
      %v304 = vsel %vm284, %v279, 0
      %v307 = vsel %vm284, %v281, 0
      %vm309 = vcmask 1045504
      %v311 = vsel %vm309, %v283, 0
      %313 = vmatpush.msra.mxu0 0.0
      %314 = vmatpush.msra.mxu0 0.0
      %315 = vmatpush.msra.mxu0 0.0
      %316 = vmatpush.msra.mxu0 0.0
      %317 = vmatpush.msra.mxu0 0.0
      %318 = vmatpush.msra.mxu0 0.0
      %319 = vmatpush.msra.mxu0 0.0
      %320 = vmatpush.msra.mxu0 0.0
      %321 = vmatpush.msra.mxu0 0.0
      %322 = vmatpush.msra.mxu0 0.0
      %323 = vmatpush.msra.mxu0 0.0
      %324 = vmatpush.msra.mxu0 0.0
      %325 = vmatpush.msra.mxu0 0.0
      %326 = vmatpush.msra.mxu0 0.0
      %327 = vmatpush.msra.mxu0 0.0
      %328 = vmatpush.msra.mxu0 %v311
      %329 = vmatmul.f32.gmra.mxu0 %v286
      %v330 = vpop.f32.mrf.mxu0
      %v331 = vadd.f32 0.0, %v330
      %332 = vmatmul.f32.gmra.mxu0 %v289
      %v333 = vpop.f32.mrf.mxu0
      %v334 = vadd.f32 0.0, %v333
      %335 = vmatmul.f32.gmra.mxu0 %v292
      %v336 = vpop.f32.mrf.mxu0
      %v337 = vadd.f32 0.0, %v336
      %338 = vmatmul.f32.gmra.mxu0 %v295
      %v339 = vpop.f32.mrf.mxu0
      %v340 = vadd.f32 0.0, %v339
      %341 = vmatmul.f32.gmra.mxu0 %v298
      %v342 = vpop.f32.mrf.mxu0
      %v343 = vadd.f32 0.0, %v342
      %344 = vmatmul.f32.gmra.mxu0 %v301
      %v345 = vpop.f32.mrf.mxu0
      %v346 = vadd.f32 0.0, %v345
      %347 = vmatmul.f32.gmra.mxu0 %v304
      %v348 = vpop.f32.mrf.mxu0
      %v349 = vadd.f32 0.0, %v348
      %350 = vmatmul.f32.gmra.mxu0 %v307
      %v351 = vpop.f32.mrf.mxu0
      %v352 = vadd.f32 0.0, %v351
      %353 = vdwg.mxu0
      %v355 = vsel %vm284, %v272, 0
      %v358 = vsel %vm309, %v280, 0
      %360 = vmatpush.msra.mxu0 0.0
      %361 = vmatpush.msra.mxu0 0.0
      %362 = vmatpush.msra.mxu0 0.0
      %363 = vmatpush.msra.mxu0 0.0
      %364 = vmatpush.msra.mxu0 0.0
      %365 = vmatpush.msra.mxu0 0.0
      %366 = vmatpush.msra.mxu0 0.0
      %367 = vmatpush.msra.mxu0 0.0
      %368 = vmatpush.msra.mxu0 0.0
      %369 = vmatpush.msra.mxu0 0.0
      %370 = vmatpush.msra.mxu0 0.0
      %371 = vmatpush.msra.mxu0 0.0
      %372 = vmatpush.msra.mxu0 0.0
      %373 = vmatpush.msra.mxu0 0.0
      %374 = vmatpush.msra.mxu0 0.0
      %375 = vmatpush.msra.mxu0 %v358
      %376 = vmatmul.f32.gmra.mxu0 %v355
      %v377 = vpop.f32.mrf.mxu0
      %v378 = vadd.f32 %v331, %v377
      %379 = vmatmul.f32.gmra.mxu0 %v286
      %v380 = vpop.f32.mrf.mxu0
      %v381 = vadd.f32 %v334, %v380
      %382 = vmatmul.f32.gmra.mxu0 %v289
      %v383 = vpop.f32.mrf.mxu0
      %v384 = vadd.f32 %v337, %v383
      %385 = vmatmul.f32.gmra.mxu0 %v292
      %v386 = vpop.f32.mrf.mxu0
      %v387 = vadd.f32 %v340, %v386
      %388 = vmatmul.f32.gmra.mxu0 %v295
      %v389 = vpop.f32.mrf.mxu0
      %v390 = vadd.f32 %v343, %v389
      %391 = vmatmul.f32.gmra.mxu0 %v298
      %v392 = vpop.f32.mrf.mxu0
      %v393 = vadd.f32 %v346, %v392
      %394 = vmatmul.f32.gmra.mxu0 %v301
      %v395 = vpop.f32.mrf.mxu0
      %v396 = vadd.f32 %v349, %v395
      %397 = vmatmul.f32.gmra.mxu0 %v304
      %v398 = vpop.f32.mrf.mxu0
      %v399 = vadd.f32 %v352, %v398
      %400 = vdwg.mxu0
      %v401 = vld [vmem:[%s261 + $0x10] sm:$0xff]
      %v402 = vld [vmem:[%s261 + $0x18] sm:$0xff]
      %v403 = vld [vmem:[%s261 + $0x20] sm:$0xff]
      %v404 = vld [vmem:[%s261 + $0x28] sm:$0xff]
      %v405 = vld [vmem:[%s261 + $0x30] sm:$0xff]
      %v406 = vld [vmem:[%s261 + $0x38] sm:$0xff]
      %v407 = vld [vmem:[%s261 + $0x40] sm:$0xff]
      %v408 = vld [vmem:[%s261 + $0x48] sm:$0xff]
      %s409 = scalar_lea.vmem %s1, 16
      %v410 = vld [vmem:[%s409] sm:$0x3f]
      %v412 = vsel %vm284, %v401, 0
      %v415 = vsel %vm284, %v402, 0
      %v418 = vsel %vm284, %v403, 0
      %v421 = vsel %vm284, %v404, 0
      %v424 = vsel %vm284, %v405, 0
      %v427 = vsel %vm284, %v406, 0
      %v430 = vsel %vm284, %v407, 0
      %v433 = vsel %vm284, %v408, 0
      %v436 = vsel %vm309, %v410, 0
      %438 = vmatpush.msra.mxu0 0.0
      %439 = vmatpush.msra.mxu0 0.0
      %440 = vmatpush.msra.mxu0 0.0
      %441 = vmatpush.msra.mxu0 0.0
      %442 = vmatpush.msra.mxu0 0.0
      %443 = vmatpush.msra.mxu0 0.0
      %444 = vmatpush.msra.mxu0 0.0
      %445 = vmatpush.msra.mxu0 0.0
      %446 = vmatpush.msra.mxu0 0.0
      %447 = vmatpush.msra.mxu0 0.0
      %448 = vmatpush.msra.mxu0 0.0
      %449 = vmatpush.msra.mxu0 0.0
      %450 = vmatpush.msra.mxu0 0.0
      %451 = vmatpush.msra.mxu0 0.0
      %452 = vmatpush.msra.mxu0 0.0
      %453 = vmatpush.msra.mxu0 %v436
      %454 = vmatmul.f32.gmra.mxu0 %v412
      %v455 = vpop.f32.mrf.mxu0
      %v456 = vadd.f32 0.0, %v455
      %457 = vmatmul.f32.gmra.mxu0 %v415
      %v458 = vpop.f32.mrf.mxu0
      %v459 = vadd.f32 0.0, %v458
      %460 = vmatmul.f32.gmra.mxu0 %v418
      %v461 = vpop.f32.mrf.mxu0
      %v462 = vadd.f32 0.0, %v461
      %463 = vmatmul.f32.gmra.mxu0 %v421
      %v464 = vpop.f32.mrf.mxu0
      %v465 = vadd.f32 0.0, %v464
      %466 = vmatmul.f32.gmra.mxu0 %v424
      %v467 = vpop.f32.mrf.mxu0
      %v468 = vadd.f32 0.0, %v467
      %469 = vmatmul.f32.gmra.mxu0 %v427
      %v470 = vpop.f32.mrf.mxu0
      %v471 = vadd.f32 0.0, %v470
      %472 = vmatmul.f32.gmra.mxu0 %v430
      %v473 = vpop.f32.mrf.mxu0
      %v474 = vadd.f32 0.0, %v473
      %475 = vmatmul.f32.gmra.mxu0 %v433
      %v476 = vpop.f32.mrf.mxu0
      %v477 = vadd.f32 0.0, %v476
      %478 = vdwg.mxu0
      %v479 = vadd.f32 %v378, %v456
      %v480 = vadd.f32 %v381, %v459
      %v481 = vadd.f32 %v384, %v462
      %v482 = vadd.f32 %v387, %v465
      %v483 = vadd.f32 %v390, %v468
      %v484 = vadd.f32 %v393, %v471
      %v485 = vadd.f32 %v396, %v474
      %v486 = vadd.f32 %v399, %v477
      %v487 = vld [vmem:[%s2] sm:$0x1]
      %v489 = vperm.slane %v487, 0
      %v491 = vmul.f32 %v479, %v489
      %v492 = vmul.f32 %v480, %v489
      %v493 = vmul.f32 %v481, %v489
      %v494 = vmul.f32 %v482, %v489
      %v495 = vmul.f32 %v483, %v489
      %v496 = vmul.f32 %v484, %v489
      %v497 = vmul.f32 %v485, %v489
      %v498 = vmul.f32 %v486, %v489
      %v499 = vld [vmem:[%s3] sm:$0x1]
      %v501 = vperm.slane %v499, 0
      %v503 = vadd.f32 %v491, %v501
      %v504 = vadd.f32 %v492, %v501
      %v505 = vadd.f32 %v493, %v501
      %v506 = vadd.f32 %v494, %v501
      %v507 = vadd.f32 %v495, %v501
      %v508 = vadd.f32 %v496, %v501
      %v509 = vadd.f32 %v497, %v501
      %v510 = vadd.f32 %v498, %v501
      %v511 = vmax.f32 %v503, 0.0
      %v512 = vmax.f32 %v504, 0.0
      %v513 = vmax.f32 %v505, 0.0
      %v514 = vmax.f32 %v506, 0.0
      %v515 = vmax.f32 %v507, 0.0
      %v516 = vmax.f32 %v508, 0.0
      %v517 = vmax.f32 %v509, 0.0
      %v518 = vmax.f32 %v510, 0.0
      %v519 = vld [vmem:[%s4] sm:$0x3]
      %v520 = vld [vmem:[%s266] sm:$0xff]
      %v521 = vld [vmem:[%s266 + $0x8] sm:$0xff]
      %v522 = vld [vmem:[%s266 + $0x10] sm:$0xff]
      %v523 = vld [vmem:[%s266 + $0x18] sm:$0xff]
      %v524 = vld [vmem:[%s266 + $0x20] sm:$0xff]
      %v525 = vld [vmem:[%s266 + $0x28] sm:$0xff]
      %v526 = vld [vmem:[%s266 + $0x30] sm:$0xff]
      %v527 = vld [vmem:[%s266 + $0x38] sm:$0xff]
      %vm528 = vcmask 15360
      %v530 = vsel %vm528, %v511, 0
      %v533 = vsel %vm528, %v512, 0
      %v536 = vsel %vm528, %v513, 0
      %v539 = vsel %vm528, %v514, 0
      %v542 = vsel %vm528, %v515, 0
      %v545 = vsel %vm528, %v516, 0
      %v548 = vsel %vm528, %v517, 0
      %v551 = vsel %vm528, %v518, 0
      %vm553 = vcmask 1041408
      %v555 = vsel %vm553, %v519, 0
      %557 = vmatpush.msra.mxu0 0.0
      %558 = vmatpush.msra.mxu0 0.0
      %559 = vmatpush.msra.mxu0 0.0
      %560 = vmatpush.msra.mxu0 0.0
      %561 = vmatpush.msra.mxu0 0.0
      %562 = vmatpush.msra.mxu0 0.0
      %563 = vmatpush.msra.mxu0 0.0
      %564 = vmatpush.msra.mxu0 0.0
      %565 = vmatpush.msra.mxu0 0.0
      %566 = vmatpush.msra.mxu0 0.0
      %567 = vmatpush.msra.mxu0 0.0
      %568 = vmatpush.msra.mxu0 0.0
      %569 = vmatpush.msra.mxu0 0.0
      %570 = vmatpush.msra.mxu0 0.0
      %571 = vmatpush.msra.mxu0 0.0
      %572 = vmatpush.msra.mxu0 %v555
      %573 = vmatmul.f32.gmra.mxu0 %v530
      %v574 = vpop.f32.mrf.mxu0
      %v575 = vadd.f32 %v520, %v574
      %576 = vmatmul.f32.gmra.mxu0 %v533
      %v577 = vpop.f32.mrf.mxu0
      %v578 = vadd.f32 %v521, %v577
      %579 = vmatmul.f32.gmra.mxu0 %v536
      %v580 = vpop.f32.mrf.mxu0
      %v581 = vadd.f32 %v522, %v580
      %582 = vmatmul.f32.gmra.mxu0 %v539
      %v583 = vpop.f32.mrf.mxu0
      %v584 = vadd.f32 %v523, %v583
      %585 = vmatmul.f32.gmra.mxu0 %v542
      %v586 = vpop.f32.mrf.mxu0
      %v587 = vadd.f32 %v524, %v586
      %588 = vmatmul.f32.gmra.mxu0 %v545
      %v589 = vpop.f32.mrf.mxu0
      %v590 = vadd.f32 %v525, %v589
      %591 = vmatmul.f32.gmra.mxu0 %v548
      %v592 = vpop.f32.mrf.mxu0
      %v593 = vadd.f32 %v526, %v592
      %594 = vmatmul.f32.gmra.mxu0 %v551
      %v595 = vpop.f32.mrf.mxu0
      %v596 = vadd.f32 %v527, %v595
      %597 = vdwg.mxu0
      %vm598 = vcmask 64512
      %599 = vst.msk [vmem:[%s271] sm:$0xff] %vm598, %v575
      %600 = vst.msk [vmem:[%s271 + $0x8] sm:$0xff] %vm598, %v578
      %601 = vst.msk [vmem:[%s271 + $0x10] sm:$0xff] %vm598, %v581
      %602 = vst.msk [vmem:[%s271 + $0x18] sm:$0xff] %vm598, %v584
      %603 = vst.msk [vmem:[%s271 + $0x20] sm:$0xff] %vm598, %v587
      %604 = vst.msk [vmem:[%s271 + $0x28] sm:$0xff] %vm598, %v590
      %605 = vst.msk [vmem:[%s271 + $0x30] sm:$0xff] %vm598, %v593
      %606 = vst.msk [vmem:[%s271 + $0x38] sm:$0xff] %vm598, %v596
      %p607 = scmp.lt.s32.totalorder %s17, 1
      %s608 = scalar_select %p607, %s17, 1
      %s609 = smul.addr %s608, 8
      %s610 = smul.addr %s609, 8
      %s611 = scalar_lea.vmem %s6, %s610
      // Predicated region
      $region45: #{attention_module_0.25} parent=43 // pred_check
        %p612 = pneg %p171
      $region46: #{attention_module_0.25} parent=43 // pred_check_branch
        %614 = sbr.rel (%p612) target = $region48
      $region47: #{attention_module_0.25} parent=43 // pred_region
        _
      $region48: #{attention_module_0.25} parent=43 // pred_fallthru
        _
    $region44: #{attention_module_0.25} parent=5 // pred_fallthru
      _
    %p615 = scmp.le.s32.totalorder 2, %s12
    // Predicated region
    $region49: #{attention_module_0.25} parent=5 // pred_check
      %p616 = pneg %p615
    $region50: #{attention_module_0.25} parent=5 // pred_check_branch
      %618 = sbr.rel (%p616) target = $region52
    $region51: #{attention_module_0.25} parent=5 // pred_region
      %s619 = ssub.s32 %s12, 2
      // Predicated region
      $region53: #{attention_module_0.25} parent=51 // pred_check
        %p620 = pneg %p177
      $region54: #{attention_module_0.25} parent=51 // pred_check_branch
        %622 = sbr.rel (%p620) target = $region56
      $region55: #{attention_module_0.25} parent=51 // pred_region
        %p623 = scmp.lt.s32.totalorder %s18, 1
        %s624 = scalar_select %p623, %s18, 1
        %s625 = smul.addr %s624, 8
        %s626 = smul.addr %s625, 8
        %s627 = scalar_lea.vmem %s6, %s626
      $region56: #{attention_module_0.25} parent=51 // pred_fallthru
        _
    $region52: #{attention_module_0.25} parent=5 // pred_fallthru
      _
  $region6: #{attention_module_0.25} parent=0 // loop_footer
    %s16 = sadd.s32 1, %s12
  $region7: #{attention_module_0.25} parent=0 // loop_footer_branch
    %11 = sbr.rel target = $region3
  $region8: #{attention_module_0.25} parent=0 // loop_exit
    _

// kernel: attention_module_0.28
$region0: #{attention_module_0.28}
  #allocation0 [shape = 'u32[]', space=smem, size = 0x4, offset = 0x4, fixed_abs, tag = 'smem constant byte address 0x4 - core index']
  #allocation1 [shape = 'u32[72,128]{1,0:T(1,128)}', space=vmem, size = 0x9000, scoped, tag = 'internal scratch']
  %s0 = inlined_call_operand.vmem [shape: f32[256,64], index: 0, kind: input, shape index: {}]
  %s1 = inlined_call_operand.vmem [shape: f32[2,64,8], index: 1, kind: input, shape index: {}]
  %s2 = inlined_call_operand.vmem [shape: f32[2,256,8], index: 2, kind: input, shape index: {}]
  %s3 = inlined_call_operand.vmem [shape: f32[2,256,8], index: 3, kind: output, shape index: {}]
  %s4 = sld [smem:[#allocation0]]
  $region45: #{attention_module_0.28} parent=0
    _
  %s6 = ssub.s32 1, %s4
  %s7 = scalar_select 0, %s6, %s4
  loop: start=0, step=1, limit=4
  $region2: #{attention_module_0.28} parent=0 // loop_pre_header
    _
  $region3: #{attention_module_0.28} parent=0 // loop_header
    %s9 = sphi 0, %s13
    %p10 = scmp.ge.s32.totalorder %s9, 4
    %s17 = sphi 0, %s17
    %s19 = sphi 0, %s17
    %s20 = sphi 0, %s19
    %s34 = sphi 0, %s20
    %s40 = sphi 0, %s42
    %s43 = sphi 0, %s40
    %s44 = sphi 0, %s43
    %s60 = sphi 0, %s44
    %s66 = sphi 0, %s68
    %s69 = sphi 0, %s66
    %s70 = sphi 0, %s69
    %s86 = sphi 0, %s70
    %s92 = sphi 0, %s94
    %s95 = sphi 0, %s92
    %s96 = sphi 0, %s95
    %s112 = sphi 0, %s96
  $region4: #{attention_module_0.28} parent=0 // loop_header_branch
    %12 = sbr.rel (%p10) target = $region8
  $region5: #{attention_module_0.28} parent=0 // loop_body
    %s14 = ssub.s32 %s9, 1
    %s15 = ssub.s32 %s9, 2
    %s16 = sadd.s32 %s9, 1
    %s18 = sadd.s32 %s17, 1
    %p21 = scmp.eq.s32.totalorder %s9, 1
    %p22 = scmp.ne.s32.totalorder %s17, %s19
    %p23 = scmp.eq.s32.totalorder %s9, 0
    %p24 = por %p22, %p23
    %p25 = scmp.ne.s32.totalorder %s17, %s19
    %p26 = scmp.eq.s32.totalorder %s14, 1
    %p27 = por %p25, %p26
    %p28 = scmp.ne.s32.totalorder %s19, %s20
    %p29 = scmp.eq.s32.totalorder %s14, 0
    %p30 = por %p28, %p29
    %p31 = scmp.ne.s32.totalorder %s19, %s20
    %p32 = scmp.eq.s32.totalorder %s15, 1
    %p33 = por %p31, %p32
    %p35 = scmp.ne.s32.totalorder %s20, %s34
    %p36 = scmp.eq.s32.totalorder %s15, 0
    %p37 = por %p35, %p36
    %s38 = ssub.s32 %s9, %s16
    %p39 = scmp.eq.s32.totalorder %s38, 0
    %s41 = sadd.s32 %s40, 1
    %s42 = scalar_select %p39, %s40, %s41
    %p45 = pneg %p39
    %p46 = scmp.eq.s32.totalorder %s9, 1
    %p47 = por %p45, %p46
    %p48 = scmp.ne.s32.totalorder %s40, %s43
    %p49 = scmp.eq.s32.totalorder %s9, 0
    %p50 = por %p48, %p49
    %p51 = scmp.ne.s32.totalorder %s40, %s43
    %p52 = scmp.eq.s32.totalorder %s14, 1
    %p53 = por %p51, %p52
    %p54 = scmp.ne.s32.totalorder %s43, %s44
    %p55 = scmp.eq.s32.totalorder %s14, 0
    %p56 = por %p54, %p55
    %p57 = scmp.ne.s32.totalorder %s43, %s44
    %p58 = scmp.eq.s32.totalorder %s15, 1
    %p59 = por %p57, %p58
    %p61 = scmp.ne.s32.totalorder %s44, %s60
    %p62 = scmp.eq.s32.totalorder %s15, 0
    %p63 = por %p61, %p62
    %s64 = ssub.s32 %s9, %s16
    %p65 = scmp.eq.s32.totalorder %s64, 0
    %s67 = sadd.s32 %s66, 1
    %s68 = scalar_select %p65, %s66, %s67
    %p71 = pneg %p65
    %p72 = scmp.eq.s32.totalorder %s9, 1
    %p73 = por %p71, %p72
    %p74 = scmp.ne.s32.totalorder %s66, %s69
    %p75 = scmp.eq.s32.totalorder %s9, 0
    %p76 = por %p74, %p75
    %p77 = scmp.ne.s32.totalorder %s66, %s69
    %p78 = scmp.eq.s32.totalorder %s14, 1
    %p79 = por %p77, %p78
    %p80 = scmp.ne.s32.totalorder %s69, %s70
    %p81 = scmp.eq.s32.totalorder %s14, 0
    %p82 = por %p80, %p81
    %p83 = scmp.ne.s32.totalorder %s69, %s70
    %p84 = scmp.eq.s32.totalorder %s15, 1
    %p85 = por %p83, %p84
    %p87 = scmp.ne.s32.totalorder %s70, %s86
    %p88 = scmp.eq.s32.totalorder %s15, 0
    %p89 = por %p87, %p88
    %s90 = ssub.s32 %s9, %s16
    %p91 = scmp.eq.s32.totalorder %s90, 0
    %s93 = sadd.s32 %s92, 1
    %s94 = scalar_select %p91, %s92, %s93
    %p97 = pneg %p91
    %p98 = scmp.eq.s32.totalorder %s9, 1
    %p99 = por %p97, %p98
    %p100 = scmp.ne.s32.totalorder %s92, %s95
    %p101 = scmp.eq.s32.totalorder %s9, 0
    %p102 = por %p100, %p101
    %p103 = scmp.ne.s32.totalorder %s92, %s95
    %p104 = scmp.eq.s32.totalorder %s14, 1
    %p105 = por %p103, %p104
    %p106 = scmp.ne.s32.totalorder %s95, %s96
    %p107 = scmp.eq.s32.totalorder %s14, 0
    %p108 = por %p106, %p107
    %p109 = scmp.ne.s32.totalorder %s95, %s96
    %p110 = scmp.eq.s32.totalorder %s15, 1
    %p111 = por %p109, %p110
    %p113 = scmp.ne.s32.totalorder %s96, %s112
    %p114 = scmp.eq.s32.totalorder %s15, 0
    %p115 = por %p113, %p114
    %p116 = scmp.le.s32.totalorder 1, %s9
    %p117 = scmp.lt.s32.totalorder %s9, 3
    %p118 = pnand %p116, %p117
    %p119 = pneg %p118
    // Predicated region
    $region9: #{attention_module_0.28} parent=5 // pred_check
      _
    $region10: #{attention_module_0.28} parent=5 // pred_check_branch
      %121 = sbr.rel (%p118) target = $region12
    $region11: #{attention_module_0.28} parent=5 // pred_region
      %s122 = ssub.s32 %s9, 1
      // Predicated region
      $region13: #{attention_module_0.28} parent=11 // pred_check
        %p123 = pneg %p30
      $region14: #{attention_module_0.28} parent=11 // pred_check_branch
        %125 = sbr.rel (%p123) target = $region16
      $region15: #{attention_module_0.28} parent=11 // pred_region
        _
      $region16: #{attention_module_0.28} parent=11 // pred_fallthru
        _
    $region12: #{attention_module_0.28} parent=5 // pred_fallthru
      _
    %p126 = scmp.lt.s32.totalorder %s9, 2
    // Predicated region
    $region17: #{attention_module_0.28} parent=5 // pred_check
      %p127 = pneg %p126
    $region18: #{attention_module_0.28} parent=5 // pred_check_branch
      %129 = sbr.rel (%p127) target = $region20
    $region19: #{attention_module_0.28} parent=5 // pred_region
      // Predicated region
      $region21: #{attention_module_0.28} parent=19 // pred_check
        %p130 = pneg %p50
      $region22: #{attention_module_0.28} parent=19 // pred_check_branch
        %132 = sbr.rel (%p130) target = $region24
      $region23: #{attention_module_0.28} parent=19 // pred_region
        %p133 = scmp.lt.s32.totalorder %s9, 1
        %s134 = scalar_select %p133, %s9, 1
        %s135 = smul.addr %s134, 8
        %s136 = smul.addr %s135, 8
        %s137 = scalar_lea.vmem %s1, %s136
      $region24: #{attention_module_0.28} parent=19 // pred_fallthru
        _
      // Predicated region
      $region25: #{attention_module_0.28} parent=19 // pred_check
        %p138 = pneg %p76
      $region26: #{attention_module_0.28} parent=19 // pred_check_branch
        %140 = sbr.rel (%p138) target = $region28
      $region27: #{attention_module_0.28} parent=19 // pred_region
        %p141 = scmp.lt.s32.totalorder %s9, 1
        %s142 = scalar_select %p141, %s9, 1
        %s143 = smul.addr %s142, 32
        %s144 = smul.addr %s143, 8
        %s145 = scalar_lea.vmem %s2, %s144
      $region28: #{attention_module_0.28} parent=19 // pred_fallthru
        _
    $region20: #{attention_module_0.28} parent=5 // pred_fallthru
      _
    %p146 = scmp.le.s32.totalorder 1, %s9
    %p147 = scmp.lt.s32.totalorder %s9, 3
    %p148 = pnand %p146, %p147
    %p149 = pneg %p148
    // Predicated region
    $region29: #{attention_module_0.28} parent=5 // pred_check
      _
    $region30: #{attention_module_0.28} parent=5 // pred_check_branch
      %151 = sbr.rel (%p148) target = $region32
    $region31: #{attention_module_0.28} parent=5 // pred_region
      %s152 = ssub.s32 %s9, 1
      %p153 = pneg %p30
      %p154 = pneg %p27
      %p155 = scmp.lt.s32.totalorder %s14, 1
      %s156 = scalar_select %p155, %s14, 1
      %s157 = smul.addr %s156, 8
      %s158 = smul.addr %s157, 8
      %s159 = scalar_lea.vmem %s1, %s158
      %p160 = pneg %p56
      %p161 = pneg %p53
      %p162 = scmp.lt.s32.totalorder %s14, 1
      %s163 = scalar_select %p162, %s14, 1
      %s164 = smul.addr %s163, 32
      %s165 = smul.addr %s164, 8
      %s166 = scalar_lea.vmem %s2, %s165
      %p167 = pneg %p82
      %p168 = pneg %p79
      %p169 = pneg %p108
      %p170 = pneg %p105
      %p171 = scmp.lt.s32.totalorder %s14, 1
      %s172 = scalar_select %p171, %s14, 1
      %s173 = smul.addr %s172, 32
      %s174 = smul.addr %s173, 8
      %s175 = scalar_lea.vmem %s3, %s174
      %p176 = scmp.lt.s32.totalorder %s14, 1
      %s177 = scalar_select %p176, %s14, 1
      %s178 = smul.addr %s177, 8
      %s179 = smul.addr %s178, 8
      %s180 = scalar_lea.vmem %s1, %s179
      %p181 = scmp.lt.s32.totalorder %s14, 1
      %s182 = scalar_select %p181, %s14, 1
      %s183 = smul.addr %s182, 32
      %s184 = smul.addr %s183, 8
      %s185 = scalar_lea.vmem %s2, %s184
      %p186 = scmp.lt.s32.totalorder %s14, 1
      %s187 = scalar_select %p186, %s14, 1
      %s188 = smul.addr %s187, 32
      %s189 = smul.addr %s188, 8
      %s190 = scalar_lea.vmem %s3, %s189
      %v191 = vld [vmem:[%s0] sm:$0xff]
      %v192 = vld [vmem:[%s0 + $0x8] sm:$0xff]
      %v193 = vld [vmem:[%s0 + $0x10] sm:$0xff]
      %v194 = vld [vmem:[%s0 + $0x18] sm:$0xff]
      %v195 = vld [vmem:[%s0 + $0x20] sm:$0xff]
      %v196 = vld [vmem:[%s0 + $0x28] sm:$0xff]
      %v197 = vld [vmem:[%s0 + $0x30] sm:$0xff]
      %v198 = vld [vmem:[%s0 + $0x38] sm:$0xff]
      %v199 = vld [vmem:[%s0 + $0x40] sm:$0xff]
      %v200 = vld [vmem:[%s0 + $0x48] sm:$0xff]
      %v201 = vld [vmem:[%s0 + $0x50] sm:$0xff]
      %v202 = vld [vmem:[%s0 + $0x58] sm:$0xff]
      %v203 = vld [vmem:[%s0 + $0x60] sm:$0xff]
      %v204 = vld [vmem:[%s0 + $0x68] sm:$0xff]
      %v205 = vld [vmem:[%s0 + $0x70] sm:$0xff]
      %v206 = vld [vmem:[%s0 + $0x78] sm:$0xff]
      %v207 = vld [vmem:[%s0 + $0x80] sm:$0xff]
      %v208 = vld [vmem:[%s0 + $0x88] sm:$0xff]
      %v209 = vld [vmem:[%s0 + $0x90] sm:$0xff]
      %v210 = vld [vmem:[%s0 + $0x98] sm:$0xff]
      %v211 = vld [vmem:[%s0 + $0xa0] sm:$0xff]
      %v212 = vld [vmem:[%s0 + $0xa8] sm:$0xff]
      %v213 = vld [vmem:[%s0 + $0xb0] sm:$0xff]
      %v214 = vld [vmem:[%s0 + $0xb8] sm:$0xff]
      %v215 = vld [vmem:[%s0 + $0xc0] sm:$0xff]
      %v216 = vld [vmem:[%s0 + $0xc8] sm:$0xff]
      %v217 = vld [vmem:[%s0 + $0xd0] sm:$0xff]
      %v218 = vld [vmem:[%s0 + $0xd8] sm:$0xff]
      %v219 = vld [vmem:[%s0 + $0xe0] sm:$0xff]
      %v220 = vld [vmem:[%s0 + $0xe8] sm:$0xff]
      %v221 = vld [vmem:[%s0 + $0xf0] sm:$0xff]
      %v222 = vld [vmem:[%s0 + $0xf8] sm:$0xff]
      %v223 = vld [vmem:[%s180] sm:$0xff]
      %v224 = vld [vmem:[%s180 + $0x8] sm:$0xff]
      %v225 = vld [vmem:[%s180 + $0x10] sm:$0xff]
      %v226 = vld [vmem:[%s180 + $0x18] sm:$0xff]
      %v227 = vld [vmem:[%s180 + $0x20] sm:$0xff]
      %v228 = vld [vmem:[%s180 + $0x28] sm:$0xff]
      %v229 = vld [vmem:[%s180 + $0x30] sm:$0xff]
      %v230 = vld [vmem:[%s180 + $0x38] sm:$0xff]
      %v231 = vld [vmem:[%s185] sm:$0xff]
      %v232 = vld [vmem:[%s185 + $0x8] sm:$0xff]
      %v233 = vld [vmem:[%s185 + $0x10] sm:$0xff]
      %v234 = vld [vmem:[%s185 + $0x18] sm:$0xff]
      %v235 = vld [vmem:[%s185 + $0x20] sm:$0xff]
      %v236 = vld [vmem:[%s185 + $0x28] sm:$0xff]
      %v237 = vld [vmem:[%s185 + $0x30] sm:$0xff]
      %v238 = vld [vmem:[%s185 + $0x38] sm:$0xff]
      %v239 = vld [vmem:[%s185 + $0x40] sm:$0xff]
      %v240 = vld [vmem:[%s185 + $0x48] sm:$0xff]
      %v241 = vld [vmem:[%s185 + $0x50] sm:$0xff]
      %v242 = vld [vmem:[%s185 + $0x58] sm:$0xff]
      %v243 = vld [vmem:[%s185 + $0x60] sm:$0xff]
      %v244 = vld [vmem:[%s185 + $0x68] sm:$0xff]
      %v245 = vld [vmem:[%s185 + $0x70] sm:$0xff]
      %v246 = vld [vmem:[%s185 + $0x78] sm:$0xff]
      %v247 = vld [vmem:[%s185 + $0x80] sm:$0xff]
      %v248 = vld [vmem:[%s185 + $0x88] sm:$0xff]
      %v249 = vld [vmem:[%s185 + $0x90] sm:$0xff]
      %v250 = vld [vmem:[%s185 + $0x98] sm:$0xff]
      %v251 = vld [vmem:[%s185 + $0xa0] sm:$0xff]
      %v252 = vld [vmem:[%s185 + $0xa8] sm:$0xff]
      %v253 = vld [vmem:[%s185 + $0xb0] sm:$0xff]
      %v254 = vld [vmem:[%s185 + $0xb8] sm:$0xff]
      %v255 = vld [vmem:[%s185 + $0xc0] sm:$0xff]
      %v256 = vld [vmem:[%s185 + $0xc8] sm:$0xff]
      %v257 = vld [vmem:[%s185 + $0xd0] sm:$0xff]
      %v258 = vld [vmem:[%s185 + $0xd8] sm:$0xff]
      %v259 = vld [vmem:[%s185 + $0xe0] sm:$0xff]
      %v260 = vld [vmem:[%s185 + $0xe8] sm:$0xff]
      %v261 = vld [vmem:[%s185 + $0xf0] sm:$0xff]
      %v262 = vld [vmem:[%s185 + $0xf8] sm:$0xff]
      %vm263 = vcmask 523264
      %v265 = vsel %vm263, %v191, 0
      %v268 = vsel %vm263, %v192, 0
      %v271 = vsel %vm263, %v193, 0
      %v274 = vsel %vm263, %v194, 0
      %v277 = vsel %vm263, %v195, 0
      %v280 = vsel %vm263, %v196, 0
      %v283 = vsel %vm263, %v197, 0
      %v286 = vsel %vm263, %v198, 0
      %v289 = vsel %vm263, %v199, 0
      %v292 = vsel %vm263, %v200, 0
      %v295 = vsel %vm263, %v201, 0
      %v298 = vsel %vm263, %v202, 0
      %v301 = vsel %vm263, %v203, 0
      %v304 = vsel %vm263, %v204, 0
      %v307 = vsel %vm263, %v205, 0
      %v310 = vsel %vm263, %v206, 0
      %v313 = vsel %vm263, %v207, 0
      %v316 = vsel %vm263, %v208, 0
      %v319 = vsel %vm263, %v209, 0
      %v322 = vsel %vm263, %v210, 0
      %v325 = vsel %vm263, %v211, 0
      %v328 = vsel %vm263, %v212, 0
      %v331 = vsel %vm263, %v213, 0
      %v334 = vsel %vm263, %v214, 0
      %v337 = vsel %vm263, %v215, 0
      %v340 = vsel %vm263, %v216, 0
      %v343 = vsel %vm263, %v217, 0
      %v346 = vsel %vm263, %v218, 0
      %v349 = vsel %vm263, %v219, 0
      %v352 = vsel %vm263, %v220, 0
      %v355 = vsel %vm263, %v221, 0
      %v358 = vsel %vm263, %v222, 0
      %360 = vmatpush.msra.mxu0 0.0
      %361 = vmatpush.msra.mxu0 0.0
      %362 = vmatpush.msra.mxu0 0.0
      %363 = vmatpush.msra.mxu0 0.0
      %364 = vmatpush.msra.mxu0 0.0
      %365 = vmatpush.msra.mxu0 0.0
      %366 = vmatpush.msra.mxu0 0.0
      %367 = vmatpush.msra.mxu0 0.0
      %368 = vmatpush.msra.mxu0 %v230
      %369 = vmatpush.msra.mxu0 %v229
      %370 = vmatpush.msra.mxu0 %v228
      %371 = vmatpush.msra.mxu0 %v227
      %372 = vmatpush.msra.mxu0 %v226
      %373 = vmatpush.msra.mxu0 %v225
      %374 = vmatpush.msra.mxu0 %v224
      %375 = vmatpush.msra.mxu0 %v223
      %376 = vmatmul.f32.gmra.mxu0 %v265
      %v377 = vpop.f32.mrf.mxu0
      %v378 = vadd.f32 %v231, %v377
      %379 = vmatmul.f32.gmra.mxu0 %v268
      %v380 = vpop.f32.mrf.mxu0
      %v381 = vadd.f32 %v232, %v380
      %382 = vmatmul.f32.gmra.mxu0 %v271
      %v383 = vpop.f32.mrf.mxu0
      %v384 = vadd.f32 %v233, %v383
      %385 = vmatmul.f32.gmra.mxu0 %v274
      %v386 = vpop.f32.mrf.mxu0
      %v387 = vadd.f32 %v234, %v386
      %388 = vmatmul.f32.gmra.mxu0 %v277
      %v389 = vpop.f32.mrf.mxu0
      %v390 = vadd.f32 %v235, %v389
      %391 = vmatmul.f32.gmra.mxu0 %v280
      %v392 = vpop.f32.mrf.mxu0
      %v393 = vadd.f32 %v236, %v392
      %394 = vmatmul.f32.gmra.mxu0 %v283
      %v395 = vpop.f32.mrf.mxu0
      %v396 = vadd.f32 %v237, %v395
      %397 = vmatmul.f32.gmra.mxu0 %v286
      %v398 = vpop.f32.mrf.mxu0
      %v399 = vadd.f32 %v238, %v398
      %400 = vmatmul.f32.gmra.mxu0 %v289
      %v401 = vpop.f32.mrf.mxu0
      %v402 = vadd.f32 %v239, %v401
      %403 = vmatmul.f32.gmra.mxu0 %v292
      %v404 = vpop.f32.mrf.mxu0
      %v405 = vadd.f32 %v240, %v404
      %406 = vmatmul.f32.gmra.mxu0 %v295
      %v407 = vpop.f32.mrf.mxu0
      %v408 = vadd.f32 %v241, %v407
      %409 = vmatmul.f32.gmra.mxu0 %v298
      %v410 = vpop.f32.mrf.mxu0
      %v411 = vadd.f32 %v242, %v410
      %412 = vmatmul.f32.gmra.mxu0 %v301
      %v413 = vpop.f32.mrf.mxu0
      %v414 = vadd.f32 %v243, %v413
      %415 = vmatmul.f32.gmra.mxu0 %v304
      %v416 = vpop.f32.mrf.mxu0
      %v417 = vadd.f32 %v244, %v416
      %418 = vmatmul.f32.gmra.mxu0 %v307
      %v419 = vpop.f32.mrf.mxu0
      %v420 = vadd.f32 %v245, %v419
      %421 = vmatmul.f32.gmra.mxu0 %v310
      %v422 = vpop.f32.mrf.mxu0
      %v423 = vadd.f32 %v246, %v422
      %424 = vmatmul.f32.gmra.mxu0 %v313
      %v425 = vpop.f32.mrf.mxu0
      %v426 = vadd.f32 %v247, %v425
      %427 = vmatmul.f32.gmra.mxu0 %v316
      %v428 = vpop.f32.mrf.mxu0
      %v429 = vadd.f32 %v248, %v428
      %430 = vmatmul.f32.gmra.mxu0 %v319
      %v431 = vpop.f32.mrf.mxu0
      %v432 = vadd.f32 %v249, %v431
      %433 = vmatmul.f32.gmra.mxu0 %v322
      %v434 = vpop.f32.mrf.mxu0
      %v435 = vadd.f32 %v250, %v434
      %436 = vmatmul.f32.gmra.mxu0 %v325
      %v437 = vpop.f32.mrf.mxu0
      %v438 = vadd.f32 %v251, %v437
      %439 = vmatmul.f32.gmra.mxu0 %v328
      %v440 = vpop.f32.mrf.mxu0
      %v441 = vadd.f32 %v252, %v440
      %442 = vmatmul.f32.gmra.mxu0 %v331
      %v443 = vpop.f32.mrf.mxu0
      %v444 = vadd.f32 %v253, %v443
      %445 = vmatmul.f32.gmra.mxu0 %v334
      %v446 = vpop.f32.mrf.mxu0
      %v447 = vadd.f32 %v254, %v446
      %448 = vmatmul.f32.gmra.mxu0 %v337
      %v449 = vpop.f32.mrf.mxu0
      %v450 = vadd.f32 %v255, %v449
      %451 = vmatmul.f32.gmra.mxu0 %v340
      %v452 = vpop.f32.mrf.mxu0
      %v453 = vadd.f32 %v256, %v452
      %454 = vmatmul.f32.gmra.mxu0 %v343
      %v455 = vpop.f32.mrf.mxu0
      %v456 = vadd.f32 %v257, %v455
      %457 = vmatmul.f32.gmra.mxu0 %v346
      %v458 = vpop.f32.mrf.mxu0
      %v459 = vadd.f32 %v258, %v458
      %460 = vmatmul.f32.gmra.mxu0 %v349
      %v461 = vpop.f32.mrf.mxu0
      %v462 = vadd.f32 %v259, %v461
      %463 = vmatmul.f32.gmra.mxu0 %v352
      %v464 = vpop.f32.mrf.mxu0
      %v465 = vadd.f32 %v260, %v464
      %466 = vmatmul.f32.gmra.mxu0 %v355
      %v467 = vpop.f32.mrf.mxu0
      %v468 = vadd.f32 %v261, %v467
      %469 = vmatmul.f32.gmra.mxu0 %v358
      %v470 = vpop.f32.mrf.mxu0
      %v471 = vadd.f32 %v262, %v470
      %472 = vdwg.mxu0
      %vm473 = vcmask 64512
      %474 = vst.msk [vmem:[%s190] sm:$0xff] %vm473, %v378
      %475 = vst.msk [vmem:[%s190 + $0x8] sm:$0xff] %vm473, %v381
      %476 = vst.msk [vmem:[%s190 + $0x10] sm:$0xff] %vm473, %v384
      %477 = vst.msk [vmem:[%s190 + $0x18] sm:$0xff] %vm473, %v387
      %478 = vst.msk [vmem:[%s190 + $0x20] sm:$0xff] %vm473, %v390
      %479 = vst.msk [vmem:[%s190 + $0x28] sm:$0xff] %vm473, %v393
      %480 = vst.msk [vmem:[%s190 + $0x30] sm:$0xff] %vm473, %v396
      %481 = vst.msk [vmem:[%s190 + $0x38] sm:$0xff] %vm473, %v399
      %482 = vst.msk [vmem:[%s190 + $0x40] sm:$0xff] %vm473, %v402
      %483 = vst.msk [vmem:[%s190 + $0x48] sm:$0xff] %vm473, %v405
      %484 = vst.msk [vmem:[%s190 + $0x50] sm:$0xff] %vm473, %v408
      %485 = vst.msk [vmem:[%s190 + $0x58] sm:$0xff] %vm473, %v411
      %486 = vst.msk [vmem:[%s190 + $0x60] sm:$0xff] %vm473, %v414
      %487 = vst.msk [vmem:[%s190 + $0x68] sm:$0xff] %vm473, %v417
      %488 = vst.msk [vmem:[%s190 + $0x70] sm:$0xff] %vm473, %v420
      %489 = vst.msk [vmem:[%s190 + $0x78] sm:$0xff] %vm473, %v423
      %490 = vst.msk [vmem:[%s190 + $0x80] sm:$0xff] %vm473, %v426
      %491 = vst.msk [vmem:[%s190 + $0x88] sm:$0xff] %vm473, %v429
      %492 = vst.msk [vmem:[%s190 + $0x90] sm:$0xff] %vm473, %v432
      %493 = vst.msk [vmem:[%s190 + $0x98] sm:$0xff] %vm473, %v435
      %494 = vst.msk [vmem:[%s190 + $0xa0] sm:$0xff] %vm473, %v438
      %495 = vst.msk [vmem:[%s190 + $0xa8] sm:$0xff] %vm473, %v441
      %496 = vst.msk [vmem:[%s190 + $0xb0] sm:$0xff] %vm473, %v444
      %497 = vst.msk [vmem:[%s190 + $0xb8] sm:$0xff] %vm473, %v447
      %498 = vst.msk [vmem:[%s190 + $0xc0] sm:$0xff] %vm473, %v450
      %499 = vst.msk [vmem:[%s190 + $0xc8] sm:$0xff] %vm473, %v453
      %500 = vst.msk [vmem:[%s190 + $0xd0] sm:$0xff] %vm473, %v456
      %501 = vst.msk [vmem:[%s190 + $0xd8] sm:$0xff] %vm473, %v459
      %502 = vst.msk [vmem:[%s190 + $0xe0] sm:$0xff] %vm473, %v462
      %503 = vst.msk [vmem:[%s190 + $0xe8] sm:$0xff] %vm473, %v465
      %504 = vst.msk [vmem:[%s190 + $0xf0] sm:$0xff] %vm473, %v468
      %505 = vst.msk [vmem:[%s190 + $0xf8] sm:$0xff] %vm473, %v471
      %p506 = scmp.lt.s32.totalorder %s14, 1
      %s507 = scalar_select %p506, %s14, 1
      %s508 = smul.addr %s507, 32
      %s509 = smul.addr %s508, 8
      %s510 = scalar_lea.vmem %s3, %s509
      // Predicated region
      $region33: #{attention_module_0.28} parent=31 // pred_check
        %p511 = pneg %p105
      $region34: #{attention_module_0.28} parent=31 // pred_check_branch
        %513 = sbr.rel (%p511) target = $region36
      $region35: #{attention_module_0.28} parent=31 // pred_region
        _
      $region36: #{attention_module_0.28} parent=31 // pred_fallthru
        _
    $region32: #{attention_module_0.28} parent=5 // pred_fallthru
      _
    %p514 = scmp.le.s32.totalorder 2, %s9
    // Predicated region
    $region37: #{attention_module_0.28} parent=5 // pred_check
      %p515 = pneg %p514
    $region38: #{attention_module_0.28} parent=5 // pred_check_branch
      %517 = sbr.rel (%p515) target = $region40
    $region39: #{attention_module_0.28} parent=5 // pred_region
      %s518 = ssub.s32 %s9, 2
      // Predicated region
      $region41: #{attention_module_0.28} parent=39 // pred_check
        %p519 = pneg %p111
      $region42: #{attention_module_0.28} parent=39 // pred_check_branch
        %521 = sbr.rel (%p519) target = $region44
      $region43: #{attention_module_0.28} parent=39 // pred_region
        %p522 = scmp.lt.s32.totalorder %s15, 1
        %s523 = scalar_select %p522, %s15, 1
        %s524 = smul.addr %s523, 32
        %s525 = smul.addr %s524, 8
        %s526 = scalar_lea.vmem %s3, %s525
      $region44: #{attention_module_0.28} parent=39 // pred_fallthru
        _
    $region40: #{attention_module_0.28} parent=5 // pred_fallthru
      _
  $region6: #{attention_module_0.28} parent=0 // loop_footer
    %s13 = sadd.s32 1, %s9
  $region7: #{attention_module_0.28} parent=0 // loop_footer_branch
    %8 = sbr.rel target = $region3
  $region8: #{attention_module_0.28} parent=0 // loop_exit
    _

// kernel: attention_module_0.18
$region0: #{attention_module_0.18}
  #allocation0 [shape = 'u32[]', space=smem, size = 0x4, offset = 0x4, fixed_abs, tag = 'smem constant byte address 0x4 - core index']
  #allocation1 [shape = 'u32[72,128]{1,0:T(1,128)}', space=vmem, size = 0x9000, scoped, tag = 'internal scratch']
  %s0 = inlined_call_operand.vmem [shape: f32[512,8], index: 0, kind: input, shape index: {}]
  %s1 = inlined_call_operand.vmem [shape: f32[1,8], index: 1, kind: input, shape index: {}]
  %s2 = inlined_call_operand.vmem [shape: f32[1,8], index: 2, kind: input, shape index: {}]
  %s3 = inlined_call_operand.vmem [shape: f32[8,2], index: 3, kind: input, shape index: {}]
  %s4 = inlined_call_operand.vmem [shape: f32[1,2], index: 4, kind: input, shape index: {}]
  %s5 = inlined_call_operand.vmem [shape: f32[1,2], index: 5, kind: input, shape index: {}]
  %s6 = inlined_call_operand.vmem [shape: f32[512,2], index: 6, kind: output, shape index: {}]
  %s7 = sld [smem:[#allocation0]]
  $region57: #{attention_module_0.18} parent=0
    _
  %s9 = ssub.s32 1, %s7
  %s10 = scalar_select 0, %s9, %s7
  loop: start=0, step=1, limit=4
  $region2: #{attention_module_0.18} parent=0 // loop_pre_header
    _
  $region3: #{attention_module_0.18} parent=0 // loop_header
    %s12 = sphi 0, %s16
    %p13 = scmp.ge.s32.totalorder %s12, 4
    %s22 = sphi 0, %s24
    %s25 = sphi 0, %s22
    %s26 = sphi 0, %s25
    %s42 = sphi 0, %s26
    %s46 = sphi 0, %s46
    %s48 = sphi 0, %s46
    %s49 = sphi 0, %s48
    %s63 = sphi 0, %s49
    %s67 = sphi 0, %s67
    %s69 = sphi 0, %s67
    %s70 = sphi 0, %s69
    %s84 = sphi 0, %s70
    %s88 = sphi 0, %s88
    %s90 = sphi 0, %s88
    %s91 = sphi 0, %s90
    %s105 = sphi 0, %s91
    %s109 = sphi 0, %s109
    %s111 = sphi 0, %s109
    %s112 = sphi 0, %s111
    %s126 = sphi 0, %s112
    %s130 = sphi 0, %s130
    %s132 = sphi 0, %s130
    %s133 = sphi 0, %s132
    %s147 = sphi 0, %s133
    %s153 = sphi 0, %s155
    %s156 = sphi 0, %s153
    %s157 = sphi 0, %s156
    %s173 = sphi 0, %s157
  $region4: #{attention_module_0.18} parent=0 // loop_header_branch
    %15 = sbr.rel (%p13) target = $region8
  $region5: #{attention_module_0.18} parent=0 // loop_body
    %s17 = ssub.s32 %s12, 1
    %s18 = ssub.s32 %s12, 2
    %s19 = sadd.s32 %s12, 1
    %s20 = ssub.s32 %s12, %s19
    %p21 = scmp.eq.s32.totalorder %s20, 0
    %s23 = sadd.s32 %s22, 1
    %s24 = scalar_select %p21, %s22, %s23
    %p27 = pneg %p21
    %p28 = scmp.eq.s32.totalorder %s12, 1
    %p29 = por %p27, %p28
    %p30 = scmp.ne.s32.totalorder %s22, %s25
    %p31 = scmp.eq.s32.totalorder %s12, 0
    %p32 = por %p30, %p31
    %p33 = scmp.ne.s32.totalorder %s22, %s25
    %p34 = scmp.eq.s32.totalorder %s17, 1
    %p35 = por %p33, %p34
    %p36 = scmp.ne.s32.totalorder %s25, %s26
    %p37 = scmp.eq.s32.totalorder %s17, 0
    %p38 = por %p36, %p37
    %p39 = scmp.ne.s32.totalorder %s25, %s26
    %p40 = scmp.eq.s32.totalorder %s18, 1
    %p41 = por %p39, %p40
    %p43 = scmp.ne.s32.totalorder %s26, %s42
    %p44 = scmp.eq.s32.totalorder %s18, 0
    %p45 = por %p43, %p44
    %s47 = sadd.s32 %s46, 1
    %p50 = scmp.eq.s32.totalorder %s12, 1
    %p51 = scmp.ne.s32.totalorder %s46, %s48
    %p52 = scmp.eq.s32.totalorder %s12, 0
    %p53 = por %p51, %p52
    %p54 = scmp.ne.s32.totalorder %s46, %s48
    %p55 = scmp.eq.s32.totalorder %s17, 1
    %p56 = por %p54, %p55
    %p57 = scmp.ne.s32.totalorder %s48, %s49
    %p58 = scmp.eq.s32.totalorder %s17, 0
    %p59 = por %p57, %p58
    %p60 = scmp.ne.s32.totalorder %s48, %s49
    %p61 = scmp.eq.s32.totalorder %s18, 1
    %p62 = por %p60, %p61
    %p64 = scmp.ne.s32.totalorder %s49, %s63
    %p65 = scmp.eq.s32.totalorder %s18, 0
    %p66 = por %p64, %p65
    %s68 = sadd.s32 %s67, 1
    %p71 = scmp.eq.s32.totalorder %s12, 1
    %p72 = scmp.ne.s32.totalorder %s67, %s69
    %p73 = scmp.eq.s32.totalorder %s12, 0
    %p74 = por %p72, %p73
    %p75 = scmp.ne.s32.totalorder %s67, %s69
    %p76 = scmp.eq.s32.totalorder %s17, 1
    %p77 = por %p75, %p76
    %p78 = scmp.ne.s32.totalorder %s69, %s70
    %p79 = scmp.eq.s32.totalorder %s17, 0
    %p80 = por %p78, %p79
    %p81 = scmp.ne.s32.totalorder %s69, %s70
    %p82 = scmp.eq.s32.totalorder %s18, 1
    %p83 = por %p81, %p82
    %p85 = scmp.ne.s32.totalorder %s70, %s84
    %p86 = scmp.eq.s32.totalorder %s18, 0
    %p87 = por %p85, %p86
    %s89 = sadd.s32 %s88, 1
    %p92 = scmp.eq.s32.totalorder %s12, 1
    %p93 = scmp.ne.s32.totalorder %s88, %s90
    %p94 = scmp.eq.s32.totalorder %s12, 0
    %p95 = por %p93, %p94
    %p96 = scmp.ne.s32.totalorder %s88, %s90
    %p97 = scmp.eq.s32.totalorder %s17, 1
    %p98 = por %p96, %p97
    %p99 = scmp.ne.s32.totalorder %s90, %s91
    %p100 = scmp.eq.s32.totalorder %s17, 0
    %p101 = por %p99, %p100
    %p102 = scmp.ne.s32.totalorder %s90, %s91
    %p103 = scmp.eq.s32.totalorder %s18, 1
    %p104 = por %p102, %p103
    %p106 = scmp.ne.s32.totalorder %s91, %s105
    %p107 = scmp.eq.s32.totalorder %s18, 0
    %p108 = por %p106, %p107
    %s110 = sadd.s32 %s109, 1
    %p113 = scmp.eq.s32.totalorder %s12, 1
    %p114 = scmp.ne.s32.totalorder %s109, %s111
    %p115 = scmp.eq.s32.totalorder %s12, 0
    %p116 = por %p114, %p115
    %p117 = scmp.ne.s32.totalorder %s109, %s111
    %p118 = scmp.eq.s32.totalorder %s17, 1
    %p119 = por %p117, %p118
    %p120 = scmp.ne.s32.totalorder %s111, %s112
    %p121 = scmp.eq.s32.totalorder %s17, 0
    %p122 = por %p120, %p121
    %p123 = scmp.ne.s32.totalorder %s111, %s112
    %p124 = scmp.eq.s32.totalorder %s18, 1
    %p125 = por %p123, %p124
    %p127 = scmp.ne.s32.totalorder %s112, %s126
    %p128 = scmp.eq.s32.totalorder %s18, 0
    %p129 = por %p127, %p128
    %s131 = sadd.s32 %s130, 1
    %p134 = scmp.eq.s32.totalorder %s12, 1
    %p135 = scmp.ne.s32.totalorder %s130, %s132
    %p136 = scmp.eq.s32.totalorder %s12, 0
    %p137 = por %p135, %p136
    %p138 = scmp.ne.s32.totalorder %s130, %s132
    %p139 = scmp.eq.s32.totalorder %s17, 1
    %p140 = por %p138, %p139
    %p141 = scmp.ne.s32.totalorder %s132, %s133
    %p142 = scmp.eq.s32.totalorder %s17, 0
    %p143 = por %p141, %p142
    %p144 = scmp.ne.s32.totalorder %s132, %s133
    %p145 = scmp.eq.s32.totalorder %s18, 1
    %p146 = por %p144, %p145
    %p148 = scmp.ne.s32.totalorder %s133, %s147
    %p149 = scmp.eq.s32.totalorder %s18, 0
    %p150 = por %p148, %p149
    %s151 = ssub.s32 %s12, %s19
    %p152 = scmp.eq.s32.totalorder %s151, 0
    %s154 = sadd.s32 %s153, 1
    %s155 = scalar_select %p152, %s153, %s154
    %p158 = pneg %p152
    %p159 = scmp.eq.s32.totalorder %s12, 1
    %p160 = por %p158, %p159
    %p161 = scmp.ne.s32.totalorder %s153, %s156
    %p162 = scmp.eq.s32.totalorder %s12, 0
    %p163 = por %p161, %p162
    %p164 = scmp.ne.s32.totalorder %s153, %s156
    %p165 = scmp.eq.s32.totalorder %s17, 1
    %p166 = por %p164, %p165
    %p167 = scmp.ne.s32.totalorder %s156, %s157
    %p168 = scmp.eq.s32.totalorder %s17, 0
    %p169 = por %p167, %p168
    %p170 = scmp.ne.s32.totalorder %s156, %s157
    %p171 = scmp.eq.s32.totalorder %s18, 1
    %p172 = por %p170, %p171
    %p174 = scmp.ne.s32.totalorder %s157, %s173
    %p175 = scmp.eq.s32.totalorder %s18, 0
    %p176 = por %p174, %p175
    %p177 = scmp.le.s32.totalorder 1, %s12
    %p178 = scmp.lt.s32.totalorder %s12, 3
    %p179 = pnand %p177, %p178
    %p180 = pneg %p179
    // Predicated region
    $region9: #{attention_module_0.18} parent=5 // pred_check
      _
    $region10: #{attention_module_0.18} parent=5 // pred_check_branch
      %182 = sbr.rel (%p179) target = $region12
    $region11: #{attention_module_0.18} parent=5 // pred_region
      %s183 = ssub.s32 %s12, 1
      // Predicated region
      $region13: #{attention_module_0.18} parent=11 // pred_check
        %p184 = pneg %p59
      $region14: #{attention_module_0.18} parent=11 // pred_check_branch
        %186 = sbr.rel (%p184) target = $region16
      $region15: #{attention_module_0.18} parent=11 // pred_region
        _
      $region16: #{attention_module_0.18} parent=11 // pred_fallthru
        _
      // Predicated region
      $region17: #{attention_module_0.18} parent=11 // pred_check
        %p187 = pneg %p80
      $region18: #{attention_module_0.18} parent=11 // pred_check_branch
        %189 = sbr.rel (%p187) target = $region20
      $region19: #{attention_module_0.18} parent=11 // pred_region
        _
      $region20: #{attention_module_0.18} parent=11 // pred_fallthru
        _
      // Predicated region
      $region21: #{attention_module_0.18} parent=11 // pred_check
        %p190 = pneg %p101
      $region22: #{attention_module_0.18} parent=11 // pred_check_branch
        %192 = sbr.rel (%p190) target = $region24
      $region23: #{attention_module_0.18} parent=11 // pred_region
        _
      $region24: #{attention_module_0.18} parent=11 // pred_fallthru
        _
      // Predicated region
      $region25: #{attention_module_0.18} parent=11 // pred_check
        %p193 = pneg %p122
      $region26: #{attention_module_0.18} parent=11 // pred_check_branch
        %195 = sbr.rel (%p193) target = $region28
      $region27: #{attention_module_0.18} parent=11 // pred_region
        _
      $region28: #{attention_module_0.18} parent=11 // pred_fallthru
        _
      // Predicated region
      $region29: #{attention_module_0.18} parent=11 // pred_check
        %p196 = pneg %p143
      $region30: #{attention_module_0.18} parent=11 // pred_check_branch
        %198 = sbr.rel (%p196) target = $region32
      $region31: #{attention_module_0.18} parent=11 // pred_region
        _
      $region32: #{attention_module_0.18} parent=11 // pred_fallthru
        _
    $region12: #{attention_module_0.18} parent=5 // pred_fallthru
      _
    %p199 = scmp.lt.s32.totalorder %s12, 2
    // Predicated region
    $region33: #{attention_module_0.18} parent=5 // pred_check
      %p200 = pneg %p199
    $region34: #{attention_module_0.18} parent=5 // pred_check_branch
      %202 = sbr.rel (%p200) target = $region36
    $region35: #{attention_module_0.18} parent=5 // pred_region
      // Predicated region
      $region37: #{attention_module_0.18} parent=35 // pred_check
        %p203 = pneg %p32
      $region38: #{attention_module_0.18} parent=35 // pred_check_branch
        %205 = sbr.rel (%p203) target = $region40
      $region39: #{attention_module_0.18} parent=35 // pred_region
        %s206 = smul.u32 32, %s12
        %p207 = scmp.lt.s32.totalorder %s206, 63
        %s208 = scalar_select %p207, %s206, 63
        %s209 = smul.addr %s208, 8
        %s210 = scalar_lea.vmem %s0, %s209
        %s211 = smul.u32 32, %s12
      $region40: #{attention_module_0.18} parent=35 // pred_fallthru
        _
    $region36: #{attention_module_0.18} parent=5 // pred_fallthru
      _
    %p212 = scmp.le.s32.totalorder 1, %s12
    %p213 = scmp.lt.s32.totalorder %s12, 3
    %p214 = pnand %p212, %p213
    %p215 = pneg %p214
    // Predicated region
    $region41: #{attention_module_0.18} parent=5 // pred_check
      _
    $region42: #{attention_module_0.18} parent=5 // pred_check_branch
      %217 = sbr.rel (%p214) target = $region44
    $region43: #{attention_module_0.18} parent=5 // pred_region
      %s218 = ssub.s32 %s12, 1
      %s219 = smul.u32 32, %s17
      %p220 = scmp.lt.s32.totalorder %s219, 63
      %s221 = scalar_select %p220, %s219, 63
      %s222 = smul.addr %s221, 8
      %s223 = scalar_lea.vmem %s0, %s222
      %p224 = pneg %p38
      %p225 = pneg %p35
      %p226 = pneg %p59
      %p227 = pneg %p56
      %p228 = pneg %p80
      %p229 = pneg %p77
      %p230 = pneg %p101
      %p231 = pneg %p98
      %p232 = pneg %p122
      %p233 = pneg %p119
      %p234 = pneg %p143
      %p235 = pneg %p140
      %p236 = pneg %p169
      %p237 = pneg %p166
      %s238 = smul.u32 32, %s17
      %p239 = scmp.lt.s32.totalorder %s238, 63
      %s240 = scalar_select %p239, %s238, 63
      %s241 = smul.addr %s240, 8
      %s242 = scalar_lea.vmem %s6, %s241
      %s243 = smul.u32 32, %s17
      %p244 = scmp.lt.s32.totalorder %s243, 63
      %s245 = scalar_select %p244, %s243, 63
      %s246 = smul.addr %s245, 8
      %s247 = scalar_lea.vmem %s0, %s246
      %s248 = smul.u32 32, %s17
      %s249 = smul.u32 32, %s17
      %p250 = scmp.lt.s32.totalorder %s249, 63
      %s251 = scalar_select %p250, %s249, 63
      %s252 = smul.addr %s251, 8
      %s253 = scalar_lea.vmem %s6, %s252
      %s254 = smul.u32 32, %s17
      %v255 = vld [vmem:[%s247] sm:$0xff]
      %v256 = vld [vmem:[%s247 + $0x8] sm:$0xff]
      %v257 = vld [vmem:[%s247 + $0x10] sm:$0xff]
      %v258 = vld [vmem:[%s247 + $0x18] sm:$0xff]
      %v259 = vld [vmem:[%s247 + $0x20] sm:$0xff]
      %v260 = vld [vmem:[%s247 + $0x28] sm:$0xff]
      %v261 = vld [vmem:[%s247 + $0x30] sm:$0xff]
      %v262 = vld [vmem:[%s247 + $0x38] sm:$0xff]
      %v263 = vld [vmem:[%s247 + $0x40] sm:$0xff]
      %v264 = vld [vmem:[%s247 + $0x48] sm:$0xff]
      %v265 = vld [vmem:[%s247 + $0x50] sm:$0xff]
      %v266 = vld [vmem:[%s247 + $0x58] sm:$0xff]
      %v267 = vld [vmem:[%s247 + $0x60] sm:$0xff]
      %v268 = vld [vmem:[%s247 + $0x68] sm:$0xff]
      %v269 = vld [vmem:[%s247 + $0x70] sm:$0xff]
      %v270 = vld [vmem:[%s247 + $0x78] sm:$0xff]
      %v271 = vld [vmem:[%s247 + $0x80] sm:$0xff]
      %v272 = vld [vmem:[%s247 + $0x88] sm:$0xff]
      %v273 = vld [vmem:[%s247 + $0x90] sm:$0xff]
      %v274 = vld [vmem:[%s247 + $0x98] sm:$0xff]
      %v275 = vld [vmem:[%s247 + $0xa0] sm:$0xff]
      %v276 = vld [vmem:[%s247 + $0xa8] sm:$0xff]
      %v277 = vld [vmem:[%s247 + $0xb0] sm:$0xff]
      %v278 = vld [vmem:[%s247 + $0xb8] sm:$0xff]
      %v279 = vld [vmem:[%s247 + $0xc0] sm:$0xff]
      %v280 = vld [vmem:[%s247 + $0xc8] sm:$0xff]
      %v281 = vld [vmem:[%s247 + $0xd0] sm:$0xff]
      %v282 = vld [vmem:[%s247 + $0xd8] sm:$0xff]
      %v283 = vld [vmem:[%s247 + $0xe0] sm:$0xff]
      %v284 = vld [vmem:[%s247 + $0xe8] sm:$0xff]
      %v285 = vld [vmem:[%s247 + $0xf0] sm:$0xff]
      %v286 = vld [vmem:[%s247 + $0xf8] sm:$0xff]
      %v287 = vld [vmem:[%s1] sm:$0x1]
      %v289 = vperm.slane %v287, 0
      %v291 = vmul.f32 %v255, %v289
      %v292 = vmul.f32 %v256, %v289
      %v293 = vmul.f32 %v257, %v289
      %v294 = vmul.f32 %v258, %v289
      %v295 = vmul.f32 %v259, %v289
      %v296 = vmul.f32 %v260, %v289
      %v297 = vmul.f32 %v261, %v289
      %v298 = vmul.f32 %v262, %v289
      %v299 = vmul.f32 %v263, %v289
      %v300 = vmul.f32 %v264, %v289
      %v301 = vmul.f32 %v265, %v289
      %v302 = vmul.f32 %v266, %v289
      %v303 = vmul.f32 %v267, %v289
      %v304 = vmul.f32 %v268, %v289
      %v305 = vmul.f32 %v269, %v289
      %v306 = vmul.f32 %v270, %v289
      %v307 = vmul.f32 %v271, %v289
      %v308 = vmul.f32 %v272, %v289
      %v309 = vmul.f32 %v273, %v289
      %v310 = vmul.f32 %v274, %v289
      %v311 = vmul.f32 %v275, %v289
      %v312 = vmul.f32 %v276, %v289
      %v313 = vmul.f32 %v277, %v289
      %v314 = vmul.f32 %v278, %v289
      %v315 = vmul.f32 %v279, %v289
      %v316 = vmul.f32 %v280, %v289
      %v317 = vmul.f32 %v281, %v289
      %v318 = vmul.f32 %v282, %v289
      %v319 = vmul.f32 %v283, %v289
      %v320 = vmul.f32 %v284, %v289
      %v321 = vmul.f32 %v285, %v289
      %v322 = vmul.f32 %v286, %v289
      %v323 = vld [vmem:[%s2] sm:$0x1]
      %v325 = vperm.slane %v323, 0
      %v327 = vadd.f32 %v291, %v325
      %v328 = vadd.f32 %v292, %v325
      %v329 = vadd.f32 %v293, %v325
      %v330 = vadd.f32 %v294, %v325
      %v331 = vadd.f32 %v295, %v325
      %v332 = vadd.f32 %v296, %v325
      %v333 = vadd.f32 %v297, %v325
      %v334 = vadd.f32 %v298, %v325
      %v335 = vadd.f32 %v299, %v325
      %v336 = vadd.f32 %v300, %v325
      %v337 = vadd.f32 %v301, %v325
      %v338 = vadd.f32 %v302, %v325
      %v339 = vadd.f32 %v303, %v325
      %v340 = vadd.f32 %v304, %v325
      %v341 = vadd.f32 %v305, %v325
      %v342 = vadd.f32 %v306, %v325
      %v343 = vadd.f32 %v307, %v325
      %v344 = vadd.f32 %v308, %v325
      %v345 = vadd.f32 %v309, %v325
      %v346 = vadd.f32 %v310, %v325
      %v347 = vadd.f32 %v311, %v325
      %v348 = vadd.f32 %v312, %v325
      %v349 = vadd.f32 %v313, %v325
      %v350 = vadd.f32 %v314, %v325
      %v351 = vadd.f32 %v315, %v325
      %v352 = vadd.f32 %v316, %v325
      %v353 = vadd.f32 %v317, %v325
      %v354 = vadd.f32 %v318, %v325
      %v355 = vadd.f32 %v319, %v325
      %v356 = vadd.f32 %v320, %v325
      %v357 = vadd.f32 %v321, %v325
      %v358 = vadd.f32 %v322, %v325
      %v359 = vmax.f32 %v327, 0.0
      %v360 = vmax.f32 %v328, 0.0
      %v361 = vmax.f32 %v329, 0.0
      %v362 = vmax.f32 %v330, 0.0
      %v363 = vmax.f32 %v331, 0.0
      %v364 = vmax.f32 %v332, 0.0
      %v365 = vmax.f32 %v333, 0.0
      %v366 = vmax.f32 %v334, 0.0
      %v367 = vmax.f32 %v335, 0.0
      %v368 = vmax.f32 %v336, 0.0
      %v369 = vmax.f32 %v337, 0.0
      %v370 = vmax.f32 %v338, 0.0
      %v371 = vmax.f32 %v339, 0.0
      %v372 = vmax.f32 %v340, 0.0
      %v373 = vmax.f32 %v341, 0.0
      %v374 = vmax.f32 %v342, 0.0
      %v375 = vmax.f32 %v343, 0.0
      %v376 = vmax.f32 %v344, 0.0
      %v377 = vmax.f32 %v345, 0.0
      %v378 = vmax.f32 %v346, 0.0
      %v379 = vmax.f32 %v347, 0.0
      %v380 = vmax.f32 %v348, 0.0
      %v381 = vmax.f32 %v349, 0.0
      %v382 = vmax.f32 %v350, 0.0
      %v383 = vmax.f32 %v351, 0.0
      %v384 = vmax.f32 %v352, 0.0
      %v385 = vmax.f32 %v353, 0.0
      %v386 = vmax.f32 %v354, 0.0
      %v387 = vmax.f32 %v355, 0.0
      %v388 = vmax.f32 %v356, 0.0
      %v389 = vmax.f32 %v357, 0.0
      %v390 = vmax.f32 %v358, 0.0
      %v391 = vld [vmem:[%s3] sm:$0xff]
      %vm392 = vcmask 64512
      %v394 = vsel %vm392, %v359, 0
      %v397 = vsel %vm392, %v360, 0
      %v400 = vsel %vm392, %v361, 0
      %v403 = vsel %vm392, %v362, 0
      %v406 = vsel %vm392, %v363, 0
      %v409 = vsel %vm392, %v364, 0
      %v412 = vsel %vm392, %v365, 0
      %v415 = vsel %vm392, %v366, 0
      %v418 = vsel %vm392, %v367, 0
      %v421 = vsel %vm392, %v368, 0
      %v424 = vsel %vm392, %v369, 0
      %v427 = vsel %vm392, %v370, 0
      %v430 = vsel %vm392, %v371, 0
      %v433 = vsel %vm392, %v372, 0
      %v436 = vsel %vm392, %v373, 0
      %v439 = vsel %vm392, %v374, 0
      %v442 = vsel %vm392, %v375, 0
      %v445 = vsel %vm392, %v376, 0
      %v448 = vsel %vm392, %v377, 0
      %v451 = vsel %vm392, %v378, 0
      %v454 = vsel %vm392, %v379, 0
      %v457 = vsel %vm392, %v380, 0
      %v460 = vsel %vm392, %v381, 0
      %v463 = vsel %vm392, %v382, 0
      %v466 = vsel %vm392, %v383, 0
      %v469 = vsel %vm392, %v384, 0
      %v472 = vsel %vm392, %v385, 0
      %v475 = vsel %vm392, %v386, 0
      %v478 = vsel %vm392, %v387, 0
      %v481 = vsel %vm392, %v388, 0
      %v484 = vsel %vm392, %v389, 0
      %v487 = vsel %vm392, %v390, 0
      %489 = vmatpush.msra.mxu0 0.0
      %490 = vmatpush.msra.mxu0 0.0
      %491 = vmatpush.msra.mxu0 0.0
      %492 = vmatpush.msra.mxu0 0.0
      %493 = vmatpush.msra.mxu0 0.0
      %494 = vmatpush.msra.mxu0 0.0
      %495 = vmatpush.msra.mxu0 0.0
      %496 = vmatpush.msra.mxu0 0.0
      %497 = vmatpush.msra.mxu0 0.0
      %498 = vmatpush.msra.mxu0 0.0
      %499 = vmatpush.msra.mxu0 0.0
      %500 = vmatpush.msra.mxu0 0.0
      %501 = vmatpush.msra.mxu0 0.0
      %502 = vmatpush.msra.mxu0 0.0
      %503 = vmatpush.msra.mxu0 0.0
      %504 = vmatpush.msra.mxu0 %v391
      %505 = vmatmul.f32.gmra.mxu0 %v394
      %v506 = vpop.f32.mrf.mxu0
      %v507 = vadd.f32 0.0, %v506
      %508 = vmatmul.f32.gmra.mxu0 %v397
      %v509 = vpop.f32.mrf.mxu0
      %v510 = vadd.f32 0.0, %v509
      %511 = vmatmul.f32.gmra.mxu0 %v400
      %v512 = vpop.f32.mrf.mxu0
      %v513 = vadd.f32 0.0, %v512
      %514 = vmatmul.f32.gmra.mxu0 %v403
      %v515 = vpop.f32.mrf.mxu0
      %v516 = vadd.f32 0.0, %v515
      %517 = vmatmul.f32.gmra.mxu0 %v406
      %v518 = vpop.f32.mrf.mxu0
      %v519 = vadd.f32 0.0, %v518
      %520 = vmatmul.f32.gmra.mxu0 %v409
      %v521 = vpop.f32.mrf.mxu0
      %v522 = vadd.f32 0.0, %v521
      %523 = vmatmul.f32.gmra.mxu0 %v412
      %v524 = vpop.f32.mrf.mxu0
      %v525 = vadd.f32 0.0, %v524
      %526 = vmatmul.f32.gmra.mxu0 %v415
      %v527 = vpop.f32.mrf.mxu0
      %v528 = vadd.f32 0.0, %v527
      %529 = vmatmul.f32.gmra.mxu0 %v418
      %v530 = vpop.f32.mrf.mxu0
      %v531 = vadd.f32 0.0, %v530
      %532 = vmatmul.f32.gmra.mxu0 %v421
      %v533 = vpop.f32.mrf.mxu0
      %v534 = vadd.f32 0.0, %v533
      %535 = vmatmul.f32.gmra.mxu0 %v424
      %v536 = vpop.f32.mrf.mxu0
      %v537 = vadd.f32 0.0, %v536
      %538 = vmatmul.f32.gmra.mxu0 %v427
      %v539 = vpop.f32.mrf.mxu0
      %v540 = vadd.f32 0.0, %v539
      %541 = vmatmul.f32.gmra.mxu0 %v430
      %v542 = vpop.f32.mrf.mxu0
      %v543 = vadd.f32 0.0, %v542
      %544 = vmatmul.f32.gmra.mxu0 %v433
      %v545 = vpop.f32.mrf.mxu0
      %v546 = vadd.f32 0.0, %v545
      %547 = vmatmul.f32.gmra.mxu0 %v436
      %v548 = vpop.f32.mrf.mxu0
      %v549 = vadd.f32 0.0, %v548
      %550 = vmatmul.f32.gmra.mxu0 %v439
      %v551 = vpop.f32.mrf.mxu0
      %v552 = vadd.f32 0.0, %v551
      %553 = vmatmul.f32.gmra.mxu0 %v442
      %v554 = vpop.f32.mrf.mxu0
      %v555 = vadd.f32 0.0, %v554
      %556 = vmatmul.f32.gmra.mxu0 %v445
      %v557 = vpop.f32.mrf.mxu0
      %v558 = vadd.f32 0.0, %v557
      %559 = vmatmul.f32.gmra.mxu0 %v448
      %v560 = vpop.f32.mrf.mxu0
      %v561 = vadd.f32 0.0, %v560
      %562 = vmatmul.f32.gmra.mxu0 %v451
      %v563 = vpop.f32.mrf.mxu0
      %v564 = vadd.f32 0.0, %v563
      %565 = vmatmul.f32.gmra.mxu0 %v454
      %v566 = vpop.f32.mrf.mxu0
      %v567 = vadd.f32 0.0, %v566
      %568 = vmatmul.f32.gmra.mxu0 %v457
      %v569 = vpop.f32.mrf.mxu0
      %v570 = vadd.f32 0.0, %v569
      %571 = vmatmul.f32.gmra.mxu0 %v460
      %v572 = vpop.f32.mrf.mxu0
      %v573 = vadd.f32 0.0, %v572
      %574 = vmatmul.f32.gmra.mxu0 %v463
      %v575 = vpop.f32.mrf.mxu0
      %v576 = vadd.f32 0.0, %v575
      %577 = vmatmul.f32.gmra.mxu0 %v466
      %v578 = vpop.f32.mrf.mxu0
      %v579 = vadd.f32 0.0, %v578
      %580 = vmatmul.f32.gmra.mxu0 %v469
      %v581 = vpop.f32.mrf.mxu0
      %v582 = vadd.f32 0.0, %v581
      %583 = vmatmul.f32.gmra.mxu0 %v472
      %v584 = vpop.f32.mrf.mxu0
      %v585 = vadd.f32 0.0, %v584
      %586 = vmatmul.f32.gmra.mxu0 %v475
      %v587 = vpop.f32.mrf.mxu0
      %v588 = vadd.f32 0.0, %v587
      %589 = vmatmul.f32.gmra.mxu0 %v478
      %v590 = vpop.f32.mrf.mxu0
      %v591 = vadd.f32 0.0, %v590
      %592 = vmatmul.f32.gmra.mxu0 %v481
      %v593 = vpop.f32.mrf.mxu0
      %v594 = vadd.f32 0.0, %v593
      %595 = vmatmul.f32.gmra.mxu0 %v484
      %v596 = vpop.f32.mrf.mxu0
      %v597 = vadd.f32 0.0, %v596
      %598 = vmatmul.f32.gmra.mxu0 %v487
      %v599 = vpop.f32.mrf.mxu0
      %v600 = vadd.f32 0.0, %v599
      %601 = vdwg.mxu0
      %v602 = vld [vmem:[%s4] sm:$0x1]
      %v604 = vperm.slane %v602, 0
      %v606 = vmul.f32 %v507, %v604
      %v607 = vmul.f32 %v510, %v604
      %v608 = vmul.f32 %v513, %v604
      %v609 = vmul.f32 %v516, %v604
      %v610 = vmul.f32 %v519, %v604
      %v611 = vmul.f32 %v522, %v604
      %v612 = vmul.f32 %v525, %v604
      %v613 = vmul.f32 %v528, %v604
      %v614 = vmul.f32 %v531, %v604
      %v615 = vmul.f32 %v534, %v604
      %v616 = vmul.f32 %v537, %v604
      %v617 = vmul.f32 %v540, %v604
      %v618 = vmul.f32 %v543, %v604
      %v619 = vmul.f32 %v546, %v604
      %v620 = vmul.f32 %v549, %v604
      %v621 = vmul.f32 %v552, %v604
      %v622 = vmul.f32 %v555, %v604
      %v623 = vmul.f32 %v558, %v604
      %v624 = vmul.f32 %v561, %v604
      %v625 = vmul.f32 %v564, %v604
      %v626 = vmul.f32 %v567, %v604
      %v627 = vmul.f32 %v570, %v604
      %v628 = vmul.f32 %v573, %v604
      %v629 = vmul.f32 %v576, %v604
      %v630 = vmul.f32 %v579, %v604
      %v631 = vmul.f32 %v582, %v604
      %v632 = vmul.f32 %v585, %v604
      %v633 = vmul.f32 %v588, %v604
      %v634 = vmul.f32 %v591, %v604
      %v635 = vmul.f32 %v594, %v604
      %v636 = vmul.f32 %v597, %v604
      %v637 = vmul.f32 %v600, %v604
      %v638 = vld [vmem:[%s5] sm:$0x1]
      %v640 = vperm.slane %v638, 0
      %v642 = vadd.f32 %v606, %v640
      %v643 = vadd.f32 %v607, %v640
      %v644 = vadd.f32 %v608, %v640
      %v645 = vadd.f32 %v609, %v640
      %v646 = vadd.f32 %v610, %v640
      %v647 = vadd.f32 %v611, %v640
      %v648 = vadd.f32 %v612, %v640
      %v649 = vadd.f32 %v613, %v640
      %v650 = vadd.f32 %v614, %v640
      %v651 = vadd.f32 %v615, %v640
      %v652 = vadd.f32 %v616, %v640
      %v653 = vadd.f32 %v617, %v640
      %v654 = vadd.f32 %v618, %v640
      %v655 = vadd.f32 %v619, %v640
      %v656 = vadd.f32 %v620, %v640
      %v657 = vadd.f32 %v621, %v640
      %v658 = vadd.f32 %v622, %v640
      %v659 = vadd.f32 %v623, %v640
      %v660 = vadd.f32 %v624, %v640
      %v661 = vadd.f32 %v625, %v640
      %v662 = vadd.f32 %v626, %v640
      %v663 = vadd.f32 %v627, %v640
      %v664 = vadd.f32 %v628, %v640
      %v665 = vadd.f32 %v629, %v640
      %v666 = vadd.f32 %v630, %v640
      %v667 = vadd.f32 %v631, %v640
      %v668 = vadd.f32 %v632, %v640
      %v669 = vadd.f32 %v633, %v640
      %v670 = vadd.f32 %v634, %v640
      %v671 = vadd.f32 %v635, %v640
      %v672 = vadd.f32 %v636, %v640
      %v673 = vadd.f32 %v637, %v640
      %v674 = vmax.f32 %v642, 0.0
      %v675 = vmax.f32 %v643, 0.0
      %v676 = vmax.f32 %v644, 0.0
      %v677 = vmax.f32 %v645, 0.0
      %v678 = vmax.f32 %v646, 0.0
      %v679 = vmax.f32 %v647, 0.0
      %v680 = vmax.f32 %v648, 0.0
      %v681 = vmax.f32 %v649, 0.0
      %v682 = vmax.f32 %v650, 0.0
      %v683 = vmax.f32 %v651, 0.0
      %v684 = vmax.f32 %v652, 0.0
      %v685 = vmax.f32 %v653, 0.0
      %v686 = vmax.f32 %v654, 0.0
      %v687 = vmax.f32 %v655, 0.0
      %v688 = vmax.f32 %v656, 0.0
      %v689 = vmax.f32 %v657, 0.0
      %v690 = vmax.f32 %v658, 0.0
      %v691 = vmax.f32 %v659, 0.0
      %v692 = vmax.f32 %v660, 0.0
      %v693 = vmax.f32 %v661, 0.0
      %v694 = vmax.f32 %v662, 0.0
      %v695 = vmax.f32 %v663, 0.0
      %v696 = vmax.f32 %v664, 0.0
      %v697 = vmax.f32 %v665, 0.0
      %v698 = vmax.f32 %v666, 0.0
      %v699 = vmax.f32 %v667, 0.0
      %v700 = vmax.f32 %v668, 0.0
      %v701 = vmax.f32 %v669, 0.0
      %v702 = vmax.f32 %v670, 0.0
      %v703 = vmax.f32 %v671, 0.0
      %v704 = vmax.f32 %v672, 0.0
      %v705 = vmax.f32 %v673, 0.0
      %vm706 = vcmask 15360
      %707 = vst.msk [vmem:[%s253] sm:$0xff] %vm706, %v674
      %708 = vst.msk [vmem:[%s253 + $0x8] sm:$0xff] %vm706, %v675
      %709 = vst.msk [vmem:[%s253 + $0x10] sm:$0xff] %vm706, %v676
      %710 = vst.msk [vmem:[%s253 + $0x18] sm:$0xff] %vm706, %v677
      %711 = vst.msk [vmem:[%s253 + $0x20] sm:$0xff] %vm706, %v678
      %712 = vst.msk [vmem:[%s253 + $0x28] sm:$0xff] %vm706, %v679
      %713 = vst.msk [vmem:[%s253 + $0x30] sm:$0xff] %vm706, %v680
      %714 = vst.msk [vmem:[%s253 + $0x38] sm:$0xff] %vm706, %v681
      %715 = vst.msk [vmem:[%s253 + $0x40] sm:$0xff] %vm706, %v682
      %716 = vst.msk [vmem:[%s253 + $0x48] sm:$0xff] %vm706, %v683
      %717 = vst.msk [vmem:[%s253 + $0x50] sm:$0xff] %vm706, %v684
      %718 = vst.msk [vmem:[%s253 + $0x58] sm:$0xff] %vm706, %v685
      %719 = vst.msk [vmem:[%s253 + $0x60] sm:$0xff] %vm706, %v686
      %720 = vst.msk [vmem:[%s253 + $0x68] sm:$0xff] %vm706, %v687
      %721 = vst.msk [vmem:[%s253 + $0x70] sm:$0xff] %vm706, %v688
      %722 = vst.msk [vmem:[%s253 + $0x78] sm:$0xff] %vm706, %v689
      %723 = vst.msk [vmem:[%s253 + $0x80] sm:$0xff] %vm706, %v690
      %724 = vst.msk [vmem:[%s253 + $0x88] sm:$0xff] %vm706, %v691
      %725 = vst.msk [vmem:[%s253 + $0x90] sm:$0xff] %vm706, %v692
      %726 = vst.msk [vmem:[%s253 + $0x98] sm:$0xff] %vm706, %v693
      %727 = vst.msk [vmem:[%s253 + $0xa0] sm:$0xff] %vm706, %v694
      %728 = vst.msk [vmem:[%s253 + $0xa8] sm:$0xff] %vm706, %v695
      %729 = vst.msk [vmem:[%s253 + $0xb0] sm:$0xff] %vm706, %v696
      %730 = vst.msk [vmem:[%s253 + $0xb8] sm:$0xff] %vm706, %v697
      %731 = vst.msk [vmem:[%s253 + $0xc0] sm:$0xff] %vm706, %v698
      %732 = vst.msk [vmem:[%s253 + $0xc8] sm:$0xff] %vm706, %v699
      %733 = vst.msk [vmem:[%s253 + $0xd0] sm:$0xff] %vm706, %v700
      %734 = vst.msk [vmem:[%s253 + $0xd8] sm:$0xff] %vm706, %v701
      %735 = vst.msk [vmem:[%s253 + $0xe0] sm:$0xff] %vm706, %v702
      %736 = vst.msk [vmem:[%s253 + $0xe8] sm:$0xff] %vm706, %v703
      %737 = vst.msk [vmem:[%s253 + $0xf0] sm:$0xff] %vm706, %v704
      %738 = vst.msk [vmem:[%s253 + $0xf8] sm:$0xff] %vm706, %v705
      %s739 = smul.u32 32, %s17
      %p740 = scmp.lt.s32.totalorder %s739, 63
      %s741 = scalar_select %p740, %s739, 63
      %s742 = smul.addr %s741, 8
      %s743 = scalar_lea.vmem %s6, %s742
      // Predicated region
      $region45: #{attention_module_0.18} parent=43 // pred_check
        %p744 = pneg %p166
      $region46: #{attention_module_0.18} parent=43 // pred_check_branch
        %746 = sbr.rel (%p744) target = $region48
      $region47: #{attention_module_0.18} parent=43 // pred_region
        %s747 = smul.u32 32, %s17
      $region48: #{attention_module_0.18} parent=43 // pred_fallthru
        _
    $region44: #{attention_module_0.18} parent=5 // pred_fallthru
      _
    %p748 = scmp.le.s32.totalorder 2, %s12
    // Predicated region
    $region49: #{attention_module_0.18} parent=5 // pred_check
      %p749 = pneg %p748
    $region50: #{attention_module_0.18} parent=5 // pred_check_branch
      %751 = sbr.rel (%p749) target = $region52
    $region51: #{attention_module_0.18} parent=5 // pred_region
      %s752 = ssub.s32 %s12, 2
      // Predicated region
      $region53: #{attention_module_0.18} parent=51 // pred_check
        %p753 = pneg %p172
      $region54: #{attention_module_0.18} parent=51 // pred_check_branch
        %755 = sbr.rel (%p753) target = $region56
      $region55: #{attention_module_0.18} parent=51 // pred_region
        %s756 = smul.u32 32, %s18
        %p757 = scmp.lt.s32.totalorder %s756, 63
        %s758 = scalar_select %p757, %s756, 63
        %s759 = smul.addr %s758, 8
        %s760 = scalar_lea.vmem %s6, %s759
      $region56: #{attention_module_0.18} parent=51 // pred_fallthru
        _
    $region52: #{attention_module_0.18} parent=5 // pred_fallthru
      _
  $region6: #{attention_module_0.18} parent=0 // loop_footer
    %s16 = sadd.s32 1, %s12
  $region7: #{attention_module_0.18} parent=0 // loop_footer_branch
    %11 = sbr.rel target = $region3
  $region8: #{attention_module_0.18} parent=0 // loop_exit
    _

// kernel: attention_module_0.29
$region0: #{attention_module_0.29}
  #allocation0 [shape = 'u32[]', space=smem, size = 0x4, offset = 0x4, fixed_abs, tag = 'smem constant byte address 0x4 - core index']
  #allocation1 [shape = 'u32[72,128]{1,0:T(1,128)}', space=vmem, size = 0x9000, scoped, tag = 'internal scratch']
  %s0 = inlined_call_operand.vmem [shape: f32[512,8], index: 0, kind: input, shape index: {}]
  %s1 = inlined_call_operand.vmem [shape: f32[512,8], index: 1, kind: input, shape index: {}]
  %s2 = inlined_call_operand.vmem [shape: f32[1,8], index: 2, kind: input, shape index: {}]
  %s3 = inlined_call_operand.vmem [shape: f32[1,8], index: 3, kind: input, shape index: {}]
  %s4 = inlined_call_operand.vmem [shape: f32[8,8], index: 4, kind: input, shape index: {}]
  %s5 = inlined_call_operand.vmem [shape: f32[1,8], index: 5, kind: input, shape index: {}]
  %s6 = inlined_call_operand.vmem [shape: f32[1,8], index: 6, kind: input, shape index: {}]
  %s7 = inlined_call_operand.vmem [shape: f32[8,8], index: 7, kind: input, shape index: {}]
  %s8 = inlined_call_operand.vmem [shape: f32[512,8], index: 8, kind: output, shape index: {}]
  %s9 = sld [smem:[#allocation0]]
  $region65: #{attention_module_0.29} parent=0
    _
  %s11 = ssub.s32 1, %s9
  %s12 = scalar_select 0, %s11, %s9
  loop: start=0, step=1, limit=4
  $region2: #{attention_module_0.29} parent=0 // loop_pre_header
    _
  $region3: #{attention_module_0.29} parent=0 // loop_header
    %s14 = sphi 0, %s18
    %p15 = scmp.ge.s32.totalorder %s14, 4
    %s24 = sphi 0, %s26
    %s27 = sphi 0, %s24
    %s28 = sphi 0, %s27
    %s44 = sphi 0, %s28
    %s50 = sphi 0, %s52
    %s53 = sphi 0, %s50
    %s54 = sphi 0, %s53
    %s70 = sphi 0, %s54
    %s74 = sphi 0, %s74
    %s76 = sphi 0, %s74
    %s77 = sphi 0, %s76
    %s91 = sphi 0, %s77
    %s95 = sphi 0, %s95
    %s97 = sphi 0, %s95
    %s98 = sphi 0, %s97
    %s112 = sphi 0, %s98
    %s116 = sphi 0, %s116
    %s118 = sphi 0, %s116
    %s119 = sphi 0, %s118
    %s133 = sphi 0, %s119
    %s137 = sphi 0, %s137
    %s139 = sphi 0, %s137
    %s140 = sphi 0, %s139
    %s154 = sphi 0, %s140
    %s158 = sphi 0, %s158
    %s160 = sphi 0, %s158
    %s161 = sphi 0, %s160
    %s175 = sphi 0, %s161
    %s179 = sphi 0, %s179
    %s181 = sphi 0, %s179
    %s182 = sphi 0, %s181
    %s196 = sphi 0, %s182
    %s202 = sphi 0, %s204
    %s205 = sphi 0, %s202
    %s206 = sphi 0, %s205
    %s222 = sphi 0, %s206
  $region4: #{attention_module_0.29} parent=0 // loop_header_branch
    %17 = sbr.rel (%p15) target = $region8
  $region5: #{attention_module_0.29} parent=0 // loop_body
    %s19 = ssub.s32 %s14, 1
    %s20 = ssub.s32 %s14, 2
    %s21 = sadd.s32 %s14, 1
    %s22 = ssub.s32 %s14, %s21
    %p23 = scmp.eq.s32.totalorder %s22, 0
    %s25 = sadd.s32 %s24, 1
    %s26 = scalar_select %p23, %s24, %s25
    %p29 = pneg %p23
    %p30 = scmp.eq.s32.totalorder %s14, 1
    %p31 = por %p29, %p30
    %p32 = scmp.ne.s32.totalorder %s24, %s27
    %p33 = scmp.eq.s32.totalorder %s14, 0
    %p34 = por %p32, %p33
    %p35 = scmp.ne.s32.totalorder %s24, %s27
    %p36 = scmp.eq.s32.totalorder %s19, 1
    %p37 = por %p35, %p36
    %p38 = scmp.ne.s32.totalorder %s27, %s28
    %p39 = scmp.eq.s32.totalorder %s19, 0
    %p40 = por %p38, %p39
    %p41 = scmp.ne.s32.totalorder %s27, %s28
    %p42 = scmp.eq.s32.totalorder %s20, 1
    %p43 = por %p41, %p42
    %p45 = scmp.ne.s32.totalorder %s28, %s44
    %p46 = scmp.eq.s32.totalorder %s20, 0
    %p47 = por %p45, %p46
    %s48 = ssub.s32 %s14, %s21
    %p49 = scmp.eq.s32.totalorder %s48, 0
    %s51 = sadd.s32 %s50, 1
    %s52 = scalar_select %p49, %s50, %s51
    %p55 = pneg %p49
    %p56 = scmp.eq.s32.totalorder %s14, 1
    %p57 = por %p55, %p56
    %p58 = scmp.ne.s32.totalorder %s50, %s53
    %p59 = scmp.eq.s32.totalorder %s14, 0
    %p60 = por %p58, %p59
    %p61 = scmp.ne.s32.totalorder %s50, %s53
    %p62 = scmp.eq.s32.totalorder %s19, 1
    %p63 = por %p61, %p62
    %p64 = scmp.ne.s32.totalorder %s53, %s54
    %p65 = scmp.eq.s32.totalorder %s19, 0
    %p66 = por %p64, %p65
    %p67 = scmp.ne.s32.totalorder %s53, %s54
    %p68 = scmp.eq.s32.totalorder %s20, 1
    %p69 = por %p67, %p68
    %p71 = scmp.ne.s32.totalorder %s54, %s70
    %p72 = scmp.eq.s32.totalorder %s20, 0
    %p73 = por %p71, %p72
    %s75 = sadd.s32 %s74, 1
    %p78 = scmp.eq.s32.totalorder %s14, 1
    %p79 = scmp.ne.s32.totalorder %s74, %s76
    %p80 = scmp.eq.s32.totalorder %s14, 0
    %p81 = por %p79, %p80
    %p82 = scmp.ne.s32.totalorder %s74, %s76
    %p83 = scmp.eq.s32.totalorder %s19, 1
    %p84 = por %p82, %p83
    %p85 = scmp.ne.s32.totalorder %s76, %s77
    %p86 = scmp.eq.s32.totalorder %s19, 0
    %p87 = por %p85, %p86
    %p88 = scmp.ne.s32.totalorder %s76, %s77
    %p89 = scmp.eq.s32.totalorder %s20, 1
    %p90 = por %p88, %p89
    %p92 = scmp.ne.s32.totalorder %s77, %s91
    %p93 = scmp.eq.s32.totalorder %s20, 0
    %p94 = por %p92, %p93
    %s96 = sadd.s32 %s95, 1
    %p99 = scmp.eq.s32.totalorder %s14, 1
    %p100 = scmp.ne.s32.totalorder %s95, %s97
    %p101 = scmp.eq.s32.totalorder %s14, 0
    %p102 = por %p100, %p101
    %p103 = scmp.ne.s32.totalorder %s95, %s97
    %p104 = scmp.eq.s32.totalorder %s19, 1
    %p105 = por %p103, %p104
    %p106 = scmp.ne.s32.totalorder %s97, %s98
    %p107 = scmp.eq.s32.totalorder %s19, 0
    %p108 = por %p106, %p107
    %p109 = scmp.ne.s32.totalorder %s97, %s98
    %p110 = scmp.eq.s32.totalorder %s20, 1
    %p111 = por %p109, %p110
    %p113 = scmp.ne.s32.totalorder %s98, %s112
    %p114 = scmp.eq.s32.totalorder %s20, 0
    %p115 = por %p113, %p114
    %s117 = sadd.s32 %s116, 1
    %p120 = scmp.eq.s32.totalorder %s14, 1
    %p121 = scmp.ne.s32.totalorder %s116, %s118
    %p122 = scmp.eq.s32.totalorder %s14, 0
    %p123 = por %p121, %p122
    %p124 = scmp.ne.s32.totalorder %s116, %s118
    %p125 = scmp.eq.s32.totalorder %s19, 1
    %p126 = por %p124, %p125
    %p127 = scmp.ne.s32.totalorder %s118, %s119
    %p128 = scmp.eq.s32.totalorder %s19, 0
    %p129 = por %p127, %p128
    %p130 = scmp.ne.s32.totalorder %s118, %s119
    %p131 = scmp.eq.s32.totalorder %s20, 1
    %p132 = por %p130, %p131
    %p134 = scmp.ne.s32.totalorder %s119, %s133
    %p135 = scmp.eq.s32.totalorder %s20, 0
    %p136 = por %p134, %p135
    %s138 = sadd.s32 %s137, 1
    %p141 = scmp.eq.s32.totalorder %s14, 1
    %p142 = scmp.ne.s32.totalorder %s137, %s139
    %p143 = scmp.eq.s32.totalorder %s14, 0
    %p144 = por %p142, %p143
    %p145 = scmp.ne.s32.totalorder %s137, %s139
    %p146 = scmp.eq.s32.totalorder %s19, 1
    %p147 = por %p145, %p146
    %p148 = scmp.ne.s32.totalorder %s139, %s140
    %p149 = scmp.eq.s32.totalorder %s19, 0
    %p150 = por %p148, %p149
    %p151 = scmp.ne.s32.totalorder %s139, %s140
    %p152 = scmp.eq.s32.totalorder %s20, 1
    %p153 = por %p151, %p152
    %p155 = scmp.ne.s32.totalorder %s140, %s154
    %p156 = scmp.eq.s32.totalorder %s20, 0
    %p157 = por %p155, %p156
    %s159 = sadd.s32 %s158, 1
    %p162 = scmp.eq.s32.totalorder %s14, 1
    %p163 = scmp.ne.s32.totalorder %s158, %s160
    %p164 = scmp.eq.s32.totalorder %s14, 0
    %p165 = por %p163, %p164
    %p166 = scmp.ne.s32.totalorder %s158, %s160
    %p167 = scmp.eq.s32.totalorder %s19, 1
    %p168 = por %p166, %p167
    %p169 = scmp.ne.s32.totalorder %s160, %s161
    %p170 = scmp.eq.s32.totalorder %s19, 0
    %p171 = por %p169, %p170
    %p172 = scmp.ne.s32.totalorder %s160, %s161
    %p173 = scmp.eq.s32.totalorder %s20, 1
    %p174 = por %p172, %p173
    %p176 = scmp.ne.s32.totalorder %s161, %s175
    %p177 = scmp.eq.s32.totalorder %s20, 0
    %p178 = por %p176, %p177
    %s180 = sadd.s32 %s179, 1
    %p183 = scmp.eq.s32.totalorder %s14, 1
    %p184 = scmp.ne.s32.totalorder %s179, %s181
    %p185 = scmp.eq.s32.totalorder %s14, 0
    %p186 = por %p184, %p185
    %p187 = scmp.ne.s32.totalorder %s179, %s181
    %p188 = scmp.eq.s32.totalorder %s19, 1
    %p189 = por %p187, %p188
    %p190 = scmp.ne.s32.totalorder %s181, %s182
    %p191 = scmp.eq.s32.totalorder %s19, 0
    %p192 = por %p190, %p191
    %p193 = scmp.ne.s32.totalorder %s181, %s182
    %p194 = scmp.eq.s32.totalorder %s20, 1
    %p195 = por %p193, %p194
    %p197 = scmp.ne.s32.totalorder %s182, %s196
    %p198 = scmp.eq.s32.totalorder %s20, 0
    %p199 = por %p197, %p198
    %s200 = ssub.s32 %s14, %s21
    %p201 = scmp.eq.s32.totalorder %s200, 0
    %s203 = sadd.s32 %s202, 1
    %s204 = scalar_select %p201, %s202, %s203
    %p207 = pneg %p201
    %p208 = scmp.eq.s32.totalorder %s14, 1
    %p209 = por %p207, %p208
    %p210 = scmp.ne.s32.totalorder %s202, %s205
    %p211 = scmp.eq.s32.totalorder %s14, 0
    %p212 = por %p210, %p211
    %p213 = scmp.ne.s32.totalorder %s202, %s205
    %p214 = scmp.eq.s32.totalorder %s19, 1
    %p215 = por %p213, %p214
    %p216 = scmp.ne.s32.totalorder %s205, %s206
    %p217 = scmp.eq.s32.totalorder %s19, 0
    %p218 = por %p216, %p217
    %p219 = scmp.ne.s32.totalorder %s205, %s206
    %p220 = scmp.eq.s32.totalorder %s20, 1
    %p221 = por %p219, %p220
    %p223 = scmp.ne.s32.totalorder %s206, %s222
    %p224 = scmp.eq.s32.totalorder %s20, 0
    %p225 = por %p223, %p224
    %p226 = scmp.le.s32.totalorder 1, %s14
    %p227 = scmp.lt.s32.totalorder %s14, 3
    %p228 = pnand %p226, %p227
    %p229 = pneg %p228
    // Predicated region
    $region9: #{attention_module_0.29} parent=5 // pred_check
      _
    $region10: #{attention_module_0.29} parent=5 // pred_check_branch
      %231 = sbr.rel (%p228) target = $region12
    $region11: #{attention_module_0.29} parent=5 // pred_region
      %s232 = ssub.s32 %s14, 1
      // Predicated region
      $region13: #{attention_module_0.29} parent=11 // pred_check
        %p233 = pneg %p87
      $region14: #{attention_module_0.29} parent=11 // pred_check_branch
        %235 = sbr.rel (%p233) target = $region16
      $region15: #{attention_module_0.29} parent=11 // pred_region
        _
      $region16: #{attention_module_0.29} parent=11 // pred_fallthru
        _
      // Predicated region
      $region17: #{attention_module_0.29} parent=11 // pred_check
        %p236 = pneg %p108
      $region18: #{attention_module_0.29} parent=11 // pred_check_branch
        %238 = sbr.rel (%p236) target = $region20
      $region19: #{attention_module_0.29} parent=11 // pred_region
        _
      $region20: #{attention_module_0.29} parent=11 // pred_fallthru
        _
      // Predicated region
      $region21: #{attention_module_0.29} parent=11 // pred_check
        %p239 = pneg %p129
      $region22: #{attention_module_0.29} parent=11 // pred_check_branch
        %241 = sbr.rel (%p239) target = $region24
      $region23: #{attention_module_0.29} parent=11 // pred_region
        _
      $region24: #{attention_module_0.29} parent=11 // pred_fallthru
        _
      // Predicated region
      $region25: #{attention_module_0.29} parent=11 // pred_check
        %p242 = pneg %p150
      $region26: #{attention_module_0.29} parent=11 // pred_check_branch
        %244 = sbr.rel (%p242) target = $region28
      $region27: #{attention_module_0.29} parent=11 // pred_region
        _
      $region28: #{attention_module_0.29} parent=11 // pred_fallthru
        _
      // Predicated region
      $region29: #{attention_module_0.29} parent=11 // pred_check
        %p245 = pneg %p171
      $region30: #{attention_module_0.29} parent=11 // pred_check_branch
        %247 = sbr.rel (%p245) target = $region32
      $region31: #{attention_module_0.29} parent=11 // pred_region
        _
      $region32: #{attention_module_0.29} parent=11 // pred_fallthru
        _
      // Predicated region
      $region33: #{attention_module_0.29} parent=11 // pred_check
        %p248 = pneg %p192
      $region34: #{attention_module_0.29} parent=11 // pred_check_branch
        %250 = sbr.rel (%p248) target = $region36
      $region35: #{attention_module_0.29} parent=11 // pred_region
        _
      $region36: #{attention_module_0.29} parent=11 // pred_fallthru
        _
    $region12: #{attention_module_0.29} parent=5 // pred_fallthru
      _
    %p251 = scmp.lt.s32.totalorder %s14, 2
    // Predicated region
    $region37: #{attention_module_0.29} parent=5 // pred_check
      %p252 = pneg %p251
    $region38: #{attention_module_0.29} parent=5 // pred_check_branch
      %254 = sbr.rel (%p252) target = $region40
    $region39: #{attention_module_0.29} parent=5 // pred_region
      // Predicated region
      $region41: #{attention_module_0.29} parent=39 // pred_check
        %p255 = pneg %p34
      $region42: #{attention_module_0.29} parent=39 // pred_check_branch
        %257 = sbr.rel (%p255) target = $region44
      $region43: #{attention_module_0.29} parent=39 // pred_region
        %s258 = smul.u32 32, %s14
        %p259 = scmp.lt.s32.totalorder %s258, 63
        %s260 = scalar_select %p259, %s258, 63
        %s261 = smul.addr %s260, 8
        %s262 = scalar_lea.vmem %s0, %s261
        %s263 = smul.u32 32, %s14
      $region44: #{attention_module_0.29} parent=39 // pred_fallthru
        _
      // Predicated region
      $region45: #{attention_module_0.29} parent=39 // pred_check
        %p264 = pneg %p60
      $region46: #{attention_module_0.29} parent=39 // pred_check_branch
        %266 = sbr.rel (%p264) target = $region48
      $region47: #{attention_module_0.29} parent=39 // pred_region
        %s267 = smul.u32 32, %s14
        %p268 = scmp.lt.s32.totalorder %s267, 63
        %s269 = scalar_select %p268, %s267, 63
        %s270 = smul.addr %s269, 8
        %s271 = scalar_lea.vmem %s1, %s270
        %s272 = smul.u32 32, %s14
      $region48: #{attention_module_0.29} parent=39 // pred_fallthru
        _
    $region40: #{attention_module_0.29} parent=5 // pred_fallthru
      _
    %p273 = scmp.le.s32.totalorder 1, %s14
    %p274 = scmp.lt.s32.totalorder %s14, 3
    %p275 = pnand %p273, %p274
    %p276 = pneg %p275
    // Predicated region
    $region49: #{attention_module_0.29} parent=5 // pred_check
      _
    $region50: #{attention_module_0.29} parent=5 // pred_check_branch
      %278 = sbr.rel (%p275) target = $region52
    $region51: #{attention_module_0.29} parent=5 // pred_region
      %s279 = ssub.s32 %s14, 1
      %s280 = smul.u32 32, %s19
      %p281 = scmp.lt.s32.totalorder %s280, 63
      %s282 = scalar_select %p281, %s280, 63
      %s283 = smul.addr %s282, 8
      %s284 = scalar_lea.vmem %s0, %s283
      %p285 = pneg %p40
      %p286 = pneg %p37
      %s287 = smul.u32 32, %s19
      %p288 = scmp.lt.s32.totalorder %s287, 63
      %s289 = scalar_select %p288, %s287, 63
      %s290 = smul.addr %s289, 8
      %s291 = scalar_lea.vmem %s1, %s290
      %p292 = pneg %p66
      %p293 = pneg %p63
      %p294 = pneg %p87
      %p295 = pneg %p84
      %p296 = pneg %p108
      %p297 = pneg %p105
      %p298 = pneg %p129
      %p299 = pneg %p126
      %p300 = pneg %p150
      %p301 = pneg %p147
      %p302 = pneg %p171
      %p303 = pneg %p168
      %p304 = pneg %p192
      %p305 = pneg %p189
      %p306 = pneg %p218
      %p307 = pneg %p215
      %s308 = smul.u32 32, %s19
      %p309 = scmp.lt.s32.totalorder %s308, 63
      %s310 = scalar_select %p309, %s308, 63
      %s311 = smul.addr %s310, 8
      %s312 = scalar_lea.vmem %s8, %s311
      %s313 = smul.u32 32, %s19
      %p314 = scmp.lt.s32.totalorder %s313, 63
      %s315 = scalar_select %p314, %s313, 63
      %s316 = smul.addr %s315, 8
      %s317 = scalar_lea.vmem %s0, %s316
      %s318 = smul.u32 32, %s19
      %s319 = smul.u32 32, %s19
      %p320 = scmp.lt.s32.totalorder %s319, 63
      %s321 = scalar_select %p320, %s319, 63
      %s322 = smul.addr %s321, 8
      %s323 = scalar_lea.vmem %s1, %s322
      %s324 = smul.u32 32, %s19
      %s325 = smul.u32 32, %s19
      %p326 = scmp.lt.s32.totalorder %s325, 63
      %s327 = scalar_select %p326, %s325, 63
      %s328 = smul.addr %s327, 8
      %s329 = scalar_lea.vmem %s8, %s328
      %s330 = smul.u32 32, %s19
      %v331 = vld [vmem:[%s317] sm:$0xff]
      %v332 = vld [vmem:[%s317 + $0x8] sm:$0xff]
      %v333 = vld [vmem:[%s317 + $0x10] sm:$0xff]
      %v334 = vld [vmem:[%s317 + $0x18] sm:$0xff]
      %v335 = vld [vmem:[%s317 + $0x20] sm:$0xff]
      %v336 = vld [vmem:[%s317 + $0x28] sm:$0xff]
      %v337 = vld [vmem:[%s317 + $0x30] sm:$0xff]
      %v338 = vld [vmem:[%s317 + $0x38] sm:$0xff]
      %v339 = vld [vmem:[%s317 + $0x40] sm:$0xff]
      %v340 = vld [vmem:[%s317 + $0x48] sm:$0xff]
      %v341 = vld [vmem:[%s317 + $0x50] sm:$0xff]
      %v342 = vld [vmem:[%s317 + $0x58] sm:$0xff]
      %v343 = vld [vmem:[%s317 + $0x60] sm:$0xff]
      %v344 = vld [vmem:[%s317 + $0x68] sm:$0xff]
      %v345 = vld [vmem:[%s317 + $0x70] sm:$0xff]
      %v346 = vld [vmem:[%s317 + $0x78] sm:$0xff]
      %v347 = vld [vmem:[%s317 + $0x80] sm:$0xff]
      %v348 = vld [vmem:[%s317 + $0x88] sm:$0xff]
      %v349 = vld [vmem:[%s317 + $0x90] sm:$0xff]
      %v350 = vld [vmem:[%s317 + $0x98] sm:$0xff]
      %v351 = vld [vmem:[%s317 + $0xa0] sm:$0xff]
      %v352 = vld [vmem:[%s317 + $0xa8] sm:$0xff]
      %v353 = vld [vmem:[%s317 + $0xb0] sm:$0xff]
      %v354 = vld [vmem:[%s317 + $0xb8] sm:$0xff]
      %v355 = vld [vmem:[%s317 + $0xc0] sm:$0xff]
      %v356 = vld [vmem:[%s317 + $0xc8] sm:$0xff]
      %v357 = vld [vmem:[%s317 + $0xd0] sm:$0xff]
      %v358 = vld [vmem:[%s317 + $0xd8] sm:$0xff]
      %v359 = vld [vmem:[%s317 + $0xe0] sm:$0xff]
      %v360 = vld [vmem:[%s317 + $0xe8] sm:$0xff]
      %v361 = vld [vmem:[%s317 + $0xf0] sm:$0xff]
      %v362 = vld [vmem:[%s317 + $0xf8] sm:$0xff]
      %v363 = vld [vmem:[%s2] sm:$0x1]
      %v365 = vperm.slane %v363, 0
      %v367 = vmul.f32 %v331, %v365
      %v368 = vmul.f32 %v332, %v365
      %v369 = vmul.f32 %v333, %v365
      %v370 = vmul.f32 %v334, %v365
      %v371 = vmul.f32 %v335, %v365
      %v372 = vmul.f32 %v336, %v365
      %v373 = vmul.f32 %v337, %v365
      %v374 = vmul.f32 %v338, %v365
      %v375 = vmul.f32 %v339, %v365
      %v376 = vmul.f32 %v340, %v365
      %v377 = vmul.f32 %v341, %v365
      %v378 = vmul.f32 %v342, %v365
      %v379 = vmul.f32 %v343, %v365
      %v380 = vmul.f32 %v344, %v365
      %v381 = vmul.f32 %v345, %v365
      %v382 = vmul.f32 %v346, %v365
      %v383 = vmul.f32 %v347, %v365
      %v384 = vmul.f32 %v348, %v365
      %v385 = vmul.f32 %v349, %v365
      %v386 = vmul.f32 %v350, %v365
      %v387 = vmul.f32 %v351, %v365
      %v388 = vmul.f32 %v352, %v365
      %v389 = vmul.f32 %v353, %v365
      %v390 = vmul.f32 %v354, %v365
      %v391 = vmul.f32 %v355, %v365
      %v392 = vmul.f32 %v356, %v365
      %v393 = vmul.f32 %v357, %v365
      %v394 = vmul.f32 %v358, %v365
      %v395 = vmul.f32 %v359, %v365
      %v396 = vmul.f32 %v360, %v365
      %v397 = vmul.f32 %v361, %v365
      %v398 = vmul.f32 %v362, %v365
      %v399 = vld [vmem:[%s3] sm:$0x1]
      %v401 = vperm.slane %v399, 0
      %v403 = vadd.f32 %v367, %v401
      %v404 = vadd.f32 %v368, %v401
      %v405 = vadd.f32 %v369, %v401
      %v406 = vadd.f32 %v370, %v401
      %v407 = vadd.f32 %v371, %v401
      %v408 = vadd.f32 %v372, %v401
      %v409 = vadd.f32 %v373, %v401
      %v410 = vadd.f32 %v374, %v401
      %v411 = vadd.f32 %v375, %v401
      %v412 = vadd.f32 %v376, %v401
      %v413 = vadd.f32 %v377, %v401
      %v414 = vadd.f32 %v378, %v401
      %v415 = vadd.f32 %v379, %v401
      %v416 = vadd.f32 %v380, %v401
      %v417 = vadd.f32 %v381, %v401
      %v418 = vadd.f32 %v382, %v401
      %v419 = vadd.f32 %v383, %v401
      %v420 = vadd.f32 %v384, %v401
      %v421 = vadd.f32 %v385, %v401
      %v422 = vadd.f32 %v386, %v401
      %v423 = vadd.f32 %v387, %v401
      %v424 = vadd.f32 %v388, %v401
      %v425 = vadd.f32 %v389, %v401
      %v426 = vadd.f32 %v390, %v401
      %v427 = vadd.f32 %v391, %v401
      %v428 = vadd.f32 %v392, %v401
      %v429 = vadd.f32 %v393, %v401
      %v430 = vadd.f32 %v394, %v401
      %v431 = vadd.f32 %v395, %v401
      %v432 = vadd.f32 %v396, %v401
      %v433 = vadd.f32 %v397, %v401
      %v434 = vadd.f32 %v398, %v401
      %v435 = vmax.f32 %v403, 0.0
      %v436 = vmax.f32 %v404, 0.0
      %v437 = vmax.f32 %v405, 0.0
      %v438 = vmax.f32 %v406, 0.0
      %v439 = vmax.f32 %v407, 0.0
      %v440 = vmax.f32 %v408, 0.0
      %v441 = vmax.f32 %v409, 0.0
      %v442 = vmax.f32 %v410, 0.0
      %v443 = vmax.f32 %v411, 0.0
      %v444 = vmax.f32 %v412, 0.0
      %v445 = vmax.f32 %v413, 0.0
      %v446 = vmax.f32 %v414, 0.0
      %v447 = vmax.f32 %v415, 0.0
      %v448 = vmax.f32 %v416, 0.0
      %v449 = vmax.f32 %v417, 0.0
      %v450 = vmax.f32 %v418, 0.0
      %v451 = vmax.f32 %v419, 0.0
      %v452 = vmax.f32 %v420, 0.0
      %v453 = vmax.f32 %v421, 0.0
      %v454 = vmax.f32 %v422, 0.0
      %v455 = vmax.f32 %v423, 0.0
      %v456 = vmax.f32 %v424, 0.0
      %v457 = vmax.f32 %v425, 0.0
      %v458 = vmax.f32 %v426, 0.0
      %v459 = vmax.f32 %v427, 0.0
      %v460 = vmax.f32 %v428, 0.0
      %v461 = vmax.f32 %v429, 0.0
      %v462 = vmax.f32 %v430, 0.0
      %v463 = vmax.f32 %v431, 0.0
      %v464 = vmax.f32 %v432, 0.0
      %v465 = vmax.f32 %v433, 0.0
      %v466 = vmax.f32 %v434, 0.0
      %v467 = vld [vmem:[%s4] sm:$0xff]
      %vm468 = vcmask 64512
      %v470 = vsel %vm468, %v435, 0
      %v473 = vsel %vm468, %v436, 0
      %v476 = vsel %vm468, %v437, 0
      %v479 = vsel %vm468, %v438, 0
      %v482 = vsel %vm468, %v439, 0
      %v485 = vsel %vm468, %v440, 0
      %v488 = vsel %vm468, %v441, 0
      %v491 = vsel %vm468, %v442, 0
      %v494 = vsel %vm468, %v443, 0
      %v497 = vsel %vm468, %v444, 0
      %v500 = vsel %vm468, %v445, 0
      %v503 = vsel %vm468, %v446, 0
      %v506 = vsel %vm468, %v447, 0
      %v509 = vsel %vm468, %v448, 0
      %v512 = vsel %vm468, %v449, 0
      %v515 = vsel %vm468, %v450, 0
      %v518 = vsel %vm468, %v451, 0
      %v521 = vsel %vm468, %v452, 0
      %v524 = vsel %vm468, %v453, 0
      %v527 = vsel %vm468, %v454, 0
      %v530 = vsel %vm468, %v455, 0
      %v533 = vsel %vm468, %v456, 0
      %v536 = vsel %vm468, %v457, 0
      %v539 = vsel %vm468, %v458, 0
      %v542 = vsel %vm468, %v459, 0
      %v545 = vsel %vm468, %v460, 0
      %v548 = vsel %vm468, %v461, 0
      %v551 = vsel %vm468, %v462, 0
      %v554 = vsel %vm468, %v463, 0
      %v557 = vsel %vm468, %v464, 0
      %v560 = vsel %vm468, %v465, 0
      %v563 = vsel %vm468, %v466, 0
      %565 = vmatpush.msra.mxu0 0.0
      %566 = vmatpush.msra.mxu0 0.0
      %567 = vmatpush.msra.mxu0 0.0
      %568 = vmatpush.msra.mxu0 0.0
      %569 = vmatpush.msra.mxu0 0.0
      %570 = vmatpush.msra.mxu0 0.0
      %571 = vmatpush.msra.mxu0 0.0
      %572 = vmatpush.msra.mxu0 0.0
      %573 = vmatpush.msra.mxu0 0.0
      %574 = vmatpush.msra.mxu0 0.0
      %575 = vmatpush.msra.mxu0 0.0
      %576 = vmatpush.msra.mxu0 0.0
      %577 = vmatpush.msra.mxu0 0.0
      %578 = vmatpush.msra.mxu0 0.0
      %579 = vmatpush.msra.mxu0 0.0
      %580 = vmatpush.msra.mxu0 %v467
      %581 = vmatmul.f32.gmra.mxu0 %v470
      %v582 = vpop.f32.mrf.mxu0
      %v583 = vadd.f32 0.0, %v582
      %584 = vmatmul.f32.gmra.mxu0 %v473
      %v585 = vpop.f32.mrf.mxu0
      %v586 = vadd.f32 0.0, %v585
      %587 = vmatmul.f32.gmra.mxu0 %v476
      %v588 = vpop.f32.mrf.mxu0
      %v589 = vadd.f32 0.0, %v588
      %590 = vmatmul.f32.gmra.mxu0 %v479
      %v591 = vpop.f32.mrf.mxu0
      %v592 = vadd.f32 0.0, %v591
      %593 = vmatmul.f32.gmra.mxu0 %v482
      %v594 = vpop.f32.mrf.mxu0
      %v595 = vadd.f32 0.0, %v594
      %596 = vmatmul.f32.gmra.mxu0 %v485
      %v597 = vpop.f32.mrf.mxu0
      %v598 = vadd.f32 0.0, %v597
      %599 = vmatmul.f32.gmra.mxu0 %v488
      %v600 = vpop.f32.mrf.mxu0
      %v601 = vadd.f32 0.0, %v600
      %602 = vmatmul.f32.gmra.mxu0 %v491
      %v603 = vpop.f32.mrf.mxu0
      %v604 = vadd.f32 0.0, %v603
      %605 = vmatmul.f32.gmra.mxu0 %v494
      %v606 = vpop.f32.mrf.mxu0
      %v607 = vadd.f32 0.0, %v606
      %608 = vmatmul.f32.gmra.mxu0 %v497
      %v609 = vpop.f32.mrf.mxu0
      %v610 = vadd.f32 0.0, %v609
      %611 = vmatmul.f32.gmra.mxu0 %v500
      %v612 = vpop.f32.mrf.mxu0
      %v613 = vadd.f32 0.0, %v612
      %614 = vmatmul.f32.gmra.mxu0 %v503
      %v615 = vpop.f32.mrf.mxu0
      %v616 = vadd.f32 0.0, %v615
      %617 = vmatmul.f32.gmra.mxu0 %v506
      %v618 = vpop.f32.mrf.mxu0
      %v619 = vadd.f32 0.0, %v618
      %620 = vmatmul.f32.gmra.mxu0 %v509
      %v621 = vpop.f32.mrf.mxu0
      %v622 = vadd.f32 0.0, %v621
      %623 = vmatmul.f32.gmra.mxu0 %v512
      %v624 = vpop.f32.mrf.mxu0
      %v625 = vadd.f32 0.0, %v624
      %626 = vmatmul.f32.gmra.mxu0 %v515
      %v627 = vpop.f32.mrf.mxu0
      %v628 = vadd.f32 0.0, %v627
      %629 = vmatmul.f32.gmra.mxu0 %v518
      %v630 = vpop.f32.mrf.mxu0
      %v631 = vadd.f32 0.0, %v630
      %632 = vmatmul.f32.gmra.mxu0 %v521
      %v633 = vpop.f32.mrf.mxu0
      %v634 = vadd.f32 0.0, %v633
      %635 = vmatmul.f32.gmra.mxu0 %v524
      %v636 = vpop.f32.mrf.mxu0
      %v637 = vadd.f32 0.0, %v636
      %638 = vmatmul.f32.gmra.mxu0 %v527
      %v639 = vpop.f32.mrf.mxu0
      %v640 = vadd.f32 0.0, %v639
      %641 = vmatmul.f32.gmra.mxu0 %v530
      %v642 = vpop.f32.mrf.mxu0
      %v643 = vadd.f32 0.0, %v642
      %644 = vmatmul.f32.gmra.mxu0 %v533
      %v645 = vpop.f32.mrf.mxu0
      %v646 = vadd.f32 0.0, %v645
      %647 = vmatmul.f32.gmra.mxu0 %v536
      %v648 = vpop.f32.mrf.mxu0
      %v649 = vadd.f32 0.0, %v648
      %650 = vmatmul.f32.gmra.mxu0 %v539
      %v651 = vpop.f32.mrf.mxu0
      %v652 = vadd.f32 0.0, %v651
      %653 = vmatmul.f32.gmra.mxu0 %v542
      %v654 = vpop.f32.mrf.mxu0
      %v655 = vadd.f32 0.0, %v654
      %656 = vmatmul.f32.gmra.mxu0 %v545
      %v657 = vpop.f32.mrf.mxu0
      %v658 = vadd.f32 0.0, %v657
      %659 = vmatmul.f32.gmra.mxu0 %v548
      %v660 = vpop.f32.mrf.mxu0
      %v661 = vadd.f32 0.0, %v660
      %662 = vmatmul.f32.gmra.mxu0 %v551
      %v663 = vpop.f32.mrf.mxu0
      %v664 = vadd.f32 0.0, %v663
      %665 = vmatmul.f32.gmra.mxu0 %v554
      %v666 = vpop.f32.mrf.mxu0
      %v667 = vadd.f32 0.0, %v666
      %668 = vmatmul.f32.gmra.mxu0 %v557
      %v669 = vpop.f32.mrf.mxu0
      %v670 = vadd.f32 0.0, %v669
      %671 = vmatmul.f32.gmra.mxu0 %v560
      %v672 = vpop.f32.mrf.mxu0
      %v673 = vadd.f32 0.0, %v672
      %674 = vmatmul.f32.gmra.mxu0 %v563
      %v675 = vpop.f32.mrf.mxu0
      %v676 = vadd.f32 0.0, %v675
      %677 = vdwg.mxu0
      %v678 = vld [vmem:[%s5] sm:$0x1]
      %v680 = vperm.slane %v678, 0
      %v682 = vmul.f32 %v583, %v680
      %v683 = vmul.f32 %v586, %v680
      %v684 = vmul.f32 %v589, %v680
      %v685 = vmul.f32 %v592, %v680
      %v686 = vmul.f32 %v595, %v680
      %v687 = vmul.f32 %v598, %v680
      %v688 = vmul.f32 %v601, %v680
      %v689 = vmul.f32 %v604, %v680
      %v690 = vmul.f32 %v607, %v680
      %v691 = vmul.f32 %v610, %v680
      %v692 = vmul.f32 %v613, %v680
      %v693 = vmul.f32 %v616, %v680
      %v694 = vmul.f32 %v619, %v680
      %v695 = vmul.f32 %v622, %v680
      %v696 = vmul.f32 %v625, %v680
      %v697 = vmul.f32 %v628, %v680
      %v698 = vmul.f32 %v631, %v680
      %v699 = vmul.f32 %v634, %v680
      %v700 = vmul.f32 %v637, %v680
      %v701 = vmul.f32 %v640, %v680
      %v702 = vmul.f32 %v643, %v680
      %v703 = vmul.f32 %v646, %v680
      %v704 = vmul.f32 %v649, %v680
      %v705 = vmul.f32 %v652, %v680
      %v706 = vmul.f32 %v655, %v680
      %v707 = vmul.f32 %v658, %v680
      %v708 = vmul.f32 %v661, %v680
      %v709 = vmul.f32 %v664, %v680
      %v710 = vmul.f32 %v667, %v680
      %v711 = vmul.f32 %v670, %v680
      %v712 = vmul.f32 %v673, %v680
      %v713 = vmul.f32 %v676, %v680
      %v714 = vld [vmem:[%s6] sm:$0x1]
      %v716 = vperm.slane %v714, 0
      %v718 = vadd.f32 %v682, %v716
      %v719 = vadd.f32 %v683, %v716
      %v720 = vadd.f32 %v684, %v716
      %v721 = vadd.f32 %v685, %v716
      %v722 = vadd.f32 %v686, %v716
      %v723 = vadd.f32 %v687, %v716
      %v724 = vadd.f32 %v688, %v716
      %v725 = vadd.f32 %v689, %v716
      %v726 = vadd.f32 %v690, %v716
      %v727 = vadd.f32 %v691, %v716
      %v728 = vadd.f32 %v692, %v716
      %v729 = vadd.f32 %v693, %v716
      %v730 = vadd.f32 %v694, %v716
      %v731 = vadd.f32 %v695, %v716
      %v732 = vadd.f32 %v696, %v716
      %v733 = vadd.f32 %v697, %v716
      %v734 = vadd.f32 %v698, %v716
      %v735 = vadd.f32 %v699, %v716
      %v736 = vadd.f32 %v700, %v716
      %v737 = vadd.f32 %v701, %v716
      %v738 = vadd.f32 %v702, %v716
      %v739 = vadd.f32 %v703, %v716
      %v740 = vadd.f32 %v704, %v716
      %v741 = vadd.f32 %v705, %v716
      %v742 = vadd.f32 %v706, %v716
      %v743 = vadd.f32 %v707, %v716
      %v744 = vadd.f32 %v708, %v716
      %v745 = vadd.f32 %v709, %v716
      %v746 = vadd.f32 %v710, %v716
      %v747 = vadd.f32 %v711, %v716
      %v748 = vadd.f32 %v712, %v716
      %v749 = vadd.f32 %v713, %v716
      %v750 = vmax.f32 %v718, 0.0
      %v751 = vmax.f32 %v719, 0.0
      %v752 = vmax.f32 %v720, 0.0
      %v753 = vmax.f32 %v721, 0.0
      %v754 = vmax.f32 %v722, 0.0
      %v755 = vmax.f32 %v723, 0.0
      %v756 = vmax.f32 %v724, 0.0
      %v757 = vmax.f32 %v725, 0.0
      %v758 = vmax.f32 %v726, 0.0
      %v759 = vmax.f32 %v727, 0.0
      %v760 = vmax.f32 %v728, 0.0
      %v761 = vmax.f32 %v729, 0.0
      %v762 = vmax.f32 %v730, 0.0
      %v763 = vmax.f32 %v731, 0.0
      %v764 = vmax.f32 %v732, 0.0
      %v765 = vmax.f32 %v733, 0.0
      %v766 = vmax.f32 %v734, 0.0
      %v767 = vmax.f32 %v735, 0.0
      %v768 = vmax.f32 %v736, 0.0
      %v769 = vmax.f32 %v737, 0.0
      %v770 = vmax.f32 %v738, 0.0
      %v771 = vmax.f32 %v739, 0.0
      %v772 = vmax.f32 %v740, 0.0
      %v773 = vmax.f32 %v741, 0.0
      %v774 = vmax.f32 %v742, 0.0
      %v775 = vmax.f32 %v743, 0.0
      %v776 = vmax.f32 %v744, 0.0
      %v777 = vmax.f32 %v745, 0.0
      %v778 = vmax.f32 %v746, 0.0
      %v779 = vmax.f32 %v747, 0.0
      %v780 = vmax.f32 %v748, 0.0
      %v781 = vmax.f32 %v749, 0.0
      %v782 = vld [vmem:[%s7] sm:$0xff]
      %v784 = vsel %vm468, %v750, 0
      %v787 = vsel %vm468, %v751, 0
      %v790 = vsel %vm468, %v752, 0
      %v793 = vsel %vm468, %v753, 0
      %v796 = vsel %vm468, %v754, 0
      %v799 = vsel %vm468, %v755, 0
      %v802 = vsel %vm468, %v756, 0
      %v805 = vsel %vm468, %v757, 0
      %v808 = vsel %vm468, %v758, 0
      %v811 = vsel %vm468, %v759, 0
      %v814 = vsel %vm468, %v760, 0
      %v817 = vsel %vm468, %v761, 0
      %v820 = vsel %vm468, %v762, 0
      %v823 = vsel %vm468, %v763, 0
      %v826 = vsel %vm468, %v764, 0
      %v829 = vsel %vm468, %v765, 0
      %v832 = vsel %vm468, %v766, 0
      %v835 = vsel %vm468, %v767, 0
      %v838 = vsel %vm468, %v768, 0
      %v841 = vsel %vm468, %v769, 0
      %v844 = vsel %vm468, %v770, 0
      %v847 = vsel %vm468, %v771, 0
      %v850 = vsel %vm468, %v772, 0
      %v853 = vsel %vm468, %v773, 0
      %v856 = vsel %vm468, %v774, 0
      %v859 = vsel %vm468, %v775, 0
      %v862 = vsel %vm468, %v776, 0
      %v865 = vsel %vm468, %v777, 0
      %v868 = vsel %vm468, %v778, 0
      %v871 = vsel %vm468, %v779, 0
      %v874 = vsel %vm468, %v780, 0
      %v877 = vsel %vm468, %v781, 0
      %879 = vmatpush.msra.mxu0 0.0
      %880 = vmatpush.msra.mxu0 0.0
      %881 = vmatpush.msra.mxu0 0.0
      %882 = vmatpush.msra.mxu0 0.0
      %883 = vmatpush.msra.mxu0 0.0
      %884 = vmatpush.msra.mxu0 0.0
      %885 = vmatpush.msra.mxu0 0.0
      %886 = vmatpush.msra.mxu0 0.0
      %887 = vmatpush.msra.mxu0 0.0
      %888 = vmatpush.msra.mxu0 0.0
      %889 = vmatpush.msra.mxu0 0.0
      %890 = vmatpush.msra.mxu0 0.0
      %891 = vmatpush.msra.mxu0 0.0
      %892 = vmatpush.msra.mxu0 0.0
      %893 = vmatpush.msra.mxu0 0.0
      %894 = vmatpush.msra.mxu0 %v782
      %895 = vmatmul.f32.gmra.mxu0 %v784
      %v896 = vpop.f32.mrf.mxu0
      %v897 = vadd.f32 0.0, %v896
      %898 = vmatmul.f32.gmra.mxu0 %v787
      %v899 = vpop.f32.mrf.mxu0
      %v900 = vadd.f32 0.0, %v899
      %901 = vmatmul.f32.gmra.mxu0 %v790
      %v902 = vpop.f32.mrf.mxu0
      %v903 = vadd.f32 0.0, %v902
      %904 = vmatmul.f32.gmra.mxu0 %v793
      %v905 = vpop.f32.mrf.mxu0
      %v906 = vadd.f32 0.0, %v905
      %907 = vmatmul.f32.gmra.mxu0 %v796
      %v908 = vpop.f32.mrf.mxu0
      %v909 = vadd.f32 0.0, %v908
      %910 = vmatmul.f32.gmra.mxu0 %v799
      %v911 = vpop.f32.mrf.mxu0
      %v912 = vadd.f32 0.0, %v911
      %913 = vmatmul.f32.gmra.mxu0 %v802
      %v914 = vpop.f32.mrf.mxu0
      %v915 = vadd.f32 0.0, %v914
      %916 = vmatmul.f32.gmra.mxu0 %v805
      %v917 = vpop.f32.mrf.mxu0
      %v918 = vadd.f32 0.0, %v917
      %919 = vmatmul.f32.gmra.mxu0 %v808
      %v920 = vpop.f32.mrf.mxu0
      %v921 = vadd.f32 0.0, %v920
      %922 = vmatmul.f32.gmra.mxu0 %v811
      %v923 = vpop.f32.mrf.mxu0
      %v924 = vadd.f32 0.0, %v923
      %925 = vmatmul.f32.gmra.mxu0 %v814
      %v926 = vpop.f32.mrf.mxu0
      %v927 = vadd.f32 0.0, %v926
      %928 = vmatmul.f32.gmra.mxu0 %v817
      %v929 = vpop.f32.mrf.mxu0
      %v930 = vadd.f32 0.0, %v929
      %931 = vmatmul.f32.gmra.mxu0 %v820
      %v932 = vpop.f32.mrf.mxu0
      %v933 = vadd.f32 0.0, %v932
      %934 = vmatmul.f32.gmra.mxu0 %v823
      %v935 = vpop.f32.mrf.mxu0
      %v936 = vadd.f32 0.0, %v935
      %937 = vmatmul.f32.gmra.mxu0 %v826
      %v938 = vpop.f32.mrf.mxu0
      %v939 = vadd.f32 0.0, %v938
      %940 = vmatmul.f32.gmra.mxu0 %v829
      %v941 = vpop.f32.mrf.mxu0
      %v942 = vadd.f32 0.0, %v941
      %943 = vmatmul.f32.gmra.mxu0 %v832
      %v944 = vpop.f32.mrf.mxu0
      %v945 = vadd.f32 0.0, %v944
      %946 = vmatmul.f32.gmra.mxu0 %v835
      %v947 = vpop.f32.mrf.mxu0
      %v948 = vadd.f32 0.0, %v947
      %949 = vmatmul.f32.gmra.mxu0 %v838
      %v950 = vpop.f32.mrf.mxu0
      %v951 = vadd.f32 0.0, %v950
      %952 = vmatmul.f32.gmra.mxu0 %v841
      %v953 = vpop.f32.mrf.mxu0
      %v954 = vadd.f32 0.0, %v953
      %955 = vmatmul.f32.gmra.mxu0 %v844
      %v956 = vpop.f32.mrf.mxu0
      %v957 = vadd.f32 0.0, %v956
      %958 = vmatmul.f32.gmra.mxu0 %v847
      %v959 = vpop.f32.mrf.mxu0
      %v960 = vadd.f32 0.0, %v959
      %961 = vmatmul.f32.gmra.mxu0 %v850
      %v962 = vpop.f32.mrf.mxu0
      %v963 = vadd.f32 0.0, %v962
      %964 = vmatmul.f32.gmra.mxu0 %v853
      %v965 = vpop.f32.mrf.mxu0
      %v966 = vadd.f32 0.0, %v965
      %967 = vmatmul.f32.gmra.mxu0 %v856
      %v968 = vpop.f32.mrf.mxu0
      %v969 = vadd.f32 0.0, %v968
      %970 = vmatmul.f32.gmra.mxu0 %v859
      %v971 = vpop.f32.mrf.mxu0
      %v972 = vadd.f32 0.0, %v971
      %973 = vmatmul.f32.gmra.mxu0 %v862
      %v974 = vpop.f32.mrf.mxu0
      %v975 = vadd.f32 0.0, %v974
      %976 = vmatmul.f32.gmra.mxu0 %v865
      %v977 = vpop.f32.mrf.mxu0
      %v978 = vadd.f32 0.0, %v977
      %979 = vmatmul.f32.gmra.mxu0 %v868
      %v980 = vpop.f32.mrf.mxu0
      %v981 = vadd.f32 0.0, %v980
      %982 = vmatmul.f32.gmra.mxu0 %v871
      %v983 = vpop.f32.mrf.mxu0
      %v984 = vadd.f32 0.0, %v983
      %985 = vmatmul.f32.gmra.mxu0 %v874
      %v986 = vpop.f32.mrf.mxu0
      %v987 = vadd.f32 0.0, %v986
      %988 = vmatmul.f32.gmra.mxu0 %v877
      %v989 = vpop.f32.mrf.mxu0
      %v990 = vadd.f32 0.0, %v989
      %991 = vdwg.mxu0
      %v992 = vxor.u32 %v897, 2147483648
      %v993 = vxor.u32 %v900, 2147483648
      %v994 = vxor.u32 %v903, 2147483648
      %v995 = vxor.u32 %v906, 2147483648
      %v996 = vxor.u32 %v909, 2147483648
      %v997 = vxor.u32 %v912, 2147483648
      %v998 = vxor.u32 %v915, 2147483648
      %v999 = vxor.u32 %v918, 2147483648
      %v1000 = vxor.u32 %v921, 2147483648
      %v1001 = vxor.u32 %v924, 2147483648
      %v1002 = vxor.u32 %v927, 2147483648
      %v1003 = vxor.u32 %v930, 2147483648
      %v1004 = vxor.u32 %v933, 2147483648
      %v1005 = vxor.u32 %v936, 2147483648
      %v1006 = vxor.u32 %v939, 2147483648
      %v1007 = vxor.u32 %v942, 2147483648
      %v1008 = vxor.u32 %v945, 2147483648
      %v1009 = vxor.u32 %v948, 2147483648
      %v1010 = vxor.u32 %v951, 2147483648
      %v1011 = vxor.u32 %v954, 2147483648
      %v1012 = vxor.u32 %v957, 2147483648
      %v1013 = vxor.u32 %v960, 2147483648
      %v1014 = vxor.u32 %v963, 2147483648
      %v1015 = vxor.u32 %v966, 2147483648
      %v1016 = vxor.u32 %v969, 2147483648
      %v1017 = vxor.u32 %v972, 2147483648
      %v1018 = vxor.u32 %v975, 2147483648
      %v1019 = vxor.u32 %v978, 2147483648
      %v1020 = vxor.u32 %v981, 2147483648
      %v1021 = vxor.u32 %v984, 2147483648
      %v1022 = vxor.u32 %v987, 2147483648
      %v1023 = vxor.u32 %v990, 2147483648
      %v1024 = vmul.f32 %v992, 1.442695
      %v1025 = vpow.pop %v1024
      %v1026 = vmul.f32 %v993, 1.442695
      %v1027 = vpow.pop %v1026
      %v1028 = vmul.f32 %v994, 1.442695
      %v1029 = vpow.pop %v1028
      %v1030 = vmul.f32 %v995, 1.442695
      %v1031 = vpow.pop %v1030
      %v1032 = vmul.f32 %v996, 1.442695
      %v1033 = vpow.pop %v1032
      %v1034 = vmul.f32 %v997, 1.442695
      %v1035 = vpow.pop %v1034
      %v1036 = vmul.f32 %v998, 1.442695
      %v1037 = vpow.pop %v1036
      %v1038 = vmul.f32 %v999, 1.442695
      %v1039 = vpow.pop %v1038
      %v1040 = vmul.f32 %v1000, 1.442695
      %v1041 = vpow.pop %v1040
      %v1042 = vmul.f32 %v1001, 1.442695
      %v1043 = vpow.pop %v1042
      %v1044 = vmul.f32 %v1002, 1.442695
      %v1045 = vpow.pop %v1044
      %v1046 = vmul.f32 %v1003, 1.442695
      %v1047 = vpow.pop %v1046
      %v1048 = vmul.f32 %v1004, 1.442695
      %v1049 = vpow.pop %v1048
      %v1050 = vmul.f32 %v1005, 1.442695
      %v1051 = vpow.pop %v1050
      %v1052 = vmul.f32 %v1006, 1.442695
      %v1053 = vpow.pop %v1052
      %v1054 = vmul.f32 %v1007, 1.442695
      %v1055 = vpow.pop %v1054
      %v1056 = vmul.f32 %v1008, 1.442695
      %v1057 = vpow.pop %v1056
      %v1058 = vmul.f32 %v1009, 1.442695
      %v1059 = vpow.pop %v1058
      %v1060 = vmul.f32 %v1010, 1.442695
      %v1061 = vpow.pop %v1060
      %v1062 = vmul.f32 %v1011, 1.442695
      %v1063 = vpow.pop %v1062
      %v1064 = vmul.f32 %v1012, 1.442695
      %v1065 = vpow.pop %v1064
      %v1066 = vmul.f32 %v1013, 1.442695
      %v1067 = vpow.pop %v1066
      %v1068 = vmul.f32 %v1014, 1.442695
      %v1069 = vpow.pop %v1068
      %v1070 = vmul.f32 %v1015, 1.442695
      %v1071 = vpow.pop %v1070
      %v1072 = vmul.f32 %v1016, 1.442695
      %v1073 = vpow.pop %v1072
      %v1074 = vmul.f32 %v1017, 1.442695
      %v1075 = vpow.pop %v1074
      %v1076 = vmul.f32 %v1018, 1.442695
      %v1077 = vpow.pop %v1076
      %v1078 = vmul.f32 %v1019, 1.442695
      %v1079 = vpow.pop %v1078
      %v1080 = vmul.f32 %v1020, 1.442695
      %v1081 = vpow.pop %v1080
      %v1082 = vmul.f32 %v1021, 1.442695
      %v1083 = vpow.pop %v1082
      %v1084 = vmul.f32 %v1022, 1.442695
      %v1085 = vpow.pop %v1084
      %v1086 = vmul.f32 %v1023, 1.442695
      %v1087 = vpow.pop %v1086
      %v1088 = vadd.f32 %v1025, 1.0
      %v1089 = vadd.f32 %v1027, 1.0
      %v1090 = vadd.f32 %v1029, 1.0
      %v1091 = vadd.f32 %v1031, 1.0
      %v1092 = vadd.f32 %v1033, 1.0
      %v1093 = vadd.f32 %v1035, 1.0
      %v1094 = vadd.f32 %v1037, 1.0
      %v1095 = vadd.f32 %v1039, 1.0
      %v1096 = vadd.f32 %v1041, 1.0
      %v1097 = vadd.f32 %v1043, 1.0
      %v1098 = vadd.f32 %v1045, 1.0
      %v1099 = vadd.f32 %v1047, 1.0
      %v1100 = vadd.f32 %v1049, 1.0
      %v1101 = vadd.f32 %v1051, 1.0
      %v1102 = vadd.f32 %v1053, 1.0
      %v1103 = vadd.f32 %v1055, 1.0
      %v1104 = vadd.f32 %v1057, 1.0
      %v1105 = vadd.f32 %v1059, 1.0
      %v1106 = vadd.f32 %v1061, 1.0
      %v1107 = vadd.f32 %v1063, 1.0
      %v1108 = vadd.f32 %v1065, 1.0
      %v1109 = vadd.f32 %v1067, 1.0
      %v1110 = vadd.f32 %v1069, 1.0
      %v1111 = vadd.f32 %v1071, 1.0
      %v1112 = vadd.f32 %v1073, 1.0
      %v1113 = vadd.f32 %v1075, 1.0
      %v1114 = vadd.f32 %v1077, 1.0
      %v1115 = vadd.f32 %v1079, 1.0
      %v1116 = vadd.f32 %v1081, 1.0
      %v1117 = vadd.f32 %v1083, 1.0
      %v1118 = vadd.f32 %v1085, 1.0
      %v1119 = vadd.f32 %v1087, 1.0
      %v1120 = vrcp.pop %v1088
      %v1121 = vmul.f32 %v1088, %v1120
      %v1122 = vsub.f32 1.0, %v1121
      %v1123 = vmul.f32 %v1120, %v1122
      %v1124 = vadd.f32 %v1120, %v1123
      %vm1125 = vweird.f32 %v1088
      %vm1126 = vweird.f32 %v1120
      %vm1127 = vmor %vm1125, %vm1126
      %v1128 = vsel %vm1127, %v1120, %v1124
      %v1129 = vand.u32 2147483647, %v1088
      %vm1130 = vcmp.eq.f32.partialorder %v1129, 8.507059e+37
      %v1131 = vand.u32 %v1088, 2147483648
      %v1132 = vor.u32 1.1754944e-38, %v1131
      %v1133 = vsel %vm1130, %v1132, %v1128
      %v1134 = vmul.f32 1.0, %v1133
      %v1135 = vrcp.pop %v1089
      %v1136 = vmul.f32 %v1089, %v1135
      %v1137 = vsub.f32 1.0, %v1136
      %v1138 = vmul.f32 %v1135, %v1137
      %v1139 = vadd.f32 %v1135, %v1138
      %vm1140 = vweird.f32 %v1089
      %vm1141 = vweird.f32 %v1135
      %vm1142 = vmor %vm1140, %vm1141
      %v1143 = vsel %vm1142, %v1135, %v1139
      %v1144 = vand.u32 2147483647, %v1089
      %vm1145 = vcmp.eq.f32.partialorder %v1144, 8.507059e+37
      %v1146 = vand.u32 %v1089, 2147483648
      %v1147 = vor.u32 1.1754944e-38, %v1146
      %v1148 = vsel %vm1145, %v1147, %v1143
      %v1149 = vmul.f32 1.0, %v1148
      %v1150 = vrcp.pop %v1090
      %v1151 = vmul.f32 %v1090, %v1150
      %v1152 = vsub.f32 1.0, %v1151
      %v1153 = vmul.f32 %v1150, %v1152
      %v1154 = vadd.f32 %v1150, %v1153
      %vm1155 = vweird.f32 %v1090
      %vm1156 = vweird.f32 %v1150
      %vm1157 = vmor %vm1155, %vm1156
      %v1158 = vsel %vm1157, %v1150, %v1154
      %v1159 = vand.u32 2147483647, %v1090
      %vm1160 = vcmp.eq.f32.partialorder %v1159, 8.507059e+37
      %v1161 = vand.u32 %v1090, 2147483648
      %v1162 = vor.u32 1.1754944e-38, %v1161
      %v1163 = vsel %vm1160, %v1162, %v1158
      %v1164 = vmul.f32 1.0, %v1163
      %v1165 = vrcp.pop %v1091
      %v1166 = vmul.f32 %v1091, %v1165
      %v1167 = vsub.f32 1.0, %v1166
      %v1168 = vmul.f32 %v1165, %v1167
      %v1169 = vadd.f32 %v1165, %v1168
      %vm1170 = vweird.f32 %v1091
      %vm1171 = vweird.f32 %v1165
      %vm1172 = vmor %vm1170, %vm1171
      %v1173 = vsel %vm1172, %v1165, %v1169
      %v1174 = vand.u32 2147483647, %v1091
      %vm1175 = vcmp.eq.f32.partialorder %v1174, 8.507059e+37
      %v1176 = vand.u32 %v1091, 2147483648
      %v1177 = vor.u32 1.1754944e-38, %v1176
      %v1178 = vsel %vm1175, %v1177, %v1173
      %v1179 = vmul.f32 1.0, %v1178
      %v1180 = vrcp.pop %v1092
      %v1181 = vmul.f32 %v1092, %v1180
      %v1182 = vsub.f32 1.0, %v1181
      %v1183 = vmul.f32 %v1180, %v1182
      %v1184 = vadd.f32 %v1180, %v1183
      %vm1185 = vweird.f32 %v1092
      %vm1186 = vweird.f32 %v1180
      %vm1187 = vmor %vm1185, %vm1186
      %v1188 = vsel %vm1187, %v1180, %v1184
      %v1189 = vand.u32 2147483647, %v1092
      %vm1190 = vcmp.eq.f32.partialorder %v1189, 8.507059e+37
      %v1191 = vand.u32 %v1092, 2147483648
      %v1192 = vor.u32 1.1754944e-38, %v1191
      %v1193 = vsel %vm1190, %v1192, %v1188
      %v1194 = vmul.f32 1.0, %v1193
      %v1195 = vrcp.pop %v1093
      %v1196 = vmul.f32 %v1093, %v1195
      %v1197 = vsub.f32 1.0, %v1196
      %v1198 = vmul.f32 %v1195, %v1197
      %v1199 = vadd.f32 %v1195, %v1198
      %vm1200 = vweird.f32 %v1093
      %vm1201 = vweird.f32 %v1195
      %vm1202 = vmor %vm1200, %vm1201
      %v1203 = vsel %vm1202, %v1195, %v1199
      %v1204 = vand.u32 2147483647, %v1093
      %vm1205 = vcmp.eq.f32.partialorder %v1204, 8.507059e+37
      %v1206 = vand.u32 %v1093, 2147483648
      %v1207 = vor.u32 1.1754944e-38, %v1206
      %v1208 = vsel %vm1205, %v1207, %v1203
      %v1209 = vmul.f32 1.0, %v1208
      %v1210 = vrcp.pop %v1094
      %v1211 = vmul.f32 %v1094, %v1210
      %v1212 = vsub.f32 1.0, %v1211
      %v1213 = vmul.f32 %v1210, %v1212
      %v1214 = vadd.f32 %v1210, %v1213
      %vm1215 = vweird.f32 %v1094
      %vm1216 = vweird.f32 %v1210
      %vm1217 = vmor %vm1215, %vm1216
      %v1218 = vsel %vm1217, %v1210, %v1214
      %v1219 = vand.u32 2147483647, %v1094
      %vm1220 = vcmp.eq.f32.partialorder %v1219, 8.507059e+37
      %v1221 = vand.u32 %v1094, 2147483648
      %v1222 = vor.u32 1.1754944e-38, %v1221
      %v1223 = vsel %vm1220, %v1222, %v1218
      %v1224 = vmul.f32 1.0, %v1223
      %v1225 = vrcp.pop %v1095
      %v1226 = vmul.f32 %v1095, %v1225
      %v1227 = vsub.f32 1.0, %v1226
      %v1228 = vmul.f32 %v1225, %v1227
      %v1229 = vadd.f32 %v1225, %v1228
      %vm1230 = vweird.f32 %v1095
      %vm1231 = vweird.f32 %v1225
      %vm1232 = vmor %vm1230, %vm1231
      %v1233 = vsel %vm1232, %v1225, %v1229
      %v1234 = vand.u32 2147483647, %v1095
      %vm1235 = vcmp.eq.f32.partialorder %v1234, 8.507059e+37
      %v1236 = vand.u32 %v1095, 2147483648
      %v1237 = vor.u32 1.1754944e-38, %v1236
      %v1238 = vsel %vm1235, %v1237, %v1233
      %v1239 = vmul.f32 1.0, %v1238
      %v1240 = vrcp.pop %v1096
      %v1241 = vmul.f32 %v1096, %v1240
      %v1242 = vsub.f32 1.0, %v1241
      %v1243 = vmul.f32 %v1240, %v1242
      %v1244 = vadd.f32 %v1240, %v1243
      %vm1245 = vweird.f32 %v1096
      %vm1246 = vweird.f32 %v1240
      %vm1247 = vmor %vm1245, %vm1246
      %v1248 = vsel %vm1247, %v1240, %v1244
      %v1249 = vand.u32 2147483647, %v1096
      %vm1250 = vcmp.eq.f32.partialorder %v1249, 8.507059e+37
      %v1251 = vand.u32 %v1096, 2147483648
      %v1252 = vor.u32 1.1754944e-38, %v1251
      %v1253 = vsel %vm1250, %v1252, %v1248
      %v1254 = vmul.f32 1.0, %v1253
      %v1255 = vrcp.pop %v1097
      %v1256 = vmul.f32 %v1097, %v1255
      %v1257 = vsub.f32 1.0, %v1256
      %v1258 = vmul.f32 %v1255, %v1257
      %v1259 = vadd.f32 %v1255, %v1258
      %vm1260 = vweird.f32 %v1097
      %vm1261 = vweird.f32 %v1255
      %vm1262 = vmor %vm1260, %vm1261
      %v1263 = vsel %vm1262, %v1255, %v1259
      %v1264 = vand.u32 2147483647, %v1097
      %vm1265 = vcmp.eq.f32.partialorder %v1264, 8.507059e+37
      %v1266 = vand.u32 %v1097, 2147483648
      %v1267 = vor.u32 1.1754944e-38, %v1266
      %v1268 = vsel %vm1265, %v1267, %v1263
      %v1269 = vmul.f32 1.0, %v1268
      %v1270 = vrcp.pop %v1098
      %v1271 = vmul.f32 %v1098, %v1270
      %v1272 = vsub.f32 1.0, %v1271
      %v1273 = vmul.f32 %v1270, %v1272
      %v1274 = vadd.f32 %v1270, %v1273
      %vm1275 = vweird.f32 %v1098
      %vm1276 = vweird.f32 %v1270
      %vm1277 = vmor %vm1275, %vm1276
      %v1278 = vsel %vm1277, %v1270, %v1274
      %v1279 = vand.u32 2147483647, %v1098
      %vm1280 = vcmp.eq.f32.partialorder %v1279, 8.507059e+37
      %v1281 = vand.u32 %v1098, 2147483648
      %v1282 = vor.u32 1.1754944e-38, %v1281
      %v1283 = vsel %vm1280, %v1282, %v1278
      %v1284 = vmul.f32 1.0, %v1283
      %v1285 = vrcp.pop %v1099
      %v1286 = vmul.f32 %v1099, %v1285
      %v1287 = vsub.f32 1.0, %v1286
      %v1288 = vmul.f32 %v1285, %v1287
      %v1289 = vadd.f32 %v1285, %v1288
      %vm1290 = vweird.f32 %v1099
      %vm1291 = vweird.f32 %v1285
      %vm1292 = vmor %vm1290, %vm1291
      %v1293 = vsel %vm1292, %v1285, %v1289
      %v1294 = vand.u32 2147483647, %v1099
      %vm1295 = vcmp.eq.f32.partialorder %v1294, 8.507059e+37
      %v1296 = vand.u32 %v1099, 2147483648
      %v1297 = vor.u32 1.1754944e-38, %v1296
      %v1298 = vsel %vm1295, %v1297, %v1293
      %v1299 = vmul.f32 1.0, %v1298
      %v1300 = vrcp.pop %v1100
      %v1301 = vmul.f32 %v1100, %v1300
      %v1302 = vsub.f32 1.0, %v1301
      %v1303 = vmul.f32 %v1300, %v1302
      %v1304 = vadd.f32 %v1300, %v1303
      %vm1305 = vweird.f32 %v1100
      %vm1306 = vweird.f32 %v1300
      %vm1307 = vmor %vm1305, %vm1306
      %v1308 = vsel %vm1307, %v1300, %v1304
      %v1309 = vand.u32 2147483647, %v1100
      %vm1310 = vcmp.eq.f32.partialorder %v1309, 8.507059e+37
      %v1311 = vand.u32 %v1100, 2147483648
      %v1312 = vor.u32 1.1754944e-38, %v1311
      %v1313 = vsel %vm1310, %v1312, %v1308
      %v1314 = vmul.f32 1.0, %v1313
      %v1315 = vrcp.pop %v1101
      %v1316 = vmul.f32 %v1101, %v1315
      %v1317 = vsub.f32 1.0, %v1316
      %v1318 = vmul.f32 %v1315, %v1317
      %v1319 = vadd.f32 %v1315, %v1318
      %vm1320 = vweird.f32 %v1101
      %vm1321 = vweird.f32 %v1315
      %vm1322 = vmor %vm1320, %vm1321
      %v1323 = vsel %vm1322, %v1315, %v1319
      %v1324 = vand.u32 2147483647, %v1101
      %vm1325 = vcmp.eq.f32.partialorder %v1324, 8.507059e+37
      %v1326 = vand.u32 %v1101, 2147483648
      %v1327 = vor.u32 1.1754944e-38, %v1326
      %v1328 = vsel %vm1325, %v1327, %v1323
      %v1329 = vmul.f32 1.0, %v1328
      %v1330 = vrcp.pop %v1102
      %v1331 = vmul.f32 %v1102, %v1330
      %v1332 = vsub.f32 1.0, %v1331
      %v1333 = vmul.f32 %v1330, %v1332
      %v1334 = vadd.f32 %v1330, %v1333
      %vm1335 = vweird.f32 %v1102
      %vm1336 = vweird.f32 %v1330
      %vm1337 = vmor %vm1335, %vm1336
      %v1338 = vsel %vm1337, %v1330, %v1334
      %v1339 = vand.u32 2147483647, %v1102
      %vm1340 = vcmp.eq.f32.partialorder %v1339, 8.507059e+37
      %v1341 = vand.u32 %v1102, 2147483648
      %v1342 = vor.u32 1.1754944e-38, %v1341
      %v1343 = vsel %vm1340, %v1342, %v1338
      %v1344 = vmul.f32 1.0, %v1343
      %v1345 = vrcp.pop %v1103
      %v1346 = vmul.f32 %v1103, %v1345
      %v1347 = vsub.f32 1.0, %v1346
      %v1348 = vmul.f32 %v1345, %v1347
      %v1349 = vadd.f32 %v1345, %v1348
      %vm1350 = vweird.f32 %v1103
      %vm1351 = vweird.f32 %v1345
      %vm1352 = vmor %vm1350, %vm1351
      %v1353 = vsel %vm1352, %v1345, %v1349
      %v1354 = vand.u32 2147483647, %v1103
      %vm1355 = vcmp.eq.f32.partialorder %v1354, 8.507059e+37
      %v1356 = vand.u32 %v1103, 2147483648
      %v1357 = vor.u32 1.1754944e-38, %v1356
      %v1358 = vsel %vm1355, %v1357, %v1353
      %v1359 = vmul.f32 1.0, %v1358
      %v1360 = vrcp.pop %v1104
      %v1361 = vmul.f32 %v1104, %v1360
      %v1362 = vsub.f32 1.0, %v1361
      %v1363 = vmul.f32 %v1360, %v1362
      %v1364 = vadd.f32 %v1360, %v1363
      %vm1365 = vweird.f32 %v1104
      %vm1366 = vweird.f32 %v1360
      %vm1367 = vmor %vm1365, %vm1366
      %v1368 = vsel %vm1367, %v1360, %v1364
      %v1369 = vand.u32 2147483647, %v1104
      %vm1370 = vcmp.eq.f32.partialorder %v1369, 8.507059e+37
      %v1371 = vand.u32 %v1104, 2147483648
      %v1372 = vor.u32 1.1754944e-38, %v1371
      %v1373 = vsel %vm1370, %v1372, %v1368
      %v1374 = vmul.f32 1.0, %v1373
      %v1375 = vrcp.pop %v1105
      %v1376 = vmul.f32 %v1105, %v1375
      %v1377 = vsub.f32 1.0, %v1376
      %v1378 = vmul.f32 %v1375, %v1377
      %v1379 = vadd.f32 %v1375, %v1378
      %vm1380 = vweird.f32 %v1105
      %vm1381 = vweird.f32 %v1375
      %vm1382 = vmor %vm1380, %vm1381
      %v1383 = vsel %vm1382, %v1375, %v1379
      %v1384 = vand.u32 2147483647, %v1105
      %vm1385 = vcmp.eq.f32.partialorder %v1384, 8.507059e+37
      %v1386 = vand.u32 %v1105, 2147483648
      %v1387 = vor.u32 1.1754944e-38, %v1386
      %v1388 = vsel %vm1385, %v1387, %v1383
      %v1389 = vmul.f32 1.0, %v1388
      %v1390 = vrcp.pop %v1106
      %v1391 = vmul.f32 %v1106, %v1390
      %v1392 = vsub.f32 1.0, %v1391
      %v1393 = vmul.f32 %v1390, %v1392
      %v1394 = vadd.f32 %v1390, %v1393
      %vm1395 = vweird.f32 %v1106
      %vm1396 = vweird.f32 %v1390
      %vm1397 = vmor %vm1395, %vm1396
      %v1398 = vsel %vm1397, %v1390, %v1394
      %v1399 = vand.u32 2147483647, %v1106
      %vm1400 = vcmp.eq.f32.partialorder %v1399, 8.507059e+37
      %v1401 = vand.u32 %v1106, 2147483648
      %v1402 = vor.u32 1.1754944e-38, %v1401
      %v1403 = vsel %vm1400, %v1402, %v1398
      %v1404 = vmul.f32 1.0, %v1403
      %v1405 = vrcp.pop %v1107
      %v1406 = vmul.f32 %v1107, %v1405
      %v1407 = vsub.f32 1.0, %v1406
      %v1408 = vmul.f32 %v1405, %v1407
      %v1409 = vadd.f32 %v1405, %v1408
      %vm1410 = vweird.f32 %v1107
      %vm1411 = vweird.f32 %v1405
      %vm1412 = vmor %vm1410, %vm1411
      %v1413 = vsel %vm1412, %v1405, %v1409
      %v1414 = vand.u32 2147483647, %v1107
      %vm1415 = vcmp.eq.f32.partialorder %v1414, 8.507059e+37
      %v1416 = vand.u32 %v1107, 2147483648
      %v1417 = vor.u32 1.1754944e-38, %v1416
      %v1418 = vsel %vm1415, %v1417, %v1413
      %v1419 = vmul.f32 1.0, %v1418
      %v1420 = vrcp.pop %v1108
      %v1421 = vmul.f32 %v1108, %v1420
      %v1422 = vsub.f32 1.0, %v1421
      %v1423 = vmul.f32 %v1420, %v1422
      %v1424 = vadd.f32 %v1420, %v1423
      %vm1425 = vweird.f32 %v1108
      %vm1426 = vweird.f32 %v1420
      %vm1427 = vmor %vm1425, %vm1426
      %v1428 = vsel %vm1427, %v1420, %v1424
      %v1429 = vand.u32 2147483647, %v1108
      %vm1430 = vcmp.eq.f32.partialorder %v1429, 8.507059e+37
      %v1431 = vand.u32 %v1108, 2147483648
      %v1432 = vor.u32 1.1754944e-38, %v1431
      %v1433 = vsel %vm1430, %v1432, %v1428
      %v1434 = vmul.f32 1.0, %v1433
      %v1435 = vrcp.pop %v1109
      %v1436 = vmul.f32 %v1109, %v1435
      %v1437 = vsub.f32 1.0, %v1436
      %v1438 = vmul.f32 %v1435, %v1437
      %v1439 = vadd.f32 %v1435, %v1438
      %vm1440 = vweird.f32 %v1109
      %vm1441 = vweird.f32 %v1435
      %vm1442 = vmor %vm1440, %vm1441
      %v1443 = vsel %vm1442, %v1435, %v1439
      %v1444 = vand.u32 2147483647, %v1109
      %vm1445 = vcmp.eq.f32.partialorder %v1444, 8.507059e+37
      %v1446 = vand.u32 %v1109, 2147483648
      %v1447 = vor.u32 1.1754944e-38, %v1446
      %v1448 = vsel %vm1445, %v1447, %v1443
      %v1449 = vmul.f32 1.0, %v1448
      %v1450 = vrcp.pop %v1110
      %v1451 = vmul.f32 %v1110, %v1450
      %v1452 = vsub.f32 1.0, %v1451
      %v1453 = vmul.f32 %v1450, %v1452
      %v1454 = vadd.f32 %v1450, %v1453
      %vm1455 = vweird.f32 %v1110
      %vm1456 = vweird.f32 %v1450
      %vm1457 = vmor %vm1455, %vm1456
      %v1458 = vsel %vm1457, %v1450, %v1454
      %v1459 = vand.u32 2147483647, %v1110
      %vm1460 = vcmp.eq.f32.partialorder %v1459, 8.507059e+37
      %v1461 = vand.u32 %v1110, 2147483648
      %v1462 = vor.u32 1.1754944e-38, %v1461
      %v1463 = vsel %vm1460, %v1462, %v1458
      %v1464 = vmul.f32 1.0, %v1463
      %v1465 = vrcp.pop %v1111
      %v1466 = vmul.f32 %v1111, %v1465
      %v1467 = vsub.f32 1.0, %v1466
      %v1468 = vmul.f32 %v1465, %v1467
      %v1469 = vadd.f32 %v1465, %v1468
      %vm1470 = vweird.f32 %v1111
      %vm1471 = vweird.f32 %v1465
      %vm1472 = vmor %vm1470, %vm1471
      %v1473 = vsel %vm1472, %v1465, %v1469
      %v1474 = vand.u32 2147483647, %v1111
      %vm1475 = vcmp.eq.f32.partialorder %v1474, 8.507059e+37
      %v1476 = vand.u32 %v1111, 2147483648
      %v1477 = vor.u32 1.1754944e-38, %v1476
      %v1478 = vsel %vm1475, %v1477, %v1473
      %v1479 = vmul.f32 1.0, %v1478
      %v1480 = vrcp.pop %v1112
      %v1481 = vmul.f32 %v1112, %v1480
      %v1482 = vsub.f32 1.0, %v1481
      %v1483 = vmul.f32 %v1480, %v1482
      %v1484 = vadd.f32 %v1480, %v1483
      %vm1485 = vweird.f32 %v1112
      %vm1486 = vweird.f32 %v1480
      %vm1487 = vmor %vm1485, %vm1486
      %v1488 = vsel %vm1487, %v1480, %v1484
      %v1489 = vand.u32 2147483647, %v1112
      %vm1490 = vcmp.eq.f32.partialorder %v1489, 8.507059e+37
      %v1491 = vand.u32 %v1112, 2147483648
      %v1492 = vor.u32 1.1754944e-38, %v1491
      %v1493 = vsel %vm1490, %v1492, %v1488
      %v1494 = vmul.f32 1.0, %v1493
      %v1495 = vrcp.pop %v1113
      %v1496 = vmul.f32 %v1113, %v1495
      %v1497 = vsub.f32 1.0, %v1496
      %v1498 = vmul.f32 %v1495, %v1497
      %v1499 = vadd.f32 %v1495, %v1498
      %vm1500 = vweird.f32 %v1113
      %vm1501 = vweird.f32 %v1495
      %vm1502 = vmor %vm1500, %vm1501
      %v1503 = vsel %vm1502, %v1495, %v1499
      %v1504 = vand.u32 2147483647, %v1113
      %vm1505 = vcmp.eq.f32.partialorder %v1504, 8.507059e+37
      %v1506 = vand.u32 %v1113, 2147483648
      %v1507 = vor.u32 1.1754944e-38, %v1506
      %v1508 = vsel %vm1505, %v1507, %v1503
      %v1509 = vmul.f32 1.0, %v1508
      %v1510 = vrcp.pop %v1114
      %v1511 = vmul.f32 %v1114, %v1510
      %v1512 = vsub.f32 1.0, %v1511
      %v1513 = vmul.f32 %v1510, %v1512
      %v1514 = vadd.f32 %v1510, %v1513
      %vm1515 = vweird.f32 %v1114
      %vm1516 = vweird.f32 %v1510
      %vm1517 = vmor %vm1515, %vm1516
      %v1518 = vsel %vm1517, %v1510, %v1514
      %v1519 = vand.u32 2147483647, %v1114
      %vm1520 = vcmp.eq.f32.partialorder %v1519, 8.507059e+37
      %v1521 = vand.u32 %v1114, 2147483648
      %v1522 = vor.u32 1.1754944e-38, %v1521
      %v1523 = vsel %vm1520, %v1522, %v1518
      %v1524 = vmul.f32 1.0, %v1523
      %v1525 = vrcp.pop %v1115
      %v1526 = vmul.f32 %v1115, %v1525
      %v1527 = vsub.f32 1.0, %v1526
      %v1528 = vmul.f32 %v1525, %v1527
      %v1529 = vadd.f32 %v1525, %v1528
      %vm1530 = vweird.f32 %v1115
      %vm1531 = vweird.f32 %v1525
      %vm1532 = vmor %vm1530, %vm1531
      %v1533 = vsel %vm1532, %v1525, %v1529
      %v1534 = vand.u32 2147483647, %v1115
      %vm1535 = vcmp.eq.f32.partialorder %v1534, 8.507059e+37
      %v1536 = vand.u32 %v1115, 2147483648
      %v1537 = vor.u32 1.1754944e-38, %v1536
      %v1538 = vsel %vm1535, %v1537, %v1533
      %v1539 = vmul.f32 1.0, %v1538
      %v1540 = vrcp.pop %v1116
      %v1541 = vmul.f32 %v1116, %v1540
      %v1542 = vsub.f32 1.0, %v1541
      %v1543 = vmul.f32 %v1540, %v1542
      %v1544 = vadd.f32 %v1540, %v1543
      %vm1545 = vweird.f32 %v1116
      %vm1546 = vweird.f32 %v1540
      %vm1547 = vmor %vm1545, %vm1546
      %v1548 = vsel %vm1547, %v1540, %v1544
      %v1549 = vand.u32 2147483647, %v1116
      %vm1550 = vcmp.eq.f32.partialorder %v1549, 8.507059e+37
      %v1551 = vand.u32 %v1116, 2147483648
      %v1552 = vor.u32 1.1754944e-38, %v1551
      %v1553 = vsel %vm1550, %v1552, %v1548
      %v1554 = vmul.f32 1.0, %v1553
      %v1555 = vrcp.pop %v1117
      %v1556 = vmul.f32 %v1117, %v1555
      %v1557 = vsub.f32 1.0, %v1556
      %v1558 = vmul.f32 %v1555, %v1557
      %v1559 = vadd.f32 %v1555, %v1558
      %vm1560 = vweird.f32 %v1117
      %vm1561 = vweird.f32 %v1555
      %vm1562 = vmor %vm1560, %vm1561
      %v1563 = vsel %vm1562, %v1555, %v1559
      %v1564 = vand.u32 2147483647, %v1117
      %vm1565 = vcmp.eq.f32.partialorder %v1564, 8.507059e+37
      %v1566 = vand.u32 %v1117, 2147483648
      %v1567 = vor.u32 1.1754944e-38, %v1566
      %v1568 = vsel %vm1565, %v1567, %v1563
      %v1569 = vmul.f32 1.0, %v1568
      %v1570 = vrcp.pop %v1118
      %v1571 = vmul.f32 %v1118, %v1570
      %v1572 = vsub.f32 1.0, %v1571
      %v1573 = vmul.f32 %v1570, %v1572
      %v1574 = vadd.f32 %v1570, %v1573
      %vm1575 = vweird.f32 %v1118
      %vm1576 = vweird.f32 %v1570
      %vm1577 = vmor %vm1575, %vm1576
      %v1578 = vsel %vm1577, %v1570, %v1574
      %v1579 = vand.u32 2147483647, %v1118
      %vm1580 = vcmp.eq.f32.partialorder %v1579, 8.507059e+37
      %v1581 = vand.u32 %v1118, 2147483648
      %v1582 = vor.u32 1.1754944e-38, %v1581
      %v1583 = vsel %vm1580, %v1582, %v1578
      %v1584 = vmul.f32 1.0, %v1583
      %v1585 = vrcp.pop %v1119
      %v1586 = vmul.f32 %v1119, %v1585
      %v1587 = vsub.f32 1.0, %v1586
      %v1588 = vmul.f32 %v1585, %v1587
      %v1589 = vadd.f32 %v1585, %v1588
      %vm1590 = vweird.f32 %v1119
      %vm1591 = vweird.f32 %v1585
      %vm1592 = vmor %vm1590, %vm1591
      %v1593 = vsel %vm1592, %v1585, %v1589
      %v1594 = vand.u32 2147483647, %v1119
      %vm1595 = vcmp.eq.f32.partialorder %v1594, 8.507059e+37
      %v1596 = vand.u32 %v1119, 2147483648
      %v1597 = vor.u32 1.1754944e-38, %v1596
      %v1598 = vsel %vm1595, %v1597, %v1593
      %v1599 = vmul.f32 1.0, %v1598
      %v1600 = vadd.f32 %v1134, 1.0
      %v1601 = vadd.f32 %v1149, 1.0
      %v1602 = vadd.f32 %v1164, 1.0
      %v1603 = vadd.f32 %v1179, 1.0
      %v1604 = vadd.f32 %v1194, 1.0
      %v1605 = vadd.f32 %v1209, 1.0
      %v1606 = vadd.f32 %v1224, 1.0
      %v1607 = vadd.f32 %v1239, 1.0
      %v1608 = vadd.f32 %v1254, 1.0
      %v1609 = vadd.f32 %v1269, 1.0
      %v1610 = vadd.f32 %v1284, 1.0
      %v1611 = vadd.f32 %v1299, 1.0
      %v1612 = vadd.f32 %v1314, 1.0
      %v1613 = vadd.f32 %v1329, 1.0
      %v1614 = vadd.f32 %v1344, 1.0
      %v1615 = vadd.f32 %v1359, 1.0
      %v1616 = vadd.f32 %v1374, 1.0
      %v1617 = vadd.f32 %v1389, 1.0
      %v1618 = vadd.f32 %v1404, 1.0
      %v1619 = vadd.f32 %v1419, 1.0
      %v1620 = vadd.f32 %v1434, 1.0
      %v1621 = vadd.f32 %v1449, 1.0
      %v1622 = vadd.f32 %v1464, 1.0
      %v1623 = vadd.f32 %v1479, 1.0
      %v1624 = vadd.f32 %v1494, 1.0
      %v1625 = vadd.f32 %v1509, 1.0
      %v1626 = vadd.f32 %v1524, 1.0
      %v1627 = vadd.f32 %v1539, 1.0
      %v1628 = vadd.f32 %v1554, 1.0
      %v1629 = vadd.f32 %v1569, 1.0
      %v1630 = vadd.f32 %v1584, 1.0
      %v1631 = vadd.f32 %v1599, 1.0
      %v1632 = vld [vmem:[%s323] sm:$0xff]
      %v1633 = vld [vmem:[%s323 + $0x8] sm:$0xff]
      %v1634 = vld [vmem:[%s323 + $0x10] sm:$0xff]
      %v1635 = vld [vmem:[%s323 + $0x18] sm:$0xff]
      %v1636 = vld [vmem:[%s323 + $0x20] sm:$0xff]
      %v1637 = vld [vmem:[%s323 + $0x28] sm:$0xff]
      %v1638 = vld [vmem:[%s323 + $0x30] sm:$0xff]
      %v1639 = vld [vmem:[%s323 + $0x38] sm:$0xff]
      %v1640 = vld [vmem:[%s323 + $0x40] sm:$0xff]
      %v1641 = vld [vmem:[%s323 + $0x48] sm:$0xff]
      %v1642 = vld [vmem:[%s323 + $0x50] sm:$0xff]
      %v1643 = vld [vmem:[%s323 + $0x58] sm:$0xff]
      %v1644 = vld [vmem:[%s323 + $0x60] sm:$0xff]
      %v1645 = vld [vmem:[%s323 + $0x68] sm:$0xff]
      %v1646 = vld [vmem:[%s323 + $0x70] sm:$0xff]
      %v1647 = vld [vmem:[%s323 + $0x78] sm:$0xff]
      %v1648 = vld [vmem:[%s323 + $0x80] sm:$0xff]
      %v1649 = vld [vmem:[%s323 + $0x88] sm:$0xff]
      %v1650 = vld [vmem:[%s323 + $0x90] sm:$0xff]
      %v1651 = vld [vmem:[%s323 + $0x98] sm:$0xff]
      %v1652 = vld [vmem:[%s323 + $0xa0] sm:$0xff]
      %v1653 = vld [vmem:[%s323 + $0xa8] sm:$0xff]
      %v1654 = vld [vmem:[%s323 + $0xb0] sm:$0xff]
      %v1655 = vld [vmem:[%s323 + $0xb8] sm:$0xff]
      %v1656 = vld [vmem:[%s323 + $0xc0] sm:$0xff]
      %v1657 = vld [vmem:[%s323 + $0xc8] sm:$0xff]
      %v1658 = vld [vmem:[%s323 + $0xd0] sm:$0xff]
      %v1659 = vld [vmem:[%s323 + $0xd8] sm:$0xff]
      %v1660 = vld [vmem:[%s323 + $0xe0] sm:$0xff]
      %v1661 = vld [vmem:[%s323 + $0xe8] sm:$0xff]
      %v1662 = vld [vmem:[%s323 + $0xf0] sm:$0xff]
      %v1663 = vld [vmem:[%s323 + $0xf8] sm:$0xff]
      %v1664 = vmul.f32 %v1600, %v1632
      %v1665 = vmul.f32 %v1601, %v1633
      %v1666 = vmul.f32 %v1602, %v1634
      %v1667 = vmul.f32 %v1603, %v1635
      %v1668 = vmul.f32 %v1604, %v1636
      %v1669 = vmul.f32 %v1605, %v1637
      %v1670 = vmul.f32 %v1606, %v1638
      %v1671 = vmul.f32 %v1607, %v1639
      %v1672 = vmul.f32 %v1608, %v1640
      %v1673 = vmul.f32 %v1609, %v1641
      %v1674 = vmul.f32 %v1610, %v1642
      %v1675 = vmul.f32 %v1611, %v1643
      %v1676 = vmul.f32 %v1612, %v1644
      %v1677 = vmul.f32 %v1613, %v1645
      %v1678 = vmul.f32 %v1614, %v1646
      %v1679 = vmul.f32 %v1615, %v1647
      %v1680 = vmul.f32 %v1616, %v1648
      %v1681 = vmul.f32 %v1617, %v1649
      %v1682 = vmul.f32 %v1618, %v1650
      %v1683 = vmul.f32 %v1619, %v1651
      %v1684 = vmul.f32 %v1620, %v1652
      %v1685 = vmul.f32 %v1621, %v1653
      %v1686 = vmul.f32 %v1622, %v1654
      %v1687 = vmul.f32 %v1623, %v1655
      %v1688 = vmul.f32 %v1624, %v1656
      %v1689 = vmul.f32 %v1625, %v1657
      %v1690 = vmul.f32 %v1626, %v1658
      %v1691 = vmul.f32 %v1627, %v1659
      %v1692 = vmul.f32 %v1628, %v1660
      %v1693 = vmul.f32 %v1629, %v1661
      %v1694 = vmul.f32 %v1630, %v1662
      %v1695 = vmul.f32 %v1631, %v1663
      %1696 = vst.msk [vmem:[%s329] sm:$0xff] %vm468, %v1664
      %1697 = vst.msk [vmem:[%s329 + $0x8] sm:$0xff] %vm468, %v1665
      %1698 = vst.msk [vmem:[%s329 + $0x10] sm:$0xff] %vm468, %v1666
      %1699 = vst.msk [vmem:[%s329 + $0x18] sm:$0xff] %vm468, %v1667
      %1700 = vst.msk [vmem:[%s329 + $0x20] sm:$0xff] %vm468, %v1668
      %1701 = vst.msk [vmem:[%s329 + $0x28] sm:$0xff] %vm468, %v1669
      %1702 = vst.msk [vmem:[%s329 + $0x30] sm:$0xff] %vm468, %v1670
      %1703 = vst.msk [vmem:[%s329 + $0x38] sm:$0xff] %vm468, %v1671
      %1704 = vst.msk [vmem:[%s329 + $0x40] sm:$0xff] %vm468, %v1672
      %1705 = vst.msk [vmem:[%s329 + $0x48] sm:$0xff] %vm468, %v1673
      %1706 = vst.msk [vmem:[%s329 + $0x50] sm:$0xff] %vm468, %v1674
      %1707 = vst.msk [vmem:[%s329 + $0x58] sm:$0xff] %vm468, %v1675
      %1708 = vst.msk [vmem:[%s329 + $0x60] sm:$0xff] %vm468, %v1676
      %1709 = vst.msk [vmem:[%s329 + $0x68] sm:$0xff] %vm468, %v1677
      %1710 = vst.msk [vmem:[%s329 + $0x70] sm:$0xff] %vm468, %v1678
      %1711 = vst.msk [vmem:[%s329 + $0x78] sm:$0xff] %vm468, %v1679
      %1712 = vst.msk [vmem:[%s329 + $0x80] sm:$0xff] %vm468, %v1680
      %1713 = vst.msk [vmem:[%s329 + $0x88] sm:$0xff] %vm468, %v1681
      %1714 = vst.msk [vmem:[%s329 + $0x90] sm:$0xff] %vm468, %v1682
      %1715 = vst.msk [vmem:[%s329 + $0x98] sm:$0xff] %vm468, %v1683
      %1716 = vst.msk [vmem:[%s329 + $0xa0] sm:$0xff] %vm468, %v1684
      %1717 = vst.msk [vmem:[%s329 + $0xa8] sm:$0xff] %vm468, %v1685
      %1718 = vst.msk [vmem:[%s329 + $0xb0] sm:$0xff] %vm468, %v1686
      %1719 = vst.msk [vmem:[%s329 + $0xb8] sm:$0xff] %vm468, %v1687
      %1720 = vst.msk [vmem:[%s329 + $0xc0] sm:$0xff] %vm468, %v1688
      %1721 = vst.msk [vmem:[%s329 + $0xc8] sm:$0xff] %vm468, %v1689
      %1722 = vst.msk [vmem:[%s329 + $0xd0] sm:$0xff] %vm468, %v1690
      %1723 = vst.msk [vmem:[%s329 + $0xd8] sm:$0xff] %vm468, %v1691
      %1724 = vst.msk [vmem:[%s329 + $0xe0] sm:$0xff] %vm468, %v1692
      %1725 = vst.msk [vmem:[%s329 + $0xe8] sm:$0xff] %vm468, %v1693
      %1726 = vst.msk [vmem:[%s329 + $0xf0] sm:$0xff] %vm468, %v1694
      %1727 = vst.msk [vmem:[%s329 + $0xf8] sm:$0xff] %vm468, %v1695
      %s1728 = smul.u32 32, %s19
      %p1729 = scmp.lt.s32.totalorder %s1728, 63
      %s1730 = scalar_select %p1729, %s1728, 63
      %s1731 = smul.addr %s1730, 8
      %s1732 = scalar_lea.vmem %s8, %s1731
      // Predicated region
      $region53: #{attention_module_0.29} parent=51 // pred_check
        %p1733 = pneg %p215
      $region54: #{attention_module_0.29} parent=51 // pred_check_branch
        %1735 = sbr.rel (%p1733) target = $region56
      $region55: #{attention_module_0.29} parent=51 // pred_region
        %s1736 = smul.u32 32, %s19
      $region56: #{attention_module_0.29} parent=51 // pred_fallthru
        _
    $region52: #{attention_module_0.29} parent=5 // pred_fallthru
      _
    %p1737 = scmp.le.s32.totalorder 2, %s14
    // Predicated region
    $region57: #{attention_module_0.29} parent=5 // pred_check
      %p1738 = pneg %p1737
    $region58: #{attention_module_0.29} parent=5 // pred_check_branch
      %1740 = sbr.rel (%p1738) target = $region60
    $region59: #{attention_module_0.29} parent=5 // pred_region
      %s1741 = ssub.s32 %s14, 2
      // Predicated region
      $region61: #{attention_module_0.29} parent=59 // pred_check
        %p1742 = pneg %p221
      $region62: #{attention_module_0.29} parent=59 // pred_check_branch
        %1744 = sbr.rel (%p1742) target = $region64
      $region63: #{attention_module_0.29} parent=59 // pred_region
        %s1745 = smul.u32 32, %s20
        %p1746 = scmp.lt.s32.totalorder %s1745, 63
        %s1747 = scalar_select %p1746, %s1745, 63
        %s1748 = smul.addr %s1747, 8
        %s1749 = scalar_lea.vmem %s8, %s1748
      $region64: #{attention_module_0.29} parent=59 // pred_fallthru
        _
    $region60: #{attention_module_0.29} parent=5 // pred_fallthru
      _
  $region6: #{attention_module_0.29} parent=0 // loop_footer
    %s18 = sadd.s32 1, %s14
  $region7: #{attention_module_0.29} parent=0 // loop_footer_branch
    %13 = sbr.rel target = $region3
  $region8: #{attention_module_0.29} parent=0 // loop_exit
    _

</llo_original>
